<compile_context>
chip_gen: v5e
topology: v5e:2x2
jax: 0.10.0
libtpu: 0.0.40
codegen_flags: <defaults>
</compile_context>

<pallas_src>
import functools
import math

import jax
import jax.numpy as jnp
from jax.experimental import pallas as pl
from jax.experimental.pallas import tpu as pltpu

LN_EPS = 1e-6          # ONMT-style LayerNorm eps
NEG_INF = -1e9
VMEM_LIMIT = 32 * 1024 * 1024   # safe on v5e/v6e/v7x; > v5e's 16 MiB default


def _pick_tile(L, target=256):
    """Largest row tile <= target that divides L and is a multiple of 8."""
    if L <= target:
        return L
    for t in range(min(target, L), 7, -1):
        if L % t == 0 and t % 8 == 0:
            return t
    return L


# -----------------------------------------------------------------------------
# In-kernel helpers
# -----------------------------------------------------------------------------
def _ln(x, g_ref, b_ref):
    mu = jnp.mean(x, axis=-1, keepdims=True)
    var = jnp.mean(jnp.square(x - mu), axis=-1, keepdims=True)
    return (x - mu) * jax.lax.rsqrt(var + LN_EPS) * g_ref[...] + b_ref[...]


def _attend(xb, kv, addmask, w, H, dk, dv, scale, want_attn):
    """Multi-head attention on VMEM tiles.

    xb: (Lq, D) bf16 (already LayerNormed query source)
    kv: (Lk, D) f32 key/value source
    addmask: additive mask, (Lq, Lk) or (1, Lk)
    w: (wq_ref, bq_ref, wkv_ref, bkv_ref, wo_ref, bo_ref); wkv = [wk | wv] fused
    returns (out (Lq, D) f32, head-mean attn (Lq, Lk) f32 or None)
    """
    wq, bq, wkv, bkv, wo, bo = w
    kvb = kv.astype(jnp.bfloat16)
    # Fused projections: one Q matmul, one K|V matmul (lane-dense outputs).
    q_all = jnp.dot(xb, wq[...], preferred_element_type=jnp.float32) + bq[...]
    kv_all = jnp.dot(kvb, wkv[...], preferred_element_type=jnp.float32) + bkv[...]

    ctx = []
    attn_sum = None
    # TODO(synk): replace static head loop with a head-batched 3-D dot_general
    # on v6e/v7x (256-deep MXU) once dk is large enough to matter.
    for h in range(H):
        qh = q_all[:, h * dk:(h + 1) * dk].astype(jnp.bfloat16)
        kh = kv_all[:, h * dk:(h + 1) * dk].astype(jnp.bfloat16)
        vh = kv_all[:, H * dk + h * dv:H * dk + (h + 1) * dv].astype(jnp.bfloat16)
        s = jax.lax.dot_general(qh, kh, (((1,), (1,)), ((), ())),
                                preferred_element_type=jnp.float32) * scale + addmask
        smax = jnp.max(s, axis=-1, keepdims=True)
        e = jnp.exp(s - smax)
        denom = jnp.sum(e, axis=-1, keepdims=True)
        if want_attn:
            p = e / denom                                  # exact for returned probs
            attn_sum = p if attn_sum is None else attn_sum + p
        else:
            p = e * pl.reciprocal(denom, approx=True)      # EUP slot
        ctx.append(jnp.dot(p.astype(jnp.bfloat16), vh,
                           preferred_element_type=jnp.float32).astype(jnp.bfloat16))
    ctx_all = jnp.concatenate(ctx, axis=-1)                # (Lq, H*dv) bf16
    out = jnp.dot(ctx_all, wo[...], preferred_element_type=jnp.float32) + bo[...]
    attn_mean = None if attn_sum is None else attn_sum * (1.0 / H)
    return out, attn_mean


# -----------------------------------------------------------------------------
# Kernel 1: self-attention block  (out = x + Wo(MHA(LN1(x), LN1(x))))
# -----------------------------------------------------------------------------
def _self_attn_kernel(x_ref, m_ref, g_ref, b_ref, wq_ref, bq_ref, wkv_ref,
                      bkv_ref, wo_ref, bo_ref, o_ref, *, H, dk, dv, scale):
    x = x_ref[0]                                           # (Lt, D) f32
    Lq = x.shape[0]
    xn = _ln(x, g_ref, b_ref)
    # causal mask built in-kernel (VPU iota), only the (1,Lt) pad mask is DMA'd
    row = jax.lax.broadcasted_iota(jnp.int32, (Lq, Lq), 0)
    col = jax.lax.broadcasted_iota(jnp.int32, (Lq, Lq), 1)
    addmask = jnp.where(col > row, NEG_INF, 0.0).astype(jnp.float32) + m_ref[0]
    out, _ = _attend(xn.astype(jnp.bfloat16), xn, addmask,
                     (wq_ref, bq_ref, wkv_ref, bkv_ref, wo_ref, bo_ref),
                     H, dk, dv, scale, False)
    o_ref[0] = out + x


def self_attn_block(attn_p, ln_g, ln_b, cfg, x, pad_addmask):
    """x: (B,Lt,D)  pad_addmask: (B,1,Lt) additive (0 / NEG_INF)."""
    B, Lt, D = x.shape
    H, dk, dv = cfg["heads"], cfg["d_k"], cfg["d_v"]
    Hdk, Hdv = H * dk, H * dv
    kernel = functools.partial(_self_attn_kernel, H=H, dk=dk, dv=dv,
                               scale=1.0 / math.sqrt(dk))

    def fixed(shape):
        return pl.BlockSpec(shape, lambda b: tuple(0 for _ in shape))

    # TODO(synk): flash-style K-tiled online softmax for Lt in the thousands.
    return pl.pallas_call(
        kernel,
        out_shape=jax.ShapeDtypeStruct((B, Lt, D), jnp.float32),
        grid=(B,),
        in_specs=[
            pl.BlockSpec((1, Lt, D), lambda b: (b, 0, 0)),   # x (q == kv == residual)
            pl.BlockSpec((1, 1, Lt), lambda b: (b, 0, 0)),   # pad additive mask
            fixed((1, D)), fixed((1, D)),
            fixed((D, Hdk)), fixed((1, Hdk)),
            fixed((D, Hdk + Hdv)), fixed((1, Hdk + Hdv)),
            fixed((Hdv, D)), fixed((1, D)),
        ],
        out_specs=pl.BlockSpec((1, Lt, D), lambda b: (b, 0, 0)),
        compiler_params=pltpu.CompilerParams(
            dimension_semantics=("parallel",),
            vmem_limit_bytes=VMEM_LIMIT),
    )(x, pad_addmask, ln_g, ln_b, attn_p["wq"], attn_p["bq"],
      attn_p["wkv"], attn_p["bkv"], attn_p["wo"], attn_p["bo"])


# -----------------------------------------------------------------------------
# Kernel 2: fused cross-attn + gnn-attn block
#   out = query + CtxAttn(LN2(query), memory) + GnnAttn(LN2(query), gnn)
# -----------------------------------------------------------------------------
def _cross_gnn_kernel(*refs, H, dk, dv, scale, use_seq, use_gnn, ret_attn):
    it = iter(refs)
    q_ref = next(it)
    mem_ref = next(it) if use_seq else None
    gnn_ref = next(it) if use_gnn else None
    mm_ref = next(it) if use_seq else None
    gm_ref = next(it) if use_gnn else None
    g_ref = next(it)
    b_ref = next(it)
    cw = [next(it) for _ in range(6)] if use_seq else None
    gw = [next(it) for _ in range(6)] if use_gnn else None
    o_ref = next(it)
    a_ref = next(it) if ret_attn else None

    q = q_ref[0]                                           # (tq, D) f32
    xn = _ln(q, g_ref, b_ref)                              # LN2 computed once
    xb = xn.astype(jnp.bfloat16)

    acc = q                                                # residual
    if use_seq:
        out_c, attn = _attend(xb, mem_ref[0], mm_ref[0], cw, H, dk, dv, scale, ret_attn)
        acc = acc + out_c
        if ret_attn:
            a_ref[0] = attn
    if use_gnn:
        out_g, _ = _attend(xb, gnn_ref[0], gm_ref[0], gw, H, dk, dv, scale, False)
        acc = acc + out_g
    o_ref[0] = acc


def cross_gnn_block(layer, cfg, query, memory_bank, mem_addmask, gnn, gnn_addmask,
                    *, use_seq, use_gnn, return_attn=False):
    B, Lt, D = query.shape
    H, dk, dv = cfg["heads"], cfg["d_k"], cfg["d_v"]
    Hdk, Hdv = H * dk, H * dv
    tq = _pick_tile(Lt)
    nq = Lt // tq
    return_attn = return_attn and use_seq
    kernel = functools.partial(_cross_gnn_kernel, H=H, dk=dk, dv=dv,
                               scale=1.0 / math.sqrt(dk), use_seq=use_seq,
                               use_gnn=use_gnn, ret_attn=return_attn)

    def fixed(shape):
        return pl.BlockSpec(shape, lambda b, q: tuple(0 for _ in shape))

    def qtile(last):
        return pl.BlockSpec((1, tq, last), lambda b, q: (b, q, 0))

    def full_kv(L):
        return pl.BlockSpec((1, L, D), lambda b, q: (b, 0, 0))

    def mask_spec(L):
        return pl.BlockSpec((1, 1, L), lambda b, q: (b, 0, 0))

    attn_w = lambda p: [p["wq"], p["bq"], p["wkv"], p["bkv"], p["wo"], p["bo"]]
    attn_specs = [fixed((D, Hdk)), fixed((1, Hdk)),
                  fixed((D, Hdk + Hdv)), fixed((1, Hdk + Hdv)),
                  fixed((Hdv, D)), fixed((1, D))]

    in_specs = [qtile(D)]
    args = [query]
    if use_seq:
        Ls = memory_bank.shape[1]
        in_specs.append(full_kv(Ls)); args.append(memory_bank)
    if use_gnn:
        Ln = gnn.shape[1]
        in_specs.append(full_kv(Ln)); args.append(gnn)
    if use_seq:
        in_specs.append(mask_spec(Ls)); args.append(mem_addmask)
    if use_gnn:
        in_specs.append(mask_spec(Ln)); args.append(gnn_addmask)
    in_specs += [fixed((1, D)), fixed((1, D))]
    args += [layer["ln2_g"], layer["ln2_b"]]
    if use_seq:
        in_specs += attn_specs
        args += attn_w(layer["ctx_attn"])
    if use_gnn:
        in_specs += attn_specs
        args += attn_w(layer["gnn_attn"])

    if return_attn:
        out_shape = (jax.ShapeDtypeStruct((B, Lt, D), jnp.float32),
                     jax.ShapeDtypeStruct((B, Lt, Ls), jnp.float32))
        out_specs = (qtile(D), qtile(Ls))
    else:
        out_shape = jax.ShapeDtypeStruct((B, Lt, D), jnp.float32)
        out_specs = qtile(D)

    return pl.pallas_call(
        kernel,
        out_shape=out_shape,
        grid=(B, nq),
        in_specs=in_specs,
        out_specs=out_specs,
        compiler_params=pltpu.CompilerParams(
            dimension_semantics=("parallel", "parallel"),
            vmem_limit_bytes=VMEM_LIMIT),
    )(*args)


# -----------------------------------------------------------------------------
# Kernel 3: LN3 + FFN + residual (+ optional fused final LayerNorm)
# -----------------------------------------------------------------------------
def _ffn_kernel(x_ref, g3_ref, b3_ref, w1_ref, b1_ref, w2_ref, b2_ref, *rest,
                final_ln):
    if final_ln:
        gf_ref, bf_ref, o_ref = rest
    else:
        (o_ref,) = rest
    x = x_ref[0]                                           # (tl, D) f32
    xn = _ln(x, g3_ref, b3_ref)
    h = jnp.dot(xn.astype(jnp.bfloat16), w1_ref[...],
                preferred_element_type=jnp.float32) + b1_ref[...]
    h = jnp.maximum(h, 0.0)
    y = jnp.dot(h.astype(jnp.bfloat16), w2_ref[...],
                preferred_element_type=jnp.float32) + b2_ref[...] + x
    if final_ln:
        y = _ln(y, gf_ref, bf_ref)
    o_ref[0] = y


def ffn_block(layer, x, *, final_ln_params=None):
    B, L, D = x.shape
    dff = layer["w1"].shape[1]
    tl = _pick_tile(L)
    nl = L // tl
    kernel = functools.partial(_ffn_kernel, final_ln=final_ln_params is not None)

    def fixed(shape):
        return pl.BlockSpec(shape, lambda b, i: tuple(0 for _ in shape))

    in_specs = [pl.BlockSpec((1, tl, D), lambda b, i: (b, i, 0)),
                fixed((1, D)), fixed((1, D)),
                fixed((D, dff)), fixed((1, dff)),
                fixed((dff, D)), fixed((1, D))]
    args = [x, layer["ln3_g"], layer["ln3_b"], layer["w1"], layer["b1"],
            layer["w2"], layer["b2"]]
    if final_ln_params is not None:
        in_specs += [fixed((1, D)), fixed((1, D))]
        args += list(final_ln_params)

    return pl.pallas_call(
        kernel,
        out_shape=jax.ShapeDtypeStruct((B, L, D), jnp.float32),
        grid=(B, nl),
        in_specs=in_specs,
        out_specs=pl.BlockSpec((1, tl, D), lambda b, i: (b, i, 0)),
        compiler_params=pltpu.CompilerParams(
            dimension_semantics=("parallel", "parallel"),
            vmem_limit_bytes=VMEM_LIMIT),
    )(*args)


# -----------------------------------------------------------------------------
# Parameter init (deterministic, synthetic). K|V weights stored pre-fused.
# Static config (heads/d_k/d_v) lives OUTSIDE the params pytree.
# -----------------------------------------------------------------------------
def _init_mha(key, d_model, heads, d_k, d_v):
    ks = jax.random.split(key, 4)
    s = 0.02

    def w(k, shape):
        return (s * jax.random.normal(k, shape, jnp.float32)).astype(jnp.bfloat16)

    wk = w(ks[1], (d_model, heads * d_k))
    wv = w(ks[2], (d_model, heads * d_v))
    return {
        "wq": w(ks[0], (d_model, heads * d_k)),
        "bq": jnp.zeros((1, heads * d_k), jnp.float32),
        "wkv": jnp.concatenate([wk, wv], axis=1),        # fused [K | V]
        "bkv": jnp.zeros((1, heads * (d_k + d_v)), jnp.float32),
        "wo": w(ks[3], (heads * d_v, d_model)),
        "bo": jnp.zeros((1, d_model), jnp.float32),
    }


def init_decoder_params(key, nlayers, d_model, heads, d_k, d_v, d_ff):
    layers = []
    keys = jax.random.split(key, nlayers + 1)
    s = 0.02
    for l in range(nlayers):
        ks = jax.random.split(keys[l], 5)
        layers.append({
            "self_attn": _init_mha(ks[0], d_model, heads, d_k, d_v),
            "ctx_attn": _init_mha(ks[1], d_model, heads, d_k, d_v),
            "gnn_attn": _init_mha(ks[2], d_model, heads, d_k, d_v),
            "ln1_g": jnp.ones((1, d_model), jnp.float32), "ln1_b": jnp.zeros((1, d_model), jnp.float32),
            "ln2_g": jnp.ones((1, d_model), jnp.float32), "ln2_b": jnp.zeros((1, d_model), jnp.float32),
            "ln3_g": jnp.ones((1, d_model), jnp.float32), "ln3_b": jnp.zeros((1, d_model), jnp.float32),
            "w1": (s * jax.random.normal(ks[3], (d_model, d_ff), jnp.float32)).astype(jnp.bfloat16),
            "b1": jnp.zeros((1, d_ff), jnp.float32),
            "w2": (s * jax.random.normal(ks[4], (d_ff, d_model), jnp.float32)).astype(jnp.bfloat16),
            "b2": jnp.zeros((1, d_model), jnp.float32),
        })
    return {
        "layers": layers,
        "lnf_g": jnp.ones((1, d_model), jnp.float32),
        "lnf_b": jnp.zeros((1, d_model), jnp.float32),
    }


# -----------------------------------------------------------------------------
# Decoder.forward
# -----------------------------------------------------------------------------
def decoder_forward(params, memory_bank, memory_len, tgt_pad_mask, tgt_emb,
                    gnn, lengths_node, template_out=None, *,
                    cfg, use_seq=True, use_gnn=True):
    """memory_bank:(B,Ls,D) memory_len:(B,) tgt_pad_mask:(B,Lt) bool(True=pad)
       tgt_emb:(B,Lt,D) gnn:(B,Ln,D) lengths_node:(B,)"""
    B, Lt, _ = tgt_emb.shape
    use_gnn = use_gnn and gnn is not None

    # compact additive masks; the causal part is generated inside the kernel
    tgt_pad_add = jnp.where(tgt_pad_mask, NEG_INF, 0.0).astype(jnp.float32)[:, None, :]
    mem_add = None
    if use_seq:
        Ls = memory_bank.shape[1]
        src_pad = jnp.arange(Ls)[None, :] >= memory_len[:, None]
        mem_add = jnp.where(src_pad, NEG_INF, 0.0).astype(jnp.float32)[:, None, :]
    gnn_add = None
    if use_gnn:
        Ln = gnn.shape[1]
        node_pad = jnp.arange(Ln)[None, :] >= lengths_node[:, None]
        gnn_add = jnp.where(node_pad, NEG_INF, 0.0).astype(jnp.float32)[:, None, :]

    nlayers = len(params["layers"])
    x = tgt_emb
    attn_last = None
    for li, layer in enumerate(params["layers"]):
        last = li == nlayers - 1
        # query = x + SelfAttn(LN1(x))
        query = self_attn_block(layer["self_attn"], layer["ln1_g"], layer["ln1_b"],
                                cfg, x, tgt_pad_add)
        # mid = query + CtxAttn(LN2(query), mem) + GnnAttn(LN2(query), gnn)
        if use_seq or use_gnn:
            if use_seq and last:
                acc, attn_last = cross_gnn_block(
                    layer, cfg, query, memory_bank, mem_add, gnn, gnn_add,
                    use_seq=use_seq, use_gnn=use_gnn, return_attn=True)
            else:
                acc = cross_gnn_block(
                    layer, cfg, query, memory_bank, mem_add, gnn, gnn_add,
                    use_seq=use_seq, use_gnn=use_gnn, return_attn=False)
        else:
            acc = query
        # x = mid + FFN(LN3(mid)); final LayerNorm fused into last layer's FFN
        x = ffn_block(layer, acc,
                      final_ln_params=(params["lnf_g"], params["lnf_b"]) if last else None)

    attns = {"std": attn_last}
    # TODO(synk): split_decoder/copy-attn fusion, coverage_attn, template_out and
    # incremental-decoding (step) caching are not exercised in this forward path.
    return x, attns


# -----------------------------------------------------------------------------
# Demo
# -----------------------------------------------------------------------------
if __name__ == "__main__":
    key = jax.random.PRNGKey(0)
    B, Lt, Ls, Ln = 2, 8, 16, 8
    D, H, dk, dv, dff, nlayers = 32, 4, 8, 8, 64, 2
    cfg = {"heads": H, "d_k": dk, "d_v": dv}   # static Python ints, not jit-traced

    k_par, k_mem, k_tgt, k_gnn = jax.random.split(key, 4)
    params = init_decoder_params(k_par, nlayers, D, H, dk, dv, dff)

    memory_bank = jax.random.normal(k_mem, (B, Ls, D), jnp.float32)
    tgt_emb = jax.random.normal(k_tgt, (B, Lt, D), jnp.float32)
    gnn = jax.random.normal(k_gnn, (B, Ln, D), jnp.float32)
    memory_len = jnp.array([16, 12], jnp.int32)
    lengths_node = jnp.array([8, 5], jnp.int32)
    # True = padding position
    tgt_pad_mask = jnp.arange(Lt)[None, :] >= jnp.array([8, 6], jnp.int32)[:, None]

    fwd = jax.jit(functools.partial(decoder_forward, cfg=cfg,
                                    use_seq=True, use_gnn=True))
    out, attns = fwd(params, memory_bank, memory_len, tgt_pad_mask, tgt_emb,
                     gnn, lengths_node)
    jax.block_until_ready((out, attns))

    assert out.shape == (B, Lt, D)
    assert attns["std"].shape == (B, Lt, Ls)
    assert bool(jnp.all(jnp.isfinite(out)))
    assert bool(jnp.all(jnp.isfinite(attns["std"])))
    print("KERNEL_OK")
</pallas_src>

<mosaic_0001>
module attributes {stable_mosaic.version = 11 : i64} {
  func.func @_self_attn_kernel(%arg0: i32, %arg1: memref<1x8x32xf32, #tpu.memory_space<vmem>>, %arg2: memref<1x1x8xf32, #tpu.memory_space<vmem>>, %arg3: memref<1x32xf32, #tpu.memory_space<vmem>>, %arg4: memref<1x32xf32, #tpu.memory_space<vmem>>, %arg5: memref<32x32xbf16, #tpu.memory_space<vmem>>, %arg6: memref<1x32xf32, #tpu.memory_space<vmem>>, %arg7: memref<32x64xbf16, #tpu.memory_space<vmem>>, %arg8: memref<1x64xf32, #tpu.memory_space<vmem>>, %arg9: memref<32x32xbf16, #tpu.memory_space<vmem>>, %arg10: memref<1x32xf32, #tpu.memory_space<vmem>>, %arg11: memref<1x8x32xf32, #tpu.memory_space<vmem>>) attributes {dimension_semantics = [#tpu.dimension_semantics<parallel>], iteration_bounds = array<i64: 2>, scalar_prefetch = 0 : i64, scratch_operands = 0 : i64, tpu.core_type = #tpu.core_type<tc>, window_params = [{transform_indices = @transform_0, window_bounds = array<i64: 1, 8, 32>}, {transform_indices = @transform_1, window_bounds = array<i64: 1, 1, 8>}, {pipeline_mode = #tpu.pipeline_mode<synchronous>, transform_indices = @transform_2, window_bounds = array<i64: 1, 32>}, {pipeline_mode = #tpu.pipeline_mode<synchronous>, transform_indices = @transform_3, window_bounds = array<i64: 1, 32>}, {pipeline_mode = #tpu.pipeline_mode<synchronous>, transform_indices = @transform_4, window_bounds = array<i64: 32, 32>}, {pipeline_mode = #tpu.pipeline_mode<synchronous>, transform_indices = @transform_5, window_bounds = array<i64: 1, 32>}, {pipeline_mode = #tpu.pipeline_mode<synchronous>, transform_indices = @transform_6, window_bounds = array<i64: 32, 64>}, {pipeline_mode = #tpu.pipeline_mode<synchronous>, transform_indices = @transform_7, window_bounds = array<i64: 1, 64>}, {pipeline_mode = #tpu.pipeline_mode<synchronous>, transform_indices = @transform_8, window_bounds = array<i64: 32, 32>}, {pipeline_mode = #tpu.pipeline_mode<synchronous>, transform_indices = @transform_9, window_bounds = array<i64: 1, 32>}, {transform_indices = @transform_10, window_bounds = array<i64: 1, 8, 32>}]} {
    %c0 = arith.constant 0 : index
    %c0_0 = arith.constant 0 : index
    %c0_1 = arith.constant 0 : index
    %0 = vector.load %arg1[%c0, %c0_0, %c0_1] : memref<1x8x32xf32, #tpu.memory_space<vmem>>, vector<1x8x32xf32>
    %1 = vector.shape_cast %0 : vector<1x8x32xf32> to vector<8x32xf32>
    %cst = arith.constant dense<0.000000e+00> : vector<8xf32>
    %2 = vector.multi_reduction <add>, %1, %cst [1] : vector<8x32xf32> to vector<8xf32>
    %3 = vector.shape_cast %2 : vector<8xf32> to vector<8x1xf32>
    %cst_2 = arith.constant 3.200000e+01 : f32
    %4 = vector.broadcast %cst_2 : f32 to vector<8x1xf32>
    %5 = arith.divf %3, %4 : vector<8x1xf32>
    %6 = vector.broadcast %5 : vector<8x1xf32> to vector<8x32xf32>
    %7 = arith.subf %1, %6 : vector<8x32xf32>
    %8 = arith.mulf %7, %7 : vector<8x32xf32>
    %cst_3 = arith.constant dense<0.000000e+00> : vector<8xf32>
    %9 = vector.multi_reduction <add>, %8, %cst_3 [1] : vector<8x32xf32> to vector<8xf32>
    %10 = vector.shape_cast %9 : vector<8xf32> to vector<8x1xf32>
    %cst_4 = arith.constant 3.200000e+01 : f32
    %11 = vector.broadcast %cst_4 : f32 to vector<8x1xf32>
    %12 = arith.divf %10, %11 : vector<8x1xf32>
    %13 = vector.broadcast %5 : vector<8x1xf32> to vector<8x32xf32>
    %14 = arith.subf %1, %13 : vector<8x32xf32>
    %cst_5 = arith.constant 9.99999997E-7 : f32
    %15 = vector.broadcast %cst_5 : f32 to vector<8x1xf32>
    %16 = arith.addf %12, %15 : vector<8x1xf32>
    %17 = math.rsqrt %16 : vector<8x1xf32>
    %18 = vector.broadcast %17 : vector<8x1xf32> to vector<8x32xf32>
    %19 = arith.mulf %14, %18 : vector<8x32xf32>
    %c0_6 = arith.constant 0 : index
    %c0_7 = arith.constant 0 : index
    %20 = vector.load %arg3[%c0_6, %c0_7] : memref<1x32xf32, #tpu.memory_space<vmem>>, vector<1x32xf32>
    %21 = vector.broadcast %20 : vector<1x32xf32> to vector<8x32xf32>
    %22 = arith.mulf %19, %21 : vector<8x32xf32>
    %c0_8 = arith.constant 0 : index
    %c0_9 = arith.constant 0 : index
    %23 = vector.load %arg4[%c0_8, %c0_9] : memref<1x32xf32, #tpu.memory_space<vmem>>, vector<1x32xf32>
    %24 = vector.broadcast %23 : vector<1x32xf32> to vector<8x32xf32>
    %25 = arith.addf %22, %24 : vector<8x32xf32>
    %26 = tpu.iota {dimensions = array<i32: 0>} : vector<8x8xi32>
    %27 = tpu.iota {dimensions = array<i32: 1>} : vector<8x8xi32>
    %28 = arith.cmpi sgt, %27, %26 : vector<8x8xi32>
    %cst_10 = arith.constant -1.000000e+09 : f32
    %cst_11 = arith.constant 0.000000e+00 : f32
    %29 = vector.broadcast %cst_10 : f32 to vector<8x8xf32>
    %30 = vector.broadcast %cst_11 : f32 to vector<8x8xf32>
    %31 = arith.select %28, %29, %30 : vector<8x8xi1>, vector<8x8xf32>
    %c0_12 = arith.constant 0 : index
    %c0_13 = arith.constant 0 : index
    %c0_14 = arith.constant 0 : index
    %32 = vector.load %arg2[%c0_12, %c0_13, %c0_14] : memref<1x1x8xf32, #tpu.memory_space<vmem>>, vector<1x1x8xf32>
    %33 = vector.shape_cast %32 : vector<1x1x8xf32> to vector<1x8xf32>
    %34 = vector.broadcast %33 : vector<1x8xf32> to vector<8x8xf32>
    %35 = arith.addf %31, %34 : vector<8x8xf32>
    %36 = arith.truncf %25 : vector<8x32xf32> to vector<8x32xbf16>
    %37 = arith.truncf %25 : vector<8x32xf32> to vector<8x32xbf16>
    %c0_15 = arith.constant 0 : index
    %c0_16 = arith.constant 0 : index
    %38 = vector.load %arg5[%c0_15, %c0_16] : memref<32x32xbf16, #tpu.memory_space<vmem>>, vector<32x32xbf16>
    %cst_17 = arith.constant dense<0.000000e+00> : vector<8x32xf32>
    %39 = tpu.matmul %36, %38, %cst_17 {dimension_numbers = #tpu.dot_dimension_numbers<[1], [0], [0], [1], [0, 0, 1, 1], [], []>} : vector<8x32xbf16>, vector<32x32xbf16>, vector<8x32xf32> -> vector<8x32xf32>
    %c0_18 = arith.constant 0 : index
    %c0_19 = arith.constant 0 : index
    %40 = vector.load %arg6[%c0_18, %c0_19] : memref<1x32xf32, #tpu.memory_space<vmem>>, vector<1x32xf32>
    %41 = vector.broadcast %40 : vector<1x32xf32> to vector<8x32xf32>
    %42 = arith.addf %39, %41 : vector<8x32xf32>
    %c0_20 = arith.constant 0 : index
    %c0_21 = arith.constant 0 : index
    %43 = vector.load %arg7[%c0_20, %c0_21] : memref<32x64xbf16, #tpu.memory_space<vmem>>, vector<32x64xbf16>
    %cst_22 = arith.constant dense<0.000000e+00> : vector<8x64xf32>
    %44 = tpu.matmul %37, %43, %cst_22 {dimension_numbers = #tpu.dot_dimension_numbers<[1], [0], [0], [1], [0, 0, 1, 1], [], []>} : vector<8x32xbf16>, vector<32x64xbf16>, vector<8x64xf32> -> vector<8x64xf32>
    %c0_23 = arith.constant 0 : index
    %c0_24 = arith.constant 0 : index
    %45 = vector.load %arg8[%c0_23, %c0_24] : memref<1x64xf32, #tpu.memory_space<vmem>>, vector<1x64xf32>
    %46 = vector.broadcast %45 : vector<1x64xf32> to vector<8x64xf32>
    %47 = arith.addf %44, %46 : vector<8x64xf32>
    %48 = vector.extract_strided_slice %42 {offsets = [0, 0], sizes = [8, 8], strides = [1, 1]} : vector<8x32xf32> to vector<8x8xf32>
    %49 = arith.truncf %48 : vector<8x8xf32> to vector<8x8xbf16>
    %50 = vector.extract_strided_slice %47 {offsets = [0, 0], sizes = [8, 8], strides = [1, 1]} : vector<8x64xf32> to vector<8x8xf32>
    %51 = arith.truncf %50 : vector<8x8xf32> to vector<8x8xbf16>
    %52 = vector.extract_strided_slice %47 {offsets = [0, 32], sizes = [8, 8], strides = [1, 1]} : vector<8x64xf32> to vector<8x8xf32>
    %53 = arith.truncf %52 : vector<8x8xf32> to vector<8x8xbf16>
    %cst_25 = arith.constant dense<0.000000e+00> : vector<8x8xf32>
    %54 = tpu.matmul %49, %51, %cst_25 {dimension_numbers = #tpu.dot_dimension_numbers<[1], [1], [0], [0], [0, 0, 1, 0], [], []>} : vector<8x8xbf16>, vector<8x8xbf16>, vector<8x8xf32> -> vector<8x8xf32>
    %cst_26 = arith.constant 0.353553385 : f32
    %55 = vector.broadcast %cst_26 : f32 to vector<8x8xf32>
    %56 = arith.mulf %54, %55 : vector<8x8xf32>
    %57 = arith.addf %56, %35 : vector<8x8xf32>
    %cst_27 = arith.constant dense<0xFF800000> : vector<8xf32>
    %58 = vector.multi_reduction <maximumf>, %57, %cst_27 [1] : vector<8x8xf32> to vector<8xf32>
    %59 = vector.shape_cast %58 : vector<8xf32> to vector<8x1xf32>
    %60 = vector.broadcast %59 : vector<8x1xf32> to vector<8x8xf32>
    %61 = arith.subf %57, %60 : vector<8x8xf32>
    %62 = math.exp %61 : vector<8x8xf32>
    %cst_28 = arith.constant dense<0.000000e+00> : vector<8xf32>
    %63 = vector.multi_reduction <add>, %62, %cst_28 [1] : vector<8x8xf32> to vector<8xf32>
    %64 = vector.shape_cast %63 : vector<8xf32> to vector<8x1xf32>
    %65 = tpu.reciprocal %64 {approx = true} : vector<8x1xf32> -> vector<8x1xf32>
    %66 = vector.broadcast %65 : vector<8x1xf32> to vector<8x8xf32>
    %67 = arith.mulf %62, %66 : vector<8x8xf32>
    %68 = arith.truncf %67 : vector<8x8xf32> to vector<8x8xbf16>
    %cst_29 = arith.constant dense<0.000000e+00> : vector<8x8xf32>
    %69 = tpu.matmul %68, %53, %cst_29 {dimension_numbers = #tpu.dot_dimension_numbers<[1], [0], [0], [1], [0, 0, 1, 1], [], []>} : vector<8x8xbf16>, vector<8x8xbf16>, vector<8x8xf32> -> vector<8x8xf32>
    %70 = arith.truncf %69 : vector<8x8xf32> to vector<8x8xbf16>
    %71 = vector.extract_strided_slice %42 {offsets = [0, 8], sizes = [8, 8], strides = [1, 1]} : vector<8x32xf32> to vector<8x8xf32>
    %72 = arith.truncf %71 : vector<8x8xf32> to vector<8x8xbf16>
    %73 = vector.extract_strided_slice %47 {offsets = [0, 8], sizes = [8, 8], strides = [1, 1]} : vector<8x64xf32> to vector<8x8xf32>
    %74 = arith.truncf %73 : vector<8x8xf32> to vector<8x8xbf16>
    %75 = vector.extract_strided_slice %47 {offsets = [0, 40], sizes = [8, 8], strides = [1, 1]} : vector<8x64xf32> to vector<8x8xf32>
    %76 = arith.truncf %75 : vector<8x8xf32> to vector<8x8xbf16>
    %cst_30 = arith.constant dense<0.000000e+00> : vector<8x8xf32>
    %77 = tpu.matmul %72, %74, %cst_30 {dimension_numbers = #tpu.dot_dimension_numbers<[1], [1], [0], [0], [0, 0, 1, 0], [], []>} : vector<8x8xbf16>, vector<8x8xbf16>, vector<8x8xf32> -> vector<8x8xf32>
    %cst_31 = arith.constant 0.353553385 : f32
    %78 = vector.broadcast %cst_31 : f32 to vector<8x8xf32>
    %79 = arith.mulf %77, %78 : vector<8x8xf32>
    %80 = arith.addf %79, %35 : vector<8x8xf32>
    %cst_32 = arith.constant dense<0xFF800000> : vector<8xf32>
    %81 = vector.multi_reduction <maximumf>, %80, %cst_32 [1] : vector<8x8xf32> to vector<8xf32>
    %82 = vector.shape_cast %81 : vector<8xf32> to vector<8x1xf32>
    %83 = vector.broadcast %82 : vector<8x1xf32> to vector<8x8xf32>
    %84 = arith.subf %80, %83 : vector<8x8xf32>
    %85 = math.exp %84 : vector<8x8xf32>
    %cst_33 = arith.constant dense<0.000000e+00> : vector<8xf32>
    %86 = vector.multi_reduction <add>, %85, %cst_33 [1] : vector<8x8xf32> to vector<8xf32>
    %87 = vector.shape_cast %86 : vector<8xf32> to vector<8x1xf32>
    %88 = tpu.reciprocal %87 {approx = true} : vector<8x1xf32> -> vector<8x1xf32>
    %89 = vector.broadcast %88 : vector<8x1xf32> to vector<8x8xf32>
    %90 = arith.mulf %85, %89 : vector<8x8xf32>
    %91 = arith.truncf %90 : vector<8x8xf32> to vector<8x8xbf16>
    %cst_34 = arith.constant dense<0.000000e+00> : vector<8x8xf32>
    %92 = tpu.matmul %91, %76, %cst_34 {dimension_numbers = #tpu.dot_dimension_numbers<[1], [0], [0], [1], [0, 0, 1, 1], [], []>} : vector<8x8xbf16>, vector<8x8xbf16>, vector<8x8xf32> -> vector<8x8xf32>
    %93 = arith.truncf %92 : vector<8x8xf32> to vector<8x8xbf16>
    %94 = vector.extract_strided_slice %42 {offsets = [0, 16], sizes = [8, 8], strides = [1, 1]} : vector<8x32xf32> to vector<8x8xf32>
    %95 = arith.truncf %94 : vector<8x8xf32> to vector<8x8xbf16>
    %96 = vector.extract_strided_slice %47 {offsets = [0, 16], sizes = [8, 8], strides = [1, 1]} : vector<8x64xf32> to vector<8x8xf32>
    %97 = arith.truncf %96 : vector<8x8xf32> to vector<8x8xbf16>
    %98 = vector.extract_strided_slice %47 {offsets = [0, 48], sizes = [8, 8], strides = [1, 1]} : vector<8x64xf32> to vector<8x8xf32>
    %99 = arith.truncf %98 : vector<8x8xf32> to vector<8x8xbf16>
    %cst_35 = arith.constant dense<0.000000e+00> : vector<8x8xf32>
    %100 = tpu.matmul %95, %97, %cst_35 {dimension_numbers = #tpu.dot_dimension_numbers<[1], [1], [0], [0], [0, 0, 1, 0], [], []>} : vector<8x8xbf16>, vector<8x8xbf16>, vector<8x8xf32> -> vector<8x8xf32>
    %cst_36 = arith.constant 0.353553385 : f32
    %101 = vector.broadcast %cst_36 : f32 to vector<8x8xf32>
    %102 = arith.mulf %100, %101 : vector<8x8xf32>
    %103 = arith.addf %102, %35 : vector<8x8xf32>
    %cst_37 = arith.constant dense<0xFF800000> : vector<8xf32>
    %104 = vector.multi_reduction <maximumf>, %103, %cst_37 [1] : vector<8x8xf32> to vector<8xf32>
    %105 = vector.shape_cast %104 : vector<8xf32> to vector<8x1xf32>
    %106 = vector.broadcast %105 : vector<8x1xf32> to vector<8x8xf32>
    %107 = arith.subf %103, %106 : vector<8x8xf32>
    %108 = math.exp %107 : vector<8x8xf32>
    %cst_38 = arith.constant dense<0.000000e+00> : vector<8xf32>
    %109 = vector.multi_reduction <add>, %108, %cst_38 [1] : vector<8x8xf32> to vector<8xf32>
    %110 = vector.shape_cast %109 : vector<8xf32> to vector<8x1xf32>
    %111 = tpu.reciprocal %110 {approx = true} : vector<8x1xf32> -> vector<8x1xf32>
    %112 = vector.broadcast %111 : vector<8x1xf32> to vector<8x8xf32>
    %113 = arith.mulf %108, %112 : vector<8x8xf32>
    %114 = arith.truncf %113 : vector<8x8xf32> to vector<8x8xbf16>
    %cst_39 = arith.constant dense<0.000000e+00> : vector<8x8xf32>
    %115 = tpu.matmul %114, %99, %cst_39 {dimension_numbers = #tpu.dot_dimension_numbers<[1], [0], [0], [1], [0, 0, 1, 1], [], []>} : vector<8x8xbf16>, vector<8x8xbf16>, vector<8x8xf32> -> vector<8x8xf32>
    %116 = arith.truncf %115 : vector<8x8xf32> to vector<8x8xbf16>
    %117 = vector.extract_strided_slice %42 {offsets = [0, 24], sizes = [8, 8], strides = [1, 1]} : vector<8x32xf32> to vector<8x8xf32>
    %118 = arith.truncf %117 : vector<8x8xf32> to vector<8x8xbf16>
    %119 = vector.extract_strided_slice %47 {offsets = [0, 24], sizes = [8, 8], strides = [1, 1]} : vector<8x64xf32> to vector<8x8xf32>
    %120 = arith.truncf %119 : vector<8x8xf32> to vector<8x8xbf16>
    %121 = vector.extract_strided_slice %47 {offsets = [0, 56], sizes = [8, 8], strides = [1, 1]} : vector<8x64xf32> to vector<8x8xf32>
    %122 = arith.truncf %121 : vector<8x8xf32> to vector<8x8xbf16>
    %cst_40 = arith.constant dense<0.000000e+00> : vector<8x8xf32>
    %123 = tpu.matmul %118, %120, %cst_40 {dimension_numbers = #tpu.dot_dimension_numbers<[1], [1], [0], [0], [0, 0, 1, 0], [], []>} : vector<8x8xbf16>, vector<8x8xbf16>, vector<8x8xf32> -> vector<8x8xf32>
    %cst_41 = arith.constant 0.353553385 : f32
    %124 = vector.broadcast %cst_41 : f32 to vector<8x8xf32>
    %125 = arith.mulf %123, %124 : vector<8x8xf32>
    %126 = arith.addf %125, %35 : vector<8x8xf32>
    %cst_42 = arith.constant dense<0xFF800000> : vector<8xf32>
    %127 = vector.multi_reduction <maximumf>, %126, %cst_42 [1] : vector<8x8xf32> to vector<8xf32>
    %128 = vector.shape_cast %127 : vector<8xf32> to vector<8x1xf32>
    %129 = vector.broadcast %128 : vector<8x1xf32> to vector<8x8xf32>
    %130 = arith.subf %126, %129 : vector<8x8xf32>
    %131 = math.exp %130 : vector<8x8xf32>
    %cst_43 = arith.constant dense<0.000000e+00> : vector<8xf32>
    %132 = vector.multi_reduction <add>, %131, %cst_43 [1] : vector<8x8xf32> to vector<8xf32>
    %133 = vector.shape_cast %132 : vector<8xf32> to vector<8x1xf32>
    %134 = tpu.reciprocal %133 {approx = true} : vector<8x1xf32> -> vector<8x1xf32>
    %135 = vector.broadcast %134 : vector<8x1xf32> to vector<8x8xf32>
    %136 = arith.mulf %131, %135 : vector<8x8xf32>
    %137 = arith.truncf %136 : vector<8x8xf32> to vector<8x8xbf16>
    %cst_44 = arith.constant dense<0.000000e+00> : vector<8x8xf32>
    %138 = tpu.matmul %137, %122, %cst_44 {dimension_numbers = #tpu.dot_dimension_numbers<[1], [0], [0], [1], [0, 0, 1, 1], [], []>} : vector<8x8xbf16>, vector<8x8xbf16>, vector<8x8xf32> -> vector<8x8xf32>
    %139 = arith.truncf %138 : vector<8x8xf32> to vector<8x8xbf16>
    %140 = tpu.concatenate %70, %93, %116, %139 in 1 : vector<8x8xbf16>, vector<8x8xbf16>, vector<8x8xbf16>, vector<8x8xbf16> -> vector<8x32xbf16>
    %c0_45 = arith.constant 0 : index
    %c0_46 = arith.constant 0 : index
    %141 = vector.load %arg9[%c0_45, %c0_46] : memref<32x32xbf16, #tpu.memory_space<vmem>>, vector<32x32xbf16>
    %cst_47 = arith.constant dense<0.000000e+00> : vector<8x32xf32>
    %142 = tpu.matmul %140, %141, %cst_47 {dimension_numbers = #tpu.dot_dimension_numbers<[1], [0], [0], [1], [0, 0, 1, 1], [], []>} : vector<8x32xbf16>, vector<32x32xbf16>, vector<8x32xf32> -> vector<8x32xf32>
    %c0_48 = arith.constant 0 : index
    %c0_49 = arith.constant 0 : index
    %143 = vector.load %arg10[%c0_48, %c0_49] : memref<1x32xf32, #tpu.memory_space<vmem>>, vector<1x32xf32>
    %144 = vector.broadcast %143 : vector<1x32xf32> to vector<8x32xf32>
    %145 = arith.addf %142, %144 : vector<8x32xf32>
    %146 = arith.addf %145, %1 : vector<8x32xf32>
    %c0_50 = arith.constant 0 : index
    %c0_51 = arith.constant 0 : index
    %c0_52 = arith.constant 0 : index
    %147 = vector.load %arg11[%c0_50, %c0_51, %c0_52] : memref<1x8x32xf32, #tpu.memory_space<vmem>>, vector<1x8x32xf32>
    %148 = vector.shape_cast %147 : vector<1x8x32xf32> to vector<8x32xf32>
    %149 = vector.shape_cast %146 : vector<8x32xf32> to vector<1x8x32xf32>
    tpu.vector_store %arg11[%c0_50, %c0_51, %c0_52], %149 {strides = array<i32>} : memref<1x8x32xf32, #tpu.memory_space<vmem>>, vector<1x8x32xf32>,
    return
  }
  func.func @transform_0(%arg0: i32) -> (i32, i32, i32) {
    %c0_i32 = arith.constant 0 : i32
    %c0_i32_0 = arith.constant 0 : i32
    %c0_i32_1 = arith.constant 0 : i32
    return %arg0, %c0_i32, %c0_i32_0 : i32, i32, i32
  }
  func.func @transform_1(%arg0: i32) -> (i32, i32, i32) {
    %c0_i32 = arith.constant 0 : i32
    %c0_i32_0 = arith.constant 0 : i32
    %c0_i32_1 = arith.constant 0 : i32
    return %arg0, %c0_i32, %c0_i32_0 : i32, i32, i32
  }
  func.func @transform_2(%arg0: i32) -> (i32, i32) {
    %c0_i32 = arith.constant 0 : i32
    %c0_i32_0 = arith.constant 0 : i32
    %c0_i32_1 = arith.constant 0 : i32
    return %c0_i32, %c0_i32_0 : i32, i32
  }
  func.func @transform_3(%arg0: i32) -> (i32, i32) {
    %c0_i32 = arith.constant 0 : i32
    %c0_i32_0 = arith.constant 0 : i32
    %c0_i32_1 = arith.constant 0 : i32
    return %c0_i32, %c0_i32_0 : i32, i32
  }
  func.func @transform_4(%arg0: i32) -> (i32, i32) {
    %c0_i32 = arith.constant 0 : i32
    %c0_i32_0 = arith.constant 0 : i32
    %c0_i32_1 = arith.constant 0 : i32
    return %c0_i32, %c0_i32_0 : i32, i32
  }
  func.func @transform_5(%arg0: i32) -> (i32, i32) {
    %c0_i32 = arith.constant 0 : i32
    %c0_i32_0 = arith.constant 0 : i32
    %c0_i32_1 = arith.constant 0 : i32
    return %c0_i32, %c0_i32_0 : i32, i32
  }
  func.func @transform_6(%arg0: i32) -> (i32, i32) {
    %c0_i32 = arith.constant 0 : i32
    %c0_i32_0 = arith.constant 0 : i32
    %c0_i32_1 = arith.constant 0 : i32
    return %c0_i32, %c0_i32_0 : i32, i32
  }
  func.func @transform_7(%arg0: i32) -> (i32, i32) {
    %c0_i32 = arith.constant 0 : i32
    %c0_i32_0 = arith.constant 0 : i32
    %c0_i32_1 = arith.constant 0 : i32
    return %c0_i32, %c0_i32_0 : i32, i32
  }
  func.func @transform_8(%arg0: i32) -> (i32, i32) {
    %c0_i32 = arith.constant 0 : i32
    %c0_i32_0 = arith.constant 0 : i32
    %c0_i32_1 = arith.constant 0 : i32
    return %c0_i32, %c0_i32_0 : i32, i32
  }
  func.func @transform_9(%arg0: i32) -> (i32, i32) {
    %c0_i32 = arith.constant 0 : i32
    %c0_i32_0 = arith.constant 0 : i32
    %c0_i32_1 = arith.constant 0 : i32
    return %c0_i32, %c0_i32_0 : i32, i32
  }
  func.func @transform_10(%arg0: i32) -> (i32, i32, i32) {
    %c0_i32 = arith.constant 0 : i32
    %c0_i32_0 = arith.constant 0 : i32
    %c0_i32_1 = arith.constant 0 : i32
    return %arg0, %c0_i32, %c0_i32_0 : i32, i32, i32
  }
}

module attributes {stable_mosaic.version = 11 : i64} {
  func.func @_cross_gnn_kernel(%arg0: i32, %arg1: i32, %arg2: memref<1x8x32xf32, #tpu.memory_space<vmem>>, %arg3: memref<1x16x32xf32, #tpu.memory_space<vmem>>, %arg4: memref<1x8x32xf32, #tpu.memory_space<vmem>>, %arg5: memref<1x1x16xf32, #tpu.memory_space<vmem>>, %arg6: memref<1x1x8xf32, #tpu.memory_space<vmem>>, %arg7: memref<1x32xf32, #tpu.memory_space<vmem>>, %arg8: memref<1x32xf32, #tpu.memory_space<vmem>>, %arg9: memref<32x32xbf16, #tpu.memory_space<vmem>>, %arg10: memref<1x32xf32, #tpu.memory_space<vmem>>, %arg11: memref<32x64xbf16, #tpu.memory_space<vmem>>, %arg12: memref<1x64xf32, #tpu.memory_space<vmem>>, %arg13: memref<32x32xbf16, #tpu.memory_space<vmem>>, %arg14: memref<1x32xf32, #tpu.memory_space<vmem>>, %arg15: memref<32x32xbf16, #tpu.memory_space<vmem>>, %arg16: memref<1x32xf32, #tpu.memory_space<vmem>>, %arg17: memref<32x64xbf16, #tpu.memory_space<vmem>>, %arg18: memref<1x64xf32, #tpu.memory_space<vmem>>, %arg19: memref<32x32xbf16, #tpu.memory_space<vmem>>, %arg20: memref<1x32xf32, #tpu.memory_space<vmem>>, %arg21: memref<1x8x32xf32, #tpu.memory_space<vmem>>) attributes {dimension_semantics = [#tpu.dimension_semantics<parallel>, #tpu.dimension_semantics<parallel>], iteration_bounds = array<i64: 2, 1>, scalar_prefetch = 0 : i64, scratch_operands = 0 : i64, tpu.core_type = #tpu.core_type<tc>, window_params = [{transform_indices = @transform_0, window_bounds = array<i64: 1, 8, 32>}, {transform_indices = @transform_1, window_bounds = array<i64: 1, 16, 32>}, {transform_indices = @transform_2, window_bounds = array<i64: 1, 8, 32>}, {transform_indices = @transform_3, window_bounds = array<i64: 1, 1, 16>}, {transform_indices = @transform_4, window_bounds = array<i64: 1, 1, 8>}, {pipeline_mode = #tpu.pipeline_mode<synchronous>, transform_indices = @transform_5, window_bounds = array<i64: 1, 32>}, {pipeline_mode = #tpu.pipeline_mode<synchronous>, transform_indices = @transform_6, window_bounds = array<i64: 1, 32>}, {pipeline_mode = #tpu.pipeline_mode<synchronous>, transform_indices = @transform_7, window_bounds = array<i64: 32, 32>}, {pipeline_mode = #tpu.pipeline_mode<synchronous>, transform_indices = @transform_8, window_bounds = array<i64: 1, 32>}, {pipeline_mode = #tpu.pipeline_mode<synchronous>, transform_indices = @transform_9, window_bounds = array<i64: 32, 64>}, {pipeline_mode = #tpu.pipeline_mode<synchronous>, transform_indices = @transform_10, window_bounds = array<i64: 1, 64>}, {pipeline_mode = #tpu.pipeline_mode<synchronous>, transform_indices = @transform_11, window_bounds = array<i64: 32, 32>}, {pipeline_mode = #tpu.pipeline_mode<synchronous>, transform_indices = @transform_12, window_bounds = array<i64: 1, 32>}, {pipeline_mode = #tpu.pipeline_mode<synchronous>, transform_indices = @transform_13, window_bounds = array<i64: 32, 32>}, {pipeline_mode = #tpu.pipeline_mode<synchronous>, transform_indices = @transform_14, window_bounds = array<i64: 1, 32>}, {pipeline_mode = #tpu.pipeline_mode<synchronous>, transform_indices = @transform_15, window_bounds = array<i64: 32, 64>}, {pipeline_mode = #tpu.pipeline_mode<synchronous>, transform_indices = @transform_16, window_bounds = array<i64: 1, 64>}, {pipeline_mode = #tpu.pipeline_mode<synchronous>, transform_indices = @transform_17, window_bounds = array<i64: 32, 32>}, {pipeline_mode = #tpu.pipeline_mode<synchronous>, transform_indices = @transform_18, window_bounds = array<i64: 1, 32>}, {transform_indices = @transform_19, window_bounds = array<i64: 1, 8, 32>}]} {
    %c0 = arith.constant 0 : index
    %c0_0 = arith.constant 0 : index
    %c0_1 = arith.constant 0 : index
    %0 = vector.load %arg2[%c0, %c0_0, %c0_1] : memref<1x8x32xf32, #tpu.memory_space<vmem>>, vector<1x8x32xf32>
    %1 = vector.shape_cast %0 : vector<1x8x32xf32> to vector<8x32xf32>
    %cst = arith.constant dense<0.000000e+00> : vector<8xf32>
    %2 = vector.multi_reduction <add>, %1, %cst [1] : vector<8x32xf32> to vector<8xf32>
    %3 = vector.shape_cast %2 : vector<8xf32> to vector<8x1xf32>
    %cst_2 = arith.constant 3.200000e+01 : f32
    %4 = vector.broadcast %cst_2 : f32 to vector<8x1xf32>
    %5 = arith.divf %3, %4 : vector<8x1xf32>
    %6 = vector.broadcast %5 : vector<8x1xf32> to vector<8x32xf32>
    %7 = arith.subf %1, %6 : vector<8x32xf32>
    %8 = arith.mulf %7, %7 : vector<8x32xf32>
    %cst_3 = arith.constant dense<0.000000e+00> : vector<8xf32>
    %9 = vector.multi_reduction <add>, %8, %cst_3 [1] : vector<8x32xf32> to vector<8xf32>
    %10 = vector.shape_cast %9 : vector<8xf32> to vector<8x1xf32>
    %cst_4 = arith.constant 3.200000e+01 : f32
    %11 = vector.broadcast %cst_4 : f32 to vector<8x1xf32>
    %12 = arith.divf %10, %11 : vector<8x1xf32>
    %13 = vector.broadcast %5 : vector<8x1xf32> to vector<8x32xf32>
    %14 = arith.subf %1, %13 : vector<8x32xf32>
    %cst_5 = arith.constant 9.99999997E-7 : f32
    %15 = vector.broadcast %cst_5 : f32 to vector<8x1xf32>
    %16 = arith.addf %12, %15 : vector<8x1xf32>
    %17 = math.rsqrt %16 : vector<8x1xf32>
    %18 = vector.broadcast %17 : vector<8x1xf32> to vector<8x32xf32>
    %19 = arith.mulf %14, %18 : vector<8x32xf32>
    %c0_6 = arith.constant 0 : index
    %c0_7 = arith.constant 0 : index
    %20 = vector.load %arg7[%c0_6, %c0_7] : memref<1x32xf32, #tpu.memory_space<vmem>>, vector<1x32xf32>
    %21 = vector.broadcast %20 : vector<1x32xf32> to vector<8x32xf32>
    %22 = arith.mulf %19, %21 : vector<8x32xf32>
    %c0_8 = arith.constant 0 : index
    %c0_9 = arith.constant 0 : index
    %23 = vector.load %arg8[%c0_8, %c0_9] : memref<1x32xf32, #tpu.memory_space<vmem>>, vector<1x32xf32>
    %24 = vector.broadcast %23 : vector<1x32xf32> to vector<8x32xf32>
    %25 = arith.addf %22, %24 : vector<8x32xf32>
    %26 = arith.truncf %25 : vector<8x32xf32> to vector<8x32xbf16>
    %c0_10 = arith.constant 0 : index
    %c0_11 = arith.constant 0 : index
    %c0_12 = arith.constant 0 : index
    %27 = vector.load %arg3[%c0_10, %c0_11, %c0_12] : memref<1x16x32xf32, #tpu.memory_space<vmem>>, vector<1x16x32xf32>
    %28 = vector.shape_cast %27 : vector<1x16x32xf32> to vector<16x32xf32>
    %c0_13 = arith.constant 0 : index
    %c0_14 = arith.constant 0 : index
    %c0_15 = arith.constant 0 : index
    %29 = vector.load %arg5[%c0_13, %c0_14, %c0_15] : memref<1x1x16xf32, #tpu.memory_space<vmem>>, vector<1x1x16xf32>
    %30 = vector.shape_cast %29 : vector<1x1x16xf32> to vector<1x16xf32>
    %31 = arith.truncf %28 : vector<16x32xf32> to vector<16x32xbf16>
    %c0_16 = arith.constant 0 : index
    %c0_17 = arith.constant 0 : index
    %32 = vector.load %arg9[%c0_16, %c0_17] : memref<32x32xbf16, #tpu.memory_space<vmem>>, vector<32x32xbf16>
    %cst_18 = arith.constant dense<0.000000e+00> : vector<8x32xf32>
    %33 = tpu.matmul %26, %32, %cst_18 {dimension_numbers = #tpu.dot_dimension_numbers<[1], [0], [0], [1], [0, 0, 1, 1], [], []>} : vector<8x32xbf16>, vector<32x32xbf16>, vector<8x32xf32> -> vector<8x32xf32>
    %c0_19 = arith.constant 0 : index
    %c0_20 = arith.constant 0 : index
    %34 = vector.load %arg10[%c0_19, %c0_20] : memref<1x32xf32, #tpu.memory_space<vmem>>, vector<1x32xf32>
    %35 = vector.broadcast %34 : vector<1x32xf32> to vector<8x32xf32>
    %36 = arith.addf %33, %35 : vector<8x32xf32>
    %c0_21 = arith.constant 0 : index
    %c0_22 = arith.constant 0 : index
    %37 = vector.load %arg11[%c0_21, %c0_22] : memref<32x64xbf16, #tpu.memory_space<vmem>>, vector<32x64xbf16>
    %cst_23 = arith.constant dense<0.000000e+00> : vector<16x64xf32>
    %38 = tpu.matmul %31, %37, %cst_23 {dimension_numbers = #tpu.dot_dimension_numbers<[1], [0], [0], [1], [0, 0, 1, 1], [], []>} : vector<16x32xbf16>, vector<32x64xbf16>, vector<16x64xf32> -> vector<16x64xf32>
    %c0_24 = arith.constant 0 : index
    %c0_25 = arith.constant 0 : index
    %39 = vector.load %arg12[%c0_24, %c0_25] : memref<1x64xf32, #tpu.memory_space<vmem>>, vector<1x64xf32>
    %40 = vector.broadcast %39 : vector<1x64xf32> to vector<16x64xf32>
    %41 = arith.addf %38, %40 : vector<16x64xf32>
    %42 = vector.extract_strided_slice %36 {offsets = [0, 0], sizes = [8, 8], strides = [1, 1]} : vector<8x32xf32> to vector<8x8xf32>
    %43 = arith.truncf %42 : vector<8x8xf32> to vector<8x8xbf16>
    %44 = vector.extract_strided_slice %41 {offsets = [0, 0], sizes = [16, 8], strides = [1, 1]} : vector<16x64xf32> to vector<16x8xf32>
    %45 = arith.truncf %44 : vector<16x8xf32> to vector<16x8xbf16>
    %46 = vector.extract_strided_slice %41 {offsets = [0, 32], sizes = [16, 8], strides = [1, 1]} : vector<16x64xf32> to vector<16x8xf32>
    %47 = arith.truncf %46 : vector<16x8xf32> to vector<16x8xbf16>
    %cst_26 = arith.constant dense<0.000000e+00> : vector<8x16xf32>
    %48 = tpu.matmul %43, %45, %cst_26 {dimension_numbers = #tpu.dot_dimension_numbers<[1], [1], [0], [0], [0, 0, 1, 0], [], []>} : vector<8x8xbf16>, vector<16x8xbf16>, vector<8x16xf32> -> vector<8x16xf32>
    %cst_27 = arith.constant 0.353553385 : f32
    %49 = vector.broadcast %cst_27 : f32 to vector<8x16xf32>
    %50 = arith.mulf %48, %49 : vector<8x16xf32>
    %51 = vector.broadcast %30 : vector<1x16xf32> to vector<8x16xf32>
    %52 = arith.addf %50, %51 : vector<8x16xf32>
    %cst_28 = arith.constant dense<0xFF800000> : vector<8xf32>
    %53 = vector.multi_reduction <maximumf>, %52, %cst_28 [1] : vector<8x16xf32> to vector<8xf32>
    %54 = vector.shape_cast %53 : vector<8xf32> to vector<8x1xf32>
    %55 = vector.broadcast %54 : vector<8x1xf32> to vector<8x16xf32>
    %56 = arith.subf %52, %55 : vector<8x16xf32>
    %57 = math.exp %56 : vector<8x16xf32>
    %cst_29 = arith.constant dense<0.000000e+00> : vector<8xf32>
    %58 = vector.multi_reduction <add>, %57, %cst_29 [1] : vector<8x16xf32> to vector<8xf32>
    %59 = vector.shape_cast %58 : vector<8xf32> to vector<8x1xf32>
    %60 = tpu.reciprocal %59 {approx = true} : vector<8x1xf32> -> vector<8x1xf32>
    %61 = vector.broadcast %60 : vector<8x1xf32> to vector<8x16xf32>
    %62 = arith.mulf %57, %61 : vector<8x16xf32>
    %63 = arith.truncf %62 : vector<8x16xf32> to vector<8x16xbf16>
    %cst_30 = arith.constant dense<0.000000e+00> : vector<8x8xf32>
    %64 = tpu.matmul %63, %47, %cst_30 {dimension_numbers = #tpu.dot_dimension_numbers<[1], [0], [0], [1], [0, 0, 1, 1], [], []>} : vector<8x16xbf16>, vector<16x8xbf16>, vector<8x8xf32> -> vector<8x8xf32>
    %65 = arith.truncf %64 : vector<8x8xf32> to vector<8x8xbf16>
    %66 = vector.extract_strided_slice %36 {offsets = [0, 8], sizes = [8, 8], strides = [1, 1]} : vector<8x32xf32> to vector<8x8xf32>
    %67 = arith.truncf %66 : vector<8x8xf32> to vector<8x8xbf16>
    %68 = vector.extract_strided_slice %41 {offsets = [0, 8], sizes = [16, 8], strides = [1, 1]} : vector<16x64xf32> to vector<16x8xf32>
    %69 = arith.truncf %68 : vector<16x8xf32> to vector<16x8xbf16>
    %70 = vector.extract_strided_slice %41 {offsets = [0, 40], sizes = [16, 8], strides = [1, 1]} : vector<16x64xf32> to vector<16x8xf32>
    %71 = arith.truncf %70 : vector<16x8xf32> to vector<16x8xbf16>
    %cst_31 = arith.constant dense<0.000000e+00> : vector<8x16xf32>
    %72 = tpu.matmul %67, %69, %cst_31 {dimension_numbers = #tpu.dot_dimension_numbers<[1], [1], [0], [0], [0, 0, 1, 0], [], []>} : vector<8x8xbf16>, vector<16x8xbf16>, vector<8x16xf32> -> vector<8x16xf32>
    %cst_32 = arith.constant 0.353553385 : f32
    %73 = vector.broadcast %cst_32 : f32 to vector<8x16xf32>
    %74 = arith.mulf %72, %73 : vector<8x16xf32>
    %75 = vector.broadcast %30 : vector<1x16xf32> to vector<8x16xf32>
    %76 = arith.addf %74, %75 : vector<8x16xf32>
    %cst_33 = arith.constant dense<0xFF800000> : vector<8xf32>
    %77 = vector.multi_reduction <maximumf>, %76, %cst_33 [1] : vector<8x16xf32> to vector<8xf32>
    %78 = vector.shape_cast %77 : vector<8xf32> to vector<8x1xf32>
    %79 = vector.broadcast %78 : vector<8x1xf32> to vector<8x16xf32>
    %80 = arith.subf %76, %79 : vector<8x16xf32>
    %81 = math.exp %80 : vector<8x16xf32>
    %cst_34 = arith.constant dense<0.000000e+00> : vector<8xf32>
    %82 = vector.multi_reduction <add>, %81, %cst_34 [1] : vector<8x16xf32> to vector<8xf32>
    %83 = vector.shape_cast %82 : vector<8xf32> to vector<8x1xf32>
    %84 = tpu.reciprocal %83 {approx = true} : vector<8x1xf32> -> vector<8x1xf32>
    %85 = vector.broadcast %84 : vector<8x1xf32> to vector<8x16xf32>
    %86 = arith.mulf %81, %85 : vector<8x16xf32>
    %87 = arith.truncf %86 : vector<8x16xf32> to vector<8x16xbf16>
    %cst_35 = arith.constant dense<0.000000e+00> : vector<8x8xf32>
    %88 = tpu.matmul %87, %71, %cst_35 {dimension_numbers = #tpu.dot_dimension_numbers<[1], [0], [0], [1], [0, 0, 1, 1], [], []>} : vector<8x16xbf16>, vector<16x8xbf16>, vector<8x8xf32> -> vector<8x8xf32>
    %89 = arith.truncf %88 : vector<8x8xf32> to vector<8x8xbf16>
    %90 = vector.extract_strided_slice %36 {offsets = [0, 16], sizes = [8, 8], strides = [1, 1]} : vector<8x32xf32> to vector<8x8xf32>
    %91 = arith.truncf %90 : vector<8x8xf32> to vector<8x8xbf16>
    %92 = vector.extract_strided_slice %41 {offsets = [0, 16], sizes = [16, 8], strides = [1, 1]} : vector<16x64xf32> to vector<16x8xf32>
    %93 = arith.truncf %92 : vector<16x8xf32> to vector<16x8xbf16>
    %94 = vector.extract_strided_slice %41 {offsets = [0, 48], sizes = [16, 8], strides = [1, 1]} : vector<16x64xf32> to vector<16x8xf32>
    %95 = arith.truncf %94 : vector<16x8xf32> to vector<16x8xbf16>
    %cst_36 = arith.constant dense<0.000000e+00> : vector<8x16xf32>
    %96 = tpu.matmul %91, %93, %cst_36 {dimension_numbers = #tpu.dot_dimension_numbers<[1], [1], [0], [0], [0, 0, 1, 0], [], []>} : vector<8x8xbf16>, vector<16x8xbf16>, vector<8x16xf32> -> vector<8x16xf32>
    %cst_37 = arith.constant 0.353553385 : f32
    %97 = vector.broadcast %cst_37 : f32 to vector<8x16xf32>
    %98 = arith.mulf %96, %97 : vector<8x16xf32>
    %99 = vector.broadcast %30 : vector<1x16xf32> to vector<8x16xf32>
    %100 = arith.addf %98, %99 : vector<8x16xf32>
    %cst_38 = arith.constant dense<0xFF800000> : vector<8xf32>
    %101 = vector.multi_reduction <maximumf>, %100, %cst_38 [1] : vector<8x16xf32> to vector<8xf32>
    %102 = vector.shape_cast %101 : vector<8xf32> to vector<8x1xf32>
    %103 = vector.broadcast %102 : vector<8x1xf32> to vector<8x16xf32>
    %104 = arith.subf %100, %103 : vector<8x16xf32>
    %105 = math.exp %104 : vector<8x16xf32>
    %cst_39 = arith.constant dense<0.000000e+00> : vector<8xf32>
    %106 = vector.multi_reduction <add>, %105, %cst_39 [1] : vector<8x16xf32> to vector<8xf32>
    %107 = vector.shape_cast %106 : vector<8xf32> to vector<8x1xf32>
    %108 = tpu.reciprocal %107 {approx = true} : vector<8x1xf32> -> vector<8x1xf32>
    %109 = vector.broadcast %108 : vector<8x1xf32> to vector<8x16xf32>
    %110 = arith.mulf %105, %109 : vector<8x16xf32>
    %111 = arith.truncf %110 : vector<8x16xf32> to vector<8x16xbf16>
    %cst_40 = arith.constant dense<0.000000e+00> : vector<8x8xf32>
    %112 = tpu.matmul %111, %95, %cst_40 {dimension_numbers = #tpu.dot_dimension_numbers<[1], [0], [0], [1], [0, 0, 1, 1], [], []>} : vector<8x16xbf16>, vector<16x8xbf16>, vector<8x8xf32> -> vector<8x8xf32>
    %113 = arith.truncf %112 : vector<8x8xf32> to vector<8x8xbf16>
    %114 = vector.extract_strided_slice %36 {offsets = [0, 24], sizes = [8, 8], strides = [1, 1]} : vector<8x32xf32> to vector<8x8xf32>
    %115 = arith.truncf %114 : vector<8x8xf32> to vector<8x8xbf16>
    %116 = vector.extract_strided_slice %41 {offsets = [0, 24], sizes = [16, 8], strides = [1, 1]} : vector<16x64xf32> to vector<16x8xf32>
    %117 = arith.truncf %116 : vector<16x8xf32> to vector<16x8xbf16>
    %118 = vector.extract_strided_slice %41 {offsets = [0, 56], sizes = [16, 8], strides = [1, 1]} : vector<16x64xf32> to vector<16x8xf32>
    %119 = arith.truncf %118 : vector<16x8xf32> to vector<16x8xbf16>
    %cst_41 = arith.constant dense<0.000000e+00> : vector<8x16xf32>
    %120 = tpu.matmul %115, %117, %cst_41 {dimension_numbers = #tpu.dot_dimension_numbers<[1], [1], [0], [0], [0, 0, 1, 0], [], []>} : vector<8x8xbf16>, vector<16x8xbf16>, vector<8x16xf32> -> vector<8x16xf32>
    %cst_42 = arith.constant 0.353553385 : f32
    %121 = vector.broadcast %cst_42 : f32 to vector<8x16xf32>
    %122 = arith.mulf %120, %121 : vector<8x16xf32>
    %123 = vector.broadcast %30 : vector<1x16xf32> to vector<8x16xf32>
    %124 = arith.addf %122, %123 : vector<8x16xf32>
    %cst_43 = arith.constant dense<0xFF800000> : vector<8xf32>
    %125 = vector.multi_reduction <maximumf>, %124, %cst_43 [1] : vector<8x16xf32> to vector<8xf32>
    %126 = vector.shape_cast %125 : vector<8xf32> to vector<8x1xf32>
    %127 = vector.broadcast %126 : vector<8x1xf32> to vector<8x16xf32>
    %128 = arith.subf %124, %127 : vector<8x16xf32>
    %129 = math.exp %128 : vector<8x16xf32>
    %cst_44 = arith.constant dense<0.000000e+00> : vector<8xf32>
    %130 = vector.multi_reduction <add>, %129, %cst_44 [1] : vector<8x16xf32> to vector<8xf32>
    %131 = vector.shape_cast %130 : vector<8xf32> to vector<8x1xf32>
    %132 = tpu.reciprocal %131 {approx = true} : vector<8x1xf32> -> vector<8x1xf32>
    %133 = vector.broadcast %132 : vector<8x1xf32> to vector<8x16xf32>
    %134 = arith.mulf %129, %133 : vector<8x16xf32>
    %135 = arith.truncf %134 : vector<8x16xf32> to vector<8x16xbf16>
    %cst_45 = arith.constant dense<0.000000e+00> : vector<8x8xf32>
    %136 = tpu.matmul %135, %119, %cst_45 {dimension_numbers = #tpu.dot_dimension_numbers<[1], [0], [0], [1], [0, 0, 1, 1], [], []>} : vector<8x16xbf16>, vector<16x8xbf16>, vector<8x8xf32> -> vector<8x8xf32>
    %137 = arith.truncf %136 : vector<8x8xf32> to vector<8x8xbf16>
    %138 = tpu.concatenate %65, %89, %113, %137 in 1 : vector<8x8xbf16>, vector<8x8xbf16>, vector<8x8xbf16>, vector<8x8xbf16> -> vector<8x32xbf16>
    %c0_46 = arith.constant 0 : index
    %c0_47 = arith.constant 0 : index
    %139 = vector.load %arg13[%c0_46, %c0_47] : memref<32x32xbf16, #tpu.memory_space<vmem>>, vector<32x32xbf16>
    %cst_48 = arith.constant dense<0.000000e+00> : vector<8x32xf32>
    %140 = tpu.matmul %138, %139, %cst_48 {dimension_numbers = #tpu.dot_dimension_numbers<[1], [0], [0], [1], [0, 0, 1, 1], [], []>} : vector<8x32xbf16>, vector<32x32xbf16>, vector<8x32xf32> -> vector<8x32xf32>
    %c0_49 = arith.constant 0 : index
    %c0_50 = arith.constant 0 : index
    %141 = vector.load %arg14[%c0_49, %c0_50] : memref<1x32xf32, #tpu.memory_space<vmem>>, vector<1x32xf32>
    %142 = vector.broadcast %141 : vector<1x32xf32> to vector<8x32xf32>
    %143 = arith.addf %140, %142 : vector<8x32xf32>
    %144 = arith.addf %1, %143 : vector<8x32xf32>
    %c0_51 = arith.constant 0 : index
    %c0_52 = arith.constant 0 : index
    %c0_53 = arith.constant 0 : index
    %145 = vector.load %arg4[%c0_51, %c0_52, %c0_53] : memref<1x8x32xf32, #tpu.memory_space<vmem>>, vector<1x8x32xf32>
    %146 = vector.shape_cast %145 : vector<1x8x32xf32> to vector<8x32xf32>
    %c0_54 = arith.constant 0 : index
    %c0_55 = arith.constant 0 : index
    %c0_56 = arith.constant 0 : index
    %147 = vector.load %arg6[%c0_54, %c0_55, %c0_56] : memref<1x1x8xf32, #tpu.memory_space<vmem>>, vector<1x1x8xf32>
    %148 = vector.shape_cast %147 : vector<1x1x8xf32> to vector<1x8xf32>
    %149 = arith.truncf %146 : vector<8x32xf32> to vector<8x32xbf16>
    %c0_57 = arith.constant 0 : index
    %c0_58 = arith.constant 0 : index
    %150 = vector.load %arg15[%c0_57, %c0_58] : memref<32x32xbf16, #tpu.memory_space<vmem>>, vector<32x32xbf16>
    %cst_59 = arith.constant dense<0.000000e+00> : vector<8x32xf32>
    %151 = tpu.matmul %26, %150, %cst_59 {dimension_numbers = #tpu.dot_dimension_numbers<[1], [0], [0], [1], [0, 0, 1, 1], [], []>} : vector<8x32xbf16>, vector<32x32xbf16>, vector<8x32xf32> -> vector<8x32xf32>
    %c0_60 = arith.constant 0 : index
    %c0_61 = arith.constant 0 : index
    %152 = vector.load %arg16[%c0_60, %c0_61] : memref<1x32xf32, #tpu.memory_space<vmem>>, vector<1x32xf32>
    %153 = vector.broadcast %152 : vector<1x32xf32> to vector<8x32xf32>
    %154 = arith.addf %151, %153 : vector<8x32xf32>
    %c0_62 = arith.constant 0 : index
    %c0_63 = arith.constant 0 : index
    %155 = vector.load %arg17[%c0_62, %c0_63] : memref<32x64xbf16, #tpu.memory_space<vmem>>, vector<32x64xbf16>
    %cst_64 = arith.constant dense<0.000000e+00> : vector<8x64xf32>
    %156 = tpu.matmul %149, %155, %cst_64 {dimension_numbers = #tpu.dot_dimension_numbers<[1], [0], [0], [1], [0, 0, 1, 1], [], []>} : vector<8x32xbf16>, vector<32x64xbf16>, vector<8x64xf32> -> vector<8x64xf32>
    %c0_65 = arith.constant 0 : index
    %c0_66 = arith.constant 0 : index
    %157 = vector.load %arg18[%c0_65, %c0_66] : memref<1x64xf32, #tpu.memory_space<vmem>>, vector<1x64xf32>
    %158 = vector.broadcast %157 : vector<1x64xf32> to vector<8x64xf32>
    %159 = arith.addf %156, %158 : vector<8x64xf32>
    %160 = vector.extract_strided_slice %154 {offsets = [0, 0], sizes = [8, 8], strides = [1, 1]} : vector<8x32xf32> to vector<8x8xf32>
    %161 = arith.truncf %160 : vector<8x8xf32> to vector<8x8xbf16>
    %162 = vector.extract_strided_slice %159 {offsets = [0, 0], sizes = [8, 8], strides = [1, 1]} : vector<8x64xf32> to vector<8x8xf32>
    %163 = arith.truncf %162 : vector<8x8xf32> to vector<8x8xbf16>
    %164 = vector.extract_strided_slice %159 {offsets = [0, 32], sizes = [8, 8], strides = [1, 1]} : vector<8x64xf32> to vector<8x8xf32>
    %165 = arith.truncf %164 : vector<8x8xf32> to vector<8x8xbf16>
    %cst_67 = arith.constant dense<0.000000e+00> : vector<8x8xf32>
    %166 = tpu.matmul %161, %163, %cst_67 {dimension_numbers = #tpu.dot_dimension_numbers<[1], [1], [0], [0], [0, 0, 1, 0], [], []>} : vector<8x8xbf16>, vector<8x8xbf16>, vector<8x8xf32> -> vector<8x8xf32>
    %cst_68 = arith.constant 0.353553385 : f32
    %167 = vector.broadcast %cst_68 : f32 to vector<8x8xf32>
    %168 = arith.mulf %166, %167 : vector<8x8xf32>
    %169 = vector.broadcast %148 : vector<1x8xf32> to vector<8x8xf32>
    %170 = arith.addf %168, %169 : vector<8x8xf32>
    %cst_69 = arith.constant dense<0xFF800000> : vector<8xf32>
    %171 = vector.multi_reduction <maximumf>, %170, %cst_69 [1] : vector<8x8xf32> to vector<8xf32>
    %172 = vector.shape_cast %171 : vector<8xf32> to vector<8x1xf32>
    %173 = vector.broadcast %172 : vector<8x1xf32> to vector<8x8xf32>
    %174 = arith.subf %170, %173 : vector<8x8xf32>
    %175 = math.exp %174 : vector<8x8xf32>
    %cst_70 = arith.constant dense<0.000000e+00> : vector<8xf32>
    %176 = vector.multi_reduction <add>, %175, %cst_70 [1] : vector<8x8xf32> to vector<8xf32>
    %177 = vector.shape_cast %176 : vector<8xf32> to vector<8x1xf32>
    %178 = tpu.reciprocal %177 {approx = true} : vector<8x1xf32> -> vector<8x1xf32>
    %179 = vector.broadcast %178 : vector<8x1xf32> to vector<8x8xf32>
    %180 = arith.mulf %175, %179 : vector<8x8xf32>
    %181 = arith.truncf %180 : vector<8x8xf32> to vector<8x8xbf16>
    %cst_71 = arith.constant dense<0.000000e+00> : vector<8x8xf32>
    %182 = tpu.matmul %181, %165, %cst_71 {dimension_numbers = #tpu.dot_dimension_numbers<[1], [0], [0], [1], [0, 0, 1, 1], [], []>} : vector<8x8xbf16>, vector<8x8xbf16>, vector<8x8xf32> -> vector<8x8xf32>
    %183 = arith.truncf %182 : vector<8x8xf32> to vector<8x8xbf16>
    %184 = vector.extract_strided_slice %154 {offsets = [0, 8], sizes = [8, 8], strides = [1, 1]} : vector<8x32xf32> to vector<8x8xf32>
    %185 = arith.truncf %184 : vector<8x8xf32> to vector<8x8xbf16>
    %186 = vector.extract_strided_slice %159 {offsets = [0, 8], sizes = [8, 8], strides = [1, 1]} : vector<8x64xf32> to vector<8x8xf32>
    %187 = arith.truncf %186 : vector<8x8xf32> to vector<8x8xbf16>
    %188 = vector.extract_strided_slice %159 {offsets = [0, 40], sizes = [8, 8], strides = [1, 1]} : vector<8x64xf32> to vector<8x8xf32>
    %189 = arith.truncf %188 : vector<8x8xf32> to vector<8x8xbf16>
    %cst_72 = arith.constant dense<0.000000e+00> : vector<8x8xf32>
    %190 = tpu.matmul %185, %187, %cst_72 {dimension_numbers = #tpu.dot_dimension_numbers<[1], [1], [0], [0], [0, 0, 1, 0], [], []>} : vector<8x8xbf16>, vector<8x8xbf16>, vector<8x8xf32> -> vector<8x8xf32>
    %cst_73 = arith.constant 0.353553385 : f32
    %191 = vector.broadcast %cst_73 : f32 to vector<8x8xf32>
    %192 = arith.mulf %190, %191 : vector<8x8xf32>
    %193 = vector.broadcast %148 : vector<1x8xf32> to vector<8x8xf32>
    %194 = arith.addf %192, %193 : vector<8x8xf32>
    %cst_74 = arith.constant dense<0xFF800000> : vector<8xf32>
    %195 = vector.multi_reduction <maximumf>, %194, %cst_74 [1] : vector<8x8xf32> to vector<8xf32>
    %196 = vector.shape_cast %195 : vector<8xf32> to vector<8x1xf32>
    %197 = vector.broadcast %196 : vector<8x1xf32> to vector<8x8xf32>
    %198 = arith.subf %194, %197 : vector<8x8xf32>
    %199 = math.exp %198 : vector<8x8xf32>
    %cst_75 = arith.constant dense<0.000000e+00> : vector<8xf32>
    %200 = vector.multi_reduction <add>, %199, %cst_75 [1] : vector<8x8xf32> to vector<8xf32>
    %201 = vector.shape_cast %200 : vector<8xf32> to vector<8x1xf32>
    %202 = tpu.reciprocal %201 {approx = true} : vector<8x1xf32> -> vector<8x1xf32>
    %203 = vector.broadcast %202 : vector<8x1xf32> to vector<8x8xf32>
    %204 = arith.mulf %199, %203 : vector<8x8xf32>
    %205 = arith.truncf %204 : vector<8x8xf32> to vector<8x8xbf16>
    %cst_76 = arith.constant dense<0.000000e+00> : vector<8x8xf32>
    %206 = tpu.matmul %205, %189, %cst_76 {dimension_numbers = #tpu.dot_dimension_numbers<[1], [0], [0], [1], [0, 0, 1, 1], [], []>} : vector<8x8xbf16>, vector<8x8xbf16>, vector<8x8xf32> -> vector<8x8xf32>
    %207 = arith.truncf %206 : vector<8x8xf32> to vector<8x8xbf16>
    %208 = vector.extract_strided_slice %154 {offsets = [0, 16], sizes = [8, 8], strides = [1, 1]} : vector<8x32xf32> to vector<8x8xf32>
    %209 = arith.truncf %208 : vector<8x8xf32> to vector<8x8xbf16>
    %210 = vector.extract_strided_slice %159 {offsets = [0, 16], sizes = [8, 8], strides = [1, 1]} : vector<8x64xf32> to vector<8x8xf32>
    %211 = arith.truncf %210 : vector<8x8xf32> to vector<8x8xbf16>
    %212 = vector.extract_strided_slice %159 {offsets = [0, 48], sizes = [8, 8], strides = [1, 1]} : vector<8x64xf32> to vector<8x8xf32>
    %213 = arith.truncf %212 : vector<8x8xf32> to vector<8x8xbf16>
    %cst_77 = arith.constant dense<0.000000e+00> : vector<8x8xf32>
    %214 = tpu.matmul %209, %211, %cst_77 {dimension_numbers = #tpu.dot_dimension_numbers<[1], [1], [0], [0], [0, 0, 1, 0], [], []>} : vector<8x8xbf16>, vector<8x8xbf16>, vector<8x8xf32> -> vector<8x8xf32>
    %cst_78 = arith.constant 0.353553385 : f32
    %215 = vector.broadcast %cst_78 : f32 to vector<8x8xf32>
    %216 = arith.mulf %214, %215 : vector<8x8xf32>
    %217 = vector.broadcast %148 : vector<1x8xf32> to vector<8x8xf32>
    %218 = arith.addf %216, %217 : vector<8x8xf32>
    %cst_79 = arith.constant dense<0xFF800000> : vector<8xf32>
    %219 = vector.multi_reduction <maximumf>, %218, %cst_79 [1] : vector<8x8xf32> to vector<8xf32>
    %220 = vector.shape_cast %219 : vector<8xf32> to vector<8x1xf32>
    %221 = vector.broadcast %220 : vector<8x1xf32> to vector<8x8xf32>
    %222 = arith.subf %218, %221 : vector<8x8xf32>
    %223 = math.exp %222 : vector<8x8xf32>
    %cst_80 = arith.constant dense<0.000000e+00> : vector<8xf32>
    %224 = vector.multi_reduction <add>, %223, %cst_80 [1] : vector<8x8xf32> to vector<8xf32>
    %225 = vector.shape_cast %224 : vector<8xf32> to vector<8x1xf32>
    %226 = tpu.reciprocal %225 {approx = true} : vector<8x1xf32> -> vector<8x1xf32>
    %227 = vector.broadcast %226 : vector<8x1xf32> to vector<8x8xf32>
    %228 = arith.mulf %223, %227 : vector<8x8xf32>
    %229 = arith.truncf %228 : vector<8x8xf32> to vector<8x8xbf16>
    %cst_81 = arith.constant dense<0.000000e+00> : vector<8x8xf32>
    %230 = tpu.matmul %229, %213, %cst_81 {dimension_numbers = #tpu.dot_dimension_numbers<[1], [0], [0], [1], [0, 0, 1, 1], [], []>} : vector<8x8xbf16>, vector<8x8xbf16>, vector<8x8xf32> -> vector<8x8xf32>
    %231 = arith.truncf %230 : vector<8x8xf32> to vector<8x8xbf16>
    %232 = vector.extract_strided_slice %154 {offsets = [0, 24], sizes = [8, 8], strides = [1, 1]} : vector<8x32xf32> to vector<8x8xf32>
    %233 = arith.truncf %232 : vector<8x8xf32> to vector<8x8xbf16>
    %234 = vector.extract_strided_slice %159 {offsets = [0, 24], sizes = [8, 8], strides = [1, 1]} : vector<8x64xf32> to vector<8x8xf32>
    %235 = arith.truncf %234 : vector<8x8xf32> to vector<8x8xbf16>
    %236 = vector.extract_strided_slice %159 {offsets = [0, 56], sizes = [8, 8], strides = [1, 1]} : vector<8x64xf32> to vector<8x8xf32>
    %237 = arith.truncf %236 : vector<8x8xf32> to vector<8x8xbf16>
    %cst_82 = arith.constant dense<0.000000e+00> : vector<8x8xf32>
    %238 = tpu.matmul %233, %235, %cst_82 {dimension_numbers = #tpu.dot_dimension_numbers<[1], [1], [0], [0], [0, 0, 1, 0], [], []>} : vector<8x8xbf16>, vector<8x8xbf16>, vector<8x8xf32> -> vector<8x8xf32>
    %cst_83 = arith.constant 0.353553385 : f32
    %239 = vector.broadcast %cst_83 : f32 to vector<8x8xf32>
    %240 = arith.mulf %238, %239 : vector<8x8xf32>
    %241 = vector.broadcast %148 : vector<1x8xf32> to vector<8x8xf32>
    %242 = arith.addf %240, %241 : vector<8x8xf32>
    %cst_84 = arith.constant dense<0xFF800000> : vector<8xf32>
    %243 = vector.multi_reduction <maximumf>, %242, %cst_84 [1] : vector<8x8xf32> to vector<8xf32>
    %244 = vector.shape_cast %243 : vector<8xf32> to vector<8x1xf32>
    %245 = vector.broadcast %244 : vector<8x1xf32> to vector<8x8xf32>
    %246 = arith.subf %242, %245 : vector<8x8xf32>
    %247 = math.exp %246 : vector<8x8xf32>
    %cst_85 = arith.constant dense<0.000000e+00> : vector<8xf32>
    %248 = vector.multi_reduction <add>, %247, %cst_85 [1] : vector<8x8xf32> to vector<8xf32>
    %249 = vector.shape_cast %248 : vector<8xf32> to vector<8x1xf32>
    %250 = tpu.reciprocal %249 {approx = true} : vector<8x1xf32> -> vector<8x1xf32>
    %251 = vector.broadcast %250 : vector<8x1xf32> to vector<8x8xf32>
    %252 = arith.mulf %247, %251 : vector<8x8xf32>
    %253 = arith.truncf %252 : vector<8x8xf32> to vector<8x8xbf16>
    %cst_86 = arith.constant dense<0.000000e+00> : vector<8x8xf32>
    %254 = tpu.matmul %253, %237, %cst_86 {dimension_numbers = #tpu.dot_dimension_numbers<[1], [0], [0], [1], [0, 0, 1, 1], [], []>} : vector<8x8xbf16>, vector<8x8xbf16>, vector<8x8xf32> -> vector<8x8xf32>
    %255 = arith.truncf %254 : vector<8x8xf32> to vector<8x8xbf16>
    %256 = tpu.concatenate %183, %207, %231, %255 in 1 : vector<8x8xbf16>, vector<8x8xbf16>, vector<8x8xbf16>, vector<8x8xbf16> -> vector<8x32xbf16>
    %c0_87 = arith.constant 0 : index
    %c0_88 = arith.constant 0 : index
    %257 = vector.load %arg19[%c0_87, %c0_88] : memref<32x32xbf16, #tpu.memory_space<vmem>>, vector<32x32xbf16>
    %cst_89 = arith.constant dense<0.000000e+00> : vector<8x32xf32>
    %258 = tpu.matmul %256, %257, %cst_89 {dimension_numbers = #tpu.dot_dimension_numbers<[1], [0], [0], [1], [0, 0, 1, 1], [], []>} : vector<8x32xbf16>, vector<32x32xbf16>, vector<8x32xf32> -> vector<8x32xf32>
    %c0_90 = arith.constant 0 : index
    %c0_91 = arith.constant 0 : index
    %259 = vector.load %arg20[%c0_90, %c0_91] : memref<1x32xf32, #tpu.memory_space<vmem>>, vector<1x32xf32>
    %260 = vector.broadcast %259 : vector<1x32xf32> to vector<8x32xf32>
    %261 = arith.addf %258, %260 : vector<8x32xf32>
    %262 = arith.addf %144, %261 : vector<8x32xf32>
    %c0_92 = arith.constant 0 : index
    %c0_93 = arith.constant 0 : index
    %c0_94 = arith.constant 0 : index
    %263 = vector.load %arg21[%c0_92, %c0_93, %c0_94] : memref<1x8x32xf32, #tpu.memory_space<vmem>>, vector<1x8x32xf32>
    %264 = vector.shape_cast %263 : vector<1x8x32xf32> to vector<8x32xf32>
    %265 = vector.shape_cast %262 : vector<8x32xf32> to vector<1x8x32xf32>
    tpu.vector_store %arg21[%c0_92, %c0_93, %c0_94], %265 {strides = array<i32>} : memref<1x8x32xf32, #tpu.memory_space<vmem>>, vector<1x8x32xf32>,
    return
  }
  func.func @transform_0(%arg0: i32, %arg1: i32) -> (i32, i32, i32) {
    %c0_i32 = arith.constant 0 : i32
    %c0_i32_0 = arith.constant 0 : i32
    return %arg0, %arg1, %c0_i32 : i32, i32, i32
  }
  func.func @transform_1(%arg0: i32, %arg1: i32) -> (i32, i32, i32) {
    %c0_i32 = arith.constant 0 : i32
    %c0_i32_0 = arith.constant 0 : i32
    %c0_i32_1 = arith.constant 0 : i32
    return %arg0, %c0_i32, %c0_i32_0 : i32, i32, i32
  }
  func.func @transform_2(%arg0: i32, %arg1: i32) -> (i32, i32, i32) {
    %c0_i32 = arith.constant 0 : i32
    %c0_i32_0 = arith.constant 0 : i32
    %c0_i32_1 = arith.constant 0 : i32
    return %arg0, %c0_i32, %c0_i32_0 : i32, i32, i32
  }
  func.func @transform_3(%arg0: i32, %arg1: i32) -> (i32, i32, i32) {
    %c0_i32 = arith.constant 0 : i32
    %c0_i32_0 = arith.constant 0 : i32
    %c0_i32_1 = arith.constant 0 : i32
    return %arg0, %c0_i32, %c0_i32_0 : i32, i32, i32
  }
  func.func @transform_4(%arg0: i32, %arg1: i32) -> (i32, i32, i32) {
    %c0_i32 = arith.constant 0 : i32
    %c0_i32_0 = arith.constant 0 : i32
    %c0_i32_1 = arith.constant 0 : i32
    return %arg0, %c0_i32, %c0_i32_0 : i32, i32, i32
  }
  func.func @transform_5(%arg0: i32, %arg1: i32) -> (i32, i32) {
    %c0_i32 = arith.constant 0 : i32
    %c0_i32_0 = arith.constant 0 : i32
    %c0_i32_1 = arith.constant 0 : i32
    return %c0_i32, %c0_i32_0 : i32, i32
  }
  func.func @transform_6(%arg0: i32, %arg1: i32) -> (i32, i32) {
    %c0_i32 = arith.constant 0 : i32
    %c0_i32_0 = arith.constant 0 : i32
    %c0_i32_1 = arith.constant 0 : i32
    return %c0_i32, %c0_i32_0 : i32, i32
  }
  func.func @transform_7(%arg0: i32, %arg1: i32) -> (i32, i32) {
    %c0_i32 = arith.constant 0 : i32
    %c0_i32_0 = arith.constant 0 : i32
    %c0_i32_1 = arith.constant 0 : i32
    return %c0_i32, %c0_i32_0 : i32, i32
  }
  func.func @transform_8(%arg0: i32, %arg1: i32) -> (i32, i32) {
    %c0_i32 = arith.constant 0 : i32
    %c0_i32_0 = arith.constant 0 : i32
    %c0_i32_1 = arith.constant 0 : i32
    return %c0_i32, %c0_i32_0 : i32, i32
  }
  func.func @transform_9(%arg0: i32, %arg1: i32) -> (i32, i32) {
    %c0_i32 = arith.constant 0 : i32
    %c0_i32_0 = arith.constant 0 : i32
    %c0_i32_1 = arith.constant 0 : i32
    return %c0_i32, %c0_i32_0 : i32, i32
  }
  func.func @transform_10(%arg0: i32, %arg1: i32) -> (i32, i32) {
    %c0_i32 = arith.constant 0 : i32
    %c0_i32_0 = arith.constant 0 : i32
    %c0_i32_1 = arith.constant 0 : i32
    return %c0_i32, %c0_i32_0 : i32, i32
  }
  func.func @transform_11(%arg0: i32, %arg1: i32) -> (i32, i32) {
    %c0_i32 = arith.constant 0 : i32
    %c0_i32_0 = arith.constant 0 : i32
    %c0_i32_1 = arith.constant 0 : i32
    return %c0_i32, %c0_i32_0 : i32, i32
  }
  func.func @transform_12(%arg0: i32, %arg1: i32) -> (i32, i32) {
    %c0_i32 = arith.constant 0 : i32
    %c0_i32_0 = arith.constant 0 : i32
    %c0_i32_1 = arith.constant 0 : i32
    return %c0_i32, %c0_i32_0 : i32, i32
  }
  func.func @transform_13(%arg0: i32, %arg1: i32) -> (i32, i32) {
    %c0_i32 = arith.constant 0 : i32
    %c0_i32_0 = arith.constant 0 : i32
    %c0_i32_1 = arith.constant 0 : i32
    return %c0_i32, %c0_i32_0 : i32, i32
  }
  func.func @transform_14(%arg0: i32, %arg1: i32) -> (i32, i32) {
    %c0_i32 = arith.constant 0 : i32
    %c0_i32_0 = arith.constant 0 : i32
    %c0_i32_1 = arith.constant 0 : i32
    return %c0_i32, %c0_i32_0 : i32, i32
  }
  func.func @transform_15(%arg0: i32, %arg1: i32) -> (i32, i32) {
    %c0_i32 = arith.constant 0 : i32
    %c0_i32_0 = arith.constant 0 : i32
    %c0_i32_1 = arith.constant 0 : i32
    return %c0_i32, %c0_i32_0 : i32, i32
  }
  func.func @transform_16(%arg0: i32, %arg1: i32) -> (i32, i32) {
    %c0_i32 = arith.constant 0 : i32
    %c0_i32_0 = arith.constant 0 : i32
    %c0_i32_1 = arith.constant 0 : i32
    return %c0_i32, %c0_i32_0 : i32, i32
  }
  func.func @transform_17(%arg0: i32, %arg1: i32) -> (i32, i32) {
    %c0_i32 = arith.constant 0 : i32
    %c0_i32_0 = arith.constant 0 : i32
    %c0_i32_1 = arith.constant 0 : i32
    return %c0_i32, %c0_i32_0 : i32, i32
  }
  func.func @transform_18(%arg0: i32, %arg1: i32) -> (i32, i32) {
    %c0_i32 = arith.constant 0 : i32
    %c0_i32_0 = arith.constant 0 : i32
    %c0_i32_1 = arith.constant 0 : i32
    return %c0_i32, %c0_i32_0 : i32, i32
  }
  func.func @transform_19(%arg0: i32, %arg1: i32) -> (i32, i32, i32) {
    %c0_i32 = arith.constant 0 : i32
    %c0_i32_0 = arith.constant 0 : i32
    return %arg0, %arg1, %c0_i32 : i32, i32, i32
  }
}

module attributes {stable_mosaic.version = 11 : i64} {
  func.func @_ffn_kernel(%arg0: i32, %arg1: i32, %arg2: memref<1x8x32xf32, #tpu.memory_space<vmem>>, %arg3: memref<1x32xf32, #tpu.memory_space<vmem>>, %arg4: memref<1x32xf32, #tpu.memory_space<vmem>>, %arg5: memref<32x64xbf16, #tpu.memory_space<vmem>>, %arg6: memref<1x64xf32, #tpu.memory_space<vmem>>, %arg7: memref<64x32xbf16, #tpu.memory_space<vmem>>, %arg8: memref<1x32xf32, #tpu.memory_space<vmem>>, %arg9: memref<1x8x32xf32, #tpu.memory_space<vmem>>) attributes {dimension_semantics = [#tpu.dimension_semantics<parallel>, #tpu.dimension_semantics<parallel>], iteration_bounds = array<i64: 2, 1>, scalar_prefetch = 0 : i64, scratch_operands = 0 : i64, tpu.core_type = #tpu.core_type<tc>, window_params = [{transform_indices = @transform_0, window_bounds = array<i64: 1, 8, 32>}, {pipeline_mode = #tpu.pipeline_mode<synchronous>, transform_indices = @transform_1, window_bounds = array<i64: 1, 32>}, {pipeline_mode = #tpu.pipeline_mode<synchronous>, transform_indices = @transform_2, window_bounds = array<i64: 1, 32>}, {pipeline_mode = #tpu.pipeline_mode<synchronous>, transform_indices = @transform_3, window_bounds = array<i64: 32, 64>}, {pipeline_mode = #tpu.pipeline_mode<synchronous>, transform_indices = @transform_4, window_bounds = array<i64: 1, 64>}, {pipeline_mode = #tpu.pipeline_mode<synchronous>, transform_indices = @transform_5, window_bounds = array<i64: 64, 32>}, {pipeline_mode = #tpu.pipeline_mode<synchronous>, transform_indices = @transform_6, window_bounds = array<i64: 1, 32>}, {transform_indices = @transform_7, window_bounds = array<i64: 1, 8, 32>}]} {
    %c0 = arith.constant 0 : index
    %c0_0 = arith.constant 0 : index
    %c0_1 = arith.constant 0 : index
    %0 = vector.load %arg2[%c0, %c0_0, %c0_1] : memref<1x8x32xf32, #tpu.memory_space<vmem>>, vector<1x8x32xf32>
    %1 = vector.shape_cast %0 : vector<1x8x32xf32> to vector<8x32xf32>
    %cst = arith.constant dense<0.000000e+00> : vector<8xf32>
    %2 = vector.multi_reduction <add>, %1, %cst [1] : vector<8x32xf32> to vector<8xf32>
    %3 = vector.shape_cast %2 : vector<8xf32> to vector<8x1xf32>
    %cst_2 = arith.constant 3.200000e+01 : f32
    %4 = vector.broadcast %cst_2 : f32 to vector<8x1xf32>
    %5 = arith.divf %3, %4 : vector<8x1xf32>
    %6 = vector.broadcast %5 : vector<8x1xf32> to vector<8x32xf32>
    %7 = arith.subf %1, %6 : vector<8x32xf32>
    %8 = arith.mulf %7, %7 : vector<8x32xf32>
    %cst_3 = arith.constant dense<0.000000e+00> : vector<8xf32>
    %9 = vector.multi_reduction <add>, %8, %cst_3 [1] : vector<8x32xf32> to vector<8xf32>
    %10 = vector.shape_cast %9 : vector<8xf32> to vector<8x1xf32>
    %cst_4 = arith.constant 3.200000e+01 : f32
    %11 = vector.broadcast %cst_4 : f32 to vector<8x1xf32>
    %12 = arith.divf %10, %11 : vector<8x1xf32>
    %13 = vector.broadcast %5 : vector<8x1xf32> to vector<8x32xf32>
    %14 = arith.subf %1, %13 : vector<8x32xf32>
    %cst_5 = arith.constant 9.99999997E-7 : f32
    %15 = vector.broadcast %cst_5 : f32 to vector<8x1xf32>
    %16 = arith.addf %12, %15 : vector<8x1xf32>
    %17 = math.rsqrt %16 : vector<8x1xf32>
    %18 = vector.broadcast %17 : vector<8x1xf32> to vector<8x32xf32>
    %19 = arith.mulf %14, %18 : vector<8x32xf32>
    %c0_6 = arith.constant 0 : index
    %c0_7 = arith.constant 0 : index
    %20 = vector.load %arg3[%c0_6, %c0_7] : memref<1x32xf32, #tpu.memory_space<vmem>>, vector<1x32xf32>
    %21 = vector.broadcast %20 : vector<1x32xf32> to vector<8x32xf32>
    %22 = arith.mulf %19, %21 : vector<8x32xf32>
    %c0_8 = arith.constant 0 : index
    %c0_9 = arith.constant 0 : index
    %23 = vector.load %arg4[%c0_8, %c0_9] : memref<1x32xf32, #tpu.memory_space<vmem>>, vector<1x32xf32>
    %24 = vector.broadcast %23 : vector<1x32xf32> to vector<8x32xf32>
    %25 = arith.addf %22, %24 : vector<8x32xf32>
    %26 = arith.truncf %25 : vector<8x32xf32> to vector<8x32xbf16>
    %c0_10 = arith.constant 0 : index
    %c0_11 = arith.constant 0 : index
    %27 = vector.load %arg5[%c0_10, %c0_11] : memref<32x64xbf16, #tpu.memory_space<vmem>>, vector<32x64xbf16>
    %cst_12 = arith.constant dense<0.000000e+00> : vector<8x64xf32>
    %28 = tpu.matmul %26, %27, %cst_12 {dimension_numbers = #tpu.dot_dimension_numbers<[1], [0], [0], [1], [0, 0, 1, 1], [], []>} : vector<8x32xbf16>, vector<32x64xbf16>, vector<8x64xf32> -> vector<8x64xf32>
    %c0_13 = arith.constant 0 : index
    %c0_14 = arith.constant 0 : index
    %29 = vector.load %arg6[%c0_13, %c0_14] : memref<1x64xf32, #tpu.memory_space<vmem>>, vector<1x64xf32>
    %30 = vector.broadcast %29 : vector<1x64xf32> to vector<8x64xf32>
    %31 = arith.addf %28, %30 : vector<8x64xf32>
    %cst_15 = arith.constant 0.000000e+00 : f32
    %32 = vector.broadcast %cst_15 : f32 to vector<8x64xf32>
    %33 = arith.maximumf %31, %32 : vector<8x64xf32>
    %34 = arith.truncf %33 : vector<8x64xf32> to vector<8x64xbf16>
    %c0_16 = arith.constant 0 : index
    %c0_17 = arith.constant 0 : index
    %35 = vector.load %arg7[%c0_16, %c0_17] : memref<64x32xbf16, #tpu.memory_space<vmem>>, vector<64x32xbf16>
    %cst_18 = arith.constant dense<0.000000e+00> : vector<8x32xf32>
    %36 = tpu.matmul %34, %35, %cst_18 {dimension_numbers = #tpu.dot_dimension_numbers<[1], [0], [0], [1], [0, 0, 1, 1], [], []>} : vector<8x64xbf16>, vector<64x32xbf16>, vector<8x32xf32> -> vector<8x32xf32>
    %c0_19 = arith.constant 0 : index
    %c0_20 = arith.constant 0 : index
    %37 = vector.load %arg8[%c0_19, %c0_20] : memref<1x32xf32, #tpu.memory_space<vmem>>, vector<1x32xf32>
    %38 = vector.broadcast %37 : vector<1x32xf32> to vector<8x32xf32>
    %39 = arith.addf %36, %38 : vector<8x32xf32>
    %40 = arith.addf %39, %1 : vector<8x32xf32>
    %c0_21 = arith.constant 0 : index
    %c0_22 = arith.constant 0 : index
    %c0_23 = arith.constant 0 : index
    %41 = vector.load %arg9[%c0_21, %c0_22, %c0_23] : memref<1x8x32xf32, #tpu.memory_space<vmem>>, vector<1x8x32xf32>
    %42 = vector.shape_cast %41 : vector<1x8x32xf32> to vector<8x32xf32>
    %43 = vector.shape_cast %40 : vector<8x32xf32> to vector<1x8x32xf32>
    tpu.vector_store %arg9[%c0_21, %c0_22, %c0_23], %43 {strides = array<i32>} : memref<1x8x32xf32, #tpu.memory_space<vmem>>, vector<1x8x32xf32>,
    return
  }
  func.func @transform_0(%arg0: i32, %arg1: i32) -> (i32, i32, i32) {
    %c0_i32 = arith.constant 0 : i32
    %c0_i32_0 = arith.constant 0 : i32
    return %arg0, %arg1, %c0_i32 : i32, i32, i32
  }
  func.func @transform_1(%arg0: i32, %arg1: i32) -> (i32, i32) {
    %c0_i32 = arith.constant 0 : i32
    %c0_i32_0 = arith.constant 0 : i32
    %c0_i32_1 = arith.constant 0 : i32
    return %c0_i32, %c0_i32_0 : i32, i32
  }
  func.func @transform_2(%arg0: i32, %arg1: i32) -> (i32, i32) {
    %c0_i32 = arith.constant 0 : i32
    %c0_i32_0 = arith.constant 0 : i32
    %c0_i32_1 = arith.constant 0 : i32
    return %c0_i32, %c0_i32_0 : i32, i32
  }
  func.func @transform_3(%arg0: i32, %arg1: i32) -> (i32, i32) {
    %c0_i32 = arith.constant 0 : i32
    %c0_i32_0 = arith.constant 0 : i32
    %c0_i32_1 = arith.constant 0 : i32
    return %c0_i32, %c0_i32_0 : i32, i32
  }
  func.func @transform_4(%arg0: i32, %arg1: i32) -> (i32, i32) {
    %c0_i32 = arith.constant 0 : i32
    %c0_i32_0 = arith.constant 0 : i32
    %c0_i32_1 = arith.constant 0 : i32
    return %c0_i32, %c0_i32_0 : i32, i32
  }
  func.func @transform_5(%arg0: i32, %arg1: i32) -> (i32, i32) {
    %c0_i32 = arith.constant 0 : i32
    %c0_i32_0 = arith.constant 0 : i32
    %c0_i32_1 = arith.constant 0 : i32
    return %c0_i32, %c0_i32_0 : i32, i32
  }
  func.func @transform_6(%arg0: i32, %arg1: i32) -> (i32, i32) {
    %c0_i32 = arith.constant 0 : i32
    %c0_i32_0 = arith.constant 0 : i32
    %c0_i32_1 = arith.constant 0 : i32
    return %c0_i32, %c0_i32_0 : i32, i32
  }
  func.func @transform_7(%arg0: i32, %arg1: i32) -> (i32, i32, i32) {
    %c0_i32 = arith.constant 0 : i32
    %c0_i32_0 = arith.constant 0 : i32
    return %arg0, %arg1, %c0_i32 : i32, i32, i32
  }
}

module attributes {stable_mosaic.version = 11 : i64} {
  func.func @_self_attn_kernel(%arg0: i32, %arg1: memref<1x8x32xf32, #tpu.memory_space<vmem>>, %arg2: memref<1x1x8xf32, #tpu.memory_space<vmem>>, %arg3: memref<1x32xf32, #tpu.memory_space<vmem>>, %arg4: memref<1x32xf32, #tpu.memory_space<vmem>>, %arg5: memref<32x32xbf16, #tpu.memory_space<vmem>>, %arg6: memref<1x32xf32, #tpu.memory_space<vmem>>, %arg7: memref<32x64xbf16, #tpu.memory_space<vmem>>, %arg8: memref<1x64xf32, #tpu.memory_space<vmem>>, %arg9: memref<32x32xbf16, #tpu.memory_space<vmem>>, %arg10: memref<1x32xf32, #tpu.memory_space<vmem>>, %arg11: memref<1x8x32xf32, #tpu.memory_space<vmem>>) attributes {dimension_semantics = [#tpu.dimension_semantics<parallel>], iteration_bounds = array<i64: 2>, scalar_prefetch = 0 : i64, scratch_operands = 0 : i64, tpu.core_type = #tpu.core_type<tc>, window_params = [{transform_indices = @transform_0, window_bounds = array<i64: 1, 8, 32>}, {transform_indices = @transform_1, window_bounds = array<i64: 1, 1, 8>}, {pipeline_mode = #tpu.pipeline_mode<synchronous>, transform_indices = @transform_2, window_bounds = array<i64: 1, 32>}, {pipeline_mode = #tpu.pipeline_mode<synchronous>, transform_indices = @transform_3, window_bounds = array<i64: 1, 32>}, {pipeline_mode = #tpu.pipeline_mode<synchronous>, transform_indices = @transform_4, window_bounds = array<i64: 32, 32>}, {pipeline_mode = #tpu.pipeline_mode<synchronous>, transform_indices = @transform_5, window_bounds = array<i64: 1, 32>}, {pipeline_mode = #tpu.pipeline_mode<synchronous>, transform_indices = @transform_6, window_bounds = array<i64: 32, 64>}, {pipeline_mode = #tpu.pipeline_mode<synchronous>, transform_indices = @transform_7, window_bounds = array<i64: 1, 64>}, {pipeline_mode = #tpu.pipeline_mode<synchronous>, transform_indices = @transform_8, window_bounds = array<i64: 32, 32>}, {pipeline_mode = #tpu.pipeline_mode<synchronous>, transform_indices = @transform_9, window_bounds = array<i64: 1, 32>}, {transform_indices = @transform_10, window_bounds = array<i64: 1, 8, 32>}]} {
    %c0 = arith.constant 0 : index
    %c0_0 = arith.constant 0 : index
    %c0_1 = arith.constant 0 : index
    %0 = vector.load %arg1[%c0, %c0_0, %c0_1] : memref<1x8x32xf32, #tpu.memory_space<vmem>>, vector<1x8x32xf32>
    %1 = vector.shape_cast %0 : vector<1x8x32xf32> to vector<8x32xf32>
    %cst = arith.constant dense<0.000000e+00> : vector<8xf32>
    %2 = vector.multi_reduction <add>, %1, %cst [1] : vector<8x32xf32> to vector<8xf32>
    %3 = vector.shape_cast %2 : vector<8xf32> to vector<8x1xf32>
    %cst_2 = arith.constant 3.200000e+01 : f32
    %4 = vector.broadcast %cst_2 : f32 to vector<8x1xf32>
    %5 = arith.divf %3, %4 : vector<8x1xf32>
    %6 = vector.broadcast %5 : vector<8x1xf32> to vector<8x32xf32>
    %7 = arith.subf %1, %6 : vector<8x32xf32>
    %8 = arith.mulf %7, %7 : vector<8x32xf32>
    %cst_3 = arith.constant dense<0.000000e+00> : vector<8xf32>
    %9 = vector.multi_reduction <add>, %8, %cst_3 [1] : vector<8x32xf32> to vector<8xf32>
    %10 = vector.shape_cast %9 : vector<8xf32> to vector<8x1xf32>
    %cst_4 = arith.constant 3.200000e+01 : f32
    %11 = vector.broadcast %cst_4 : f32 to vector<8x1xf32>
    %12 = arith.divf %10, %11 : vector<8x1xf32>
    %13 = vector.broadcast %5 : vector<8x1xf32> to vector<8x32xf32>
    %14 = arith.subf %1, %13 : vector<8x32xf32>
    %cst_5 = arith.constant 9.99999997E-7 : f32
    %15 = vector.broadcast %cst_5 : f32 to vector<8x1xf32>
    %16 = arith.addf %12, %15 : vector<8x1xf32>
    %17 = math.rsqrt %16 : vector<8x1xf32>
    %18 = vector.broadcast %17 : vector<8x1xf32> to vector<8x32xf32>
    %19 = arith.mulf %14, %18 : vector<8x32xf32>
    %c0_6 = arith.constant 0 : index
    %c0_7 = arith.constant 0 : index
    %20 = vector.load %arg3[%c0_6, %c0_7] : memref<1x32xf32, #tpu.memory_space<vmem>>, vector<1x32xf32>
    %21 = vector.broadcast %20 : vector<1x32xf32> to vector<8x32xf32>
    %22 = arith.mulf %19, %21 : vector<8x32xf32>
    %c0_8 = arith.constant 0 : index
    %c0_9 = arith.constant 0 : index
    %23 = vector.load %arg4[%c0_8, %c0_9] : memref<1x32xf32, #tpu.memory_space<vmem>>, vector<1x32xf32>
    %24 = vector.broadcast %23 : vector<1x32xf32> to vector<8x32xf32>
    %25 = arith.addf %22, %24 : vector<8x32xf32>
    %26 = tpu.iota {dimensions = array<i32: 0>} : vector<8x8xi32>
    %27 = tpu.iota {dimensions = array<i32: 1>} : vector<8x8xi32>
    %28 = arith.cmpi sgt, %27, %26 : vector<8x8xi32>
    %cst_10 = arith.constant -1.000000e+09 : f32
    %cst_11 = arith.constant 0.000000e+00 : f32
    %29 = vector.broadcast %cst_10 : f32 to vector<8x8xf32>
    %30 = vector.broadcast %cst_11 : f32 to vector<8x8xf32>
    %31 = arith.select %28, %29, %30 : vector<8x8xi1>, vector<8x8xf32>
    %c0_12 = arith.constant 0 : index
    %c0_13 = arith.constant 0 : index
    %c0_14 = arith.constant 0 : index
    %32 = vector.load %arg2[%c0_12, %c0_13, %c0_14] : memref<1x1x8xf32, #tpu.memory_space<vmem>>, vector<1x1x8xf32>
    %33 = vector.shape_cast %32 : vector<1x1x8xf32> to vector<1x8xf32>
    %34 = vector.broadcast %33 : vector<1x8xf32> to vector<8x8xf32>
    %35 = arith.addf %31, %34 : vector<8x8xf32>
    %36 = arith.truncf %25 : vector<8x32xf32> to vector<8x32xbf16>
    %37 = arith.truncf %25 : vector<8x32xf32> to vector<8x32xbf16>
    %c0_15 = arith.constant 0 : index
    %c0_16 = arith.constant 0 : index
    %38 = vector.load %arg5[%c0_15, %c0_16] : memref<32x32xbf16, #tpu.memory_space<vmem>>, vector<32x32xbf16>
    %cst_17 = arith.constant dense<0.000000e+00> : vector<8x32xf32>
    %39 = tpu.matmul %36, %38, %cst_17 {dimension_numbers = #tpu.dot_dimension_numbers<[1], [0], [0], [1], [0, 0, 1, 1], [], []>} : vector<8x32xbf16>, vector<32x32xbf16>, vector<8x32xf32> -> vector<8x32xf32>
    %c0_18 = arith.constant 0 : index
    %c0_19 = arith.constant 0 : index
    %40 = vector.load %arg6[%c0_18, %c0_19] : memref<1x32xf32, #tpu.memory_space<vmem>>, vector<1x32xf32>
    %41 = vector.broadcast %40 : vector<1x32xf32> to vector<8x32xf32>
    %42 = arith.addf %39, %41 : vector<8x32xf32>
    %c0_20 = arith.constant 0 : index
    %c0_21 = arith.constant 0 : index
    %43 = vector.load %arg7[%c0_20, %c0_21] : memref<32x64xbf16, #tpu.memory_space<vmem>>, vector<32x64xbf16>
    %cst_22 = arith.constant dense<0.000000e+00> : vector<8x64xf32>
    %44 = tpu.matmul %37, %43, %cst_22 {dimension_numbers = #tpu.dot_dimension_numbers<[1], [0], [0], [1], [0, 0, 1, 1], [], []>} : vector<8x32xbf16>, vector<32x64xbf16>, vector<8x64xf32> -> vector<8x64xf32>
    %c0_23 = arith.constant 0 : index
    %c0_24 = arith.constant 0 : index
    %45 = vector.load %arg8[%c0_23, %c0_24] : memref<1x64xf32, #tpu.memory_space<vmem>>, vector<1x64xf32>
    %46 = vector.broadcast %45 : vector<1x64xf32> to vector<8x64xf32>
    %47 = arith.addf %44, %46 : vector<8x64xf32>
    %48 = vector.extract_strided_slice %42 {offsets = [0, 0], sizes = [8, 8], strides = [1, 1]} : vector<8x32xf32> to vector<8x8xf32>
    %49 = arith.truncf %48 : vector<8x8xf32> to vector<8x8xbf16>
    %50 = vector.extract_strided_slice %47 {offsets = [0, 0], sizes = [8, 8], strides = [1, 1]} : vector<8x64xf32> to vector<8x8xf32>
    %51 = arith.truncf %50 : vector<8x8xf32> to vector<8x8xbf16>
    %52 = vector.extract_strided_slice %47 {offsets = [0, 32], sizes = [8, 8], strides = [1, 1]} : vector<8x64xf32> to vector<8x8xf32>
    %53 = arith.truncf %52 : vector<8x8xf32> to vector<8x8xbf16>
    %cst_25 = arith.constant dense<0.000000e+00> : vector<8x8xf32>
    %54 = tpu.matmul %49, %51, %cst_25 {dimension_numbers = #tpu.dot_dimension_numbers<[1], [1], [0], [0], [0, 0, 1, 0], [], []>} : vector<8x8xbf16>, vector<8x8xbf16>, vector<8x8xf32> -> vector<8x8xf32>
    %cst_26 = arith.constant 0.353553385 : f32
    %55 = vector.broadcast %cst_26 : f32 to vector<8x8xf32>
    %56 = arith.mulf %54, %55 : vector<8x8xf32>
    %57 = arith.addf %56, %35 : vector<8x8xf32>
    %cst_27 = arith.constant dense<0xFF800000> : vector<8xf32>
    %58 = vector.multi_reduction <maximumf>, %57, %cst_27 [1] : vector<8x8xf32> to vector<8xf32>
    %59 = vector.shape_cast %58 : vector<8xf32> to vector<8x1xf32>
    %60 = vector.broadcast %59 : vector<8x1xf32> to vector<8x8xf32>
    %61 = arith.subf %57, %60 : vector<8x8xf32>
    %62 = math.exp %61 : vector<8x8xf32>
    %cst_28 = arith.constant dense<0.000000e+00> : vector<8xf32>
    %63 = vector.multi_reduction <add>, %62, %cst_28 [1] : vector<8x8xf32> to vector<8xf32>
    %64 = vector.shape_cast %63 : vector<8xf32> to vector<8x1xf32>
    %65 = tpu.reciprocal %64 {approx = true} : vector<8x1xf32> -> vector<8x1xf32>
    %66 = vector.broadcast %65 : vector<8x1xf32> to vector<8x8xf32>
    %67 = arith.mulf %62, %66 : vector<8x8xf32>
    %68 = arith.truncf %67 : vector<8x8xf32> to vector<8x8xbf16>
    %cst_29 = arith.constant dense<0.000000e+00> : vector<8x8xf32>
    %69 = tpu.matmul %68, %53, %cst_29 {dimension_numbers = #tpu.dot_dimension_numbers<[1], [0], [0], [1], [0, 0, 1, 1], [], []>} : vector<8x8xbf16>, vector<8x8xbf16>, vector<8x8xf32> -> vector<8x8xf32>
    %70 = arith.truncf %69 : vector<8x8xf32> to vector<8x8xbf16>
    %71 = vector.extract_strided_slice %42 {offsets = [0, 8], sizes = [8, 8], strides = [1, 1]} : vector<8x32xf32> to vector<8x8xf32>
    %72 = arith.truncf %71 : vector<8x8xf32> to vector<8x8xbf16>
    %73 = vector.extract_strided_slice %47 {offsets = [0, 8], sizes = [8, 8], strides = [1, 1]} : vector<8x64xf32> to vector<8x8xf32>
    %74 = arith.truncf %73 : vector<8x8xf32> to vector<8x8xbf16>
    %75 = vector.extract_strided_slice %47 {offsets = [0, 40], sizes = [8, 8], strides = [1, 1]} : vector<8x64xf32> to vector<8x8xf32>
    %76 = arith.truncf %75 : vector<8x8xf32> to vector<8x8xbf16>
    %cst_30 = arith.constant dense<0.000000e+00> : vector<8x8xf32>
    %77 = tpu.matmul %72, %74, %cst_30 {dimension_numbers = #tpu.dot_dimension_numbers<[1], [1], [0], [0], [0, 0, 1, 0], [], []>} : vector<8x8xbf16>, vector<8x8xbf16>, vector<8x8xf32> -> vector<8x8xf32>
    %cst_31 = arith.constant 0.353553385 : f32
    %78 = vector.broadcast %cst_31 : f32 to vector<8x8xf32>
    %79 = arith.mulf %77, %78 : vector<8x8xf32>
    %80 = arith.addf %79, %35 : vector<8x8xf32>
    %cst_32 = arith.constant dense<0xFF800000> : vector<8xf32>
    %81 = vector.multi_reduction <maximumf>, %80, %cst_32 [1] : vector<8x8xf32> to vector<8xf32>
    %82 = vector.shape_cast %81 : vector<8xf32> to vector<8x1xf32>
    %83 = vector.broadcast %82 : vector<8x1xf32> to vector<8x8xf32>
    %84 = arith.subf %80, %83 : vector<8x8xf32>
    %85 = math.exp %84 : vector<8x8xf32>
    %cst_33 = arith.constant dense<0.000000e+00> : vector<8xf32>
    %86 = vector.multi_reduction <add>, %85, %cst_33 [1] : vector<8x8xf32> to vector<8xf32>
    %87 = vector.shape_cast %86 : vector<8xf32> to vector<8x1xf32>
    %88 = tpu.reciprocal %87 {approx = true} : vector<8x1xf32> -> vector<8x1xf32>
    %89 = vector.broadcast %88 : vector<8x1xf32> to vector<8x8xf32>
    %90 = arith.mulf %85, %89 : vector<8x8xf32>
    %91 = arith.truncf %90 : vector<8x8xf32> to vector<8x8xbf16>
    %cst_34 = arith.constant dense<0.000000e+00> : vector<8x8xf32>
    %92 = tpu.matmul %91, %76, %cst_34 {dimension_numbers = #tpu.dot_dimension_numbers<[1], [0], [0], [1], [0, 0, 1, 1], [], []>} : vector<8x8xbf16>, vector<8x8xbf16>, vector<8x8xf32> -> vector<8x8xf32>
    %93 = arith.truncf %92 : vector<8x8xf32> to vector<8x8xbf16>
    %94 = vector.extract_strided_slice %42 {offsets = [0, 16], sizes = [8, 8], strides = [1, 1]} : vector<8x32xf32> to vector<8x8xf32>
    %95 = arith.truncf %94 : vector<8x8xf32> to vector<8x8xbf16>
    %96 = vector.extract_strided_slice %47 {offsets = [0, 16], sizes = [8, 8], strides = [1, 1]} : vector<8x64xf32> to vector<8x8xf32>
    %97 = arith.truncf %96 : vector<8x8xf32> to vector<8x8xbf16>
    %98 = vector.extract_strided_slice %47 {offsets = [0, 48], sizes = [8, 8], strides = [1, 1]} : vector<8x64xf32> to vector<8x8xf32>
    %99 = arith.truncf %98 : vector<8x8xf32> to vector<8x8xbf16>
    %cst_35 = arith.constant dense<0.000000e+00> : vector<8x8xf32>
    %100 = tpu.matmul %95, %97, %cst_35 {dimension_numbers = #tpu.dot_dimension_numbers<[1], [1], [0], [0], [0, 0, 1, 0], [], []>} : vector<8x8xbf16>, vector<8x8xbf16>, vector<8x8xf32> -> vector<8x8xf32>
    %cst_36 = arith.constant 0.353553385 : f32
    %101 = vector.broadcast %cst_36 : f32 to vector<8x8xf32>
    %102 = arith.mulf %100, %101 : vector<8x8xf32>
    %103 = arith.addf %102, %35 : vector<8x8xf32>
    %cst_37 = arith.constant dense<0xFF800000> : vector<8xf32>
    %104 = vector.multi_reduction <maximumf>, %103, %cst_37 [1] : vector<8x8xf32> to vector<8xf32>
    %105 = vector.shape_cast %104 : vector<8xf32> to vector<8x1xf32>
    %106 = vector.broadcast %105 : vector<8x1xf32> to vector<8x8xf32>
    %107 = arith.subf %103, %106 : vector<8x8xf32>
    %108 = math.exp %107 : vector<8x8xf32>
    %cst_38 = arith.constant dense<0.000000e+00> : vector<8xf32>
    %109 = vector.multi_reduction <add>, %108, %cst_38 [1] : vector<8x8xf32> to vector<8xf32>
    %110 = vector.shape_cast %109 : vector<8xf32> to vector<8x1xf32>
    %111 = tpu.reciprocal %110 {approx = true} : vector<8x1xf32> -> vector<8x1xf32>
    %112 = vector.broadcast %111 : vector<8x1xf32> to vector<8x8xf32>
    %113 = arith.mulf %108, %112 : vector<8x8xf32>
    %114 = arith.truncf %113 : vector<8x8xf32> to vector<8x8xbf16>
    %cst_39 = arith.constant dense<0.000000e+00> : vector<8x8xf32>
    %115 = tpu.matmul %114, %99, %cst_39 {dimension_numbers = #tpu.dot_dimension_numbers<[1], [0], [0], [1], [0, 0, 1, 1], [], []>} : vector<8x8xbf16>, vector<8x8xbf16>, vector<8x8xf32> -> vector<8x8xf32>
    %116 = arith.truncf %115 : vector<8x8xf32> to vector<8x8xbf16>
    %117 = vector.extract_strided_slice %42 {offsets = [0, 24], sizes = [8, 8], strides = [1, 1]} : vector<8x32xf32> to vector<8x8xf32>
    %118 = arith.truncf %117 : vector<8x8xf32> to vector<8x8xbf16>
    %119 = vector.extract_strided_slice %47 {offsets = [0, 24], sizes = [8, 8], strides = [1, 1]} : vector<8x64xf32> to vector<8x8xf32>
    %120 = arith.truncf %119 : vector<8x8xf32> to vector<8x8xbf16>
    %121 = vector.extract_strided_slice %47 {offsets = [0, 56], sizes = [8, 8], strides = [1, 1]} : vector<8x64xf32> to vector<8x8xf32>
    %122 = arith.truncf %121 : vector<8x8xf32> to vector<8x8xbf16>
    %cst_40 = arith.constant dense<0.000000e+00> : vector<8x8xf32>
    %123 = tpu.matmul %118, %120, %cst_40 {dimension_numbers = #tpu.dot_dimension_numbers<[1], [1], [0], [0], [0, 0, 1, 0], [], []>} : vector<8x8xbf16>, vector<8x8xbf16>, vector<8x8xf32> -> vector<8x8xf32>
    %cst_41 = arith.constant 0.353553385 : f32
    %124 = vector.broadcast %cst_41 : f32 to vector<8x8xf32>
    %125 = arith.mulf %123, %124 : vector<8x8xf32>
    %126 = arith.addf %125, %35 : vector<8x8xf32>
    %cst_42 = arith.constant dense<0xFF800000> : vector<8xf32>
    %127 = vector.multi_reduction <maximumf>, %126, %cst_42 [1] : vector<8x8xf32> to vector<8xf32>
    %128 = vector.shape_cast %127 : vector<8xf32> to vector<8x1xf32>
    %129 = vector.broadcast %128 : vector<8x1xf32> to vector<8x8xf32>
    %130 = arith.subf %126, %129 : vector<8x8xf32>
    %131 = math.exp %130 : vector<8x8xf32>
    %cst_43 = arith.constant dense<0.000000e+00> : vector<8xf32>
    %132 = vector.multi_reduction <add>, %131, %cst_43 [1] : vector<8x8xf32> to vector<8xf32>
    %133 = vector.shape_cast %132 : vector<8xf32> to vector<8x1xf32>
    %134 = tpu.reciprocal %133 {approx = true} : vector<8x1xf32> -> vector<8x1xf32>
    %135 = vector.broadcast %134 : vector<8x1xf32> to vector<8x8xf32>
    %136 = arith.mulf %131, %135 : vector<8x8xf32>
    %137 = arith.truncf %136 : vector<8x8xf32> to vector<8x8xbf16>
    %cst_44 = arith.constant dense<0.000000e+00> : vector<8x8xf32>
    %138 = tpu.matmul %137, %122, %cst_44 {dimension_numbers = #tpu.dot_dimension_numbers<[1], [0], [0], [1], [0, 0, 1, 1], [], []>} : vector<8x8xbf16>, vector<8x8xbf16>, vector<8x8xf32> -> vector<8x8xf32>
    %139 = arith.truncf %138 : vector<8x8xf32> to vector<8x8xbf16>
    %140 = tpu.concatenate %70, %93, %116, %139 in 1 : vector<8x8xbf16>, vector<8x8xbf16>, vector<8x8xbf16>, vector<8x8xbf16> -> vector<8x32xbf16>
    %c0_45 = arith.constant 0 : index
    %c0_46 = arith.constant 0 : index
    %141 = vector.load %arg9[%c0_45, %c0_46] : memref<32x32xbf16, #tpu.memory_space<vmem>>, vector<32x32xbf16>
    %cst_47 = arith.constant dense<0.000000e+00> : vector<8x32xf32>
    %142 = tpu.matmul %140, %141, %cst_47 {dimension_numbers = #tpu.dot_dimension_numbers<[1], [0], [0], [1], [0, 0, 1, 1], [], []>} : vector<8x32xbf16>, vector<32x32xbf16>, vector<8x32xf32> -> vector<8x32xf32>
    %c0_48 = arith.constant 0 : index
    %c0_49 = arith.constant 0 : index
    %143 = vector.load %arg10[%c0_48, %c0_49] : memref<1x32xf32, #tpu.memory_space<vmem>>, vector<1x32xf32>
    %144 = vector.broadcast %143 : vector<1x32xf32> to vector<8x32xf32>
    %145 = arith.addf %142, %144 : vector<8x32xf32>
    %146 = arith.addf %145, %1 : vector<8x32xf32>
    %c0_50 = arith.constant 0 : index
    %c0_51 = arith.constant 0 : index
    %c0_52 = arith.constant 0 : index
    %147 = vector.load %arg11[%c0_50, %c0_51, %c0_52] : memref<1x8x32xf32, #tpu.memory_space<vmem>>, vector<1x8x32xf32>
    %148 = vector.shape_cast %147 : vector<1x8x32xf32> to vector<8x32xf32>
    %149 = vector.shape_cast %146 : vector<8x32xf32> to vector<1x8x32xf32>
    tpu.vector_store %arg11[%c0_50, %c0_51, %c0_52], %149 {strides = array<i32>} : memref<1x8x32xf32, #tpu.memory_space<vmem>>, vector<1x8x32xf32>,
    return
  }
  func.func @transform_0(%arg0: i32) -> (i32, i32, i32) {
    %c0_i32 = arith.constant 0 : i32
    %c0_i32_0 = arith.constant 0 : i32
    %c0_i32_1 = arith.constant 0 : i32
    return %arg0, %c0_i32, %c0_i32_0 : i32, i32, i32
  }
  func.func @transform_1(%arg0: i32) -> (i32, i32, i32) {
    %c0_i32 = arith.constant 0 : i32
    %c0_i32_0 = arith.constant 0 : i32
    %c0_i32_1 = arith.constant 0 : i32
    return %arg0, %c0_i32, %c0_i32_0 : i32, i32, i32
  }
  func.func @transform_2(%arg0: i32) -> (i32, i32) {
    %c0_i32 = arith.constant 0 : i32
    %c0_i32_0 = arith.constant 0 : i32
    %c0_i32_1 = arith.constant 0 : i32
    return %c0_i32, %c0_i32_0 : i32, i32
  }
  func.func @transform_3(%arg0: i32) -> (i32, i32) {
    %c0_i32 = arith.constant 0 : i32
    %c0_i32_0 = arith.constant 0 : i32
    %c0_i32_1 = arith.constant 0 : i32
    return %c0_i32, %c0_i32_0 : i32, i32
  }
  func.func @transform_4(%arg0: i32) -> (i32, i32) {
    %c0_i32 = arith.constant 0 : i32
    %c0_i32_0 = arith.constant 0 : i32
    %c0_i32_1 = arith.constant 0 : i32
    return %c0_i32, %c0_i32_0 : i32, i32
  }
  func.func @transform_5(%arg0: i32) -> (i32, i32) {
    %c0_i32 = arith.constant 0 : i32
    %c0_i32_0 = arith.constant 0 : i32
    %c0_i32_1 = arith.constant 0 : i32
    return %c0_i32, %c0_i32_0 : i32, i32
  }
  func.func @transform_6(%arg0: i32) -> (i32, i32) {
    %c0_i32 = arith.constant 0 : i32
    %c0_i32_0 = arith.constant 0 : i32
    %c0_i32_1 = arith.constant 0 : i32
    return %c0_i32, %c0_i32_0 : i32, i32
  }
  func.func @transform_7(%arg0: i32) -> (i32, i32) {
    %c0_i32 = arith.constant 0 : i32
    %c0_i32_0 = arith.constant 0 : i32
    %c0_i32_1 = arith.constant 0 : i32
    return %c0_i32, %c0_i32_0 : i32, i32
  }
  func.func @transform_8(%arg0: i32) -> (i32, i32) {
    %c0_i32 = arith.constant 0 : i32
    %c0_i32_0 = arith.constant 0 : i32
    %c0_i32_1 = arith.constant 0 : i32
    return %c0_i32, %c0_i32_0 : i32, i32
  }
  func.func @transform_9(%arg0: i32) -> (i32, i32) {
    %c0_i32 = arith.constant 0 : i32
    %c0_i32_0 = arith.constant 0 : i32
    %c0_i32_1 = arith.constant 0 : i32
    return %c0_i32, %c0_i32_0 : i32, i32
  }
  func.func @transform_10(%arg0: i32) -> (i32, i32, i32) {
    %c0_i32 = arith.constant 0 : i32
    %c0_i32_0 = arith.constant 0 : i32
    %c0_i32_1 = arith.constant 0 : i32
    return %arg0, %c0_i32, %c0_i32_0 : i32, i32, i32
  }
}

module attributes {stable_mosaic.version = 11 : i64} {
  func.func @_cross_gnn_kernel(%arg0: i32, %arg1: i32, %arg2: memref<1x8x32xf32, #tpu.memory_space<vmem>>, %arg3: memref<1x16x32xf32, #tpu.memory_space<vmem>>, %arg4: memref<1x8x32xf32, #tpu.memory_space<vmem>>, %arg5: memref<1x1x16xf32, #tpu.memory_space<vmem>>, %arg6: memref<1x1x8xf32, #tpu.memory_space<vmem>>, %arg7: memref<1x32xf32, #tpu.memory_space<vmem>>, %arg8: memref<1x32xf32, #tpu.memory_space<vmem>>, %arg9: memref<32x32xbf16, #tpu.memory_space<vmem>>, %arg10: memref<1x32xf32, #tpu.memory_space<vmem>>, %arg11: memref<32x64xbf16, #tpu.memory_space<vmem>>, %arg12: memref<1x64xf32, #tpu.memory_space<vmem>>, %arg13: memref<32x32xbf16, #tpu.memory_space<vmem>>, %arg14: memref<1x32xf32, #tpu.memory_space<vmem>>, %arg15: memref<32x32xbf16, #tpu.memory_space<vmem>>, %arg16: memref<1x32xf32, #tpu.memory_space<vmem>>, %arg17: memref<32x64xbf16, #tpu.memory_space<vmem>>, %arg18: memref<1x64xf32, #tpu.memory_space<vmem>>, %arg19: memref<32x32xbf16, #tpu.memory_space<vmem>>, %arg20: memref<1x32xf32, #tpu.memory_space<vmem>>, %arg21: memref<1x8x32xf32, #tpu.memory_space<vmem>>, %arg22: memref<1x8x16xf32, #tpu.memory_space<vmem>>) attributes {dimension_semantics = [#tpu.dimension_semantics<parallel>, #tpu.dimension_semantics<parallel>], iteration_bounds = array<i64: 2, 1>, scalar_prefetch = 0 : i64, scratch_operands = 0 : i64, tpu.core_type = #tpu.core_type<tc>, window_params = [{transform_indices = @transform_0, window_bounds = array<i64: 1, 8, 32>}, {transform_indices = @transform_1, window_bounds = array<i64: 1, 16, 32>}, {transform_indices = @transform_2, window_bounds = array<i64: 1, 8, 32>}, {transform_indices = @transform_3, window_bounds = array<i64: 1, 1, 16>}, {transform_indices = @transform_4, window_bounds = array<i64: 1, 1, 8>}, {pipeline_mode = #tpu.pipeline_mode<synchronous>, transform_indices = @transform_5, window_bounds = array<i64: 1, 32>}, {pipeline_mode = #tpu.pipeline_mode<synchronous>, transform_indices = @transform_6, window_bounds = array<i64: 1, 32>}, {pipeline_mode = #tpu.pipeline_mode<synchronous>, transform_indices = @transform_7, window_bounds = array<i64: 32, 32>}, {pipeline_mode = #tpu.pipeline_mode<synchronous>, transform_indices = @transform_8, window_bounds = array<i64: 1, 32>}, {pipeline_mode = #tpu.pipeline_mode<synchronous>, transform_indices = @transform_9, window_bounds = array<i64: 32, 64>}, {pipeline_mode = #tpu.pipeline_mode<synchronous>, transform_indices = @transform_10, window_bounds = array<i64: 1, 64>}, {pipeline_mode = #tpu.pipeline_mode<synchronous>, transform_indices = @transform_11, window_bounds = array<i64: 32, 32>}, {pipeline_mode = #tpu.pipeline_mode<synchronous>, transform_indices = @transform_12, window_bounds = array<i64: 1, 32>}, {pipeline_mode = #tpu.pipeline_mode<synchronous>, transform_indices = @transform_13, window_bounds = array<i64: 32, 32>}, {pipeline_mode = #tpu.pipeline_mode<synchronous>, transform_indices = @transform_14, window_bounds = array<i64: 1, 32>}, {pipeline_mode = #tpu.pipeline_mode<synchronous>, transform_indices = @transform_15, window_bounds = array<i64: 32, 64>}, {pipeline_mode = #tpu.pipeline_mode<synchronous>, transform_indices = @transform_16, window_bounds = array<i64: 1, 64>}, {pipeline_mode = #tpu.pipeline_mode<synchronous>, transform_indices = @transform_17, window_bounds = array<i64: 32, 32>}, {pipeline_mode = #tpu.pipeline_mode<synchronous>, transform_indices = @transform_18, window_bounds = array<i64: 1, 32>}, {transform_indices = @transform_19, window_bounds = array<i64: 1, 8, 32>}, {transform_indices = @transform_20, window_bounds = array<i64: 1, 8, 16>}]} {
    %c0 = arith.constant 0 : index
    %c0_0 = arith.constant 0 : index
    %c0_1 = arith.constant 0 : index
    %0 = vector.load %arg2[%c0, %c0_0, %c0_1] : memref<1x8x32xf32, #tpu.memory_space<vmem>>, vector<1x8x32xf32>
    %1 = vector.shape_cast %0 : vector<1x8x32xf32> to vector<8x32xf32>
    %cst = arith.constant dense<0.000000e+00> : vector<8xf32>
    %2 = vector.multi_reduction <add>, %1, %cst [1] : vector<8x32xf32> to vector<8xf32>
    %3 = vector.shape_cast %2 : vector<8xf32> to vector<8x1xf32>
    %cst_2 = arith.constant 3.200000e+01 : f32
    %4 = vector.broadcast %cst_2 : f32 to vector<8x1xf32>
    %5 = arith.divf %3, %4 : vector<8x1xf32>
    %6 = vector.broadcast %5 : vector<8x1xf32> to vector<8x32xf32>
    %7 = arith.subf %1, %6 : vector<8x32xf32>
    %8 = arith.mulf %7, %7 : vector<8x32xf32>
    %cst_3 = arith.constant dense<0.000000e+00> : vector<8xf32>
    %9 = vector.multi_reduction <add>, %8, %cst_3 [1] : vector<8x32xf32> to vector<8xf32>
    %10 = vector.shape_cast %9 : vector<8xf32> to vector<8x1xf32>
    %cst_4 = arith.constant 3.200000e+01 : f32
    %11 = vector.broadcast %cst_4 : f32 to vector<8x1xf32>
    %12 = arith.divf %10, %11 : vector<8x1xf32>
    %13 = vector.broadcast %5 : vector<8x1xf32> to vector<8x32xf32>
    %14 = arith.subf %1, %13 : vector<8x32xf32>
    %cst_5 = arith.constant 9.99999997E-7 : f32
    %15 = vector.broadcast %cst_5 : f32 to vector<8x1xf32>
    %16 = arith.addf %12, %15 : vector<8x1xf32>
    %17 = math.rsqrt %16 : vector<8x1xf32>
    %18 = vector.broadcast %17 : vector<8x1xf32> to vector<8x32xf32>
    %19 = arith.mulf %14, %18 : vector<8x32xf32>
    %c0_6 = arith.constant 0 : index
    %c0_7 = arith.constant 0 : index
    %20 = vector.load %arg7[%c0_6, %c0_7] : memref<1x32xf32, #tpu.memory_space<vmem>>, vector<1x32xf32>
    %21 = vector.broadcast %20 : vector<1x32xf32> to vector<8x32xf32>
    %22 = arith.mulf %19, %21 : vector<8x32xf32>
    %c0_8 = arith.constant 0 : index
    %c0_9 = arith.constant 0 : index
    %23 = vector.load %arg8[%c0_8, %c0_9] : memref<1x32xf32, #tpu.memory_space<vmem>>, vector<1x32xf32>
    %24 = vector.broadcast %23 : vector<1x32xf32> to vector<8x32xf32>
    %25 = arith.addf %22, %24 : vector<8x32xf32>
    %26 = arith.truncf %25 : vector<8x32xf32> to vector<8x32xbf16>
    %c0_10 = arith.constant 0 : index
    %c0_11 = arith.constant 0 : index
    %c0_12 = arith.constant 0 : index
    %27 = vector.load %arg3[%c0_10, %c0_11, %c0_12] : memref<1x16x32xf32, #tpu.memory_space<vmem>>, vector<1x16x32xf32>
    %28 = vector.shape_cast %27 : vector<1x16x32xf32> to vector<16x32xf32>
    %c0_13 = arith.constant 0 : index
    %c0_14 = arith.constant 0 : index
    %c0_15 = arith.constant 0 : index
    %29 = vector.load %arg5[%c0_13, %c0_14, %c0_15] : memref<1x1x16xf32, #tpu.memory_space<vmem>>, vector<1x1x16xf32>
    %30 = vector.shape_cast %29 : vector<1x1x16xf32> to vector<1x16xf32>
    %31 = arith.truncf %28 : vector<16x32xf32> to vector<16x32xbf16>
    %c0_16 = arith.constant 0 : index
    %c0_17 = arith.constant 0 : index
    %32 = vector.load %arg9[%c0_16, %c0_17] : memref<32x32xbf16, #tpu.memory_space<vmem>>, vector<32x32xbf16>
    %cst_18 = arith.constant dense<0.000000e+00> : vector<8x32xf32>
    %33 = tpu.matmul %26, %32, %cst_18 {dimension_numbers = #tpu.dot_dimension_numbers<[1], [0], [0], [1], [0, 0, 1, 1], [], []>} : vector<8x32xbf16>, vector<32x32xbf16>, vector<8x32xf32> -> vector<8x32xf32>
    %c0_19 = arith.constant 0 : index
    %c0_20 = arith.constant 0 : index
    %34 = vector.load %arg10[%c0_19, %c0_20] : memref<1x32xf32, #tpu.memory_space<vmem>>, vector<1x32xf32>
    %35 = vector.broadcast %34 : vector<1x32xf32> to vector<8x32xf32>
    %36 = arith.addf %33, %35 : vector<8x32xf32>
    %c0_21 = arith.constant 0 : index
    %c0_22 = arith.constant 0 : index
    %37 = vector.load %arg11[%c0_21, %c0_22] : memref<32x64xbf16, #tpu.memory_space<vmem>>, vector<32x64xbf16>
    %cst_23 = arith.constant dense<0.000000e+00> : vector<16x64xf32>
    %38 = tpu.matmul %31, %37, %cst_23 {dimension_numbers = #tpu.dot_dimension_numbers<[1], [0], [0], [1], [0, 0, 1, 1], [], []>} : vector<16x32xbf16>, vector<32x64xbf16>, vector<16x64xf32> -> vector<16x64xf32>
    %c0_24 = arith.constant 0 : index
    %c0_25 = arith.constant 0 : index
    %39 = vector.load %arg12[%c0_24, %c0_25] : memref<1x64xf32, #tpu.memory_space<vmem>>, vector<1x64xf32>
    %40 = vector.broadcast %39 : vector<1x64xf32> to vector<16x64xf32>
    %41 = arith.addf %38, %40 : vector<16x64xf32>
    %42 = vector.extract_strided_slice %36 {offsets = [0, 0], sizes = [8, 8], strides = [1, 1]} : vector<8x32xf32> to vector<8x8xf32>
    %43 = arith.truncf %42 : vector<8x8xf32> to vector<8x8xbf16>
    %44 = vector.extract_strided_slice %41 {offsets = [0, 0], sizes = [16, 8], strides = [1, 1]} : vector<16x64xf32> to vector<16x8xf32>
    %45 = arith.truncf %44 : vector<16x8xf32> to vector<16x8xbf16>
    %46 = vector.extract_strided_slice %41 {offsets = [0, 32], sizes = [16, 8], strides = [1, 1]} : vector<16x64xf32> to vector<16x8xf32>
    %47 = arith.truncf %46 : vector<16x8xf32> to vector<16x8xbf16>
    %cst_26 = arith.constant dense<0.000000e+00> : vector<8x16xf32>
    %48 = tpu.matmul %43, %45, %cst_26 {dimension_numbers = #tpu.dot_dimension_numbers<[1], [1], [0], [0], [0, 0, 1, 0], [], []>} : vector<8x8xbf16>, vector<16x8xbf16>, vector<8x16xf32> -> vector<8x16xf32>
    %cst_27 = arith.constant 0.353553385 : f32
    %49 = vector.broadcast %cst_27 : f32 to vector<8x16xf32>
    %50 = arith.mulf %48, %49 : vector<8x16xf32>
    %51 = vector.broadcast %30 : vector<1x16xf32> to vector<8x16xf32>
    %52 = arith.addf %50, %51 : vector<8x16xf32>
    %cst_28 = arith.constant dense<0xFF800000> : vector<8xf32>
    %53 = vector.multi_reduction <maximumf>, %52, %cst_28 [1] : vector<8x16xf32> to vector<8xf32>
    %54 = vector.shape_cast %53 : vector<8xf32> to vector<8x1xf32>
    %55 = vector.broadcast %54 : vector<8x1xf32> to vector<8x16xf32>
    %56 = arith.subf %52, %55 : vector<8x16xf32>
    %57 = math.exp %56 : vector<8x16xf32>
    %cst_29 = arith.constant dense<0.000000e+00> : vector<8xf32>
    %58 = vector.multi_reduction <add>, %57, %cst_29 [1] : vector<8x16xf32> to vector<8xf32>
    %59 = vector.shape_cast %58 : vector<8xf32> to vector<8x1xf32>
    %60 = vector.broadcast %59 : vector<8x1xf32> to vector<8x16xf32>
    %61 = arith.divf %57, %60 : vector<8x16xf32>
    %62 = arith.truncf %61 : vector<8x16xf32> to vector<8x16xbf16>
    %cst_30 = arith.constant dense<0.000000e+00> : vector<8x8xf32>
    %63 = tpu.matmul %62, %47, %cst_30 {dimension_numbers = #tpu.dot_dimension_numbers<[1], [0], [0], [1], [0, 0, 1, 1], [], []>} : vector<8x16xbf16>, vector<16x8xbf16>, vector<8x8xf32> -> vector<8x8xf32>
    %64 = arith.truncf %63 : vector<8x8xf32> to vector<8x8xbf16>
    %65 = vector.extract_strided_slice %36 {offsets = [0, 8], sizes = [8, 8], strides = [1, 1]} : vector<8x32xf32> to vector<8x8xf32>
    %66 = arith.truncf %65 : vector<8x8xf32> to vector<8x8xbf16>
    %67 = vector.extract_strided_slice %41 {offsets = [0, 8], sizes = [16, 8], strides = [1, 1]} : vector<16x64xf32> to vector<16x8xf32>
    %68 = arith.truncf %67 : vector<16x8xf32> to vector<16x8xbf16>
    %69 = vector.extract_strided_slice %41 {offsets = [0, 40], sizes = [16, 8], strides = [1, 1]} : vector<16x64xf32> to vector<16x8xf32>
    %70 = arith.truncf %69 : vector<16x8xf32> to vector<16x8xbf16>
    %cst_31 = arith.constant dense<0.000000e+00> : vector<8x16xf32>
    %71 = tpu.matmul %66, %68, %cst_31 {dimension_numbers = #tpu.dot_dimension_numbers<[1], [1], [0], [0], [0, 0, 1, 0], [], []>} : vector<8x8xbf16>, vector<16x8xbf16>, vector<8x16xf32> -> vector<8x16xf32>
    %cst_32 = arith.constant 0.353553385 : f32
    %72 = vector.broadcast %cst_32 : f32 to vector<8x16xf32>
    %73 = arith.mulf %71, %72 : vector<8x16xf32>
    %74 = vector.broadcast %30 : vector<1x16xf32> to vector<8x16xf32>
    %75 = arith.addf %73, %74 : vector<8x16xf32>
    %cst_33 = arith.constant dense<0xFF800000> : vector<8xf32>
    %76 = vector.multi_reduction <maximumf>, %75, %cst_33 [1] : vector<8x16xf32> to vector<8xf32>
    %77 = vector.shape_cast %76 : vector<8xf32> to vector<8x1xf32>
    %78 = vector.broadcast %77 : vector<8x1xf32> to vector<8x16xf32>
    %79 = arith.subf %75, %78 : vector<8x16xf32>
    %80 = math.exp %79 : vector<8x16xf32>
    %cst_34 = arith.constant dense<0.000000e+00> : vector<8xf32>
    %81 = vector.multi_reduction <add>, %80, %cst_34 [1] : vector<8x16xf32> to vector<8xf32>
    %82 = vector.shape_cast %81 : vector<8xf32> to vector<8x1xf32>
    %83 = vector.broadcast %82 : vector<8x1xf32> to vector<8x16xf32>
    %84 = arith.divf %80, %83 : vector<8x16xf32>
    %85 = arith.addf %61, %84 : vector<8x16xf32>
    %86 = arith.truncf %84 : vector<8x16xf32> to vector<8x16xbf16>
    %cst_35 = arith.constant dense<0.000000e+00> : vector<8x8xf32>
    %87 = tpu.matmul %86, %70, %cst_35 {dimension_numbers = #tpu.dot_dimension_numbers<[1], [0], [0], [1], [0, 0, 1, 1], [], []>} : vector<8x16xbf16>, vector<16x8xbf16>, vector<8x8xf32> -> vector<8x8xf32>
    %88 = arith.truncf %87 : vector<8x8xf32> to vector<8x8xbf16>
    %89 = vector.extract_strided_slice %36 {offsets = [0, 16], sizes = [8, 8], strides = [1, 1]} : vector<8x32xf32> to vector<8x8xf32>
    %90 = arith.truncf %89 : vector<8x8xf32> to vector<8x8xbf16>
    %91 = vector.extract_strided_slice %41 {offsets = [0, 16], sizes = [16, 8], strides = [1, 1]} : vector<16x64xf32> to vector<16x8xf32>
    %92 = arith.truncf %91 : vector<16x8xf32> to vector<16x8xbf16>
    %93 = vector.extract_strided_slice %41 {offsets = [0, 48], sizes = [16, 8], strides = [1, 1]} : vector<16x64xf32> to vector<16x8xf32>
    %94 = arith.truncf %93 : vector<16x8xf32> to vector<16x8xbf16>
    %cst_36 = arith.constant dense<0.000000e+00> : vector<8x16xf32>
    %95 = tpu.matmul %90, %92, %cst_36 {dimension_numbers = #tpu.dot_dimension_numbers<[1], [1], [0], [0], [0, 0, 1, 0], [], []>} : vector<8x8xbf16>, vector<16x8xbf16>, vector<8x16xf32> -> vector<8x16xf32>
    %cst_37 = arith.constant 0.353553385 : f32
    %96 = vector.broadcast %cst_37 : f32 to vector<8x16xf32>
    %97 = arith.mulf %95, %96 : vector<8x16xf32>
    %98 = vector.broadcast %30 : vector<1x16xf32> to vector<8x16xf32>
    %99 = arith.addf %97, %98 : vector<8x16xf32>
    %cst_38 = arith.constant dense<0xFF800000> : vector<8xf32>
    %100 = vector.multi_reduction <maximumf>, %99, %cst_38 [1] : vector<8x16xf32> to vector<8xf32>
    %101 = vector.shape_cast %100 : vector<8xf32> to vector<8x1xf32>
    %102 = vector.broadcast %101 : vector<8x1xf32> to vector<8x16xf32>
    %103 = arith.subf %99, %102 : vector<8x16xf32>
    %104 = math.exp %103 : vector<8x16xf32>
    %cst_39 = arith.constant dense<0.000000e+00> : vector<8xf32>
    %105 = vector.multi_reduction <add>, %104, %cst_39 [1] : vector<8x16xf32> to vector<8xf32>
    %106 = vector.shape_cast %105 : vector<8xf32> to vector<8x1xf32>
    %107 = vector.broadcast %106 : vector<8x1xf32> to vector<8x16xf32>
    %108 = arith.divf %104, %107 : vector<8x16xf32>
    %109 = arith.addf %85, %108 : vector<8x16xf32>
    %110 = arith.truncf %108 : vector<8x16xf32> to vector<8x16xbf16>
    %cst_40 = arith.constant dense<0.000000e+00> : vector<8x8xf32>
    %111 = tpu.matmul %110, %94, %cst_40 {dimension_numbers = #tpu.dot_dimension_numbers<[1], [0], [0], [1], [0, 0, 1, 1], [], []>} : vector<8x16xbf16>, vector<16x8xbf16>, vector<8x8xf32> -> vector<8x8xf32>
    %112 = arith.truncf %111 : vector<8x8xf32> to vector<8x8xbf16>
    %113 = vector.extract_strided_slice %36 {offsets = [0, 24], sizes = [8, 8], strides = [1, 1]} : vector<8x32xf32> to vector<8x8xf32>
    %114 = arith.truncf %113 : vector<8x8xf32> to vector<8x8xbf16>
    %115 = vector.extract_strided_slice %41 {offsets = [0, 24], sizes = [16, 8], strides = [1, 1]} : vector<16x64xf32> to vector<16x8xf32>
    %116 = arith.truncf %115 : vector<16x8xf32> to vector<16x8xbf16>
    %117 = vector.extract_strided_slice %41 {offsets = [0, 56], sizes = [16, 8], strides = [1, 1]} : vector<16x64xf32> to vector<16x8xf32>
    %118 = arith.truncf %117 : vector<16x8xf32> to vector<16x8xbf16>
    %cst_41 = arith.constant dense<0.000000e+00> : vector<8x16xf32>
    %119 = tpu.matmul %114, %116, %cst_41 {dimension_numbers = #tpu.dot_dimension_numbers<[1], [1], [0], [0], [0, 0, 1, 0], [], []>} : vector<8x8xbf16>, vector<16x8xbf16>, vector<8x16xf32> -> vector<8x16xf32>
    %cst_42 = arith.constant 0.353553385 : f32
    %120 = vector.broadcast %cst_42 : f32 to vector<8x16xf32>
    %121 = arith.mulf %119, %120 : vector<8x16xf32>
    %122 = vector.broadcast %30 : vector<1x16xf32> to vector<8x16xf32>
    %123 = arith.addf %121, %122 : vector<8x16xf32>
    %cst_43 = arith.constant dense<0xFF800000> : vector<8xf32>
    %124 = vector.multi_reduction <maximumf>, %123, %cst_43 [1] : vector<8x16xf32> to vector<8xf32>
    %125 = vector.shape_cast %124 : vector<8xf32> to vector<8x1xf32>
    %126 = vector.broadcast %125 : vector<8x1xf32> to vector<8x16xf32>
    %127 = arith.subf %123, %126 : vector<8x16xf32>
    %128 = math.exp %127 : vector<8x16xf32>
    %cst_44 = arith.constant dense<0.000000e+00> : vector<8xf32>
    %129 = vector.multi_reduction <add>, %128, %cst_44 [1] : vector<8x16xf32> to vector<8xf32>
    %130 = vector.shape_cast %129 : vector<8xf32> to vector<8x1xf32>
    %131 = vector.broadcast %130 : vector<8x1xf32> to vector<8x16xf32>
    %132 = arith.divf %128, %131 : vector<8x16xf32>
    %133 = arith.addf %109, %132 : vector<8x16xf32>
    %134 = arith.truncf %132 : vector<8x16xf32> to vector<8x16xbf16>
    %cst_45 = arith.constant dense<0.000000e+00> : vector<8x8xf32>
    %135 = tpu.matmul %134, %118, %cst_45 {dimension_numbers = #tpu.dot_dimension_numbers<[1], [0], [0], [1], [0, 0, 1, 1], [], []>} : vector<8x16xbf16>, vector<16x8xbf16>, vector<8x8xf32> -> vector<8x8xf32>
    %136 = arith.truncf %135 : vector<8x8xf32> to vector<8x8xbf16>
    %137 = tpu.concatenate %64, %88, %112, %136 in 1 : vector<8x8xbf16>, vector<8x8xbf16>, vector<8x8xbf16>, vector<8x8xbf16> -> vector<8x32xbf16>
    %c0_46 = arith.constant 0 : index
    %c0_47 = arith.constant 0 : index
    %138 = vector.load %arg13[%c0_46, %c0_47] : memref<32x32xbf16, #tpu.memory_space<vmem>>, vector<32x32xbf16>
    %cst_48 = arith.constant dense<0.000000e+00> : vector<8x32xf32>
    %139 = tpu.matmul %137, %138, %cst_48 {dimension_numbers = #tpu.dot_dimension_numbers<[1], [0], [0], [1], [0, 0, 1, 1], [], []>} : vector<8x32xbf16>, vector<32x32xbf16>, vector<8x32xf32> -> vector<8x32xf32>
    %c0_49 = arith.constant 0 : index
    %c0_50 = arith.constant 0 : index
    %140 = vector.load %arg14[%c0_49, %c0_50] : memref<1x32xf32, #tpu.memory_space<vmem>>, vector<1x32xf32>
    %141 = vector.broadcast %140 : vector<1x32xf32> to vector<8x32xf32>
    %142 = arith.addf %139, %141 : vector<8x32xf32>
    %cst_51 = arith.constant 2.500000e-01 : f32
    %143 = vector.broadcast %cst_51 : f32 to vector<8x16xf32>
    %144 = arith.mulf %133, %143 : vector<8x16xf32>
    %145 = arith.addf %1, %142 : vector<8x32xf32>
    %c0_52 = arith.constant 0 : index
    %c0_53 = arith.constant 0 : index
    %c0_54 = arith.constant 0 : index
    %146 = vector.load %arg22[%c0_52, %c0_53, %c0_54] : memref<1x8x16xf32, #tpu.memory_space<vmem>>, vector<1x8x16xf32>
    %147 = vector.shape_cast %146 : vector<1x8x16xf32> to vector<8x16xf32>
    %148 = vector.shape_cast %144 : vector<8x16xf32> to vector<1x8x16xf32>
    tpu.vector_store %arg22[%c0_52, %c0_53, %c0_54], %148 {strides = array<i32>} : memref<1x8x16xf32, #tpu.memory_space<vmem>>, vector<1x8x16xf32>,
    %c0_55 = arith.constant 0 : index
    %c0_56 = arith.constant 0 : index
    %c0_57 = arith.constant 0 : index
    %149 = vector.load %arg4[%c0_55, %c0_56, %c0_57] : memref<1x8x32xf32, #tpu.memory_space<vmem>>, vector<1x8x32xf32>
    %150 = vector.shape_cast %149 : vector<1x8x32xf32> to vector<8x32xf32>
    %c0_58 = arith.constant 0 : index
    %c0_59 = arith.constant 0 : index
    %c0_60 = arith.constant 0 : index
    %151 = vector.load %arg6[%c0_58, %c0_59, %c0_60] : memref<1x1x8xf32, #tpu.memory_space<vmem>>, vector<1x1x8xf32>
    %152 = vector.shape_cast %151 : vector<1x1x8xf32> to vector<1x8xf32>
    %153 = arith.truncf %150 : vector<8x32xf32> to vector<8x32xbf16>
    %c0_61 = arith.constant 0 : index
    %c0_62 = arith.constant 0 : index
    %154 = vector.load %arg15[%c0_61, %c0_62] : memref<32x32xbf16, #tpu.memory_space<vmem>>, vector<32x32xbf16>
    %cst_63 = arith.constant dense<0.000000e+00> : vector<8x32xf32>
    %155 = tpu.matmul %26, %154, %cst_63 {dimension_numbers = #tpu.dot_dimension_numbers<[1], [0], [0], [1], [0, 0, 1, 1], [], []>} : vector<8x32xbf16>, vector<32x32xbf16>, vector<8x32xf32> -> vector<8x32xf32>
    %c0_64 = arith.constant 0 : index
    %c0_65 = arith.constant 0 : index
    %156 = vector.load %arg16[%c0_64, %c0_65] : memref<1x32xf32, #tpu.memory_space<vmem>>, vector<1x32xf32>
    %157 = vector.broadcast %156 : vector<1x32xf32> to vector<8x32xf32>
    %158 = arith.addf %155, %157 : vector<8x32xf32>
    %c0_66 = arith.constant 0 : index
    %c0_67 = arith.constant 0 : index
    %159 = vector.load %arg17[%c0_66, %c0_67] : memref<32x64xbf16, #tpu.memory_space<vmem>>, vector<32x64xbf16>
    %cst_68 = arith.constant dense<0.000000e+00> : vector<8x64xf32>
    %160 = tpu.matmul %153, %159, %cst_68 {dimension_numbers = #tpu.dot_dimension_numbers<[1], [0], [0], [1], [0, 0, 1, 1], [], []>} : vector<8x32xbf16>, vector<32x64xbf16>, vector<8x64xf32> -> vector<8x64xf32>
    %c0_69 = arith.constant 0 : index
    %c0_70 = arith.constant 0 : index
    %161 = vector.load %arg18[%c0_69, %c0_70] : memref<1x64xf32, #tpu.memory_space<vmem>>, vector<1x64xf32>
    %162 = vector.broadcast %161 : vector<1x64xf32> to vector<8x64xf32>
    %163 = arith.addf %160, %162 : vector<8x64xf32>
    %164 = vector.extract_strided_slice %158 {offsets = [0, 0], sizes = [8, 8], strides = [1, 1]} : vector<8x32xf32> to vector<8x8xf32>
    %165 = arith.truncf %164 : vector<8x8xf32> to vector<8x8xbf16>
    %166 = vector.extract_strided_slice %163 {offsets = [0, 0], sizes = [8, 8], strides = [1, 1]} : vector<8x64xf32> to vector<8x8xf32>
    %167 = arith.truncf %166 : vector<8x8xf32> to vector<8x8xbf16>
    %168 = vector.extract_strided_slice %163 {offsets = [0, 32], sizes = [8, 8], strides = [1, 1]} : vector<8x64xf32> to vector<8x8xf32>
    %169 = arith.truncf %168 : vector<8x8xf32> to vector<8x8xbf16>
    %cst_71 = arith.constant dense<0.000000e+00> : vector<8x8xf32>
    %170 = tpu.matmul %165, %167, %cst_71 {dimension_numbers = #tpu.dot_dimension_numbers<[1], [1], [0], [0], [0, 0, 1, 0], [], []>} : vector<8x8xbf16>, vector<8x8xbf16>, vector<8x8xf32> -> vector<8x8xf32>
    %cst_72 = arith.constant 0.353553385 : f32
    %171 = vector.broadcast %cst_72 : f32 to vector<8x8xf32>
    %172 = arith.mulf %170, %171 : vector<8x8xf32>
    %173 = vector.broadcast %152 : vector<1x8xf32> to vector<8x8xf32>
    %174 = arith.addf %172, %173 : vector<8x8xf32>
    %cst_73 = arith.constant dense<0xFF800000> : vector<8xf32>
    %175 = vector.multi_reduction <maximumf>, %174, %cst_73 [1] : vector<8x8xf32> to vector<8xf32>
    %176 = vector.shape_cast %175 : vector<8xf32> to vector<8x1xf32>
    %177 = vector.broadcast %176 : vector<8x1xf32> to vector<8x8xf32>
    %178 = arith.subf %174, %177 : vector<8x8xf32>
    %179 = math.exp %178 : vector<8x8xf32>
    %cst_74 = arith.constant dense<0.000000e+00> : vector<8xf32>
    %180 = vector.multi_reduction <add>, %179, %cst_74 [1] : vector<8x8xf32> to vector<8xf32>
    %181 = vector.shape_cast %180 : vector<8xf32> to vector<8x1xf32>
    %182 = tpu.reciprocal %181 {approx = true} : vector<8x1xf32> -> vector<8x1xf32>
    %183 = vector.broadcast %182 : vector<8x1xf32> to vector<8x8xf32>
    %184 = arith.mulf %179, %183 : vector<8x8xf32>
    %185 = arith.truncf %184 : vector<8x8xf32> to vector<8x8xbf16>
    %cst_75 = arith.constant dense<0.000000e+00> : vector<8x8xf32>
    %186 = tpu.matmul %185, %169, %cst_75 {dimension_numbers = #tpu.dot_dimension_numbers<[1], [0], [0], [1], [0, 0, 1, 1], [], []>} : vector<8x8xbf16>, vector<8x8xbf16>, vector<8x8xf32> -> vector<8x8xf32>
    %187 = arith.truncf %186 : vector<8x8xf32> to vector<8x8xbf16>
    %188 = vector.extract_strided_slice %158 {offsets = [0, 8], sizes = [8, 8], strides = [1, 1]} : vector<8x32xf32> to vector<8x8xf32>
    %189 = arith.truncf %188 : vector<8x8xf32> to vector<8x8xbf16>
    %190 = vector.extract_strided_slice %163 {offsets = [0, 8], sizes = [8, 8], strides = [1, 1]} : vector<8x64xf32> to vector<8x8xf32>
    %191 = arith.truncf %190 : vector<8x8xf32> to vector<8x8xbf16>
    %192 = vector.extract_strided_slice %163 {offsets = [0, 40], sizes = [8, 8], strides = [1, 1]} : vector<8x64xf32> to vector<8x8xf32>
    %193 = arith.truncf %192 : vector<8x8xf32> to vector<8x8xbf16>
    %cst_76 = arith.constant dense<0.000000e+00> : vector<8x8xf32>
    %194 = tpu.matmul %189, %191, %cst_76 {dimension_numbers = #tpu.dot_dimension_numbers<[1], [1], [0], [0], [0, 0, 1, 0], [], []>} : vector<8x8xbf16>, vector<8x8xbf16>, vector<8x8xf32> -> vector<8x8xf32>
    %cst_77 = arith.constant 0.353553385 : f32
    %195 = vector.broadcast %cst_77 : f32 to vector<8x8xf32>
    %196 = arith.mulf %194, %195 : vector<8x8xf32>
    %197 = vector.broadcast %152 : vector<1x8xf32> to vector<8x8xf32>
    %198 = arith.addf %196, %197 : vector<8x8xf32>
    %cst_78 = arith.constant dense<0xFF800000> : vector<8xf32>
    %199 = vector.multi_reduction <maximumf>, %198, %cst_78 [1] : vector<8x8xf32> to vector<8xf32>
    %200 = vector.shape_cast %199 : vector<8xf32> to vector<8x1xf32>
    %201 = vector.broadcast %200 : vector<8x1xf32> to vector<8x8xf32>
    %202 = arith.subf %198, %201 : vector<8x8xf32>
    %203 = math.exp %202 : vector<8x8xf32>
    %cst_79 = arith.constant dense<0.000000e+00> : vector<8xf32>
    %204 = vector.multi_reduction <add>, %203, %cst_79 [1] : vector<8x8xf32> to vector<8xf32>
    %205 = vector.shape_cast %204 : vector<8xf32> to vector<8x1xf32>
    %206 = tpu.reciprocal %205 {approx = true} : vector<8x1xf32> -> vector<8x1xf32>
    %207 = vector.broadcast %206 : vector<8x1xf32> to vector<8x8xf32>
    %208 = arith.mulf %203, %207 : vector<8x8xf32>
    %209 = arith.truncf %208 : vector<8x8xf32> to vector<8x8xbf16>
    %cst_80 = arith.constant dense<0.000000e+00> : vector<8x8xf32>
    %210 = tpu.matmul %209, %193, %cst_80 {dimension_numbers = #tpu.dot_dimension_numbers<[1], [0], [0], [1], [0, 0, 1, 1], [], []>} : vector<8x8xbf16>, vector<8x8xbf16>, vector<8x8xf32> -> vector<8x8xf32>
    %211 = arith.truncf %210 : vector<8x8xf32> to vector<8x8xbf16>
    %212 = vector.extract_strided_slice %158 {offsets = [0, 16], sizes = [8, 8], strides = [1, 1]} : vector<8x32xf32> to vector<8x8xf32>
    %213 = arith.truncf %212 : vector<8x8xf32> to vector<8x8xbf16>
    %214 = vector.extract_strided_slice %163 {offsets = [0, 16], sizes = [8, 8], strides = [1, 1]} : vector<8x64xf32> to vector<8x8xf32>
    %215 = arith.truncf %214 : vector<8x8xf32> to vector<8x8xbf16>
    %216 = vector.extract_strided_slice %163 {offsets = [0, 48], sizes = [8, 8], strides = [1, 1]} : vector<8x64xf32> to vector<8x8xf32>
    %217 = arith.truncf %216 : vector<8x8xf32> to vector<8x8xbf16>
    %cst_81 = arith.constant dense<0.000000e+00> : vector<8x8xf32>
    %218 = tpu.matmul %213, %215, %cst_81 {dimension_numbers = #tpu.dot_dimension_numbers<[1], [1], [0], [0], [0, 0, 1, 0], [], []>} : vector<8x8xbf16>, vector<8x8xbf16>, vector<8x8xf32> -> vector<8x8xf32>
    %cst_82 = arith.constant 0.353553385 : f32
    %219 = vector.broadcast %cst_82 : f32 to vector<8x8xf32>
    %220 = arith.mulf %218, %219 : vector<8x8xf32>
    %221 = vector.broadcast %152 : vector<1x8xf32> to vector<8x8xf32>
    %222 = arith.addf %220, %221 : vector<8x8xf32>
    %cst_83 = arith.constant dense<0xFF800000> : vector<8xf32>
    %223 = vector.multi_reduction <maximumf>, %222, %cst_83 [1] : vector<8x8xf32> to vector<8xf32>
    %224 = vector.shape_cast %223 : vector<8xf32> to vector<8x1xf32>
    %225 = vector.broadcast %224 : vector<8x1xf32> to vector<8x8xf32>
    %226 = arith.subf %222, %225 : vector<8x8xf32>
    %227 = math.exp %226 : vector<8x8xf32>
    %cst_84 = arith.constant dense<0.000000e+00> : vector<8xf32>
    %228 = vector.multi_reduction <add>, %227, %cst_84 [1] : vector<8x8xf32> to vector<8xf32>
    %229 = vector.shape_cast %228 : vector<8xf32> to vector<8x1xf32>
    %230 = tpu.reciprocal %229 {approx = true} : vector<8x1xf32> -> vector<8x1xf32>
    %231 = vector.broadcast %230 : vector<8x1xf32> to vector<8x8xf32>
    %232 = arith.mulf %227, %231 : vector<8x8xf32>
    %233 = arith.truncf %232 : vector<8x8xf32> to vector<8x8xbf16>
    %cst_85 = arith.constant dense<0.000000e+00> : vector<8x8xf32>
    %234 = tpu.matmul %233, %217, %cst_85 {dimension_numbers = #tpu.dot_dimension_numbers<[1], [0], [0], [1], [0, 0, 1, 1], [], []>} : vector<8x8xbf16>, vector<8x8xbf16>, vector<8x8xf32> -> vector<8x8xf32>
    %235 = arith.truncf %234 : vector<8x8xf32> to vector<8x8xbf16>
    %236 = vector.extract_strided_slice %158 {offsets = [0, 24], sizes = [8, 8], strides = [1, 1]} : vector<8x32xf32> to vector<8x8xf32>
    %237 = arith.truncf %236 : vector<8x8xf32> to vector<8x8xbf16>
    %238 = vector.extract_strided_slice %163 {offsets = [0, 24], sizes = [8, 8], strides = [1, 1]} : vector<8x64xf32> to vector<8x8xf32>
    %239 = arith.truncf %238 : vector<8x8xf32> to vector<8x8xbf16>
    %240 = vector.extract_strided_slice %163 {offsets = [0, 56], sizes = [8, 8], strides = [1, 1]} : vector<8x64xf32> to vector<8x8xf32>
    %241 = arith.truncf %240 : vector<8x8xf32> to vector<8x8xbf16>
    %cst_86 = arith.constant dense<0.000000e+00> : vector<8x8xf32>
    %242 = tpu.matmul %237, %239, %cst_86 {dimension_numbers = #tpu.dot_dimension_numbers<[1], [1], [0], [0], [0, 0, 1, 0], [], []>} : vector<8x8xbf16>, vector<8x8xbf16>, vector<8x8xf32> -> vector<8x8xf32>
    %cst_87 = arith.constant 0.353553385 : f32
    %243 = vector.broadcast %cst_87 : f32 to vector<8x8xf32>
    %244 = arith.mulf %242, %243 : vector<8x8xf32>
    %245 = vector.broadcast %152 : vector<1x8xf32> to vector<8x8xf32>
    %246 = arith.addf %244, %245 : vector<8x8xf32>
    %cst_88 = arith.constant dense<0xFF800000> : vector<8xf32>
    %247 = vector.multi_reduction <maximumf>, %246, %cst_88 [1] : vector<8x8xf32> to vector<8xf32>
    %248 = vector.shape_cast %247 : vector<8xf32> to vector<8x1xf32>
    %249 = vector.broadcast %248 : vector<8x1xf32> to vector<8x8xf32>
    %250 = arith.subf %246, %249 : vector<8x8xf32>
    %251 = math.exp %250 : vector<8x8xf32>
    %cst_89 = arith.constant dense<0.000000e+00> : vector<8xf32>
    %252 = vector.multi_reduction <add>, %251, %cst_89 [1] : vector<8x8xf32> to vector<8xf32>
    %253 = vector.shape_cast %252 : vector<8xf32> to vector<8x1xf32>
    %254 = tpu.reciprocal %253 {approx = true} : vector<8x1xf32> -> vector<8x1xf32>
    %255 = vector.broadcast %254 : vector<8x1xf32> to vector<8x8xf32>
    %256 = arith.mulf %251, %255 : vector<8x8xf32>
    %257 = arith.truncf %256 : vector<8x8xf32> to vector<8x8xbf16>
    %cst_90 = arith.constant dense<0.000000e+00> : vector<8x8xf32>
    %258 = tpu.matmul %257, %241, %cst_90 {dimension_numbers = #tpu.dot_dimension_numbers<[1], [0], [0], [1], [0, 0, 1, 1], [], []>} : vector<8x8xbf16>, vector<8x8xbf16>, vector<8x8xf32> -> vector<8x8xf32>
    %259 = arith.truncf %258 : vector<8x8xf32> to vector<8x8xbf16>
    %260 = tpu.concatenate %187, %211, %235, %259 in 1 : vector<8x8xbf16>, vector<8x8xbf16>, vector<8x8xbf16>, vector<8x8xbf16> -> vector<8x32xbf16>
    %c0_91 = arith.constant 0 : index
    %c0_92 = arith.constant 0 : index
    %261 = vector.load %arg19[%c0_91, %c0_92] : memref<32x32xbf16, #tpu.memory_space<vmem>>, vector<32x32xbf16>
    %cst_93 = arith.constant dense<0.000000e+00> : vector<8x32xf32>
    %262 = tpu.matmul %260, %261, %cst_93 {dimension_numbers = #tpu.dot_dimension_numbers<[1], [0], [0], [1], [0, 0, 1, 1], [], []>} : vector<8x32xbf16>, vector<32x32xbf16>, vector<8x32xf32> -> vector<8x32xf32>
    %c0_94 = arith.constant 0 : index
    %c0_95 = arith.constant 0 : index
    %263 = vector.load %arg20[%c0_94, %c0_95] : memref<1x32xf32, #tpu.memory_space<vmem>>, vector<1x32xf32>
    %264 = vector.broadcast %263 : vector<1x32xf32> to vector<8x32xf32>
    %265 = arith.addf %262, %264 : vector<8x32xf32>
    %266 = arith.addf %145, %265 : vector<8x32xf32>
    %c0_96 = arith.constant 0 : index
    %c0_97 = arith.constant 0 : index
    %c0_98 = arith.constant 0 : index
    %267 = vector.load %arg21[%c0_96, %c0_97, %c0_98] : memref<1x8x32xf32, #tpu.memory_space<vmem>>, vector<1x8x32xf32>
    %268 = vector.shape_cast %267 : vector<1x8x32xf32> to vector<8x32xf32>
    %269 = vector.shape_cast %266 : vector<8x32xf32> to vector<1x8x32xf32>
    tpu.vector_store %arg21[%c0_96, %c0_97, %c0_98], %269 {strides = array<i32>} : memref<1x8x32xf32, #tpu.memory_space<vmem>>, vector<1x8x32xf32>,
    return
  }
  func.func @transform_0(%arg0: i32, %arg1: i32) -> (i32, i32, i32) {
    %c0_i32 = arith.constant 0 : i32
    %c0_i32_0 = arith.constant 0 : i32
    return %arg0, %arg1, %c0_i32 : i32, i32, i32
  }
  func.func @transform_1(%arg0: i32, %arg1: i32) -> (i32, i32, i32) {
    %c0_i32 = arith.constant 0 : i32
    %c0_i32_0 = arith.constant 0 : i32
    %c0_i32_1 = arith.constant 0 : i32
    return %arg0, %c0_i32, %c0_i32_0 : i32, i32, i32
  }
  func.func @transform_2(%arg0: i32, %arg1: i32) -> (i32, i32, i32) {
    %c0_i32 = arith.constant 0 : i32
    %c0_i32_0 = arith.constant 0 : i32
    %c0_i32_1 = arith.constant 0 : i32
    return %arg0, %c0_i32, %c0_i32_0 : i32, i32, i32
  }
  func.func @transform_3(%arg0: i32, %arg1: i32) -> (i32, i32, i32) {
    %c0_i32 = arith.constant 0 : i32
    %c0_i32_0 = arith.constant 0 : i32
    %c0_i32_1 = arith.constant 0 : i32
    return %arg0, %c0_i32, %c0_i32_0 : i32, i32, i32
  }
  func.func @transform_4(%arg0: i32, %arg1: i32) -> (i32, i32, i32) {
    %c0_i32 = arith.constant 0 : i32
    %c0_i32_0 = arith.constant 0 : i32
    %c0_i32_1 = arith.constant 0 : i32
    return %arg0, %c0_i32, %c0_i32_0 : i32, i32, i32
  }
  func.func @transform_5(%arg0: i32, %arg1: i32) -> (i32, i32) {
    %c0_i32 = arith.constant 0 : i32
    %c0_i32_0 = arith.constant 0 : i32
    %c0_i32_1 = arith.constant 0 : i32
    return %c0_i32, %c0_i32_0 : i32, i32
  }
  func.func @transform_6(%arg0: i32, %arg1: i32) -> (i32, i32) {
    %c0_i32 = arith.constant 0 : i32
    %c0_i32_0 = arith.constant 0 : i32
    %c0_i32_1 = arith.constant 0 : i32
    return %c0_i32, %c0_i32_0 : i32, i32
  }
  func.func @transform_7(%arg0: i32, %arg1: i32) -> (i32, i32) {
    %c0_i32 = arith.constant 0 : i32
    %c0_i32_0 = arith.constant 0 : i32
    %c0_i32_1 = arith.constant 0 : i32
    return %c0_i32, %c0_i32_0 : i32, i32
  }
  func.func @transform_8(%arg0: i32, %arg1: i32) -> (i32, i32) {
    %c0_i32 = arith.constant 0 : i32
    %c0_i32_0 = arith.constant 0 : i32
    %c0_i32_1 = arith.constant 0 : i32
    return %c0_i32, %c0_i32_0 : i32, i32
  }
  func.func @transform_9(%arg0: i32, %arg1: i32) -> (i32, i32) {
    %c0_i32 = arith.constant 0 : i32
    %c0_i32_0 = arith.constant 0 : i32
    %c0_i32_1 = arith.constant 0 : i32
    return %c0_i32, %c0_i32_0 : i32, i32
  }
  func.func @transform_10(%arg0: i32, %arg1: i32) -> (i32, i32) {
    %c0_i32 = arith.constant 0 : i32
    %c0_i32_0 = arith.constant 0 : i32
    %c0_i32_1 = arith.constant 0 : i32
    return %c0_i32, %c0_i32_0 : i32, i32
  }
  func.func @transform_11(%arg0: i32, %arg1: i32) -> (i32, i32) {
    %c0_i32 = arith.constant 0 : i32
    %c0_i32_0 = arith.constant 0 : i32
    %c0_i32_1 = arith.constant 0 : i32
    return %c0_i32, %c0_i32_0 : i32, i32
  }
  func.func @transform_12(%arg0: i32, %arg1: i32) -> (i32, i32) {
    %c0_i32 = arith.constant 0 : i32
    %c0_i32_0 = arith.constant 0 : i32
    %c0_i32_1 = arith.constant 0 : i32
    return %c0_i32, %c0_i32_0 : i32, i32
  }
  func.func @transform_13(%arg0: i32, %arg1: i32) -> (i32, i32) {
    %c0_i32 = arith.constant 0 : i32
    %c0_i32_0 = arith.constant 0 : i32
    %c0_i32_1 = arith.constant 0 : i32
    return %c0_i32, %c0_i32_0 : i32, i32
  }
  func.func @transform_14(%arg0: i32, %arg1: i32) -> (i32, i32) {
    %c0_i32 = arith.constant 0 : i32
    %c0_i32_0 = arith.constant 0 : i32
    %c0_i32_1 = arith.constant 0 : i32
    return %c0_i32, %c0_i32_0 : i32, i32
  }
  func.func @transform_15(%arg0: i32, %arg1: i32) -> (i32, i32) {
    %c0_i32 = arith.constant 0 : i32
    %c0_i32_0 = arith.constant 0 : i32
    %c0_i32_1 = arith.constant 0 : i32
    return %c0_i32, %c0_i32_0 : i32, i32
  }
  func.func @transform_16(%arg0: i32, %arg1: i32) -> (i32, i32) {
    %c0_i32 = arith.constant 0 : i32
    %c0_i32_0 = arith.constant 0 : i32
    %c0_i32_1 = arith.constant 0 : i32
    return %c0_i32, %c0_i32_0 : i32, i32
  }
  func.func @transform_17(%arg0: i32, %arg1: i32) -> (i32, i32) {
    %c0_i32 = arith.constant 0 : i32
    %c0_i32_0 = arith.constant 0 : i32
    %c0_i32_1 = arith.constant 0 : i32
    return %c0_i32, %c0_i32_0 : i32, i32
  }
  func.func @transform_18(%arg0: i32, %arg1: i32) -> (i32, i32) {
    %c0_i32 = arith.constant 0 : i32
    %c0_i32_0 = arith.constant 0 : i32
    %c0_i32_1 = arith.constant 0 : i32
    return %c0_i32, %c0_i32_0 : i32, i32
  }
  func.func @transform_19(%arg0: i32, %arg1: i32) -> (i32, i32, i32) {
    %c0_i32 = arith.constant 0 : i32
    %c0_i32_0 = arith.constant 0 : i32
    return %arg0, %arg1, %c0_i32 : i32, i32, i32
  }
  func.func @transform_20(%arg0: i32, %arg1: i32) -> (i32, i32, i32) {
    %c0_i32 = arith.constant 0 : i32
    %c0_i32_0 = arith.constant 0 : i32
    return %arg0, %arg1, %c0_i32 : i32, i32, i32
  }
}

module attributes {stable_mosaic.version = 11 : i64} {
  func.func @_ffn_kernel(%arg0: i32, %arg1: i32, %arg2: memref<1x8x32xf32, #tpu.memory_space<vmem>>, %arg3: memref<1x32xf32, #tpu.memory_space<vmem>>, %arg4: memref<1x32xf32, #tpu.memory_space<vmem>>, %arg5: memref<32x64xbf16, #tpu.memory_space<vmem>>, %arg6: memref<1x64xf32, #tpu.memory_space<vmem>>, %arg7: memref<64x32xbf16, #tpu.memory_space<vmem>>, %arg8: memref<1x32xf32, #tpu.memory_space<vmem>>, %arg9: memref<1x32xf32, #tpu.memory_space<vmem>>, %arg10: memref<1x32xf32, #tpu.memory_space<vmem>>, %arg11: memref<1x8x32xf32, #tpu.memory_space<vmem>>) attributes {dimension_semantics = [#tpu.dimension_semantics<parallel>, #tpu.dimension_semantics<parallel>], iteration_bounds = array<i64: 2, 1>, scalar_prefetch = 0 : i64, scratch_operands = 0 : i64, tpu.core_type = #tpu.core_type<tc>, window_params = [{transform_indices = @transform_0, window_bounds = array<i64: 1, 8, 32>}, {pipeline_mode = #tpu.pipeline_mode<synchronous>, transform_indices = @transform_1, window_bounds = array<i64: 1, 32>}, {pipeline_mode = #tpu.pipeline_mode<synchronous>, transform_indices = @transform_2, window_bounds = array<i64: 1, 32>}, {pipeline_mode = #tpu.pipeline_mode<synchronous>, transform_indices = @transform_3, window_bounds = array<i64: 32, 64>}, {pipeline_mode = #tpu.pipeline_mode<synchronous>, transform_indices = @transform_4, window_bounds = array<i64: 1, 64>}, {pipeline_mode = #tpu.pipeline_mode<synchronous>, transform_indices = @transform_5, window_bounds = array<i64: 64, 32>}, {pipeline_mode = #tpu.pipeline_mode<synchronous>, transform_indices = @transform_6, window_bounds = array<i64: 1, 32>}, {pipeline_mode = #tpu.pipeline_mode<synchronous>, transform_indices = @transform_7, window_bounds = array<i64: 1, 32>}, {pipeline_mode = #tpu.pipeline_mode<synchronous>, transform_indices = @transform_8, window_bounds = array<i64: 1, 32>}, {transform_indices = @transform_9, window_bounds = array<i64: 1, 8, 32>}]} {
    %c0 = arith.constant 0 : index
    %c0_0 = arith.constant 0 : index
    %c0_1 = arith.constant 0 : index
    %0 = vector.load %arg2[%c0, %c0_0, %c0_1] : memref<1x8x32xf32, #tpu.memory_space<vmem>>, vector<1x8x32xf32>
    %1 = vector.shape_cast %0 : vector<1x8x32xf32> to vector<8x32xf32>
    %cst = arith.constant dense<0.000000e+00> : vector<8xf32>
    %2 = vector.multi_reduction <add>, %1, %cst [1] : vector<8x32xf32> to vector<8xf32>
    %3 = vector.shape_cast %2 : vector<8xf32> to vector<8x1xf32>
    %cst_2 = arith.constant 3.200000e+01 : f32
    %4 = vector.broadcast %cst_2 : f32 to vector<8x1xf32>
    %5 = arith.divf %3, %4 : vector<8x1xf32>
    %6 = vector.broadcast %5 : vector<8x1xf32> to vector<8x32xf32>
    %7 = arith.subf %1, %6 : vector<8x32xf32>
    %8 = arith.mulf %7, %7 : vector<8x32xf32>
    %cst_3 = arith.constant dense<0.000000e+00> : vector<8xf32>
    %9 = vector.multi_reduction <add>, %8, %cst_3 [1] : vector<8x32xf32> to vector<8xf32>
    %10 = vector.shape_cast %9 : vector<8xf32> to vector<8x1xf32>
    %cst_4 = arith.constant 3.200000e+01 : f32
    %11 = vector.broadcast %cst_4 : f32 to vector<8x1xf32>
    %12 = arith.divf %10, %11 : vector<8x1xf32>
    %13 = vector.broadcast %5 : vector<8x1xf32> to vector<8x32xf32>
    %14 = arith.subf %1, %13 : vector<8x32xf32>
    %cst_5 = arith.constant 9.99999997E-7 : f32
    %15 = vector.broadcast %cst_5 : f32 to vector<8x1xf32>
    %16 = arith.addf %12, %15 : vector<8x1xf32>
    %17 = math.rsqrt %16 : vector<8x1xf32>
    %18 = vector.broadcast %17 : vector<8x1xf32> to vector<8x32xf32>
    %19 = arith.mulf %14, %18 : vector<8x32xf32>
    %c0_6 = arith.constant 0 : index
    %c0_7 = arith.constant 0 : index
    %20 = vector.load %arg3[%c0_6, %c0_7] : memref<1x32xf32, #tpu.memory_space<vmem>>, vector<1x32xf32>
    %21 = vector.broadcast %20 : vector<1x32xf32> to vector<8x32xf32>
    %22 = arith.mulf %19, %21 : vector<8x32xf32>
    %c0_8 = arith.constant 0 : index
    %c0_9 = arith.constant 0 : index
    %23 = vector.load %arg4[%c0_8, %c0_9] : memref<1x32xf32, #tpu.memory_space<vmem>>, vector<1x32xf32>
    %24 = vector.broadcast %23 : vector<1x32xf32> to vector<8x32xf32>
    %25 = arith.addf %22, %24 : vector<8x32xf32>
    %26 = arith.truncf %25 : vector<8x32xf32> to vector<8x32xbf16>
    %c0_10 = arith.constant 0 : index
    %c0_11 = arith.constant 0 : index
    %27 = vector.load %arg5[%c0_10, %c0_11] : memref<32x64xbf16, #tpu.memory_space<vmem>>, vector<32x64xbf16>
    %cst_12 = arith.constant dense<0.000000e+00> : vector<8x64xf32>
    %28 = tpu.matmul %26, %27, %cst_12 {dimension_numbers = #tpu.dot_dimension_numbers<[1], [0], [0], [1], [0, 0, 1, 1], [], []>} : vector<8x32xbf16>, vector<32x64xbf16>, vector<8x64xf32> -> vector<8x64xf32>
    %c0_13 = arith.constant 0 : index
    %c0_14 = arith.constant 0 : index
    %29 = vector.load %arg6[%c0_13, %c0_14] : memref<1x64xf32, #tpu.memory_space<vmem>>, vector<1x64xf32>
    %30 = vector.broadcast %29 : vector<1x64xf32> to vector<8x64xf32>
    %31 = arith.addf %28, %30 : vector<8x64xf32>
    %cst_15 = arith.constant 0.000000e+00 : f32
    %32 = vector.broadcast %cst_15 : f32 to vector<8x64xf32>
    %33 = arith.maximumf %31, %32 : vector<8x64xf32>
    %34 = arith.truncf %33 : vector<8x64xf32> to vector<8x64xbf16>
    %c0_16 = arith.constant 0 : index
    %c0_17 = arith.constant 0 : index
    %35 = vector.load %arg7[%c0_16, %c0_17] : memref<64x32xbf16, #tpu.memory_space<vmem>>, vector<64x32xbf16>
    %cst_18 = arith.constant dense<0.000000e+00> : vector<8x32xf32>
    %36 = tpu.matmul %34, %35, %cst_18 {dimension_numbers = #tpu.dot_dimension_numbers<[1], [0], [0], [1], [0, 0, 1, 1], [], []>} : vector<8x64xbf16>, vector<64x32xbf16>, vector<8x32xf32> -> vector<8x32xf32>
    %c0_19 = arith.constant 0 : index
    %c0_20 = arith.constant 0 : index
    %37 = vector.load %arg8[%c0_19, %c0_20] : memref<1x32xf32, #tpu.memory_space<vmem>>, vector<1x32xf32>
    %38 = vector.broadcast %37 : vector<1x32xf32> to vector<8x32xf32>
    %39 = arith.addf %36, %38 : vector<8x32xf32>
    %40 = arith.addf %39, %1 : vector<8x32xf32>
    %cst_21 = arith.constant dense<0.000000e+00> : vector<8xf32>
    %41 = vector.multi_reduction <add>, %40, %cst_21 [1] : vector<8x32xf32> to vector<8xf32>
    %42 = vector.shape_cast %41 : vector<8xf32> to vector<8x1xf32>
    %cst_22 = arith.constant 3.200000e+01 : f32
    %43 = vector.broadcast %cst_22 : f32 to vector<8x1xf32>
    %44 = arith.divf %42, %43 : vector<8x1xf32>
    %45 = vector.broadcast %44 : vector<8x1xf32> to vector<8x32xf32>
    %46 = arith.subf %40, %45 : vector<8x32xf32>
    %47 = arith.mulf %46, %46 : vector<8x32xf32>
    %cst_23 = arith.constant dense<0.000000e+00> : vector<8xf32>
    %48 = vector.multi_reduction <add>, %47, %cst_23 [1] : vector<8x32xf32> to vector<8xf32>
    %49 = vector.shape_cast %48 : vector<8xf32> to vector<8x1xf32>
    %cst_24 = arith.constant 3.200000e+01 : f32
    %50 = vector.broadcast %cst_24 : f32 to vector<8x1xf32>
    %51 = arith.divf %49, %50 : vector<8x1xf32>
    %52 = vector.broadcast %44 : vector<8x1xf32> to vector<8x32xf32>
    %53 = arith.subf %40, %52 : vector<8x32xf32>
    %cst_25 = arith.constant 9.99999997E-7 : f32
    %54 = vector.broadcast %cst_25 : f32 to vector<8x1xf32>
    %55 = arith.addf %51, %54 : vector<8x1xf32>
    %56 = math.rsqrt %55 : vector<8x1xf32>
    %57 = vector.broadcast %56 : vector<8x1xf32> to vector<8x32xf32>
    %58 = arith.mulf %53, %57 : vector<8x32xf32>
    %c0_26 = arith.constant 0 : index
    %c0_27 = arith.constant 0 : index
    %59 = vector.load %arg9[%c0_26, %c0_27] : memref<1x32xf32, #tpu.memory_space<vmem>>, vector<1x32xf32>
    %60 = vector.broadcast %59 : vector<1x32xf32> to vector<8x32xf32>
    %61 = arith.mulf %58, %60 : vector<8x32xf32>
    %c0_28 = arith.constant 0 : index
    %c0_29 = arith.constant 0 : index
    %62 = vector.load %arg10[%c0_28, %c0_29] : memref<1x32xf32, #tpu.memory_space<vmem>>, vector<1x32xf32>
    %63 = vector.broadcast %62 : vector<1x32xf32> to vector<8x32xf32>
    %64 = arith.addf %61, %63 : vector<8x32xf32>
    %c0_30 = arith.constant 0 : index
    %c0_31 = arith.constant 0 : index
    %c0_32 = arith.constant 0 : index
    %65 = vector.load %arg11[%c0_30, %c0_31, %c0_32] : memref<1x8x32xf32, #tpu.memory_space<vmem>>, vector<1x8x32xf32>
    %66 = vector.shape_cast %65 : vector<1x8x32xf32> to vector<8x32xf32>
    %67 = vector.shape_cast %64 : vector<8x32xf32> to vector<1x8x32xf32>
    tpu.vector_store %arg11[%c0_30, %c0_31, %c0_32], %67 {strides = array<i32>} : memref<1x8x32xf32, #tpu.memory_space<vmem>>, vector<1x8x32xf32>,
    return
  }
  func.func @transform_0(%arg0: i32, %arg1: i32) -> (i32, i32, i32) {
    %c0_i32 = arith.constant 0 : i32
    %c0_i32_0 = arith.constant 0 : i32
    return %arg0, %arg1, %c0_i32 : i32, i32, i32
  }
  func.func @transform_1(%arg0: i32, %arg1: i32) -> (i32, i32) {
    %c0_i32 = arith.constant 0 : i32
    %c0_i32_0 = arith.constant 0 : i32
    %c0_i32_1 = arith.constant 0 : i32
    return %c0_i32, %c0_i32_0 : i32, i32
  }
  func.func @transform_2(%arg0: i32, %arg1: i32) -> (i32, i32) {
    %c0_i32 = arith.constant 0 : i32
    %c0_i32_0 = arith.constant 0 : i32
    %c0_i32_1 = arith.constant 0 : i32
    return %c0_i32, %c0_i32_0 : i32, i32
  }
  func.func @transform_3(%arg0: i32, %arg1: i32) -> (i32, i32) {
    %c0_i32 = arith.constant 0 : i32
    %c0_i32_0 = arith.constant 0 : i32
    %c0_i32_1 = arith.constant 0 : i32
    return %c0_i32, %c0_i32_0 : i32, i32
  }
  func.func @transform_4(%arg0: i32, %arg1: i32) -> (i32, i32) {
    %c0_i32 = arith.constant 0 : i32
    %c0_i32_0 = arith.constant 0 : i32
    %c0_i32_1 = arith.constant 0 : i32
    return %c0_i32, %c0_i32_0 : i32, i32
  }
  func.func @transform_5(%arg0: i32, %arg1: i32) -> (i32, i32) {
    %c0_i32 = arith.constant 0 : i32
    %c0_i32_0 = arith.constant 0 : i32
    %c0_i32_1 = arith.constant 0 : i32
    return %c0_i32, %c0_i32_0 : i32, i32
  }
  func.func @transform_6(%arg0: i32, %arg1: i32) -> (i32, i32) {
    %c0_i32 = arith.constant 0 : i32
    %c0_i32_0 = arith.constant 0 : i32
    %c0_i32_1 = arith.constant 0 : i32
    return %c0_i32, %c0_i32_0 : i32, i32
  }
  func.func @transform_7(%arg0: i32, %arg1: i32) -> (i32, i32) {
    %c0_i32 = arith.constant 0 : i32
    %c0_i32_0 = arith.constant 0 : i32
    %c0_i32_1 = arith.constant 0 : i32
    return %c0_i32, %c0_i32_0 : i32, i32
  }
  func.func @transform_8(%arg0: i32, %arg1: i32) -> (i32, i32) {
    %c0_i32 = arith.constant 0 : i32
    %c0_i32_0 = arith.constant 0 : i32
    %c0_i32_1 = arith.constant 0 : i32
    return %c0_i32, %c0_i32_0 : i32, i32
  }
  func.func @transform_9(%arg0: i32, %arg1: i32) -> (i32, i32, i32) {
    %c0_i32 = arith.constant 0 : i32
    %c0_i32_0 = arith.constant 0 : i32
    return %arg0, %arg1, %c0_i32 : i32, i32, i32
  }
}

</mosaic_0001>

<llo_original>
// kernel: decoder_forward.8
$region0: #{decoder_forward.8}
  #allocation0 [shape = 'u32[]', space=smem, size = 0x4, offset = 0x4, fixed_abs, tag = 'smem constant byte address 0x4 - core index']
  #allocation1 [shape = 'u32[72,128]{1,0:T(1,128)}', space=vmem, size = 0x9000, scoped, tag = 'internal scratch']
  %s0 = inlined_call_operand.vmem [shape: f32[2,8,32], index: 0, kind: input, shape index: {}]
  %s1 = inlined_call_operand.vmem [shape: f32[1,32], index: 1, kind: input, shape index: {}]
  %s2 = inlined_call_operand.vmem [shape: f32[1,32], index: 2, kind: input, shape index: {}]
  %s3 = inlined_call_operand.vmem [shape: bf16[32,64], index: 3, kind: input, shape index: {}]
  %s4 = inlined_call_operand.hbm [shape: f32[1,64], index: 4, kind: input, shape index: {}]
  %s5 = inlined_call_operand.vmem [shape: bf16[64,32], index: 5, kind: input, shape index: {}]
  %s6 = inlined_call_operand.hbm [shape: f32[1,32], index: 6, kind: input, shape index: {}]
  %s7 = inlined_call_operand.vmem [shape: f32[2,8,32], index: 7, kind: output, shape index: {}]
  %s8 = sld [smem:[#allocation0]]
  $region69: #{decoder_forward.8} parent=0
    _
  %s10 = ssub.s32 1, %s8
  %s11 = scalar_select 0, %s10, %s8
  $region1: #{decoder_forward.8} parent=0
    #allocation2 [shape = 'u8[512]{0}', space=vmem, size = 0x400, scoped, tag = 'input window, operand 4, single buffered']
    #allocation3 [shape = 's32[2]{0}', space=sflag, size = 0x8, scoped, tag = 'scoped memory for decoder_forward.8']
    #allocation4 [shape = 'u8[512]{0}', space=vmem, size = 0x400, scoped, tag = 'input window, operand 6, single buffered']
    #allocation5 [shape = 's32[1]{0}', space=sflag, size = 0x4, scoped, tag = 'scoped memory for decoder_forward.8']
    %12 = vsyncpa [#allocation3], 0
    %13 = vsyncpa [#allocation5], 0
    loop: start=0, step=1, limit=4
    $region2: #{decoder_forward.8} parent=1 // loop_pre_header
      _
    $region3: #{decoder_forward.8} parent=1 // loop_header
      %s15 = sphi 0, %s19
      %p16 = scmp.ge.s32.totalorder %s15, 4
      %s22 = sphi 0, %s34
      %s23 = sphi 0, %s30
      %s24 = sphi 0, %s22
      %s25 = sphi 0, %s23
      %s26 = sphi 0, %s24
      %s27 = sphi 0, %s25
      %s39 = sphi 0, %s41
      %s42 = sphi 0, %s39
      %s43 = sphi 0, %s42
      %s59 = sphi 0, %s43
      %s63 = sphi 0, %s63
      %s65 = sphi 0, %s63
      %s66 = sphi 0, %s65
      %s80 = sphi 0, %s66
      %s84 = sphi 0, %s84
      %s86 = sphi 0, %s84
      %s87 = sphi 0, %s86
      %s101 = sphi 0, %s87
      %s105 = sphi 0, %s105
      %s107 = sphi 0, %s105
      %s108 = sphi 0, %s107
      %s122 = sphi 0, %s108
      %s126 = sphi 0, %s126
      %s128 = sphi 0, %s126
      %s129 = sphi 0, %s128
      %s143 = sphi 0, %s129
      %s147 = sphi 0, %s147
      %s149 = sphi 0, %s147
      %s150 = sphi 0, %s149
      %s164 = sphi 0, %s150
      %s168 = sphi 0, %s168
      %s170 = sphi 0, %s168
      %s171 = sphi 0, %s170
      %s185 = sphi 0, %s171
      %s193 = sphi 0, %s195
      %s196 = sphi 0, %s193
      %s197 = sphi 0, %s196
      %s213 = sphi 0, %s197
    $region4: #{decoder_forward.8} parent=1 // loop_header_branch
      %18 = sbr.rel (%p16) target = $region8
    $region5: #{decoder_forward.8} parent=1 // loop_body
      %s20 = ssub.s32 %s15, 1
      %s21 = ssub.s32 %s15, 2
      %s28 = sadd.s32 1, %s23
      %p29 = scmp.ge.s32.totalorder %s28, 1
      %s30 = scalar_select %p29, 0, %s28
      %s31 = sadd.s32 1, %s22
      %s32 = scalar_select %p29, %s31, %s22
      %p33 = scmp.ge.s32.totalorder %s32, 2
      %s34 = scalar_select %p33, 0, %s32
      %s35 = ssub.s32 %s22, %s34
      %s36 = ssub.s32 %s23, %s30
      %s37 = sor.u32 %s35, %s36
      %p38 = scmp.eq.s32.totalorder %s37, 0
      %s40 = sadd.s32 %s39, 1
      %s41 = scalar_select %p38, %s39, %s40
      %p44 = pneg %p38
      %p45 = scmp.eq.s32.totalorder %s15, 1
      %p46 = por %p44, %p45
      %p47 = scmp.ne.s32.totalorder %s39, %s42
      %p48 = scmp.eq.s32.totalorder %s15, 0
      %p49 = por %p47, %p48
      %p50 = scmp.ne.s32.totalorder %s39, %s42
      %p51 = scmp.eq.s32.totalorder %s20, 1
      %p52 = por %p50, %p51
      %p53 = scmp.ne.s32.totalorder %s42, %s43
      %p54 = scmp.eq.s32.totalorder %s20, 0
      %p55 = por %p53, %p54
      %p56 = scmp.ne.s32.totalorder %s42, %s43
      %p57 = scmp.eq.s32.totalorder %s21, 1
      %p58 = por %p56, %p57
      %p60 = scmp.ne.s32.totalorder %s43, %s59
      %p61 = scmp.eq.s32.totalorder %s21, 0
      %p62 = por %p60, %p61
      %s64 = sadd.s32 %s63, 1
      %p67 = scmp.eq.s32.totalorder %s15, 1
      %p68 = scmp.ne.s32.totalorder %s63, %s65
      %p69 = scmp.eq.s32.totalorder %s15, 0
      %p70 = por %p68, %p69
      %p71 = scmp.ne.s32.totalorder %s63, %s65
      %p72 = scmp.eq.s32.totalorder %s20, 1
      %p73 = por %p71, %p72
      %p74 = scmp.ne.s32.totalorder %s65, %s66
      %p75 = scmp.eq.s32.totalorder %s20, 0
      %p76 = por %p74, %p75
      %p77 = scmp.ne.s32.totalorder %s65, %s66
      %p78 = scmp.eq.s32.totalorder %s21, 1
      %p79 = por %p77, %p78
      %p81 = scmp.ne.s32.totalorder %s66, %s80
      %p82 = scmp.eq.s32.totalorder %s21, 0
      %p83 = por %p81, %p82
      %s85 = sadd.s32 %s84, 1
      %p88 = scmp.eq.s32.totalorder %s15, 1
      %p89 = scmp.ne.s32.totalorder %s84, %s86
      %p90 = scmp.eq.s32.totalorder %s15, 0
      %p91 = por %p89, %p90
      %p92 = scmp.ne.s32.totalorder %s84, %s86
      %p93 = scmp.eq.s32.totalorder %s20, 1
      %p94 = por %p92, %p93
      %p95 = scmp.ne.s32.totalorder %s86, %s87
      %p96 = scmp.eq.s32.totalorder %s20, 0
      %p97 = por %p95, %p96
      %p98 = scmp.ne.s32.totalorder %s86, %s87
      %p99 = scmp.eq.s32.totalorder %s21, 1
      %p100 = por %p98, %p99
      %p102 = scmp.ne.s32.totalorder %s87, %s101
      %p103 = scmp.eq.s32.totalorder %s21, 0
      %p104 = por %p102, %p103
      %s106 = sadd.s32 %s105, 1
      %p109 = scmp.eq.s32.totalorder %s15, 1
      %p110 = scmp.ne.s32.totalorder %s105, %s107
      %p111 = scmp.eq.s32.totalorder %s15, 0
      %p112 = por %p110, %p111
      %p113 = scmp.ne.s32.totalorder %s105, %s107
      %p114 = scmp.eq.s32.totalorder %s20, 1
      %p115 = por %p113, %p114
      %p116 = scmp.ne.s32.totalorder %s107, %s108
      %p117 = scmp.eq.s32.totalorder %s20, 0
      %p118 = por %p116, %p117
      %p119 = scmp.ne.s32.totalorder %s107, %s108
      %p120 = scmp.eq.s32.totalorder %s21, 1
      %p121 = por %p119, %p120
      %p123 = scmp.ne.s32.totalorder %s108, %s122
      %p124 = scmp.eq.s32.totalorder %s21, 0
      %p125 = por %p123, %p124
      %s127 = sadd.s32 %s126, 1
      %p130 = scmp.eq.s32.totalorder %s15, 1
      %p131 = scmp.ne.s32.totalorder %s126, %s128
      %p132 = scmp.eq.s32.totalorder %s15, 0
      %p133 = por %p131, %p132
      %p134 = scmp.ne.s32.totalorder %s126, %s128
      %p135 = scmp.eq.s32.totalorder %s20, 1
      %p136 = por %p134, %p135
      %p137 = scmp.ne.s32.totalorder %s128, %s129
      %p138 = scmp.eq.s32.totalorder %s20, 0
      %p139 = por %p137, %p138
      %p140 = scmp.ne.s32.totalorder %s128, %s129
      %p141 = scmp.eq.s32.totalorder %s21, 1
      %p142 = por %p140, %p141
      %p144 = scmp.ne.s32.totalorder %s129, %s143
      %p145 = scmp.eq.s32.totalorder %s21, 0
      %p146 = por %p144, %p145
      %s148 = sadd.s32 %s147, 1
      %p151 = scmp.eq.s32.totalorder %s15, 1
      %p152 = scmp.ne.s32.totalorder %s147, %s149
      %p153 = scmp.eq.s32.totalorder %s15, 0
      %p154 = por %p152, %p153
      %p155 = scmp.ne.s32.totalorder %s147, %s149
      %p156 = scmp.eq.s32.totalorder %s20, 1
      %p157 = por %p155, %p156
      %p158 = scmp.ne.s32.totalorder %s149, %s150
      %p159 = scmp.eq.s32.totalorder %s20, 0
      %p160 = por %p158, %p159
      %p161 = scmp.ne.s32.totalorder %s149, %s150
      %p162 = scmp.eq.s32.totalorder %s21, 1
      %p163 = por %p161, %p162
      %p165 = scmp.ne.s32.totalorder %s150, %s164
      %p166 = scmp.eq.s32.totalorder %s21, 0
      %p167 = por %p165, %p166
      %s169 = sadd.s32 %s168, 1
      %p172 = scmp.eq.s32.totalorder %s15, 1
      %p173 = scmp.ne.s32.totalorder %s168, %s170
      %p174 = scmp.eq.s32.totalorder %s15, 0
      %p175 = por %p173, %p174
      %p176 = scmp.ne.s32.totalorder %s168, %s170
      %p177 = scmp.eq.s32.totalorder %s20, 1
      %p178 = por %p176, %p177
      %p179 = scmp.ne.s32.totalorder %s170, %s171
      %p180 = scmp.eq.s32.totalorder %s20, 0
      %p181 = por %p179, %p180
      %p182 = scmp.ne.s32.totalorder %s170, %s171
      %p183 = scmp.eq.s32.totalorder %s21, 1
      %p184 = por %p182, %p183
      %p186 = scmp.ne.s32.totalorder %s171, %s185
      %p187 = scmp.eq.s32.totalorder %s21, 0
      %p188 = por %p186, %p187
      %s189 = ssub.s32 %s22, %s34
      %s190 = ssub.s32 %s23, %s30
      %s191 = sor.u32 %s189, %s190
      %p192 = scmp.eq.s32.totalorder %s191, 0
      %s194 = sadd.s32 %s193, 1
      %s195 = scalar_select %p192, %s193, %s194
      %p198 = pneg %p192
      %p199 = scmp.eq.s32.totalorder %s15, 1
      %p200 = por %p198, %p199
      %p201 = scmp.ne.s32.totalorder %s193, %s196
      %p202 = scmp.eq.s32.totalorder %s15, 0
      %p203 = por %p201, %p202
      %p204 = scmp.ne.s32.totalorder %s193, %s196
      %p205 = scmp.eq.s32.totalorder %s20, 1
      %p206 = por %p204, %p205
      %p207 = scmp.ne.s32.totalorder %s196, %s197
      %p208 = scmp.eq.s32.totalorder %s20, 0
      %p209 = por %p207, %p208
      %p210 = scmp.ne.s32.totalorder %s196, %s197
      %p211 = scmp.eq.s32.totalorder %s21, 1
      %p212 = por %p210, %p211
      %p214 = scmp.ne.s32.totalorder %s197, %s213
      %p215 = scmp.eq.s32.totalorder %s21, 0
      %p216 = por %p214, %p215
      %p217 = scmp.le.s32.totalorder 1, %s15
      %p218 = scmp.lt.s32.totalorder %s15, 3
      %p219 = pnand %p217, %p218
      %p220 = pneg %p219
      // Predicated region
      $region9: #{decoder_forward.8} parent=5 // pred_check
        _
      $region10: #{decoder_forward.8} parent=5 // pred_check_branch
        %222 = sbr.rel (%p219) target = $region12
      $region11: #{decoder_forward.8} parent=5 // pred_region
        %s223 = ssub.s32 %s15, 1
        // Predicated region
        $region13: #{decoder_forward.8} parent=11 // pred_check
          %p224 = pneg %p76
        $region14: #{decoder_forward.8} parent=11 // pred_check_branch
          %226 = sbr.rel (%p224) target = $region16
        $region15: #{decoder_forward.8} parent=11 // pred_region
          _
        $region16: #{decoder_forward.8} parent=11 // pred_fallthru
          _
        // Predicated region
        $region17: #{decoder_forward.8} parent=11 // pred_check
          %p227 = pneg %p97
        $region18: #{decoder_forward.8} parent=11 // pred_check_branch
          %229 = sbr.rel (%p227) target = $region20
        $region19: #{decoder_forward.8} parent=11 // pred_region
          _
        $region20: #{decoder_forward.8} parent=11 // pred_fallthru
          _
        // Predicated region
        $region21: #{decoder_forward.8} parent=11 // pred_check
          %p230 = pneg %p118
        $region22: #{decoder_forward.8} parent=11 // pred_check_branch
          %232 = sbr.rel (%p230) target = $region24
        $region23: #{decoder_forward.8} parent=11 // pred_region
          _
        $region24: #{decoder_forward.8} parent=11 // pred_fallthru
          _
        // Predicated region
        $region25: #{decoder_forward.8} parent=11 // pred_check
          %p233 = pneg %p139
        $region26: #{decoder_forward.8} parent=11 // pred_check_branch
          %235 = sbr.rel (%p233) target = $region28
        $region27: #{decoder_forward.8} parent=11 // pred_region
          %237 = vsyncadd [#allocation3], 0
          %s239 = sshll.u32 %s4, 4
          %s240 = int_to_ptr.hbm [resolvable:$true] %s239
          %s241 = sshll.u32 [#allocation2], 4
          %s242 = int_to_ptr.vmem [resolvable:$true] %s241
          %244 = dma.hbm_to_vmem [thread:$0]  %s240, 16, %s242, [#allocation3]
        $region28: #{decoder_forward.8} parent=11 // pred_fallthru
          _
        // Predicated region
        $region29: #{decoder_forward.8} parent=11 // pred_check
          %p245 = pneg %p160
        $region30: #{decoder_forward.8} parent=11 // pred_check_branch
          %247 = sbr.rel (%p245) target = $region32
        $region31: #{decoder_forward.8} parent=11 // pred_region
          _
        $region32: #{decoder_forward.8} parent=11 // pred_fallthru
          _
        // Predicated region
        $region33: #{decoder_forward.8} parent=11 // pred_check
          %p248 = pneg %p181
        $region34: #{decoder_forward.8} parent=11 // pred_check_branch
          %250 = sbr.rel (%p248) target = $region36
        $region35: #{decoder_forward.8} parent=11 // pred_region
          %252 = vsyncadd [#allocation5], 0
          %s254 = sshll.u32 %s6, 4
          %s255 = int_to_ptr.hbm [resolvable:$true] %s254
          %s256 = sshll.u32 [#allocation4], 4
          %s257 = int_to_ptr.vmem [resolvable:$true] %s256
          %259 = dma.hbm_to_vmem [thread:$0]  %s255, 16, %s257, [#allocation5]
        $region36: #{decoder_forward.8} parent=11 // pred_fallthru
          _
      $region12: #{decoder_forward.8} parent=5 // pred_fallthru
        _
      %p260 = scmp.lt.s32.totalorder %s15, 2
      // Predicated region
      $region37: #{decoder_forward.8} parent=5 // pred_check
        %p261 = pneg %p260
      $region38: #{decoder_forward.8} parent=5 // pred_check_branch
        %263 = sbr.rel (%p261) target = $region40
      $region39: #{decoder_forward.8} parent=5 // pred_region
        // Predicated region
        $region41: #{decoder_forward.8} parent=39 // pred_check
          %p264 = pneg %p49
        $region42: #{decoder_forward.8} parent=39 // pred_check_branch
          %266 = sbr.rel (%p264) target = $region44
        $region43: #{decoder_forward.8} parent=39 // pred_region
          %p267 = scmp.lt.s32.totalorder %s22, 1
          %s268 = scalar_select %p267, %s22, 1
          %p269 = scmp.lt.s32.totalorder %s23, 0
          %s270 = scalar_select %p269, %s23, 0
          %s271 = sadd.s32 %s270, %s268
          %s272 = smul.addr %s271, 8
          %s273 = scalar_lea.vmem %s0, %s272
        $region44: #{decoder_forward.8} parent=39 // pred_fallthru
          _
      $region40: #{decoder_forward.8} parent=5 // pred_fallthru
        _
      %p274 = scmp.le.s32.totalorder 1, %s15
      %p275 = scmp.lt.s32.totalorder %s15, 3
      %p276 = pnand %p274, %p275
      %p277 = pneg %p276
      // Predicated region
      $region45: #{decoder_forward.8} parent=5 // pred_check
        _
      $region46: #{decoder_forward.8} parent=5 // pred_check_branch
        %279 = sbr.rel (%p276) target = $region48
      $region47: #{decoder_forward.8} parent=5 // pred_region
        %s280 = ssub.s32 %s15, 1
        // Predicated region
        $region49: #{decoder_forward.8} parent=47 // pred_check
          %p281 = pneg %p139
        $region50: #{decoder_forward.8} parent=47 // pred_check_branch
          %283 = sbr.rel (%p281) target = $region52
        $region51: #{decoder_forward.8} parent=47 // pred_region
          %285 = dma.done [#allocation3], 16
        $region52: #{decoder_forward.8} parent=47 // pred_fallthru
          _
        // Predicated region
        $region53: #{decoder_forward.8} parent=47 // pred_check
          %p286 = pneg %p181
        $region54: #{decoder_forward.8} parent=47 // pred_check_branch
          %288 = sbr.rel (%p286) target = $region56
        $region55: #{decoder_forward.8} parent=47 // pred_region
          %290 = dma.done [#allocation5], 16
        $region56: #{decoder_forward.8} parent=47 // pred_fallthru
          _
        %p291 = scmp.lt.s32.totalorder %s24, 1
        %s292 = scalar_select %p291, %s24, 1
        %p293 = scmp.lt.s32.totalorder %s25, 0
        %s294 = scalar_select %p293, %s25, 0
        %s295 = sadd.s32 %s294, %s292
        %s296 = smul.addr %s295, 8
        %s297 = scalar_lea.vmem %s0, %s296
        %p298 = pneg %p55
        %p299 = pneg %p52
        %p300 = pneg %p76
        %p301 = pneg %p73
        %p302 = pneg %p97
        %p303 = pneg %p94
        %p304 = pneg %p118
        %p305 = pneg %p115
        %p306 = pneg %p139
        %p307 = pneg %p136
        %p308 = pneg %p160
        %p309 = pneg %p157
        %p310 = pneg %p181
        %p311 = pneg %p178
        %p312 = pneg %p209
        %p313 = pneg %p206
        %p314 = scmp.lt.s32.totalorder %s24, 1
        %s315 = scalar_select %p314, %s24, 1
        %p316 = scmp.lt.s32.totalorder %s25, 0
        %s317 = scalar_select %p316, %s25, 0
        %s318 = sadd.s32 %s317, %s315
        %s319 = smul.addr %s318, 8
        %s320 = scalar_lea.vmem %s7, %s319
        %p321 = scmp.lt.s32.totalorder %s24, 1
        %s322 = scalar_select %p321, %s24, 1
        %p323 = scmp.lt.s32.totalorder %s25, 0
        %s324 = scalar_select %p323, %s25, 0
        %s325 = sadd.s32 %s324, %s322
        %s326 = smul.addr %s325, 8
        %s327 = scalar_lea.vmem %s0, %s326
        %p328 = scmp.lt.s32.totalorder %s24, 1
        %s329 = scalar_select %p328, %s24, 1
        %p330 = scmp.lt.s32.totalorder %s25, 0
        %s331 = scalar_select %p330, %s25, 0
        %s332 = sadd.s32 %s331, %s329
        %s333 = smul.addr %s332, 8
        %s334 = scalar_lea.vmem %s7, %s333
        %v336 = vld [vmem:[%s327] sm:$0xff]
        %vm337 = vcmask 261120
        %v338 = vsel %vm337, %v336, 0.0
        %339 = vadd.xlane.f32.xlu0 %v338
        %v340 = vpop.xlane.xlu0 %339
        %v341 = vrcp.pop 32.0
        %v342 = vmul.f32 32.0, %v341
        %v343 = vsub.f32 1.0, %v342
        %v344 = vmul.f32 %v341, %v343
        %v345 = vadd.f32 %v341, %v344
        %vm346 = vweird.f32 %v341
        %v347 = vsel %vm346, %v341, %v345
        %v348 = vmul.f32 %v340, %v347
        %v349 = vsub.f32 %v336, %v348
        %v350 = vmul.f32 %v349, %v349
        %v351 = vsel %vm337, %v350, 0.0
        %352 = vadd.xlane.f32.xlu0 %v351
        %v353 = vpop.xlane.xlu0 %352
        %v354 = vmul.f32 %v353, %v347
        %v355 = vadd.f32 %v354, 1e-06
        %v356 = vrsqrt.pop %v355
        %v357 = vmul.f32 %v356, %v355
        %v358 = vmul.f32 %v357, %v356
        %v359 = vmul.f32 0.5, %v358
        %v360 = vsub.f32 1.5, %v359
        %v361 = vmul.f32 %v356, %v360
        %vm362 = vweird.f32 %v355
        %vm363 = vweird.f32 %v356
        %vm364 = vmor %vm362, %vm363
        %v365 = vsel %vm364, %v356, %v361
        %v366 = vmul.f32 %v349, %v365
        %v367 = vld [vmem:[%s1] sm:$0x1]
        %v369 = vperm.slane %v367, 0
        %v371 = vmul.f32 %v366, %v369
        %v372 = vld [vmem:[%s2] sm:$0x1]
        %v374 = vperm.slane %v372, 0
        %v376 = vadd.f32 %v371, %v374
        %v377 = vpack.c.bf16 %v376, %v376
        %v378 = vld [vmem:[%s3] sm:$0xf]
        %v379 = vld [vmem:[%s3 + $0x4] sm:$0xf]
        %v380 = vld [vmem:[%s3 + $0x8] sm:$0xf]
        %v381 = vld [vmem:[%s3 + $0xc] sm:$0xf]
        %v382 = vld [vmem:[#allocation2] sm:$0x1]
        %v384 = vperm.slane %v382, 0
        %v390 = vunpack.c.l.b16 %v378
        %v391 = vunpack.c.l.b16 %v379
        %v392 = vunpack.c.l.b16 %v380
        %v393 = vunpack.c.l.b16 %v381
        %v394 = vpack.c.b16 %v391, %v390
        %v395 = vpack.c.b16 %v393, %v392
        %v399 = vsel %vm337, %v377, 0
        %401 = vmatpush.bf16.msra.mxu0 0
        %402 = vmatpush.bf16.msra.mxu0 0
        %403 = vmatpush.bf16.msra.mxu0 0
        %404 = vmatpush.bf16.msra.mxu0 0
        %405 = vmatpush.bf16.msra.mxu0 0
        %406 = vmatpush.bf16.msra.mxu0 0
        %407 = vmatpush.bf16.msra.mxu0 %v395
        %408 = vmatpush.bf16.msra.mxu0 %v394
        %409 = vmatmul.bf16.gmra.mxu0 %v399
        %v410 = vpop.f32.mrf.mxu0
        %v411 = vadd.f32 %v384, %v410
        %v412 = vpop.f32.mrf.mxu0
        %413 = vdwg.mxu0
        %v414 = vmax.f32 %v411, 0.0
        %v415 = vpack.c.bf16 %v414, %v414
        %v416 = vld [vmem:[%s5] sm:$0xf]
        %v417 = vld [vmem:[%s5 + $0x4] sm:$0xf]
        %v418 = vld [vmem:[%s5 + $0x8] sm:$0xf]
        %v419 = vld [vmem:[%s5 + $0xc] sm:$0xf]
        %v420 = vld [vmem:[%s5 + $0x10] sm:$0xf]
        %v421 = vld [vmem:[%s5 + $0x14] sm:$0xf]
        %v422 = vld [vmem:[%s5 + $0x18] sm:$0xf]
        %v423 = vld [vmem:[%s5 + $0x1c] sm:$0xf]
        %v424 = vld [vmem:[#allocation4] sm:$0x1]
        %v426 = vperm.slane %v424, 0
        %v436 = vunpack.c.l.b16 %v416
        %v437 = vunpack.c.l.b16 %v417
        %v438 = vunpack.c.l.b16 %v418
        %v439 = vunpack.c.l.b16 %v419
        %v440 = vunpack.c.l.b16 %v420
        %v441 = vunpack.c.l.b16 %v421
        %v442 = vunpack.c.l.b16 %v422
        %v443 = vunpack.c.l.b16 %v423
        %v444 = vpack.c.b16 %v437, %v436
        %v445 = vpack.c.b16 %v439, %v438
        %v446 = vpack.c.b16 %v441, %v440
        %v447 = vpack.c.b16 %v443, %v442
        %vm452 = vcmask 523264
        %v454 = vsel %vm452, %v415, 0
        %456 = vmatpush.bf16.msra.mxu0 0
        %457 = vmatpush.bf16.msra.mxu0 0
        %458 = vmatpush.bf16.msra.mxu0 0
        %459 = vmatpush.bf16.msra.mxu0 0
        %460 = vmatpush.bf16.msra.mxu0 %v447
        %461 = vmatpush.bf16.msra.mxu0 %v446
        %462 = vmatpush.bf16.msra.mxu0 %v445
        %463 = vmatpush.bf16.msra.mxu0 %v444
        %464 = vmatmul.bf16.gmra.mxu0 %v454
        %v465 = vpop.f32.mrf.mxu0
        %v466 = vadd.f32 %v426, %v465
        %v467 = vpop.f32.mrf.mxu0
        %468 = vdwg.mxu0
        %v469 = vadd.f32 %v466, %v336
        %470 = vst.msk [vmem:[%s334] sm:$0xff] %vm337, %v469
        %p471 = scmp.lt.s32.totalorder %s24, 1
        %s472 = scalar_select %p471, %s24, 1
        %p473 = scmp.lt.s32.totalorder %s25, 0
        %s474 = scalar_select %p473, %s25, 0
        %s475 = sadd.s32 %s474, %s472
        %s476 = smul.addr %s475, 8
        %s477 = scalar_lea.vmem %s7, %s476
        // Predicated region
        $region57: #{decoder_forward.8} parent=47 // pred_check
          %p478 = pneg %p206
        $region58: #{decoder_forward.8} parent=47 // pred_check_branch
          %480 = sbr.rel (%p478) target = $region60
        $region59: #{decoder_forward.8} parent=47 // pred_region
          _
        $region60: #{decoder_forward.8} parent=47 // pred_fallthru
          _
      $region48: #{decoder_forward.8} parent=5 // pred_fallthru
        _
      %p481 = scmp.le.s32.totalorder 2, %s15
      // Predicated region
      $region61: #{decoder_forward.8} parent=5 // pred_check
        %p482 = pneg %p481
      $region62: #{decoder_forward.8} parent=5 // pred_check_branch
        %484 = sbr.rel (%p482) target = $region64
      $region63: #{decoder_forward.8} parent=5 // pred_region
        %s485 = ssub.s32 %s15, 2
        // Predicated region
        $region65: #{decoder_forward.8} parent=63 // pred_check
          %p486 = pneg %p212
        $region66: #{decoder_forward.8} parent=63 // pred_check_branch
          %488 = sbr.rel (%p486) target = $region68
        $region67: #{decoder_forward.8} parent=63 // pred_region
          %p489 = scmp.lt.s32.totalorder %s26, 1
          %s490 = scalar_select %p489, %s26, 1
          %p491 = scmp.lt.s32.totalorder %s27, 0
          %s492 = scalar_select %p491, %s27, 0
          %s493 = sadd.s32 %s492, %s490
          %s494 = smul.addr %s493, 8
          %s495 = scalar_lea.vmem %s7, %s494
        $region68: #{decoder_forward.8} parent=63 // pred_fallthru
          _
      $region64: #{decoder_forward.8} parent=5 // pred_fallthru
        _
    $region6: #{decoder_forward.8} parent=1 // loop_footer
      %s19 = sadd.s32 1, %s15
    $region7: #{decoder_forward.8} parent=1 // loop_footer_branch
      %14 = sbr.rel target = $region3
    $region8: #{decoder_forward.8} parent=1 // loop_exit
      _
    %496 = vsyncpa [#allocation3], 1
    %s497 = scalar_lea.sflag [#allocation3], 1
    %498 = vsyncpa %s497, 1
    %499 = vsyncpa [#allocation5], 1

// kernel: decoder_forward.6
$region0: #{decoder_forward.6}
  #allocation0 [shape = 'u32[]', space=smem, size = 0x4, offset = 0x4, fixed_abs, tag = 'smem constant byte address 0x4 - core index']
  #allocation1 [shape = 'u32[72,128]{1,0:T(1,128)}', space=vmem, size = 0x9000, scoped, tag = 'internal scratch']
  %s0 = inlined_call_operand.hbm [shape: f32[2,8,32], index: 0, kind: input, shape index: {}]
  %s1 = inlined_call_operand.vmem [shape: f32[2,1,8], index: 1, kind: input, shape index: {}]
  %s2 = inlined_call_operand.vmem [shape: f32[1,32], index: 2, kind: input, shape index: {}]
  %s3 = inlined_call_operand.vmem [shape: f32[1,32], index: 3, kind: input, shape index: {}]
  %s4 = inlined_call_operand.hbm [shape: bf16[32,32], index: 4, kind: input, shape index: {}]
  %s5 = inlined_call_operand.vmem [shape: f32[1,32], index: 5, kind: input, shape index: {}]
  %s6 = inlined_call_operand.hbm [shape: bf16[32,64], index: 6, kind: input, shape index: {}]
  %s7 = inlined_call_operand.vmem [shape: f32[1,64], index: 7, kind: input, shape index: {}]
  %s8 = inlined_call_operand.hbm [shape: bf16[32,32], index: 8, kind: input, shape index: {}]
  %s9 = inlined_call_operand.vmem [shape: f32[1,32], index: 9, kind: input, shape index: {}]
  %s10 = inlined_call_operand.vmem [shape: f32[2,8,32], index: 10, kind: output, shape index: {}]
  %s11 = sld [smem:[#allocation0]]
  $region89: #{decoder_forward.6} parent=0
    _
  %s13 = ssub.s32 1, %s11
  %s14 = scalar_select 0, %s13, %s11
  $region1: #{decoder_forward.6} parent=0
    #allocation2 [shape = 'u8[8192]{0}', space=vmem, size = 0x2000, scoped, tag = 'input window, operand 0']
    #allocation3 [shape = 's32[2]{0}', space=sflag, size = 0x8, scoped, tag = 'scoped memory for decoder_forward.6']
    #allocation4 [shape = 'u8[8192]{0}', space=vmem, size = 0x2000, scoped, tag = 'input window, operand 4, single buffered']
    #allocation5 [shape = 's32[1]{0}', space=sflag, size = 0x4, scoped, tag = 'scoped memory for decoder_forward.6']
    #allocation6 [shape = 'u8[8192]{0}', space=vmem, size = 0x2000, scoped, tag = 'input window, operand 6, single buffered']
    #allocation7 [shape = 'u8[8192]{0}', space=vmem, size = 0x2000, scoped, tag = 'input window, operand 8, single buffered']
    #allocation8 [shape = 's32[1]{0}', space=sflag, size = 0x4, scoped, tag = 'scoped memory for decoder_forward.6']
    %15 = vsyncpa [#allocation3], 0
    %s16 = scalar_lea.sflag [#allocation3], 1
    %17 = vsyncpa %s16, 0
    %18 = vsyncpa [#allocation5], 0
    %19 = vsyncpa [#allocation8], 0
    loop: start=0, step=1, limit=4
    $region2: #{decoder_forward.6} parent=1 // loop_pre_header
      _
    $region3: #{decoder_forward.6} parent=1 // loop_header
      %s21 = sphi 0, %s25
      %p22 = scmp.ge.s32.totalorder %s21, 4
      %s31 = sphi 0, %s33
      %s34 = sphi 0, %s31
      %s35 = sphi 0, %s34
      %s51 = sphi 0, %s35
      %s57 = sphi 0, %s59
      %s60 = sphi 0, %s57
      %s61 = sphi 0, %s60
      %s77 = sphi 0, %s61
      %s81 = sphi 0, %s81
      %s83 = sphi 0, %s81
      %s84 = sphi 0, %s83
      %s98 = sphi 0, %s84
      %s102 = sphi 0, %s102
      %s104 = sphi 0, %s102
      %s105 = sphi 0, %s104
      %s119 = sphi 0, %s105
      %s123 = sphi 0, %s123
      %s125 = sphi 0, %s123
      %s126 = sphi 0, %s125
      %s140 = sphi 0, %s126
      %s144 = sphi 0, %s144
      %s146 = sphi 0, %s144
      %s147 = sphi 0, %s146
      %s161 = sphi 0, %s147
      %s165 = sphi 0, %s165
      %s167 = sphi 0, %s165
      %s168 = sphi 0, %s167
      %s182 = sphi 0, %s168
      %s186 = sphi 0, %s186
      %s188 = sphi 0, %s186
      %s189 = sphi 0, %s188
      %s203 = sphi 0, %s189
      %s207 = sphi 0, %s207
      %s209 = sphi 0, %s207
      %s210 = sphi 0, %s209
      %s224 = sphi 0, %s210
      %s228 = sphi 0, %s228
      %s230 = sphi 0, %s228
      %s231 = sphi 0, %s230
      %s245 = sphi 0, %s231
      %s251 = sphi 0, %s253
      %s254 = sphi 0, %s251
      %s255 = sphi 0, %s254
      %s271 = sphi 0, %s255
    $region4: #{decoder_forward.6} parent=1 // loop_header_branch
      %24 = sbr.rel (%p22) target = $region8
    $region5: #{decoder_forward.6} parent=1 // loop_body
      %s26 = ssub.s32 %s21, 1
      %s27 = ssub.s32 %s21, 2
      %s28 = sadd.s32 %s21, 1
      %s29 = ssub.s32 %s21, %s28
      %p30 = scmp.eq.s32.totalorder %s29, 0
      %s32 = sadd.s32 %s31, 1
      %s33 = scalar_select %p30, %s31, %s32
      %p36 = pneg %p30
      %p37 = scmp.eq.s32.totalorder %s21, 1
      %p38 = por %p36, %p37
      %p39 = scmp.ne.s32.totalorder %s31, %s34
      %p40 = scmp.eq.s32.totalorder %s21, 0
      %p41 = por %p39, %p40
      %p42 = scmp.ne.s32.totalorder %s31, %s34
      %p43 = scmp.eq.s32.totalorder %s26, 1
      %p44 = por %p42, %p43
      %p45 = scmp.ne.s32.totalorder %s34, %s35
      %p46 = scmp.eq.s32.totalorder %s26, 0
      %p47 = por %p45, %p46
      %p48 = scmp.ne.s32.totalorder %s34, %s35
      %p49 = scmp.eq.s32.totalorder %s27, 1
      %p50 = por %p48, %p49
      %p52 = scmp.ne.s32.totalorder %s35, %s51
      %p53 = scmp.eq.s32.totalorder %s27, 0
      %p54 = por %p52, %p53
      %s55 = ssub.s32 %s21, %s28
      %p56 = scmp.eq.s32.totalorder %s55, 0
      %s58 = sadd.s32 %s57, 1
      %s59 = scalar_select %p56, %s57, %s58
      %p62 = pneg %p56
      %p63 = scmp.eq.s32.totalorder %s21, 1
      %p64 = por %p62, %p63
      %p65 = scmp.ne.s32.totalorder %s57, %s60
      %p66 = scmp.eq.s32.totalorder %s21, 0
      %p67 = por %p65, %p66
      %p68 = scmp.ne.s32.totalorder %s57, %s60
      %p69 = scmp.eq.s32.totalorder %s26, 1
      %p70 = por %p68, %p69
      %p71 = scmp.ne.s32.totalorder %s60, %s61
      %p72 = scmp.eq.s32.totalorder %s26, 0
      %p73 = por %p71, %p72
      %p74 = scmp.ne.s32.totalorder %s60, %s61
      %p75 = scmp.eq.s32.totalorder %s27, 1
      %p76 = por %p74, %p75
      %p78 = scmp.ne.s32.totalorder %s61, %s77
      %p79 = scmp.eq.s32.totalorder %s27, 0
      %p80 = por %p78, %p79
      %s82 = sadd.s32 %s81, 1
      %p85 = scmp.eq.s32.totalorder %s21, 1
      %p86 = scmp.ne.s32.totalorder %s81, %s83
      %p87 = scmp.eq.s32.totalorder %s21, 0
      %p88 = por %p86, %p87
      %p89 = scmp.ne.s32.totalorder %s81, %s83
      %p90 = scmp.eq.s32.totalorder %s26, 1
      %p91 = por %p89, %p90
      %p92 = scmp.ne.s32.totalorder %s83, %s84
      %p93 = scmp.eq.s32.totalorder %s26, 0
      %p94 = por %p92, %p93
      %p95 = scmp.ne.s32.totalorder %s83, %s84
      %p96 = scmp.eq.s32.totalorder %s27, 1
      %p97 = por %p95, %p96
      %p99 = scmp.ne.s32.totalorder %s84, %s98
      %p100 = scmp.eq.s32.totalorder %s27, 0
      %p101 = por %p99, %p100
      %s103 = sadd.s32 %s102, 1
      %p106 = scmp.eq.s32.totalorder %s21, 1
      %p107 = scmp.ne.s32.totalorder %s102, %s104
      %p108 = scmp.eq.s32.totalorder %s21, 0
      %p109 = por %p107, %p108
      %p110 = scmp.ne.s32.totalorder %s102, %s104
      %p111 = scmp.eq.s32.totalorder %s26, 1
      %p112 = por %p110, %p111
      %p113 = scmp.ne.s32.totalorder %s104, %s105
      %p114 = scmp.eq.s32.totalorder %s26, 0
      %p115 = por %p113, %p114
      %p116 = scmp.ne.s32.totalorder %s104, %s105
      %p117 = scmp.eq.s32.totalorder %s27, 1
      %p118 = por %p116, %p117
      %p120 = scmp.ne.s32.totalorder %s105, %s119
      %p121 = scmp.eq.s32.totalorder %s27, 0
      %p122 = por %p120, %p121
      %s124 = sadd.s32 %s123, 1
      %p127 = scmp.eq.s32.totalorder %s21, 1
      %p128 = scmp.ne.s32.totalorder %s123, %s125
      %p129 = scmp.eq.s32.totalorder %s21, 0
      %p130 = por %p128, %p129
      %p131 = scmp.ne.s32.totalorder %s123, %s125
      %p132 = scmp.eq.s32.totalorder %s26, 1
      %p133 = por %p131, %p132
      %p134 = scmp.ne.s32.totalorder %s125, %s126
      %p135 = scmp.eq.s32.totalorder %s26, 0
      %p136 = por %p134, %p135
      %p137 = scmp.ne.s32.totalorder %s125, %s126
      %p138 = scmp.eq.s32.totalorder %s27, 1
      %p139 = por %p137, %p138
      %p141 = scmp.ne.s32.totalorder %s126, %s140
      %p142 = scmp.eq.s32.totalorder %s27, 0
      %p143 = por %p141, %p142
      %s145 = sadd.s32 %s144, 1
      %p148 = scmp.eq.s32.totalorder %s21, 1
      %p149 = scmp.ne.s32.totalorder %s144, %s146
      %p150 = scmp.eq.s32.totalorder %s21, 0
      %p151 = por %p149, %p150
      %p152 = scmp.ne.s32.totalorder %s144, %s146
      %p153 = scmp.eq.s32.totalorder %s26, 1
      %p154 = por %p152, %p153
      %p155 = scmp.ne.s32.totalorder %s146, %s147
      %p156 = scmp.eq.s32.totalorder %s26, 0
      %p157 = por %p155, %p156
      %p158 = scmp.ne.s32.totalorder %s146, %s147
      %p159 = scmp.eq.s32.totalorder %s27, 1
      %p160 = por %p158, %p159
      %p162 = scmp.ne.s32.totalorder %s147, %s161
      %p163 = scmp.eq.s32.totalorder %s27, 0
      %p164 = por %p162, %p163
      %s166 = sadd.s32 %s165, 1
      %p169 = scmp.eq.s32.totalorder %s21, 1
      %p170 = scmp.ne.s32.totalorder %s165, %s167
      %p171 = scmp.eq.s32.totalorder %s21, 0
      %p172 = por %p170, %p171
      %p173 = scmp.ne.s32.totalorder %s165, %s167
      %p174 = scmp.eq.s32.totalorder %s26, 1
      %p175 = por %p173, %p174
      %p176 = scmp.ne.s32.totalorder %s167, %s168
      %p177 = scmp.eq.s32.totalorder %s26, 0
      %p178 = por %p176, %p177
      %p179 = scmp.ne.s32.totalorder %s167, %s168
      %p180 = scmp.eq.s32.totalorder %s27, 1
      %p181 = por %p179, %p180
      %p183 = scmp.ne.s32.totalorder %s168, %s182
      %p184 = scmp.eq.s32.totalorder %s27, 0
      %p185 = por %p183, %p184
      %s187 = sadd.s32 %s186, 1
      %p190 = scmp.eq.s32.totalorder %s21, 1
      %p191 = scmp.ne.s32.totalorder %s186, %s188
      %p192 = scmp.eq.s32.totalorder %s21, 0
      %p193 = por %p191, %p192
      %p194 = scmp.ne.s32.totalorder %s186, %s188
      %p195 = scmp.eq.s32.totalorder %s26, 1
      %p196 = por %p194, %p195
      %p197 = scmp.ne.s32.totalorder %s188, %s189
      %p198 = scmp.eq.s32.totalorder %s26, 0
      %p199 = por %p197, %p198
      %p200 = scmp.ne.s32.totalorder %s188, %s189
      %p201 = scmp.eq.s32.totalorder %s27, 1
      %p202 = por %p200, %p201
      %p204 = scmp.ne.s32.totalorder %s189, %s203
      %p205 = scmp.eq.s32.totalorder %s27, 0
      %p206 = por %p204, %p205
      %s208 = sadd.s32 %s207, 1
      %p211 = scmp.eq.s32.totalorder %s21, 1
      %p212 = scmp.ne.s32.totalorder %s207, %s209
      %p213 = scmp.eq.s32.totalorder %s21, 0
      %p214 = por %p212, %p213
      %p215 = scmp.ne.s32.totalorder %s207, %s209
      %p216 = scmp.eq.s32.totalorder %s26, 1
      %p217 = por %p215, %p216
      %p218 = scmp.ne.s32.totalorder %s209, %s210
      %p219 = scmp.eq.s32.totalorder %s26, 0
      %p220 = por %p218, %p219
      %p221 = scmp.ne.s32.totalorder %s209, %s210
      %p222 = scmp.eq.s32.totalorder %s27, 1
      %p223 = por %p221, %p222
      %p225 = scmp.ne.s32.totalorder %s210, %s224
      %p226 = scmp.eq.s32.totalorder %s27, 0
      %p227 = por %p225, %p226
      %s229 = sadd.s32 %s228, 1
      %p232 = scmp.eq.s32.totalorder %s21, 1
      %p233 = scmp.ne.s32.totalorder %s228, %s230
      %p234 = scmp.eq.s32.totalorder %s21, 0
      %p235 = por %p233, %p234
      %p236 = scmp.ne.s32.totalorder %s228, %s230
      %p237 = scmp.eq.s32.totalorder %s26, 1
      %p238 = por %p236, %p237
      %p239 = scmp.ne.s32.totalorder %s230, %s231
      %p240 = scmp.eq.s32.totalorder %s26, 0
      %p241 = por %p239, %p240
      %p242 = scmp.ne.s32.totalorder %s230, %s231
      %p243 = scmp.eq.s32.totalorder %s27, 1
      %p244 = por %p242, %p243
      %p246 = scmp.ne.s32.totalorder %s231, %s245
      %p247 = scmp.eq.s32.totalorder %s27, 0
      %p248 = por %p246, %p247
      %s249 = ssub.s32 %s21, %s28
      %p250 = scmp.eq.s32.totalorder %s249, 0
      %s252 = sadd.s32 %s251, 1
      %s253 = scalar_select %p250, %s251, %s252
      %p256 = pneg %p250
      %p257 = scmp.eq.s32.totalorder %s21, 1
      %p258 = por %p256, %p257
      %p259 = scmp.ne.s32.totalorder %s251, %s254
      %p260 = scmp.eq.s32.totalorder %s21, 0
      %p261 = por %p259, %p260
      %p262 = scmp.ne.s32.totalorder %s251, %s254
      %p263 = scmp.eq.s32.totalorder %s26, 1
      %p264 = por %p262, %p263
      %p265 = scmp.ne.s32.totalorder %s254, %s255
      %p266 = scmp.eq.s32.totalorder %s26, 0
      %p267 = por %p265, %p266
      %p268 = scmp.ne.s32.totalorder %s254, %s255
      %p269 = scmp.eq.s32.totalorder %s27, 1
      %p270 = por %p268, %p269
      %p272 = scmp.ne.s32.totalorder %s255, %s271
      %p273 = scmp.eq.s32.totalorder %s27, 0
      %p274 = por %p272, %p273
      %p275 = scmp.le.s32.totalorder 1, %s21
      %p276 = scmp.lt.s32.totalorder %s21, 3
      %p277 = pnand %p275, %p276
      %p278 = pneg %p277
      // Predicated region
      $region9: #{decoder_forward.6} parent=5 // pred_check
        _
      $region10: #{decoder_forward.6} parent=5 // pred_check_branch
        %280 = sbr.rel (%p277) target = $region12
      $region11: #{decoder_forward.6} parent=5 // pred_region
        %s281 = ssub.s32 %s21, 1
        // Predicated region
        $region13: #{decoder_forward.6} parent=11 // pred_check
          %p282 = pneg %p94
        $region14: #{decoder_forward.6} parent=11 // pred_check_branch
          %284 = sbr.rel (%p282) target = $region16
        $region15: #{decoder_forward.6} parent=11 // pred_region
          _
        $region16: #{decoder_forward.6} parent=11 // pred_fallthru
          _
        // Predicated region
        $region17: #{decoder_forward.6} parent=11 // pred_check
          %p285 = pneg %p115
        $region18: #{decoder_forward.6} parent=11 // pred_check_branch
          %287 = sbr.rel (%p285) target = $region20
        $region19: #{decoder_forward.6} parent=11 // pred_region
          _
        $region20: #{decoder_forward.6} parent=11 // pred_fallthru
          _
        // Predicated region
        $region21: #{decoder_forward.6} parent=11 // pred_check
          %p288 = pneg %p136
        $region22: #{decoder_forward.6} parent=11 // pred_check_branch
          %290 = sbr.rel (%p288) target = $region24
        $region23: #{decoder_forward.6} parent=11 // pred_region
          %292 = vsyncadd [#allocation5], 0
          %s293 = sshll.u32 %s4, 4
          %s294 = int_to_ptr.hbm [resolvable:$true] %s293
          %s295 = sshll.u32 [#allocation4], 4
          %s296 = int_to_ptr.vmem [resolvable:$true] %s295
          %301 = dma.hbm_to_vmem [thread:$0]  %s294, 256, %s296, [#allocation5], 64, 64, 4
        $region24: #{decoder_forward.6} parent=11 // pred_fallthru
          _
        // Predicated region
        $region25: #{decoder_forward.6} parent=11 // pred_check
          %p302 = pneg %p157
        $region26: #{decoder_forward.6} parent=11 // pred_check_branch
          %304 = sbr.rel (%p302) target = $region28
        $region27: #{decoder_forward.6} parent=11 // pred_region
          _
        $region28: #{decoder_forward.6} parent=11 // pred_fallthru
          _
        // Predicated region
        $region29: #{decoder_forward.6} parent=11 // pred_check
          %p305 = pneg %p178
        $region30: #{decoder_forward.6} parent=11 // pred_check_branch
          %307 = sbr.rel (%p305) target = $region32
        $region31: #{decoder_forward.6} parent=11 // pred_region
          %309 = vsyncadd [#allocation5], 0
          %s310 = sshll.u32 %s6, 4
          %s311 = int_to_ptr.hbm [resolvable:$true] %s310
          %s312 = sshll.u32 [#allocation6], 4
          %s313 = int_to_ptr.vmem [resolvable:$true] %s312
          %318 = dma.hbm_to_vmem [thread:$0]  %s311, 256, %s313, [#allocation5], 64, 64, 4
        $region32: #{decoder_forward.6} parent=11 // pred_fallthru
          _
        // Predicated region
        $region33: #{decoder_forward.6} parent=11 // pred_check
          %p319 = pneg %p199
        $region34: #{decoder_forward.6} parent=11 // pred_check_branch
          %321 = sbr.rel (%p319) target = $region36
        $region35: #{decoder_forward.6} parent=11 // pred_region
          _
        $region36: #{decoder_forward.6} parent=11 // pred_fallthru
          _
        // Predicated region
        $region37: #{decoder_forward.6} parent=11 // pred_check
          %p322 = pneg %p220
        $region38: #{decoder_forward.6} parent=11 // pred_check_branch
          %324 = sbr.rel (%p322) target = $region40
        $region39: #{decoder_forward.6} parent=11 // pred_region
          %326 = vsyncadd [#allocation8], 0
          %s327 = sshll.u32 %s8, 4
          %s328 = int_to_ptr.hbm [resolvable:$true] %s327
          %s329 = sshll.u32 [#allocation7], 4
          %s330 = int_to_ptr.vmem [resolvable:$true] %s329
          %335 = dma.hbm_to_vmem [thread:$0]  %s328, 256, %s330, [#allocation8], 64, 64, 4
        $region40: #{decoder_forward.6} parent=11 // pred_fallthru
          _
        // Predicated region
        $region41: #{decoder_forward.6} parent=11 // pred_check
          %p336 = pneg %p241
        $region42: #{decoder_forward.6} parent=11 // pred_check_branch
          %338 = sbr.rel (%p336) target = $region44
        $region43: #{decoder_forward.6} parent=11 // pred_region
          _
        $region44: #{decoder_forward.6} parent=11 // pred_fallthru
          _
      $region12: #{decoder_forward.6} parent=5 // pred_fallthru
        _
      %p339 = scmp.lt.s32.totalorder %s21, 2
      // Predicated region
      $region45: #{decoder_forward.6} parent=5 // pred_check
        %p340 = pneg %p339
      $region46: #{decoder_forward.6} parent=5 // pred_check_branch
        %342 = sbr.rel (%p340) target = $region48
      $region47: #{decoder_forward.6} parent=5 // pred_region
        // Predicated region
        $region49: #{decoder_forward.6} parent=47 // pred_check
          %p343 = pneg %p41
        $region50: #{decoder_forward.6} parent=47 // pred_check_branch
          %345 = sbr.rel (%p343) target = $region52
        $region51: #{decoder_forward.6} parent=47 // pred_region
          %s346 = sand.u32 %s31, 1
          %s347 = scalar_lea.sflag [#allocation3], %s346
          %s348 = sand.u32 %s31, 1
          %s349 = smul.addr %s348, 8
          %s350 = scalar_lea.vmem [#allocation2], %s349
          %352 = vsyncadd %s347, 0
          %s353 = smul.addr %s21, 8
          %s354 = scalar_lea.hbm %s0, %s353
          %s356 = sshll.u32 %s354, 4
          %s357 = int_to_ptr.hbm [resolvable:$true] %s356
          %s358 = sshll.u32 %s350, 4
          %s359 = int_to_ptr.vmem [resolvable:$true] %s358
          %361 = dma.hbm_to_vmem [thread:$0]  %s357, 128, %s359, %s347
        $region52: #{decoder_forward.6} parent=47 // pred_fallthru
          _
        // Predicated region
        $region53: #{decoder_forward.6} parent=47 // pred_check
          %p362 = pneg %p67
        $region54: #{decoder_forward.6} parent=47 // pred_check_branch
          %364 = sbr.rel (%p362) target = $region56
        $region55: #{decoder_forward.6} parent=47 // pred_region
          %p365 = scmp.lt.s32.totalorder %s21, 1
          %s366 = scalar_select %p365, %s21, 1
          %s367 = scalar_lea.vmem %s1, %s366
        $region56: #{decoder_forward.6} parent=47 // pred_fallthru
          _
      $region48: #{decoder_forward.6} parent=5 // pred_fallthru
        _
      %p368 = scmp.le.s32.totalorder 1, %s21
      %p369 = scmp.lt.s32.totalorder %s21, 3
      %p370 = pnand %p368, %p369
      %p371 = pneg %p370
      // Predicated region
      $region57: #{decoder_forward.6} parent=5 // pred_check
        _
      $region58: #{decoder_forward.6} parent=5 // pred_check_branch
        %373 = sbr.rel (%p370) target = $region60
      $region59: #{decoder_forward.6} parent=5 // pred_region
        %s374 = ssub.s32 %s21, 1
        %s375 = sand.u32 %s34, 1
        %s376 = scalar_lea.sflag [#allocation3], %s375
        %s377 = sand.u32 %s34, 1
        %s378 = smul.addr %s377, 8
        %s379 = scalar_lea.vmem [#allocation2], %s378
        // Predicated region
        $region61: #{decoder_forward.6} parent=59 // pred_check
          %p380 = pneg %p47
        $region62: #{decoder_forward.6} parent=59 // pred_check_branch
          %382 = sbr.rel (%p380) target = $region64
        $region63: #{decoder_forward.6} parent=59 // pred_region
          %384 = dma.done %s376, 128
        $region64: #{decoder_forward.6} parent=59 // pred_fallthru
          _
        // Predicated region
        $region65: #{decoder_forward.6} parent=59 // pred_check
          %p385 = pneg %p136
        $region66: #{decoder_forward.6} parent=59 // pred_check_branch
          %387 = sbr.rel (%p385) target = $region68
        $region67: #{decoder_forward.6} parent=59 // pred_region
          %389 = dma.done [#allocation5], 256
        $region68: #{decoder_forward.6} parent=59 // pred_fallthru
          _
        // Predicated region
        $region69: #{decoder_forward.6} parent=59 // pred_check
          %p390 = pneg %p178
        $region70: #{decoder_forward.6} parent=59 // pred_check_branch
          %392 = sbr.rel (%p390) target = $region72
        $region71: #{decoder_forward.6} parent=59 // pred_region
          %394 = dma.done [#allocation5], 256
        $region72: #{decoder_forward.6} parent=59 // pred_fallthru
          _
        // Predicated region
        $region73: #{decoder_forward.6} parent=59 // pred_check
          %p395 = pneg %p220
        $region74: #{decoder_forward.6} parent=59 // pred_check_branch
          %397 = sbr.rel (%p395) target = $region76
        $region75: #{decoder_forward.6} parent=59 // pred_region
          %399 = dma.done [#allocation8], 256
        $region76: #{decoder_forward.6} parent=59 // pred_fallthru
          _
        %s400 = sand.u32 %s34, 1
        %s401 = scalar_lea.sflag [#allocation3], %s400
        %s402 = sand.u32 %s34, 1
        %s403 = smul.addr %s402, 8
        %s404 = scalar_lea.vmem [#allocation2], %s403
        %p405 = pneg %p47
        %p406 = pneg %p44
        %p407 = scmp.lt.s32.totalorder %s26, 1
        %s408 = scalar_select %p407, %s26, 1
        %s409 = scalar_lea.vmem %s1, %s408
        %p410 = pneg %p73
        %p411 = pneg %p70
        %p412 = pneg %p94
        %p413 = pneg %p91
        %p414 = pneg %p115
        %p415 = pneg %p112
        %p416 = pneg %p136
        %p417 = pneg %p133
        %p418 = pneg %p157
        %p419 = pneg %p154
        %p420 = pneg %p178
        %p421 = pneg %p175
        %p422 = pneg %p199
        %p423 = pneg %p196
        %p424 = pneg %p220
        %p425 = pneg %p217
        %p426 = pneg %p241
        %p427 = pneg %p238
        %p428 = pneg %p267
        %p429 = pneg %p264
        %p430 = scmp.lt.s32.totalorder %s26, 1
        %s431 = scalar_select %p430, %s26, 1
        %s432 = smul.addr %s431, 8
        %s433 = scalar_lea.vmem %s10, %s432
        %p434 = scmp.lt.s32.totalorder %s26, 1
        %s435 = scalar_select %p434, %s26, 1
        %s436 = scalar_lea.vmem %s1, %s435
        %p437 = scmp.lt.s32.totalorder %s26, 1
        %s438 = scalar_select %p437, %s26, 1
        %s439 = smul.addr %s438, 8
        %s440 = scalar_lea.vmem %s10, %s439
        %v442 = vld [vmem:[%s379] sm:$0xff]
        %vm443 = vcmask 261120
        %v444 = vsel %vm443, %v442, 0.0
        %445 = vadd.xlane.f32.xlu0 %v444
        %v446 = vpop.xlane.xlu0 %445
        %v447 = vrcp.pop 32.0
        %v448 = vmul.f32 32.0, %v447
        %v449 = vsub.f32 1.0, %v448
        %v450 = vmul.f32 %v447, %v449
        %v451 = vadd.f32 %v447, %v450
        %vm452 = vweird.f32 %v447
        %v453 = vsel %vm452, %v447, %v451
        %v454 = vmul.f32 %v446, %v453
        %v455 = vsub.f32 %v442, %v454
        %v456 = vmul.f32 %v455, %v455
        %v457 = vsel %vm443, %v456, 0.0
        %458 = vadd.xlane.f32.xlu0 %v457
        %v459 = vpop.xlane.xlu0 %458
        %v460 = vmul.f32 %v459, %v453
        %v461 = vadd.f32 %v460, 1e-06
        %v462 = vrsqrt.pop %v461
        %v463 = vmul.f32 %v462, %v461
        %v464 = vmul.f32 %v463, %v462
        %v465 = vmul.f32 0.5, %v464
        %v466 = vsub.f32 1.5, %v465
        %v467 = vmul.f32 %v462, %v466
        %vm468 = vweird.f32 %v461
        %vm469 = vweird.f32 %v462
        %vm470 = vmor %vm468, %vm469
        %v471 = vsel %vm470, %v462, %v467
        %v472 = vmul.f32 %v455, %v471
        %v473 = vld [vmem:[%s2] sm:$0x1]
        %v475 = vperm.slane %v473, 0
        %v477 = vmul.f32 %v472, %v475
        %v478 = vld [vmem:[%s3] sm:$0x1]
        %v480 = vperm.slane %v478, 0
        %v482 = vadd.f32 %v477, %v480
        %v483 = vlaneseq
        %v484 = vshrl.u32 %v483, 7
        %v485 = vlaneseq
        %v486 = vand.u32 %v485, 127
        %vm487 = vcmp.gt.s32.totalorder %v486, %v484
        %v488 = vsel %vm487, -1e+09, 0.0
        %v489 = vld [vmem:[%s436] sm:$0x1]
        %v491 = vperm.slane %v489, 0
        %v493 = vadd.f32 %v488, %v491
        %v494 = vpack.c.bf16 %v482, %v482
        %v495 = vld [vmem:[#allocation4] sm:$0xf]
        %v496 = vld [vmem:[#allocation4 + $0x4] sm:$0xf]
        %v497 = vld [vmem:[#allocation4 + $0x8] sm:$0xf]
        %v498 = vld [vmem:[#allocation4 + $0xc] sm:$0xf]
        %v499 = vld [vmem:[%s5] sm:$0x1]
        %v501 = vperm.slane %v499, 0
        %v507 = vunpack.c.l.b16 %v495
        %v508 = vunpack.c.l.b16 %v496
        %v509 = vunpack.c.l.b16 %v497
        %v510 = vunpack.c.l.b16 %v498
        %v511 = vpack.c.b16 %v508, %v507
        %v512 = vpack.c.b16 %v510, %v509
        %v516 = vsel %vm443, %v494, 0
        %518 = vmatpush.bf16.msra.mxu0 0
        %519 = vmatpush.bf16.msra.mxu0 0
        %520 = vmatpush.bf16.msra.mxu0 0
        %521 = vmatpush.bf16.msra.mxu0 0
        %522 = vmatpush.bf16.msra.mxu0 0
        %523 = vmatpush.bf16.msra.mxu0 0
        %524 = vmatpush.bf16.msra.mxu0 %v512
        %525 = vmatpush.bf16.msra.mxu0 %v511
        %526 = vmatmul.bf16.gmra.mxu0 %v516
        %v527 = vpop.f32.mrf.mxu0
        %v528 = vadd.f32 %v501, %v527
        %v529 = vpop.f32.mrf.mxu0
        %530 = vdwg.mxu0
        %v531 = vld [vmem:[#allocation6] sm:$0xf]
        %v532 = vld [vmem:[#allocation6 + $0x4] sm:$0xf]
        %v533 = vld [vmem:[#allocation6 + $0x8] sm:$0xf]
        %v534 = vld [vmem:[#allocation6 + $0xc] sm:$0xf]
        %v535 = vld [vmem:[%s7] sm:$0x1]
        %v537 = vperm.slane %v535, 0
        %v543 = vunpack.c.l.b16 %v531
        %v544 = vunpack.c.l.b16 %v532
        %v545 = vunpack.c.l.b16 %v533
        %v546 = vunpack.c.l.b16 %v534
        %v547 = vpack.c.b16 %v544, %v543
        %v548 = vpack.c.b16 %v546, %v545
        %551 = vmatpush.bf16.msra.mxu0 0
        %552 = vmatpush.bf16.msra.mxu0 0
        %553 = vmatpush.bf16.msra.mxu0 0
        %554 = vmatpush.bf16.msra.mxu0 0
        %555 = vmatpush.bf16.msra.mxu0 0
        %556 = vmatpush.bf16.msra.mxu0 0
        %557 = vmatpush.bf16.msra.mxu0 %v548
        %558 = vmatpush.bf16.msra.mxu0 %v547
        %559 = vmatmul.bf16.gmra.mxu0 %v516
        %v560 = vpop.f32.mrf.mxu0
        %v561 = vadd.f32 %v537, %v560
        %v562 = vpop.f32.mrf.mxu0
        %563 = vdwg.mxu0
        %v564 = vpack.c.bf16 %v528, %v528
        %v565 = vpack.c.bf16 %v561, %v561
        %vm566 = vcmask 64512
        %v568 = vsel %vm566, %v564, 0
        %v571 = vsel %vm566, %v565, 0
        %573 = vmatpush.bf16.xpose.msra.mxu0 0
        %574 = vmatpush.bf16.xpose.msra.mxu0 0
        %575 = vmatpush.bf16.xpose.msra.mxu0 0
        %576 = vmatpush.bf16.xpose.msra.mxu0 0
        %577 = vmatpush.bf16.xpose.msra.mxu0 0
        %578 = vmatpush.bf16.xpose.msra.mxu0 0
        %579 = vmatpush.bf16.xpose.msra.mxu0 0
        %580 = vmatpush.bf16.xpose.msra.mxu0 %v571
        %581 = vmatmul.bf16.gmra.mxu0 %v568
        %v582 = vpop.f32.mrf.mxu0
        %v583 = vadd.f32 0.0, %v582
        %v584 = vpop.f32.mrf.mxu0
        %585 = vdwg.mxu0
        %v586 = vmul.f32 %v583, 0.35355338
        %v587 = vadd.f32 %v586, %v493
        %v588 = vsel %vm566, %v587, -inf
        %589 = vmax.xlane.f32.xlu0 %v588
        %v590 = vpop.xlane.xlu0 %589
        %v591 = vsub.f32 %v587, %v590
        %v592 = vmul.f32 %v591, 1.442695
        %v593 = vpow.pop %v592
        %v594 = vsel %vm566, %v593, 0.0
        %595 = vadd.xlane.f32.xlu0 %v594
        %v596 = vpop.xlane.xlu0 %595
        %v597 = vrcp.pop %v596
        %v598 = vmul.f32 %v593, %v597
        %v599 = vpack.c.bf16 %v598, %v598
        %601 = vrot.lane.b32.xlu0 %v565, 96
        %v602 = vpop.permute.xlu0 %601
        %v604 = vsel %vm566, %v599, 0
        %vm606 = vcmask 1043456
        %v608 = vsel %vm606, %v602, 0
        %610 = vmatpush.bf16.msra.mxu0 0
        %611 = vmatpush.bf16.msra.mxu0 0
        %612 = vmatpush.bf16.msra.mxu0 0
        %613 = vmatpush.bf16.msra.mxu0 0
        %614 = vmatpush.bf16.msra.mxu0 0
        %615 = vmatpush.bf16.msra.mxu0 0
        %616 = vmatpush.bf16.msra.mxu0 0
        %617 = vmatpush.bf16.msra.mxu0 %v608
        %618 = vmatmul.bf16.gmra.mxu0 %v604
        %v619 = vpop.f32.mrf.mxu0
        %v620 = vadd.f32 0.0, %v619
        %v621 = vpop.f32.mrf.mxu0
        %622 = vdwg.mxu0
        %v623 = vpack.c.bf16 %v620, %v620
        %625 = vrot.lane.b32.xlu0 %v564, 120
        %v626 = vpop.permute.xlu0 %625
        %627 = vrot.lane.b32.xlu0 %v565, 120
        %v628 = vpop.permute.xlu0 %627
        %v630 = vsel %vm566, %v626, 0
        %v633 = vsel %vm566, %v628, 0
        %635 = vmatpush.bf16.xpose.msra.mxu0 0
        %636 = vmatpush.bf16.xpose.msra.mxu0 0
        %637 = vmatpush.bf16.xpose.msra.mxu0 0
        %638 = vmatpush.bf16.xpose.msra.mxu0 0
        %639 = vmatpush.bf16.xpose.msra.mxu0 0
        %640 = vmatpush.bf16.xpose.msra.mxu0 0
        %641 = vmatpush.bf16.xpose.msra.mxu0 0
        %642 = vmatpush.bf16.xpose.msra.mxu0 %v633
        %643 = vmatmul.bf16.gmra.mxu0 %v630
        %v644 = vpop.f32.mrf.mxu0
        %v645 = vadd.f32 0.0, %v644
        %v646 = vpop.f32.mrf.mxu0
        %647 = vdwg.mxu0
        %v648 = vmul.f32 %v645, 0.35355338
        %v649 = vadd.f32 %v648, %v493
        %v650 = vsel %vm566, %v649, -inf
        %651 = vmax.xlane.f32.xlu0 %v650
        %v652 = vpop.xlane.xlu0 %651
        %v653 = vsub.f32 %v649, %v652
        %v654 = vmul.f32 %v653, 1.442695
        %v655 = vpow.pop %v654
        %v656 = vsel %vm566, %v655, 0.0
        %657 = vadd.xlane.f32.xlu0 %v656
        %v658 = vpop.xlane.xlu0 %657
        %v659 = vrcp.pop %v658
        %v660 = vmul.f32 %v655, %v659
        %v661 = vpack.c.bf16 %v660, %v660
        %662 = vrot.lane.b32.xlu0 %v565, 88
        %v663 = vpop.permute.xlu0 %662
        %v665 = vsel %vm566, %v661, 0
        %v668 = vsel %vm606, %v663, 0
        %670 = vmatpush.bf16.msra.mxu0 0
        %671 = vmatpush.bf16.msra.mxu0 0
        %672 = vmatpush.bf16.msra.mxu0 0
        %673 = vmatpush.bf16.msra.mxu0 0
        %674 = vmatpush.bf16.msra.mxu0 0
        %675 = vmatpush.bf16.msra.mxu0 0
        %676 = vmatpush.bf16.msra.mxu0 0
        %677 = vmatpush.bf16.msra.mxu0 %v668
        %678 = vmatmul.bf16.gmra.mxu0 %v665
        %v679 = vpop.f32.mrf.mxu0
        %v680 = vadd.f32 0.0, %v679
        %v681 = vpop.f32.mrf.mxu0
        %682 = vdwg.mxu0
        %v683 = vpack.c.bf16 %v680, %v680
        %684 = vrot.lane.b32.xlu0 %v564, 112
        %v685 = vpop.permute.xlu0 %684
        %686 = vrot.lane.b32.xlu0 %v565, 112
        %v687 = vpop.permute.xlu0 %686
        %v689 = vsel %vm566, %v685, 0
        %v692 = vsel %vm566, %v687, 0
        %694 = vmatpush.bf16.xpose.msra.mxu0 0
        %695 = vmatpush.bf16.xpose.msra.mxu0 0
        %696 = vmatpush.bf16.xpose.msra.mxu0 0
        %697 = vmatpush.bf16.xpose.msra.mxu0 0
        %698 = vmatpush.bf16.xpose.msra.mxu0 0
        %699 = vmatpush.bf16.xpose.msra.mxu0 0
        %700 = vmatpush.bf16.xpose.msra.mxu0 0
        %701 = vmatpush.bf16.xpose.msra.mxu0 %v692
        %702 = vmatmul.bf16.gmra.mxu0 %v689
        %v703 = vpop.f32.mrf.mxu0
        %v704 = vadd.f32 0.0, %v703
        %v705 = vpop.f32.mrf.mxu0
        %706 = vdwg.mxu0
        %v707 = vmul.f32 %v704, 0.35355338
        %v708 = vadd.f32 %v707, %v493
        %v709 = vsel %vm566, %v708, -inf
        %710 = vmax.xlane.f32.xlu0 %v709
        %v711 = vpop.xlane.xlu0 %710
        %v712 = vsub.f32 %v708, %v711
        %v713 = vmul.f32 %v712, 1.442695
        %v714 = vpow.pop %v713
        %v715 = vsel %vm566, %v714, 0.0
        %716 = vadd.xlane.f32.xlu0 %v715
        %v717 = vpop.xlane.xlu0 %716
        %v718 = vrcp.pop %v717
        %v719 = vmul.f32 %v714, %v718
        %v720 = vpack.c.bf16 %v719, %v719
        %721 = vrot.lane.b32.xlu0 %v565, 80
        %v722 = vpop.permute.xlu0 %721
        %v724 = vsel %vm566, %v720, 0
        %v727 = vsel %vm606, %v722, 0
        %729 = vmatpush.bf16.msra.mxu0 0
        %730 = vmatpush.bf16.msra.mxu0 0
        %731 = vmatpush.bf16.msra.mxu0 0
        %732 = vmatpush.bf16.msra.mxu0 0
        %733 = vmatpush.bf16.msra.mxu0 0
        %734 = vmatpush.bf16.msra.mxu0 0
        %735 = vmatpush.bf16.msra.mxu0 0
        %736 = vmatpush.bf16.msra.mxu0 %v727
        %737 = vmatmul.bf16.gmra.mxu0 %v724
        %v738 = vpop.f32.mrf.mxu0
        %v739 = vadd.f32 0.0, %v738
        %v740 = vpop.f32.mrf.mxu0
        %741 = vdwg.mxu0
        %v742 = vpack.c.bf16 %v739, %v739
        %743 = vrot.lane.b32.xlu0 %v564, 104
        %v744 = vpop.permute.xlu0 %743
        %745 = vrot.lane.b32.xlu0 %v565, 104
        %v746 = vpop.permute.xlu0 %745
        %v748 = vsel %vm566, %v744, 0
        %v751 = vsel %vm566, %v746, 0
        %753 = vmatpush.bf16.xpose.msra.mxu0 0
        %754 = vmatpush.bf16.xpose.msra.mxu0 0
        %755 = vmatpush.bf16.xpose.msra.mxu0 0
        %756 = vmatpush.bf16.xpose.msra.mxu0 0
        %757 = vmatpush.bf16.xpose.msra.mxu0 0
        %758 = vmatpush.bf16.xpose.msra.mxu0 0
        %759 = vmatpush.bf16.xpose.msra.mxu0 0
        %760 = vmatpush.bf16.xpose.msra.mxu0 %v751
        %761 = vmatmul.bf16.gmra.mxu0 %v748
        %v762 = vpop.f32.mrf.mxu0
        %v763 = vadd.f32 0.0, %v762
        %v764 = vpop.f32.mrf.mxu0
        %765 = vdwg.mxu0
        %v766 = vmul.f32 %v763, 0.35355338
        %v767 = vadd.f32 %v766, %v493
        %v768 = vsel %vm566, %v767, -inf
        %769 = vmax.xlane.f32.xlu0 %v768
        %v770 = vpop.xlane.xlu0 %769
        %v771 = vsub.f32 %v767, %v770
        %v772 = vmul.f32 %v771, 1.442695
        %v773 = vpow.pop %v772
        %v774 = vsel %vm566, %v773, 0.0
        %775 = vadd.xlane.f32.xlu0 %v774
        %v776 = vpop.xlane.xlu0 %775
        %v777 = vrcp.pop %v776
        %v778 = vmul.f32 %v773, %v777
        %v779 = vpack.c.bf16 %v778, %v778
        %780 = vrot.lane.b32.xlu0 %v565, 72
        %v781 = vpop.permute.xlu0 %780
        %v783 = vsel %vm566, %v779, 0
        %v786 = vsel %vm606, %v781, 0
        %788 = vmatpush.bf16.msra.mxu0 0
        %789 = vmatpush.bf16.msra.mxu0 0
        %790 = vmatpush.bf16.msra.mxu0 0
        %791 = vmatpush.bf16.msra.mxu0 0
        %792 = vmatpush.bf16.msra.mxu0 0
        %793 = vmatpush.bf16.msra.mxu0 0
        %794 = vmatpush.bf16.msra.mxu0 0
        %795 = vmatpush.bf16.msra.mxu0 %v786
        %796 = vmatmul.bf16.gmra.mxu0 %v783
        %v797 = vpop.f32.mrf.mxu0
        %v798 = vadd.f32 0.0, %v797
        %v799 = vpop.f32.mrf.mxu0
        %800 = vdwg.mxu0
        %v801 = vpack.c.bf16 %v798, %v798
        %v803 = vunpack.c.l.b16 %v683
        %v804 = vpack.c.b16 %v803, %v803
        %805 = vrot.lane.b32.xlu0 %v804, 8
        %v806 = vpop.permute.xlu0 %805
        %v808 = vunpack.c.l.b16 %v742
        %v809 = vpack.c.b16 %v808, %v808
        %810 = vrot.lane.b32.xlu0 %v809, 16
        %v811 = vpop.permute.xlu0 %810
        %v813 = vunpack.c.l.b16 %v801
        %v814 = vpack.c.b16 %v813, %v813
        %815 = vrot.lane.b32.xlu0 %v814, 24
        %v816 = vpop.permute.xlu0 %815
        %v819 = vsel %vm566, %v623, %v806
        %vm820 = vcmask 130048
        %v822 = vsel %vm820, %v819, %v811
        %vm823 = vcmask 195584
        %v825 = vsel %vm823, %v822, %v816
        %v826 = vld [vmem:[#allocation7] sm:$0xf]
        %v827 = vld [vmem:[#allocation7 + $0x4] sm:$0xf]
        %v828 = vld [vmem:[#allocation7 + $0x8] sm:$0xf]
        %v829 = vld [vmem:[#allocation7 + $0xc] sm:$0xf]
        %v830 = vld [vmem:[%s9] sm:$0x1]
        %v832 = vperm.slane %v830, 0
        %v838 = vunpack.c.l.b16 %v826
        %v839 = vunpack.c.l.b16 %v827
        %v840 = vunpack.c.l.b16 %v828
        %v841 = vunpack.c.l.b16 %v829
        %v842 = vpack.c.b16 %v839, %v838
        %v843 = vpack.c.b16 %v841, %v840
        %v846 = vsel %vm443, %v825, 0
        %848 = vmatpush.bf16.msra.mxu0 0
        %849 = vmatpush.bf16.msra.mxu0 0
        %850 = vmatpush.bf16.msra.mxu0 0
        %851 = vmatpush.bf16.msra.mxu0 0
        %852 = vmatpush.bf16.msra.mxu0 0
        %853 = vmatpush.bf16.msra.mxu0 0
        %854 = vmatpush.bf16.msra.mxu0 %v843
        %855 = vmatpush.bf16.msra.mxu0 %v842
        %856 = vmatmul.bf16.gmra.mxu0 %v846
        %v857 = vpop.f32.mrf.mxu0
        %v858 = vadd.f32 %v832, %v857
        %v859 = vpop.f32.mrf.mxu0
        %860 = vdwg.mxu0
        %v861 = vadd.f32 %v858, %v442
        %862 = vst.msk [vmem:[%s440] sm:$0xff] %vm443, %v861
        %p863 = scmp.lt.s32.totalorder %s26, 1
        %s864 = scalar_select %p863, %s26, 1
        %s865 = smul.addr %s864, 8
        %s866 = scalar_lea.vmem %s10, %s865
        // Predicated region
        $region77: #{decoder_forward.6} parent=59 // pred_check
          %p867 = pneg %p264
        $region78: #{decoder_forward.6} parent=59 // pred_check_branch
          %869 = sbr.rel (%p867) target = $region80
        $region79: #{decoder_forward.6} parent=59 // pred_region
          _
        $region80: #{decoder_forward.6} parent=59 // pred_fallthru
          _
      $region60: #{decoder_forward.6} parent=5 // pred_fallthru
        _
      %p870 = scmp.le.s32.totalorder 2, %s21
      // Predicated region
      $region81: #{decoder_forward.6} parent=5 // pred_check
        %p871 = pneg %p870
      $region82: #{decoder_forward.6} parent=5 // pred_check_branch
        %873 = sbr.rel (%p871) target = $region84
      $region83: #{decoder_forward.6} parent=5 // pred_region
        %s874 = ssub.s32 %s21, 2
        // Predicated region
        $region85: #{decoder_forward.6} parent=83 // pred_check
          %p875 = pneg %p270
        $region86: #{decoder_forward.6} parent=83 // pred_check_branch
          %877 = sbr.rel (%p875) target = $region88
        $region87: #{decoder_forward.6} parent=83 // pred_region
          %p878 = scmp.lt.s32.totalorder %s27, 1
          %s879 = scalar_select %p878, %s27, 1
          %s880 = smul.addr %s879, 8
          %s881 = scalar_lea.vmem %s10, %s880
        $region88: #{decoder_forward.6} parent=83 // pred_fallthru
          _
      $region84: #{decoder_forward.6} parent=5 // pred_fallthru
        _
    $region6: #{decoder_forward.6} parent=1 // loop_footer
      %s25 = sadd.s32 1, %s21
    $region7: #{decoder_forward.6} parent=1 // loop_footer_branch
      %20 = sbr.rel target = $region3
    $region8: #{decoder_forward.6} parent=1 // loop_exit
      _
    %882 = vsyncpa [#allocation3], 1
    %s883 = scalar_lea.sflag [#allocation3], 1
    %884 = vsyncpa %s883, 1
    %885 = vsyncpa [#allocation5], 1
    %886 = vsyncpa [#allocation8], 1

// kernel: decoder_forward.9
$region0: #{decoder_forward.9}
  #allocation0 [shape = 'u32[]', space=smem, size = 0x4, offset = 0x4, fixed_abs, tag = 'smem constant byte address 0x4 - core index']
  #allocation1 [shape = 'u32[72,128]{1,0:T(1,128)}', space=vmem, size = 0x9000, scoped, tag = 'internal scratch']
  %s0 = inlined_call_operand.vmem [shape: f32[2,8,32], index: 0, kind: input, shape index: {}]
  %s1 = inlined_call_operand.vmem [shape: f32[2,1,8], index: 1, kind: input, shape index: {}]
  %s2 = inlined_call_operand.hbm [shape: f32[1,32], index: 2, kind: input, shape index: {}]
  %s3 = inlined_call_operand.hbm [shape: f32[1,32], index: 3, kind: input, shape index: {}]
  %s4 = inlined_call_operand.vmem [shape: bf16[32,32], index: 4, kind: input, shape index: {}]
  %s5 = inlined_call_operand.hbm [shape: f32[1,32], index: 5, kind: input, shape index: {}]
  %s6 = inlined_call_operand.hbm [shape: bf16[32,64], index: 6, kind: input, shape index: {}]
  %s7 = inlined_call_operand.hbm [shape: f32[1,64], index: 7, kind: input, shape index: {}]
  %s8 = inlined_call_operand.hbm [shape: bf16[32,32], index: 8, kind: input, shape index: {}]
  %s9 = inlined_call_operand.hbm [shape: f32[1,32], index: 9, kind: input, shape index: {}]
  %s10 = inlined_call_operand.vmem [shape: f32[2,8,32], index: 10, kind: output, shape index: {}]
  %s11 = sld [smem:[#allocation0]]
  $region101: #{decoder_forward.9} parent=0
    _
  %s13 = ssub.s32 1, %s11
  %s14 = scalar_select 0, %s13, %s11
  $region1: #{decoder_forward.9} parent=0
    #allocation2 [shape = 'u8[512]{0}', space=vmem, size = 0x400, scoped, tag = 'input window, operand 2, single buffered']
    #allocation3 [shape = 's32[2]{0}', space=sflag, size = 0x8, scoped, tag = 'scoped memory for decoder_forward.9']
    #allocation4 [shape = 'u8[512]{0}', space=vmem, size = 0x400, scoped, tag = 'input window, operand 3, single buffered']
    #allocation5 [shape = 's32[1]{0}', space=sflag, size = 0x4, scoped, tag = 'scoped memory for decoder_forward.9']
    #allocation6 [shape = 'u8[512]{0}', space=vmem, size = 0x400, scoped, tag = 'input window, operand 5, single buffered']
    #allocation7 [shape = 'u8[8192]{0}', space=vmem, size = 0x2000, scoped, tag = 'input window, operand 6, single buffered']
    #allocation8 [shape = 's32[1]{0}', space=sflag, size = 0x4, scoped, tag = 'scoped memory for decoder_forward.9']
    #allocation9 [shape = 'u8[512]{0}', space=vmem, size = 0x400, scoped, tag = 'input window, operand 7, single buffered']
    #allocation10 [shape = 'u8[8192]{0}', space=vmem, size = 0x2000, scoped, tag = 'input window, operand 8, single buffered']
    #allocation11 [shape = 's32[1]{0}', space=sflag, size = 0x4, scoped, tag = 'scoped memory for decoder_forward.9']
    #allocation12 [shape = 'u8[512]{0}', space=vmem, size = 0x400, scoped, tag = 'input window, operand 9, single buffered']
    %15 = vsyncpa [#allocation3], 0
    %16 = vsyncpa [#allocation5], 0
    %17 = vsyncpa [#allocation8], 0
    %18 = vsyncpa [#allocation11], 0
    loop: start=0, step=1, limit=4
    $region2: #{decoder_forward.9} parent=1 // loop_pre_header
      _
    $region3: #{decoder_forward.9} parent=1 // loop_header
      %s20 = sphi 0, %s24
      %p21 = scmp.ge.s32.totalorder %s20, 4
      %s30 = sphi 0, %s32
      %s33 = sphi 0, %s30
      %s34 = sphi 0, %s33
      %s50 = sphi 0, %s34
      %s56 = sphi 0, %s58
      %s59 = sphi 0, %s56
      %s60 = sphi 0, %s59
      %s76 = sphi 0, %s60
      %s80 = sphi 0, %s80
      %s82 = sphi 0, %s80
      %s83 = sphi 0, %s82
      %s97 = sphi 0, %s83
      %s101 = sphi 0, %s101
      %s103 = sphi 0, %s101
      %s104 = sphi 0, %s103
      %s118 = sphi 0, %s104
      %s122 = sphi 0, %s122
      %s124 = sphi 0, %s122
      %s125 = sphi 0, %s124
      %s139 = sphi 0, %s125
      %s143 = sphi 0, %s143
      %s145 = sphi 0, %s143
      %s146 = sphi 0, %s145
      %s160 = sphi 0, %s146
      %s164 = sphi 0, %s164
      %s166 = sphi 0, %s164
      %s167 = sphi 0, %s166
      %s181 = sphi 0, %s167
      %s185 = sphi 0, %s185
      %s187 = sphi 0, %s185
      %s188 = sphi 0, %s187
      %s202 = sphi 0, %s188
      %s206 = sphi 0, %s206
      %s208 = sphi 0, %s206
      %s209 = sphi 0, %s208
      %s223 = sphi 0, %s209
      %s227 = sphi 0, %s227
      %s229 = sphi 0, %s227
      %s230 = sphi 0, %s229
      %s244 = sphi 0, %s230
      %s250 = sphi 0, %s252
      %s253 = sphi 0, %s250
      %s254 = sphi 0, %s253
      %s270 = sphi 0, %s254
    $region4: #{decoder_forward.9} parent=1 // loop_header_branch
      %23 = sbr.rel (%p21) target = $region8
    $region5: #{decoder_forward.9} parent=1 // loop_body
      %s25 = ssub.s32 %s20, 1
      %s26 = ssub.s32 %s20, 2
      %s27 = sadd.s32 %s20, 1
      %s28 = ssub.s32 %s20, %s27
      %p29 = scmp.eq.s32.totalorder %s28, 0
      %s31 = sadd.s32 %s30, 1
      %s32 = scalar_select %p29, %s30, %s31
      %p35 = pneg %p29
      %p36 = scmp.eq.s32.totalorder %s20, 1
      %p37 = por %p35, %p36
      %p38 = scmp.ne.s32.totalorder %s30, %s33
      %p39 = scmp.eq.s32.totalorder %s20, 0
      %p40 = por %p38, %p39
      %p41 = scmp.ne.s32.totalorder %s30, %s33
      %p42 = scmp.eq.s32.totalorder %s25, 1
      %p43 = por %p41, %p42
      %p44 = scmp.ne.s32.totalorder %s33, %s34
      %p45 = scmp.eq.s32.totalorder %s25, 0
      %p46 = por %p44, %p45
      %p47 = scmp.ne.s32.totalorder %s33, %s34
      %p48 = scmp.eq.s32.totalorder %s26, 1
      %p49 = por %p47, %p48
      %p51 = scmp.ne.s32.totalorder %s34, %s50
      %p52 = scmp.eq.s32.totalorder %s26, 0
      %p53 = por %p51, %p52
      %s54 = ssub.s32 %s20, %s27
      %p55 = scmp.eq.s32.totalorder %s54, 0
      %s57 = sadd.s32 %s56, 1
      %s58 = scalar_select %p55, %s56, %s57
      %p61 = pneg %p55
      %p62 = scmp.eq.s32.totalorder %s20, 1
      %p63 = por %p61, %p62
      %p64 = scmp.ne.s32.totalorder %s56, %s59
      %p65 = scmp.eq.s32.totalorder %s20, 0
      %p66 = por %p64, %p65
      %p67 = scmp.ne.s32.totalorder %s56, %s59
      %p68 = scmp.eq.s32.totalorder %s25, 1
      %p69 = por %p67, %p68
      %p70 = scmp.ne.s32.totalorder %s59, %s60
      %p71 = scmp.eq.s32.totalorder %s25, 0
      %p72 = por %p70, %p71
      %p73 = scmp.ne.s32.totalorder %s59, %s60
      %p74 = scmp.eq.s32.totalorder %s26, 1
      %p75 = por %p73, %p74
      %p77 = scmp.ne.s32.totalorder %s60, %s76
      %p78 = scmp.eq.s32.totalorder %s26, 0
      %p79 = por %p77, %p78
      %s81 = sadd.s32 %s80, 1
      %p84 = scmp.eq.s32.totalorder %s20, 1
      %p85 = scmp.ne.s32.totalorder %s80, %s82
      %p86 = scmp.eq.s32.totalorder %s20, 0
      %p87 = por %p85, %p86
      %p88 = scmp.ne.s32.totalorder %s80, %s82
      %p89 = scmp.eq.s32.totalorder %s25, 1
      %p90 = por %p88, %p89
      %p91 = scmp.ne.s32.totalorder %s82, %s83
      %p92 = scmp.eq.s32.totalorder %s25, 0
      %p93 = por %p91, %p92
      %p94 = scmp.ne.s32.totalorder %s82, %s83
      %p95 = scmp.eq.s32.totalorder %s26, 1
      %p96 = por %p94, %p95
      %p98 = scmp.ne.s32.totalorder %s83, %s97
      %p99 = scmp.eq.s32.totalorder %s26, 0
      %p100 = por %p98, %p99
      %s102 = sadd.s32 %s101, 1
      %p105 = scmp.eq.s32.totalorder %s20, 1
      %p106 = scmp.ne.s32.totalorder %s101, %s103
      %p107 = scmp.eq.s32.totalorder %s20, 0
      %p108 = por %p106, %p107
      %p109 = scmp.ne.s32.totalorder %s101, %s103
      %p110 = scmp.eq.s32.totalorder %s25, 1
      %p111 = por %p109, %p110
      %p112 = scmp.ne.s32.totalorder %s103, %s104
      %p113 = scmp.eq.s32.totalorder %s25, 0
      %p114 = por %p112, %p113
      %p115 = scmp.ne.s32.totalorder %s103, %s104
      %p116 = scmp.eq.s32.totalorder %s26, 1
      %p117 = por %p115, %p116
      %p119 = scmp.ne.s32.totalorder %s104, %s118
      %p120 = scmp.eq.s32.totalorder %s26, 0
      %p121 = por %p119, %p120
      %s123 = sadd.s32 %s122, 1
      %p126 = scmp.eq.s32.totalorder %s20, 1
      %p127 = scmp.ne.s32.totalorder %s122, %s124
      %p128 = scmp.eq.s32.totalorder %s20, 0
      %p129 = por %p127, %p128
      %p130 = scmp.ne.s32.totalorder %s122, %s124
      %p131 = scmp.eq.s32.totalorder %s25, 1
      %p132 = por %p130, %p131
      %p133 = scmp.ne.s32.totalorder %s124, %s125
      %p134 = scmp.eq.s32.totalorder %s25, 0
      %p135 = por %p133, %p134
      %p136 = scmp.ne.s32.totalorder %s124, %s125
      %p137 = scmp.eq.s32.totalorder %s26, 1
      %p138 = por %p136, %p137
      %p140 = scmp.ne.s32.totalorder %s125, %s139
      %p141 = scmp.eq.s32.totalorder %s26, 0
      %p142 = por %p140, %p141
      %s144 = sadd.s32 %s143, 1
      %p147 = scmp.eq.s32.totalorder %s20, 1
      %p148 = scmp.ne.s32.totalorder %s143, %s145
      %p149 = scmp.eq.s32.totalorder %s20, 0
      %p150 = por %p148, %p149
      %p151 = scmp.ne.s32.totalorder %s143, %s145
      %p152 = scmp.eq.s32.totalorder %s25, 1
      %p153 = por %p151, %p152
      %p154 = scmp.ne.s32.totalorder %s145, %s146
      %p155 = scmp.eq.s32.totalorder %s25, 0
      %p156 = por %p154, %p155
      %p157 = scmp.ne.s32.totalorder %s145, %s146
      %p158 = scmp.eq.s32.totalorder %s26, 1
      %p159 = por %p157, %p158
      %p161 = scmp.ne.s32.totalorder %s146, %s160
      %p162 = scmp.eq.s32.totalorder %s26, 0
      %p163 = por %p161, %p162
      %s165 = sadd.s32 %s164, 1
      %p168 = scmp.eq.s32.totalorder %s20, 1
      %p169 = scmp.ne.s32.totalorder %s164, %s166
      %p170 = scmp.eq.s32.totalorder %s20, 0
      %p171 = por %p169, %p170
      %p172 = scmp.ne.s32.totalorder %s164, %s166
      %p173 = scmp.eq.s32.totalorder %s25, 1
      %p174 = por %p172, %p173
      %p175 = scmp.ne.s32.totalorder %s166, %s167
      %p176 = scmp.eq.s32.totalorder %s25, 0
      %p177 = por %p175, %p176
      %p178 = scmp.ne.s32.totalorder %s166, %s167
      %p179 = scmp.eq.s32.totalorder %s26, 1
      %p180 = por %p178, %p179
      %p182 = scmp.ne.s32.totalorder %s167, %s181
      %p183 = scmp.eq.s32.totalorder %s26, 0
      %p184 = por %p182, %p183
      %s186 = sadd.s32 %s185, 1
      %p189 = scmp.eq.s32.totalorder %s20, 1
      %p190 = scmp.ne.s32.totalorder %s185, %s187
      %p191 = scmp.eq.s32.totalorder %s20, 0
      %p192 = por %p190, %p191
      %p193 = scmp.ne.s32.totalorder %s185, %s187
      %p194 = scmp.eq.s32.totalorder %s25, 1
      %p195 = por %p193, %p194
      %p196 = scmp.ne.s32.totalorder %s187, %s188
      %p197 = scmp.eq.s32.totalorder %s25, 0
      %p198 = por %p196, %p197
      %p199 = scmp.ne.s32.totalorder %s187, %s188
      %p200 = scmp.eq.s32.totalorder %s26, 1
      %p201 = por %p199, %p200
      %p203 = scmp.ne.s32.totalorder %s188, %s202
      %p204 = scmp.eq.s32.totalorder %s26, 0
      %p205 = por %p203, %p204
      %s207 = sadd.s32 %s206, 1
      %p210 = scmp.eq.s32.totalorder %s20, 1
      %p211 = scmp.ne.s32.totalorder %s206, %s208
      %p212 = scmp.eq.s32.totalorder %s20, 0
      %p213 = por %p211, %p212
      %p214 = scmp.ne.s32.totalorder %s206, %s208
      %p215 = scmp.eq.s32.totalorder %s25, 1
      %p216 = por %p214, %p215
      %p217 = scmp.ne.s32.totalorder %s208, %s209
      %p218 = scmp.eq.s32.totalorder %s25, 0
      %p219 = por %p217, %p218
      %p220 = scmp.ne.s32.totalorder %s208, %s209
      %p221 = scmp.eq.s32.totalorder %s26, 1
      %p222 = por %p220, %p221
      %p224 = scmp.ne.s32.totalorder %s209, %s223
      %p225 = scmp.eq.s32.totalorder %s26, 0
      %p226 = por %p224, %p225
      %s228 = sadd.s32 %s227, 1
      %p231 = scmp.eq.s32.totalorder %s20, 1
      %p232 = scmp.ne.s32.totalorder %s227, %s229
      %p233 = scmp.eq.s32.totalorder %s20, 0
      %p234 = por %p232, %p233
      %p235 = scmp.ne.s32.totalorder %s227, %s229
      %p236 = scmp.eq.s32.totalorder %s25, 1
      %p237 = por %p235, %p236
      %p238 = scmp.ne.s32.totalorder %s229, %s230
      %p239 = scmp.eq.s32.totalorder %s25, 0
      %p240 = por %p238, %p239
      %p241 = scmp.ne.s32.totalorder %s229, %s230
      %p242 = scmp.eq.s32.totalorder %s26, 1
      %p243 = por %p241, %p242
      %p245 = scmp.ne.s32.totalorder %s230, %s244
      %p246 = scmp.eq.s32.totalorder %s26, 0
      %p247 = por %p245, %p246
      %s248 = ssub.s32 %s20, %s27
      %p249 = scmp.eq.s32.totalorder %s248, 0
      %s251 = sadd.s32 %s250, 1
      %s252 = scalar_select %p249, %s250, %s251
      %p255 = pneg %p249
      %p256 = scmp.eq.s32.totalorder %s20, 1
      %p257 = por %p255, %p256
      %p258 = scmp.ne.s32.totalorder %s250, %s253
      %p259 = scmp.eq.s32.totalorder %s20, 0
      %p260 = por %p258, %p259
      %p261 = scmp.ne.s32.totalorder %s250, %s253
      %p262 = scmp.eq.s32.totalorder %s25, 1
      %p263 = por %p261, %p262
      %p264 = scmp.ne.s32.totalorder %s253, %s254
      %p265 = scmp.eq.s32.totalorder %s25, 0
      %p266 = por %p264, %p265
      %p267 = scmp.ne.s32.totalorder %s253, %s254
      %p268 = scmp.eq.s32.totalorder %s26, 1
      %p269 = por %p267, %p268
      %p271 = scmp.ne.s32.totalorder %s254, %s270
      %p272 = scmp.eq.s32.totalorder %s26, 0
      %p273 = por %p271, %p272
      %p274 = scmp.le.s32.totalorder 1, %s20
      %p275 = scmp.lt.s32.totalorder %s20, 3
      %p276 = pnand %p274, %p275
      %p277 = pneg %p276
      // Predicated region
      $region9: #{decoder_forward.9} parent=5 // pred_check
        _
      $region10: #{decoder_forward.9} parent=5 // pred_check_branch
        %279 = sbr.rel (%p276) target = $region12
      $region11: #{decoder_forward.9} parent=5 // pred_region
        %s280 = ssub.s32 %s20, 1
        // Predicated region
        $region13: #{decoder_forward.9} parent=11 // pred_check
          %p281 = pneg %p93
        $region14: #{decoder_forward.9} parent=11 // pred_check_branch
          %283 = sbr.rel (%p281) target = $region16
        $region15: #{decoder_forward.9} parent=11 // pred_region
          %285 = vsyncadd [#allocation3], 0
          %s287 = sshll.u32 %s2, 4
          %s288 = int_to_ptr.hbm [resolvable:$true] %s287
          %s289 = sshll.u32 [#allocation2], 4
          %s290 = int_to_ptr.vmem [resolvable:$true] %s289
          %292 = dma.hbm_to_vmem [thread:$0]  %s288, 16, %s290, [#allocation3]
        $region16: #{decoder_forward.9} parent=11 // pred_fallthru
          _
        // Predicated region
        $region17: #{decoder_forward.9} parent=11 // pred_check
          %p293 = pneg %p114
        $region18: #{decoder_forward.9} parent=11 // pred_check_branch
          %295 = sbr.rel (%p293) target = $region20
        $region19: #{decoder_forward.9} parent=11 // pred_region
          %297 = vsyncadd [#allocation5], 0
          %s299 = sshll.u32 %s3, 4
          %s300 = int_to_ptr.hbm [resolvable:$true] %s299
          %s301 = sshll.u32 [#allocation4], 4
          %s302 = int_to_ptr.vmem [resolvable:$true] %s301
          %304 = dma.hbm_to_vmem [thread:$0]  %s300, 16, %s302, [#allocation5]
        $region20: #{decoder_forward.9} parent=11 // pred_fallthru
          _
        // Predicated region
        $region21: #{decoder_forward.9} parent=11 // pred_check
          %p305 = pneg %p135
        $region22: #{decoder_forward.9} parent=11 // pred_check_branch
          %307 = sbr.rel (%p305) target = $region24
        $region23: #{decoder_forward.9} parent=11 // pred_region
          _
        $region24: #{decoder_forward.9} parent=11 // pred_fallthru
          _
        // Predicated region
        $region25: #{decoder_forward.9} parent=11 // pred_check
          %p308 = pneg %p156
        $region26: #{decoder_forward.9} parent=11 // pred_check_branch
          %310 = sbr.rel (%p308) target = $region28
        $region27: #{decoder_forward.9} parent=11 // pred_region
          %312 = vsyncadd [#allocation5], 0
          %s314 = sshll.u32 %s5, 4
          %s315 = int_to_ptr.hbm [resolvable:$true] %s314
          %s316 = sshll.u32 [#allocation6], 4
          %s317 = int_to_ptr.vmem [resolvable:$true] %s316
          %319 = dma.hbm_to_vmem [thread:$0]  %s315, 16, %s317, [#allocation5]
        $region28: #{decoder_forward.9} parent=11 // pred_fallthru
          _
        // Predicated region
        $region29: #{decoder_forward.9} parent=11 // pred_check
          %p320 = pneg %p177
        $region30: #{decoder_forward.9} parent=11 // pred_check_branch
          %322 = sbr.rel (%p320) target = $region32
        $region31: #{decoder_forward.9} parent=11 // pred_region
          %324 = vsyncadd [#allocation8], 0
          %s325 = sshll.u32 %s6, 4
          %s326 = int_to_ptr.hbm [resolvable:$true] %s325
          %s327 = sshll.u32 [#allocation7], 4
          %s328 = int_to_ptr.vmem [resolvable:$true] %s327
          %333 = dma.hbm_to_vmem [thread:$0]  %s326, 256, %s328, [#allocation8], 64, 64, 4
        $region32: #{decoder_forward.9} parent=11 // pred_fallthru
          _
        // Predicated region
        $region33: #{decoder_forward.9} parent=11 // pred_check
          %p334 = pneg %p198
        $region34: #{decoder_forward.9} parent=11 // pred_check_branch
          %336 = sbr.rel (%p334) target = $region36
        $region35: #{decoder_forward.9} parent=11 // pred_region
          %338 = vsyncadd [#allocation8], 0
          %s340 = sshll.u32 %s7, 4
          %s341 = int_to_ptr.hbm [resolvable:$true] %s340
          %s342 = sshll.u32 [#allocation9], 4
          %s343 = int_to_ptr.vmem [resolvable:$true] %s342
          %345 = dma.hbm_to_vmem [thread:$0]  %s341, 16, %s343, [#allocation8]
        $region36: #{decoder_forward.9} parent=11 // pred_fallthru
          _
        // Predicated region
        $region37: #{decoder_forward.9} parent=11 // pred_check
          %p346 = pneg %p219
        $region38: #{decoder_forward.9} parent=11 // pred_check_branch
          %348 = sbr.rel (%p346) target = $region40
        $region39: #{decoder_forward.9} parent=11 // pred_region
          %350 = vsyncadd [#allocation11], 0
          %s351 = sshll.u32 %s8, 4
          %s352 = int_to_ptr.hbm [resolvable:$true] %s351
          %s353 = sshll.u32 [#allocation10], 4
          %s354 = int_to_ptr.vmem [resolvable:$true] %s353
          %359 = dma.hbm_to_vmem [thread:$0]  %s352, 256, %s354, [#allocation11], 64, 64, 4
        $region40: #{decoder_forward.9} parent=11 // pred_fallthru
          _
        // Predicated region
        $region41: #{decoder_forward.9} parent=11 // pred_check
          %p360 = pneg %p240
        $region42: #{decoder_forward.9} parent=11 // pred_check_branch
          %362 = sbr.rel (%p360) target = $region44
        $region43: #{decoder_forward.9} parent=11 // pred_region
          %364 = vsyncadd [#allocation11], 0
          %s366 = sshll.u32 %s9, 4
          %s367 = int_to_ptr.hbm [resolvable:$true] %s366
          %s368 = sshll.u32 [#allocation12], 4
          %s369 = int_to_ptr.vmem [resolvable:$true] %s368
          %371 = dma.hbm_to_vmem [thread:$0]  %s367, 16, %s369, [#allocation11]
        $region44: #{decoder_forward.9} parent=11 // pred_fallthru
          _
      $region12: #{decoder_forward.9} parent=5 // pred_fallthru
        _
      %p372 = scmp.lt.s32.totalorder %s20, 2
      // Predicated region
      $region45: #{decoder_forward.9} parent=5 // pred_check
        %p373 = pneg %p372
      $region46: #{decoder_forward.9} parent=5 // pred_check_branch
        %375 = sbr.rel (%p373) target = $region48
      $region47: #{decoder_forward.9} parent=5 // pred_region
        // Predicated region
        $region49: #{decoder_forward.9} parent=47 // pred_check
          %p376 = pneg %p40
        $region50: #{decoder_forward.9} parent=47 // pred_check_branch
          %378 = sbr.rel (%p376) target = $region52
        $region51: #{decoder_forward.9} parent=47 // pred_region
          %p379 = scmp.lt.s32.totalorder %s20, 1
          %s380 = scalar_select %p379, %s20, 1
          %s381 = smul.addr %s380, 8
          %s382 = scalar_lea.vmem %s0, %s381
        $region52: #{decoder_forward.9} parent=47 // pred_fallthru
          _
        // Predicated region
        $region53: #{decoder_forward.9} parent=47 // pred_check
          %p383 = pneg %p66
        $region54: #{decoder_forward.9} parent=47 // pred_check_branch
          %385 = sbr.rel (%p383) target = $region56
        $region55: #{decoder_forward.9} parent=47 // pred_region
          %p386 = scmp.lt.s32.totalorder %s20, 1
          %s387 = scalar_select %p386, %s20, 1
          %s388 = scalar_lea.vmem %s1, %s387
        $region56: #{decoder_forward.9} parent=47 // pred_fallthru
          _
      $region48: #{decoder_forward.9} parent=5 // pred_fallthru
        _
      %p389 = scmp.le.s32.totalorder 1, %s20
      %p390 = scmp.lt.s32.totalorder %s20, 3
      %p391 = pnand %p389, %p390
      %p392 = pneg %p391
      // Predicated region
      $region57: #{decoder_forward.9} parent=5 // pred_check
        _
      $region58: #{decoder_forward.9} parent=5 // pred_check_branch
        %394 = sbr.rel (%p391) target = $region60
      $region59: #{decoder_forward.9} parent=5 // pred_region
        %s395 = ssub.s32 %s20, 1
        // Predicated region
        $region61: #{decoder_forward.9} parent=59 // pred_check
          %p396 = pneg %p93
        $region62: #{decoder_forward.9} parent=59 // pred_check_branch
          %398 = sbr.rel (%p396) target = $region64
        $region63: #{decoder_forward.9} parent=59 // pred_region
          %400 = dma.done [#allocation3], 16
        $region64: #{decoder_forward.9} parent=59 // pred_fallthru
          _
        // Predicated region
        $region65: #{decoder_forward.9} parent=59 // pred_check
          %p401 = pneg %p114
        $region66: #{decoder_forward.9} parent=59 // pred_check_branch
          %403 = sbr.rel (%p401) target = $region68
        $region67: #{decoder_forward.9} parent=59 // pred_region
          %405 = dma.done [#allocation5], 16
        $region68: #{decoder_forward.9} parent=59 // pred_fallthru
          _
        // Predicated region
        $region69: #{decoder_forward.9} parent=59 // pred_check
          %p406 = pneg %p156
        $region70: #{decoder_forward.9} parent=59 // pred_check_branch
          %408 = sbr.rel (%p406) target = $region72
        $region71: #{decoder_forward.9} parent=59 // pred_region
          %410 = dma.done [#allocation5], 16
        $region72: #{decoder_forward.9} parent=59 // pred_fallthru
          _
        // Predicated region
        $region73: #{decoder_forward.9} parent=59 // pred_check
          %p411 = pneg %p177
        $region74: #{decoder_forward.9} parent=59 // pred_check_branch
          %413 = sbr.rel (%p411) target = $region76
        $region75: #{decoder_forward.9} parent=59 // pred_region
          %415 = dma.done [#allocation8], 256
        $region76: #{decoder_forward.9} parent=59 // pred_fallthru
          _
        // Predicated region
        $region77: #{decoder_forward.9} parent=59 // pred_check
          %p416 = pneg %p198
        $region78: #{decoder_forward.9} parent=59 // pred_check_branch
          %418 = sbr.rel (%p416) target = $region80
        $region79: #{decoder_forward.9} parent=59 // pred_region
          %420 = dma.done [#allocation8], 16
        $region80: #{decoder_forward.9} parent=59 // pred_fallthru
          _
        // Predicated region
        $region81: #{decoder_forward.9} parent=59 // pred_check
          %p421 = pneg %p219
        $region82: #{decoder_forward.9} parent=59 // pred_check_branch
          %423 = sbr.rel (%p421) target = $region84
        $region83: #{decoder_forward.9} parent=59 // pred_region
          %425 = dma.done [#allocation11], 256
        $region84: #{decoder_forward.9} parent=59 // pred_fallthru
          _
        // Predicated region
        $region85: #{decoder_forward.9} parent=59 // pred_check
          %p426 = pneg %p240
        $region86: #{decoder_forward.9} parent=59 // pred_check_branch
          %428 = sbr.rel (%p426) target = $region88
        $region87: #{decoder_forward.9} parent=59 // pred_region
          %430 = dma.done [#allocation11], 16
        $region88: #{decoder_forward.9} parent=59 // pred_fallthru
          _
        %p431 = scmp.lt.s32.totalorder %s25, 1
        %s432 = scalar_select %p431, %s25, 1
        %s433 = smul.addr %s432, 8
        %s434 = scalar_lea.vmem %s0, %s433
        %p435 = pneg %p46
        %p436 = pneg %p43
        %p437 = scmp.lt.s32.totalorder %s25, 1
        %s438 = scalar_select %p437, %s25, 1
        %s439 = scalar_lea.vmem %s1, %s438
        %p440 = pneg %p72
        %p441 = pneg %p69
        %p442 = pneg %p93
        %p443 = pneg %p90
        %p444 = pneg %p114
        %p445 = pneg %p111
        %p446 = pneg %p135
        %p447 = pneg %p132
        %p448 = pneg %p156
        %p449 = pneg %p153
        %p450 = pneg %p177
        %p451 = pneg %p174
        %p452 = pneg %p198
        %p453 = pneg %p195
        %p454 = pneg %p219
        %p455 = pneg %p216
        %p456 = pneg %p240
        %p457 = pneg %p237
        %p458 = pneg %p266
        %p459 = pneg %p263
        %p460 = scmp.lt.s32.totalorder %s25, 1
        %s461 = scalar_select %p460, %s25, 1
        %s462 = smul.addr %s461, 8
        %s463 = scalar_lea.vmem %s10, %s462
        %p464 = scmp.lt.s32.totalorder %s25, 1
        %s465 = scalar_select %p464, %s25, 1
        %s466 = smul.addr %s465, 8
        %s467 = scalar_lea.vmem %s0, %s466
        %p468 = scmp.lt.s32.totalorder %s25, 1
        %s469 = scalar_select %p468, %s25, 1
        %s470 = scalar_lea.vmem %s1, %s469
        %p471 = scmp.lt.s32.totalorder %s25, 1
        %s472 = scalar_select %p471, %s25, 1
        %s473 = smul.addr %s472, 8
        %s474 = scalar_lea.vmem %s10, %s473
        %v476 = vld [vmem:[%s467] sm:$0xff]
        %vm477 = vcmask 261120
        %v478 = vsel %vm477, %v476, 0.0
        %479 = vadd.xlane.f32.xlu0 %v478
        %v480 = vpop.xlane.xlu0 %479
        %v481 = vrcp.pop 32.0
        %v482 = vmul.f32 32.0, %v481
        %v483 = vsub.f32 1.0, %v482
        %v484 = vmul.f32 %v481, %v483
        %v485 = vadd.f32 %v481, %v484
        %vm486 = vweird.f32 %v481
        %v487 = vsel %vm486, %v481, %v485
        %v488 = vmul.f32 %v480, %v487
        %v489 = vsub.f32 %v476, %v488
        %v490 = vmul.f32 %v489, %v489
        %v491 = vsel %vm477, %v490, 0.0
        %492 = vadd.xlane.f32.xlu0 %v491
        %v493 = vpop.xlane.xlu0 %492
        %v494 = vmul.f32 %v493, %v487
        %v495 = vadd.f32 %v494, 1e-06
        %v496 = vrsqrt.pop %v495
        %v497 = vmul.f32 %v496, %v495
        %v498 = vmul.f32 %v497, %v496
        %v499 = vmul.f32 0.5, %v498
        %v500 = vsub.f32 1.5, %v499
        %v501 = vmul.f32 %v496, %v500
        %vm502 = vweird.f32 %v495
        %vm503 = vweird.f32 %v496
        %vm504 = vmor %vm502, %vm503
        %v505 = vsel %vm504, %v496, %v501
        %v506 = vmul.f32 %v489, %v505
        %v507 = vld [vmem:[#allocation2] sm:$0x1]
        %v509 = vperm.slane %v507, 0
        %v511 = vmul.f32 %v506, %v509
        %v512 = vld [vmem:[#allocation4] sm:$0x1]
        %v514 = vperm.slane %v512, 0
        %v516 = vadd.f32 %v511, %v514
        %v517 = vlaneseq
        %v518 = vshrl.u32 %v517, 7
        %v519 = vlaneseq
        %v520 = vand.u32 %v519, 127
        %vm521 = vcmp.gt.s32.totalorder %v520, %v518
        %v522 = vsel %vm521, -1e+09, 0.0
        %v523 = vld [vmem:[%s470] sm:$0x1]
        %v525 = vperm.slane %v523, 0
        %v527 = vadd.f32 %v522, %v525
        %v528 = vpack.c.bf16 %v516, %v516
        %v529 = vld [vmem:[%s4] sm:$0xf]
        %v530 = vld [vmem:[%s4 + $0x4] sm:$0xf]
        %v531 = vld [vmem:[%s4 + $0x8] sm:$0xf]
        %v532 = vld [vmem:[%s4 + $0xc] sm:$0xf]
        %v533 = vld [vmem:[#allocation6] sm:$0x1]
        %v535 = vperm.slane %v533, 0
        %v541 = vunpack.c.l.b16 %v529
        %v542 = vunpack.c.l.b16 %v530
        %v543 = vunpack.c.l.b16 %v531
        %v544 = vunpack.c.l.b16 %v532
        %v545 = vpack.c.b16 %v542, %v541
        %v546 = vpack.c.b16 %v544, %v543
        %v550 = vsel %vm477, %v528, 0
        %552 = vmatpush.bf16.msra.mxu0 0
        %553 = vmatpush.bf16.msra.mxu0 0
        %554 = vmatpush.bf16.msra.mxu0 0
        %555 = vmatpush.bf16.msra.mxu0 0
        %556 = vmatpush.bf16.msra.mxu0 0
        %557 = vmatpush.bf16.msra.mxu0 0
        %558 = vmatpush.bf16.msra.mxu0 %v546
        %559 = vmatpush.bf16.msra.mxu0 %v545
        %560 = vmatmul.bf16.gmra.mxu0 %v550
        %v561 = vpop.f32.mrf.mxu0
        %v562 = vadd.f32 %v535, %v561
        %v563 = vpop.f32.mrf.mxu0
        %564 = vdwg.mxu0
        %v565 = vld [vmem:[#allocation7] sm:$0xf]
        %v566 = vld [vmem:[#allocation7 + $0x4] sm:$0xf]
        %v567 = vld [vmem:[#allocation7 + $0x8] sm:$0xf]
        %v568 = vld [vmem:[#allocation7 + $0xc] sm:$0xf]
        %v569 = vld [vmem:[#allocation9] sm:$0x1]
        %v571 = vperm.slane %v569, 0
        %v577 = vunpack.c.l.b16 %v565
        %v578 = vunpack.c.l.b16 %v566
        %v579 = vunpack.c.l.b16 %v567
        %v580 = vunpack.c.l.b16 %v568
        %v581 = vpack.c.b16 %v578, %v577
        %v582 = vpack.c.b16 %v580, %v579
        %585 = vmatpush.bf16.msra.mxu0 0
        %586 = vmatpush.bf16.msra.mxu0 0
        %587 = vmatpush.bf16.msra.mxu0 0
        %588 = vmatpush.bf16.msra.mxu0 0
        %589 = vmatpush.bf16.msra.mxu0 0
        %590 = vmatpush.bf16.msra.mxu0 0
        %591 = vmatpush.bf16.msra.mxu0 %v582
        %592 = vmatpush.bf16.msra.mxu0 %v581
        %593 = vmatmul.bf16.gmra.mxu0 %v550
        %v594 = vpop.f32.mrf.mxu0
        %v595 = vadd.f32 %v571, %v594
        %v596 = vpop.f32.mrf.mxu0
        %597 = vdwg.mxu0
        %v598 = vpack.c.bf16 %v562, %v562
        %v599 = vpack.c.bf16 %v595, %v595
        %vm600 = vcmask 64512
        %v602 = vsel %vm600, %v598, 0
        %v605 = vsel %vm600, %v599, 0
        %607 = vmatpush.bf16.xpose.msra.mxu0 0
        %608 = vmatpush.bf16.xpose.msra.mxu0 0
        %609 = vmatpush.bf16.xpose.msra.mxu0 0
        %610 = vmatpush.bf16.xpose.msra.mxu0 0
        %611 = vmatpush.bf16.xpose.msra.mxu0 0
        %612 = vmatpush.bf16.xpose.msra.mxu0 0
        %613 = vmatpush.bf16.xpose.msra.mxu0 0
        %614 = vmatpush.bf16.xpose.msra.mxu0 %v605
        %615 = vmatmul.bf16.gmra.mxu0 %v602
        %v616 = vpop.f32.mrf.mxu0
        %v617 = vadd.f32 0.0, %v616
        %v618 = vpop.f32.mrf.mxu0
        %619 = vdwg.mxu0
        %v620 = vmul.f32 %v617, 0.35355338
        %v621 = vadd.f32 %v620, %v527
        %v622 = vsel %vm600, %v621, -inf
        %623 = vmax.xlane.f32.xlu0 %v622
        %v624 = vpop.xlane.xlu0 %623
        %v625 = vsub.f32 %v621, %v624
        %v626 = vmul.f32 %v625, 1.442695
        %v627 = vpow.pop %v626
        %v628 = vsel %vm600, %v627, 0.0
        %629 = vadd.xlane.f32.xlu0 %v628
        %v630 = vpop.xlane.xlu0 %629
        %v631 = vrcp.pop %v630
        %v632 = vmul.f32 %v627, %v631
        %v633 = vpack.c.bf16 %v632, %v632
        %635 = vrot.lane.b32.xlu0 %v599, 96
        %v636 = vpop.permute.xlu0 %635
        %v638 = vsel %vm600, %v633, 0
        %vm640 = vcmask 1043456
        %v642 = vsel %vm640, %v636, 0
        %644 = vmatpush.bf16.msra.mxu0 0
        %645 = vmatpush.bf16.msra.mxu0 0
        %646 = vmatpush.bf16.msra.mxu0 0
        %647 = vmatpush.bf16.msra.mxu0 0
        %648 = vmatpush.bf16.msra.mxu0 0
        %649 = vmatpush.bf16.msra.mxu0 0
        %650 = vmatpush.bf16.msra.mxu0 0
        %651 = vmatpush.bf16.msra.mxu0 %v642
        %652 = vmatmul.bf16.gmra.mxu0 %v638
        %v653 = vpop.f32.mrf.mxu0
        %v654 = vadd.f32 0.0, %v653
        %v655 = vpop.f32.mrf.mxu0
        %656 = vdwg.mxu0
        %v657 = vpack.c.bf16 %v654, %v654
        %659 = vrot.lane.b32.xlu0 %v598, 120
        %v660 = vpop.permute.xlu0 %659
        %661 = vrot.lane.b32.xlu0 %v599, 120
        %v662 = vpop.permute.xlu0 %661
        %v664 = vsel %vm600, %v660, 0
        %v667 = vsel %vm600, %v662, 0
        %669 = vmatpush.bf16.xpose.msra.mxu0 0
        %670 = vmatpush.bf16.xpose.msra.mxu0 0
        %671 = vmatpush.bf16.xpose.msra.mxu0 0
        %672 = vmatpush.bf16.xpose.msra.mxu0 0
        %673 = vmatpush.bf16.xpose.msra.mxu0 0
        %674 = vmatpush.bf16.xpose.msra.mxu0 0
        %675 = vmatpush.bf16.xpose.msra.mxu0 0
        %676 = vmatpush.bf16.xpose.msra.mxu0 %v667
        %677 = vmatmul.bf16.gmra.mxu0 %v664
        %v678 = vpop.f32.mrf.mxu0
        %v679 = vadd.f32 0.0, %v678
        %v680 = vpop.f32.mrf.mxu0
        %681 = vdwg.mxu0
        %v682 = vmul.f32 %v679, 0.35355338
        %v683 = vadd.f32 %v682, %v527
        %v684 = vsel %vm600, %v683, -inf
        %685 = vmax.xlane.f32.xlu0 %v684
        %v686 = vpop.xlane.xlu0 %685
        %v687 = vsub.f32 %v683, %v686
        %v688 = vmul.f32 %v687, 1.442695
        %v689 = vpow.pop %v688
        %v690 = vsel %vm600, %v689, 0.0
        %691 = vadd.xlane.f32.xlu0 %v690
        %v692 = vpop.xlane.xlu0 %691
        %v693 = vrcp.pop %v692
        %v694 = vmul.f32 %v689, %v693
        %v695 = vpack.c.bf16 %v694, %v694
        %696 = vrot.lane.b32.xlu0 %v599, 88
        %v697 = vpop.permute.xlu0 %696
        %v699 = vsel %vm600, %v695, 0
        %v702 = vsel %vm640, %v697, 0
        %704 = vmatpush.bf16.msra.mxu0 0
        %705 = vmatpush.bf16.msra.mxu0 0
        %706 = vmatpush.bf16.msra.mxu0 0
        %707 = vmatpush.bf16.msra.mxu0 0
        %708 = vmatpush.bf16.msra.mxu0 0
        %709 = vmatpush.bf16.msra.mxu0 0
        %710 = vmatpush.bf16.msra.mxu0 0
        %711 = vmatpush.bf16.msra.mxu0 %v702
        %712 = vmatmul.bf16.gmra.mxu0 %v699
        %v713 = vpop.f32.mrf.mxu0
        %v714 = vadd.f32 0.0, %v713
        %v715 = vpop.f32.mrf.mxu0
        %716 = vdwg.mxu0
        %v717 = vpack.c.bf16 %v714, %v714
        %718 = vrot.lane.b32.xlu0 %v598, 112
        %v719 = vpop.permute.xlu0 %718
        %720 = vrot.lane.b32.xlu0 %v599, 112
        %v721 = vpop.permute.xlu0 %720
        %v723 = vsel %vm600, %v719, 0
        %v726 = vsel %vm600, %v721, 0
        %728 = vmatpush.bf16.xpose.msra.mxu0 0
        %729 = vmatpush.bf16.xpose.msra.mxu0 0
        %730 = vmatpush.bf16.xpose.msra.mxu0 0
        %731 = vmatpush.bf16.xpose.msra.mxu0 0
        %732 = vmatpush.bf16.xpose.msra.mxu0 0
        %733 = vmatpush.bf16.xpose.msra.mxu0 0
        %734 = vmatpush.bf16.xpose.msra.mxu0 0
        %735 = vmatpush.bf16.xpose.msra.mxu0 %v726
        %736 = vmatmul.bf16.gmra.mxu0 %v723
        %v737 = vpop.f32.mrf.mxu0
        %v738 = vadd.f32 0.0, %v737
        %v739 = vpop.f32.mrf.mxu0
        %740 = vdwg.mxu0
        %v741 = vmul.f32 %v738, 0.35355338
        %v742 = vadd.f32 %v741, %v527
        %v743 = vsel %vm600, %v742, -inf
        %744 = vmax.xlane.f32.xlu0 %v743
        %v745 = vpop.xlane.xlu0 %744
        %v746 = vsub.f32 %v742, %v745
        %v747 = vmul.f32 %v746, 1.442695
        %v748 = vpow.pop %v747
        %v749 = vsel %vm600, %v748, 0.0
        %750 = vadd.xlane.f32.xlu0 %v749
        %v751 = vpop.xlane.xlu0 %750
        %v752 = vrcp.pop %v751
        %v753 = vmul.f32 %v748, %v752
        %v754 = vpack.c.bf16 %v753, %v753
        %755 = vrot.lane.b32.xlu0 %v599, 80
        %v756 = vpop.permute.xlu0 %755
        %v758 = vsel %vm600, %v754, 0
        %v761 = vsel %vm640, %v756, 0
        %763 = vmatpush.bf16.msra.mxu0 0
        %764 = vmatpush.bf16.msra.mxu0 0
        %765 = vmatpush.bf16.msra.mxu0 0
        %766 = vmatpush.bf16.msra.mxu0 0
        %767 = vmatpush.bf16.msra.mxu0 0
        %768 = vmatpush.bf16.msra.mxu0 0
        %769 = vmatpush.bf16.msra.mxu0 0
        %770 = vmatpush.bf16.msra.mxu0 %v761
        %771 = vmatmul.bf16.gmra.mxu0 %v758
        %v772 = vpop.f32.mrf.mxu0
        %v773 = vadd.f32 0.0, %v772
        %v774 = vpop.f32.mrf.mxu0
        %775 = vdwg.mxu0
        %v776 = vpack.c.bf16 %v773, %v773
        %777 = vrot.lane.b32.xlu0 %v598, 104
        %v778 = vpop.permute.xlu0 %777
        %779 = vrot.lane.b32.xlu0 %v599, 104
        %v780 = vpop.permute.xlu0 %779
        %v782 = vsel %vm600, %v778, 0
        %v785 = vsel %vm600, %v780, 0
        %787 = vmatpush.bf16.xpose.msra.mxu0 0
        %788 = vmatpush.bf16.xpose.msra.mxu0 0
        %789 = vmatpush.bf16.xpose.msra.mxu0 0
        %790 = vmatpush.bf16.xpose.msra.mxu0 0
        %791 = vmatpush.bf16.xpose.msra.mxu0 0
        %792 = vmatpush.bf16.xpose.msra.mxu0 0
        %793 = vmatpush.bf16.xpose.msra.mxu0 0
        %794 = vmatpush.bf16.xpose.msra.mxu0 %v785
        %795 = vmatmul.bf16.gmra.mxu0 %v782
        %v796 = vpop.f32.mrf.mxu0
        %v797 = vadd.f32 0.0, %v796
        %v798 = vpop.f32.mrf.mxu0
        %799 = vdwg.mxu0
        %v800 = vmul.f32 %v797, 0.35355338
        %v801 = vadd.f32 %v800, %v527
        %v802 = vsel %vm600, %v801, -inf
        %803 = vmax.xlane.f32.xlu0 %v802
        %v804 = vpop.xlane.xlu0 %803
        %v805 = vsub.f32 %v801, %v804
        %v806 = vmul.f32 %v805, 1.442695
        %v807 = vpow.pop %v806
        %v808 = vsel %vm600, %v807, 0.0
        %809 = vadd.xlane.f32.xlu0 %v808
        %v810 = vpop.xlane.xlu0 %809
        %v811 = vrcp.pop %v810
        %v812 = vmul.f32 %v807, %v811
        %v813 = vpack.c.bf16 %v812, %v812
        %814 = vrot.lane.b32.xlu0 %v599, 72
        %v815 = vpop.permute.xlu0 %814
        %v817 = vsel %vm600, %v813, 0
        %v820 = vsel %vm640, %v815, 0
        %822 = vmatpush.bf16.msra.mxu0 0
        %823 = vmatpush.bf16.msra.mxu0 0
        %824 = vmatpush.bf16.msra.mxu0 0
        %825 = vmatpush.bf16.msra.mxu0 0
        %826 = vmatpush.bf16.msra.mxu0 0
        %827 = vmatpush.bf16.msra.mxu0 0
        %828 = vmatpush.bf16.msra.mxu0 0
        %829 = vmatpush.bf16.msra.mxu0 %v820
        %830 = vmatmul.bf16.gmra.mxu0 %v817
        %v831 = vpop.f32.mrf.mxu0
        %v832 = vadd.f32 0.0, %v831
        %v833 = vpop.f32.mrf.mxu0
        %834 = vdwg.mxu0
        %v835 = vpack.c.bf16 %v832, %v832
        %v837 = vunpack.c.l.b16 %v717
        %v838 = vpack.c.b16 %v837, %v837
        %839 = vrot.lane.b32.xlu0 %v838, 8
        %v840 = vpop.permute.xlu0 %839
        %v842 = vunpack.c.l.b16 %v776
        %v843 = vpack.c.b16 %v842, %v842
        %844 = vrot.lane.b32.xlu0 %v843, 16
        %v845 = vpop.permute.xlu0 %844
        %v847 = vunpack.c.l.b16 %v835
        %v848 = vpack.c.b16 %v847, %v847
        %849 = vrot.lane.b32.xlu0 %v848, 24
        %v850 = vpop.permute.xlu0 %849
        %v853 = vsel %vm600, %v657, %v840
        %vm854 = vcmask 130048
        %v856 = vsel %vm854, %v853, %v845
        %vm857 = vcmask 195584
        %v859 = vsel %vm857, %v856, %v850
        %v860 = vld [vmem:[#allocation10] sm:$0xf]
        %v861 = vld [vmem:[#allocation10 + $0x4] sm:$0xf]
        %v862 = vld [vmem:[#allocation10 + $0x8] sm:$0xf]
        %v863 = vld [vmem:[#allocation10 + $0xc] sm:$0xf]
        %v864 = vld [vmem:[#allocation12] sm:$0x1]
        %v866 = vperm.slane %v864, 0
        %v872 = vunpack.c.l.b16 %v860
        %v873 = vunpack.c.l.b16 %v861
        %v874 = vunpack.c.l.b16 %v862
        %v875 = vunpack.c.l.b16 %v863
        %v876 = vpack.c.b16 %v873, %v872
        %v877 = vpack.c.b16 %v875, %v874
        %v880 = vsel %vm477, %v859, 0
        %882 = vmatpush.bf16.msra.mxu0 0
        %883 = vmatpush.bf16.msra.mxu0 0
        %884 = vmatpush.bf16.msra.mxu0 0
        %885 = vmatpush.bf16.msra.mxu0 0
        %886 = vmatpush.bf16.msra.mxu0 0
        %887 = vmatpush.bf16.msra.mxu0 0
        %888 = vmatpush.bf16.msra.mxu0 %v877
        %889 = vmatpush.bf16.msra.mxu0 %v876
        %890 = vmatmul.bf16.gmra.mxu0 %v880
        %v891 = vpop.f32.mrf.mxu0
        %v892 = vadd.f32 %v866, %v891
        %v893 = vpop.f32.mrf.mxu0
        %894 = vdwg.mxu0
        %v895 = vadd.f32 %v892, %v476
        %896 = vst.msk [vmem:[%s474] sm:$0xff] %vm477, %v895
        %p897 = scmp.lt.s32.totalorder %s25, 1
        %s898 = scalar_select %p897, %s25, 1
        %s899 = smul.addr %s898, 8
        %s900 = scalar_lea.vmem %s10, %s899
        // Predicated region
        $region89: #{decoder_forward.9} parent=59 // pred_check
          %p901 = pneg %p263
        $region90: #{decoder_forward.9} parent=59 // pred_check_branch
          %903 = sbr.rel (%p901) target = $region92
        $region91: #{decoder_forward.9} parent=59 // pred_region
          _
        $region92: #{decoder_forward.9} parent=59 // pred_fallthru
          _
      $region60: #{decoder_forward.9} parent=5 // pred_fallthru
        _
      %p904 = scmp.le.s32.totalorder 2, %s20
      // Predicated region
      $region93: #{decoder_forward.9} parent=5 // pred_check
        %p905 = pneg %p904
      $region94: #{decoder_forward.9} parent=5 // pred_check_branch
        %907 = sbr.rel (%p905) target = $region96
      $region95: #{decoder_forward.9} parent=5 // pred_region
        %s908 = ssub.s32 %s20, 2
        // Predicated region
        $region97: #{decoder_forward.9} parent=95 // pred_check
          %p909 = pneg %p269
        $region98: #{decoder_forward.9} parent=95 // pred_check_branch
          %911 = sbr.rel (%p909) target = $region100
        $region99: #{decoder_forward.9} parent=95 // pred_region
          %p912 = scmp.lt.s32.totalorder %s26, 1
          %s913 = scalar_select %p912, %s26, 1
          %s914 = smul.addr %s913, 8
          %s915 = scalar_lea.vmem %s10, %s914
        $region100: #{decoder_forward.9} parent=95 // pred_fallthru
          _
      $region96: #{decoder_forward.9} parent=5 // pred_fallthru
        _
    $region6: #{decoder_forward.9} parent=1 // loop_footer
      %s24 = sadd.s32 1, %s20
    $region7: #{decoder_forward.9} parent=1 // loop_footer_branch
      %19 = sbr.rel target = $region3
    $region8: #{decoder_forward.9} parent=1 // loop_exit
      _
    %916 = vsyncpa [#allocation3], 1
    %s917 = scalar_lea.sflag [#allocation3], 1
    %918 = vsyncpa %s917, 1
    %919 = vsyncpa [#allocation5], 1
    %920 = vsyncpa [#allocation8], 1
    %921 = vsyncpa [#allocation11], 1

// kernel: decoder_forward.7
$region0: #{decoder_forward.7}
  #allocation0 [shape = 'u32[]', space=smem, size = 0x4, offset = 0x4, fixed_abs, tag = 'smem constant byte address 0x4 - core index']
  #allocation1 [shape = 'u32[72,128]{1,0:T(1,128)}', space=vmem, size = 0x9000, scoped, tag = 'internal scratch']
  %s0 = inlined_call_operand.vmem [shape: f32[2,8,32], index: 0, kind: input, shape index: {}]
  %s1 = inlined_call_operand.vmem [shape: f32[2,16,32], index: 1, kind: input, shape index: {}]
  %s2 = inlined_call_operand.hbm [shape: f32[2,8,32], index: 2, kind: input, shape index: {}]
  %s3 = inlined_call_operand.vmem [shape: f32[2,1,16], index: 3, kind: input, shape index: {}]
  %s4 = inlined_call_operand.vmem [shape: f32[2,1,8], index: 4, kind: input, shape index: {}]
  %s5 = inlined_call_operand.vmem [shape: f32[1,32], index: 5, kind: input, shape index: {}]
  %s6 = inlined_call_operand.vmem [shape: f32[1,32], index: 6, kind: input, shape index: {}]
  %s7 = inlined_call_operand.hbm [shape: bf16[32,32], index: 7, kind: input, shape index: {}]
  %s8 = inlined_call_operand.vmem [shape: f32[1,32], index: 8, kind: input, shape index: {}]
  %s9 = inlined_call_operand.hbm [shape: bf16[32,64], index: 9, kind: input, shape index: {}]
  %s10 = inlined_call_operand.vmem [shape: f32[1,64], index: 10, kind: input, shape index: {}]
  %s11 = inlined_call_operand.hbm [shape: bf16[32,32], index: 11, kind: input, shape index: {}]
  %s12 = inlined_call_operand.vmem [shape: f32[1,32], index: 12, kind: input, shape index: {}]
  %s13 = inlined_call_operand.hbm [shape: bf16[32,32], index: 13, kind: input, shape index: {}]
  %s14 = inlined_call_operand.vmem [shape: f32[1,32], index: 14, kind: input, shape index: {}]
  %s15 = inlined_call_operand.hbm [shape: bf16[32,64], index: 15, kind: input, shape index: {}]
  %s16 = inlined_call_operand.vmem [shape: f32[1,64], index: 16, kind: input, shape index: {}]
  %s17 = inlined_call_operand.hbm [shape: bf16[32,32], index: 17, kind: input, shape index: {}]
  %s18 = inlined_call_operand.hbm [shape: f32[1,32], index: 18, kind: input, shape index: {}]
  %s19 = inlined_call_operand.vmem [shape: f32[2,8,32], index: 19, kind: output, shape index: {}]
  %s20 = sld [smem:[#allocation0]]
  $region141: #{decoder_forward.7} parent=0
    _
  %s22 = ssub.s32 1, %s20
  %s23 = scalar_select 0, %s22, %s20
  $region1: #{decoder_forward.7} parent=0
    #allocation2 [shape = 'u8[8192]{0}', space=vmem, size = 0x2000, scoped, tag = 'input window, operand 2']
    #allocation3 [shape = 's32[2]{0}', space=sflag, size = 0x8, scoped, tag = 'scoped memory for decoder_forward.7']
    #allocation4 [shape = 'u8[8192]{0}', space=vmem, size = 0x2000, scoped, tag = 'input window, operand 7, single buffered']
    #allocation5 [shape = 's32[1]{0}', space=sflag, size = 0x4, scoped, tag = 'scoped memory for decoder_forward.7']
    #allocation6 [shape = 'u8[8192]{0}', space=vmem, size = 0x2000, scoped, tag = 'input window, operand 9, single buffered']
    #allocation7 [shape = 'u8[8192]{0}', space=vmem, size = 0x2000, scoped, tag = 'input window, operand 11, single buffered']
    #allocation8 [shape = 's32[1]{0}', space=sflag, size = 0x4, scoped, tag = 'scoped memory for decoder_forward.7']
    #allocation9 [shape = 'u8[8192]{0}', space=vmem, size = 0x2000, scoped, tag = 'input window, operand 13, single buffered']
    #allocation10 [shape = 'u8[8192]{0}', space=vmem, size = 0x2000, scoped, tag = 'input window, operand 15, single buffered']
    #allocation11 [shape = 's32[1]{0}', space=sflag, size = 0x4, scoped, tag = 'scoped memory for decoder_forward.7']
    #allocation12 [shape = 'u8[8192]{0}', space=vmem, size = 0x2000, scoped, tag = 'input window, operand 17, single buffered']
    #allocation13 [shape = 'u8[512]{0}', space=vmem, size = 0x400, scoped, tag = 'input window, operand 18, single buffered']
    #allocation14 [shape = 's32[1]{0}', space=sflag, size = 0x4, scoped, tag = 'scoped memory for decoder_forward.7']
    %24 = vsyncpa [#allocation3], 0
    %s25 = scalar_lea.sflag [#allocation3], 1
    %26 = vsyncpa %s25, 0
    %27 = vsyncpa [#allocation5], 0
    %28 = vsyncpa [#allocation8], 0
    %29 = vsyncpa [#allocation11], 0
    %30 = vsyncpa [#allocation14], 0
    loop: start=0, step=1, limit=4
    $region2: #{decoder_forward.7} parent=1 // loop_pre_header
      _
    $region3: #{decoder_forward.7} parent=1 // loop_header
      %s32 = sphi 0, %s36
      %p33 = scmp.ge.s32.totalorder %s32, 4
      %s39 = sphi 0, %s51
      %s40 = sphi 0, %s47
      %s41 = sphi 0, %s39
      %s42 = sphi 0, %s40
      %s43 = sphi 0, %s41
      %s44 = sphi 0, %s42
      %s56 = sphi 0, %s58
      %s59 = sphi 0, %s56
      %s60 = sphi 0, %s59
      %s76 = sphi 0, %s60
      %s82 = sphi 0, %s84
      %s85 = sphi 0, %s82
      %s86 = sphi 0, %s85
      %s102 = sphi 0, %s86
      %s108 = sphi 0, %s110
      %s111 = sphi 0, %s108
      %s112 = sphi 0, %s111
      %s128 = sphi 0, %s112
      %s134 = sphi 0, %s136
      %s137 = sphi 0, %s134
      %s138 = sphi 0, %s137
      %s154 = sphi 0, %s138
      %s160 = sphi 0, %s162
      %s163 = sphi 0, %s160
      %s164 = sphi 0, %s163
      %s180 = sphi 0, %s164
      %s184 = sphi 0, %s184
      %s186 = sphi 0, %s184
      %s187 = sphi 0, %s186
      %s201 = sphi 0, %s187
      %s205 = sphi 0, %s205
      %s207 = sphi 0, %s205
      %s208 = sphi 0, %s207
      %s222 = sphi 0, %s208
      %s226 = sphi 0, %s226
      %s228 = sphi 0, %s226
      %s229 = sphi 0, %s228
      %s243 = sphi 0, %s229
      %s247 = sphi 0, %s247
      %s249 = sphi 0, %s247
      %s250 = sphi 0, %s249
      %s264 = sphi 0, %s250
      %s268 = sphi 0, %s268
      %s270 = sphi 0, %s268
      %s271 = sphi 0, %s270
      %s285 = sphi 0, %s271
      %s289 = sphi 0, %s289
      %s291 = sphi 0, %s289
      %s292 = sphi 0, %s291
      %s306 = sphi 0, %s292
      %s310 = sphi 0, %s310
      %s312 = sphi 0, %s310
      %s313 = sphi 0, %s312
      %s327 = sphi 0, %s313
      %s331 = sphi 0, %s331
      %s333 = sphi 0, %s331
      %s334 = sphi 0, %s333
      %s348 = sphi 0, %s334
      %s352 = sphi 0, %s352
      %s354 = sphi 0, %s352
      %s355 = sphi 0, %s354
      %s369 = sphi 0, %s355
      %s373 = sphi 0, %s373
      %s375 = sphi 0, %s373
      %s376 = sphi 0, %s375
      %s390 = sphi 0, %s376
      %s394 = sphi 0, %s394
      %s396 = sphi 0, %s394
      %s397 = sphi 0, %s396
      %s411 = sphi 0, %s397
      %s415 = sphi 0, %s415
      %s417 = sphi 0, %s415
      %s418 = sphi 0, %s417
      %s432 = sphi 0, %s418
      %s436 = sphi 0, %s436
      %s438 = sphi 0, %s436
      %s439 = sphi 0, %s438
      %s453 = sphi 0, %s439
      %s457 = sphi 0, %s457
      %s459 = sphi 0, %s457
      %s460 = sphi 0, %s459
      %s474 = sphi 0, %s460
      %s482 = sphi 0, %s484
      %s485 = sphi 0, %s482
      %s486 = sphi 0, %s485
      %s502 = sphi 0, %s486
    $region4: #{decoder_forward.7} parent=1 // loop_header_branch
      %35 = sbr.rel (%p33) target = $region8
    $region5: #{decoder_forward.7} parent=1 // loop_body
      %s37 = ssub.s32 %s32, 1
      %s38 = ssub.s32 %s32, 2
      %s45 = sadd.s32 1, %s40
      %p46 = scmp.ge.s32.totalorder %s45, 1
      %s47 = scalar_select %p46, 0, %s45
      %s48 = sadd.s32 1, %s39
      %s49 = scalar_select %p46, %s48, %s39
      %p50 = scmp.ge.s32.totalorder %s49, 2
      %s51 = scalar_select %p50, 0, %s49
      %s52 = ssub.s32 %s39, %s51
      %s53 = ssub.s32 %s40, %s47
      %s54 = sor.u32 %s52, %s53
      %p55 = scmp.eq.s32.totalorder %s54, 0
      %s57 = sadd.s32 %s56, 1
      %s58 = scalar_select %p55, %s56, %s57
      %p61 = pneg %p55
      %p62 = scmp.eq.s32.totalorder %s32, 1
      %p63 = por %p61, %p62
      %p64 = scmp.ne.s32.totalorder %s56, %s59
      %p65 = scmp.eq.s32.totalorder %s32, 0
      %p66 = por %p64, %p65
      %p67 = scmp.ne.s32.totalorder %s56, %s59
      %p68 = scmp.eq.s32.totalorder %s37, 1
      %p69 = por %p67, %p68
      %p70 = scmp.ne.s32.totalorder %s59, %s60
      %p71 = scmp.eq.s32.totalorder %s37, 0
      %p72 = por %p70, %p71
      %p73 = scmp.ne.s32.totalorder %s59, %s60
      %p74 = scmp.eq.s32.totalorder %s38, 1
      %p75 = por %p73, %p74
      %p77 = scmp.ne.s32.totalorder %s60, %s76
      %p78 = scmp.eq.s32.totalorder %s38, 0
      %p79 = por %p77, %p78
      %s80 = ssub.s32 %s39, %s51
      %p81 = scmp.eq.s32.totalorder %s80, 0
      %s83 = sadd.s32 %s82, 1
      %s84 = scalar_select %p81, %s82, %s83
      %p87 = pneg %p81
      %p88 = scmp.eq.s32.totalorder %s32, 1
      %p89 = por %p87, %p88
      %p90 = scmp.ne.s32.totalorder %s82, %s85
      %p91 = scmp.eq.s32.totalorder %s32, 0
      %p92 = por %p90, %p91
      %p93 = scmp.ne.s32.totalorder %s82, %s85
      %p94 = scmp.eq.s32.totalorder %s37, 1
      %p95 = por %p93, %p94
      %p96 = scmp.ne.s32.totalorder %s85, %s86
      %p97 = scmp.eq.s32.totalorder %s37, 0
      %p98 = por %p96, %p97
      %p99 = scmp.ne.s32.totalorder %s85, %s86
      %p100 = scmp.eq.s32.totalorder %s38, 1
      %p101 = por %p99, %p100
      %p103 = scmp.ne.s32.totalorder %s86, %s102
      %p104 = scmp.eq.s32.totalorder %s38, 0
      %p105 = por %p103, %p104
      %s106 = ssub.s32 %s39, %s51
      %p107 = scmp.eq.s32.totalorder %s106, 0
      %s109 = sadd.s32 %s108, 1
      %s110 = scalar_select %p107, %s108, %s109
      %p113 = pneg %p107
      %p114 = scmp.eq.s32.totalorder %s32, 1
      %p115 = por %p113, %p114
      %p116 = scmp.ne.s32.totalorder %s108, %s111
      %p117 = scmp.eq.s32.totalorder %s32, 0
      %p118 = por %p116, %p117
      %p119 = scmp.ne.s32.totalorder %s108, %s111
      %p120 = scmp.eq.s32.totalorder %s37, 1
      %p121 = por %p119, %p120
      %p122 = scmp.ne.s32.totalorder %s111, %s112
      %p123 = scmp.eq.s32.totalorder %s37, 0
      %p124 = por %p122, %p123
      %p125 = scmp.ne.s32.totalorder %s111, %s112
      %p126 = scmp.eq.s32.totalorder %s38, 1
      %p127 = por %p125, %p126
      %p129 = scmp.ne.s32.totalorder %s112, %s128
      %p130 = scmp.eq.s32.totalorder %s38, 0
      %p131 = por %p129, %p130
      %s132 = ssub.s32 %s39, %s51
      %p133 = scmp.eq.s32.totalorder %s132, 0
      %s135 = sadd.s32 %s134, 1
      %s136 = scalar_select %p133, %s134, %s135
      %p139 = pneg %p133
      %p140 = scmp.eq.s32.totalorder %s32, 1
      %p141 = por %p139, %p140
      %p142 = scmp.ne.s32.totalorder %s134, %s137
      %p143 = scmp.eq.s32.totalorder %s32, 0
      %p144 = por %p142, %p143
      %p145 = scmp.ne.s32.totalorder %s134, %s137
      %p146 = scmp.eq.s32.totalorder %s37, 1
      %p147 = por %p145, %p146
      %p148 = scmp.ne.s32.totalorder %s137, %s138
      %p149 = scmp.eq.s32.totalorder %s37, 0
      %p150 = por %p148, %p149
      %p151 = scmp.ne.s32.totalorder %s137, %s138
      %p152 = scmp.eq.s32.totalorder %s38, 1
      %p153 = por %p151, %p152
      %p155 = scmp.ne.s32.totalorder %s138, %s154
      %p156 = scmp.eq.s32.totalorder %s38, 0
      %p157 = por %p155, %p156
      %s158 = ssub.s32 %s39, %s51
      %p159 = scmp.eq.s32.totalorder %s158, 0
      %s161 = sadd.s32 %s160, 1
      %s162 = scalar_select %p159, %s160, %s161
      %p165 = pneg %p159
      %p166 = scmp.eq.s32.totalorder %s32, 1
      %p167 = por %p165, %p166
      %p168 = scmp.ne.s32.totalorder %s160, %s163
      %p169 = scmp.eq.s32.totalorder %s32, 0
      %p170 = por %p168, %p169
      %p171 = scmp.ne.s32.totalorder %s160, %s163
      %p172 = scmp.eq.s32.totalorder %s37, 1
      %p173 = por %p171, %p172
      %p174 = scmp.ne.s32.totalorder %s163, %s164
      %p175 = scmp.eq.s32.totalorder %s37, 0
      %p176 = por %p174, %p175
      %p177 = scmp.ne.s32.totalorder %s163, %s164
      %p178 = scmp.eq.s32.totalorder %s38, 1
      %p179 = por %p177, %p178
      %p181 = scmp.ne.s32.totalorder %s164, %s180
      %p182 = scmp.eq.s32.totalorder %s38, 0
      %p183 = por %p181, %p182
      %s185 = sadd.s32 %s184, 1
      %p188 = scmp.eq.s32.totalorder %s32, 1
      %p189 = scmp.ne.s32.totalorder %s184, %s186
      %p190 = scmp.eq.s32.totalorder %s32, 0
      %p191 = por %p189, %p190
      %p192 = scmp.ne.s32.totalorder %s184, %s186
      %p193 = scmp.eq.s32.totalorder %s37, 1
      %p194 = por %p192, %p193
      %p195 = scmp.ne.s32.totalorder %s186, %s187
      %p196 = scmp.eq.s32.totalorder %s37, 0
      %p197 = por %p195, %p196
      %p198 = scmp.ne.s32.totalorder %s186, %s187
      %p199 = scmp.eq.s32.totalorder %s38, 1
      %p200 = por %p198, %p199
      %p202 = scmp.ne.s32.totalorder %s187, %s201
      %p203 = scmp.eq.s32.totalorder %s38, 0
      %p204 = por %p202, %p203
      %s206 = sadd.s32 %s205, 1
      %p209 = scmp.eq.s32.totalorder %s32, 1
      %p210 = scmp.ne.s32.totalorder %s205, %s207
      %p211 = scmp.eq.s32.totalorder %s32, 0
      %p212 = por %p210, %p211
      %p213 = scmp.ne.s32.totalorder %s205, %s207
      %p214 = scmp.eq.s32.totalorder %s37, 1
      %p215 = por %p213, %p214
      %p216 = scmp.ne.s32.totalorder %s207, %s208
      %p217 = scmp.eq.s32.totalorder %s37, 0
      %p218 = por %p216, %p217
      %p219 = scmp.ne.s32.totalorder %s207, %s208
      %p220 = scmp.eq.s32.totalorder %s38, 1
      %p221 = por %p219, %p220
      %p223 = scmp.ne.s32.totalorder %s208, %s222
      %p224 = scmp.eq.s32.totalorder %s38, 0
      %p225 = por %p223, %p224
      %s227 = sadd.s32 %s226, 1
      %p230 = scmp.eq.s32.totalorder %s32, 1
      %p231 = scmp.ne.s32.totalorder %s226, %s228
      %p232 = scmp.eq.s32.totalorder %s32, 0
      %p233 = por %p231, %p232
      %p234 = scmp.ne.s32.totalorder %s226, %s228
      %p235 = scmp.eq.s32.totalorder %s37, 1
      %p236 = por %p234, %p235
      %p237 = scmp.ne.s32.totalorder %s228, %s229
      %p238 = scmp.eq.s32.totalorder %s37, 0
      %p239 = por %p237, %p238
      %p240 = scmp.ne.s32.totalorder %s228, %s229
      %p241 = scmp.eq.s32.totalorder %s38, 1
      %p242 = por %p240, %p241
      %p244 = scmp.ne.s32.totalorder %s229, %s243
      %p245 = scmp.eq.s32.totalorder %s38, 0
      %p246 = por %p244, %p245
      %s248 = sadd.s32 %s247, 1
      %p251 = scmp.eq.s32.totalorder %s32, 1
      %p252 = scmp.ne.s32.totalorder %s247, %s249
      %p253 = scmp.eq.s32.totalorder %s32, 0
      %p254 = por %p252, %p253
      %p255 = scmp.ne.s32.totalorder %s247, %s249
      %p256 = scmp.eq.s32.totalorder %s37, 1
      %p257 = por %p255, %p256
      %p258 = scmp.ne.s32.totalorder %s249, %s250
      %p259 = scmp.eq.s32.totalorder %s37, 0
      %p260 = por %p258, %p259
      %p261 = scmp.ne.s32.totalorder %s249, %s250
      %p262 = scmp.eq.s32.totalorder %s38, 1
      %p263 = por %p261, %p262
      %p265 = scmp.ne.s32.totalorder %s250, %s264
      %p266 = scmp.eq.s32.totalorder %s38, 0
      %p267 = por %p265, %p266
      %s269 = sadd.s32 %s268, 1
      %p272 = scmp.eq.s32.totalorder %s32, 1
      %p273 = scmp.ne.s32.totalorder %s268, %s270
      %p274 = scmp.eq.s32.totalorder %s32, 0
      %p275 = por %p273, %p274
      %p276 = scmp.ne.s32.totalorder %s268, %s270
      %p277 = scmp.eq.s32.totalorder %s37, 1
      %p278 = por %p276, %p277
      %p279 = scmp.ne.s32.totalorder %s270, %s271
      %p280 = scmp.eq.s32.totalorder %s37, 0
      %p281 = por %p279, %p280
      %p282 = scmp.ne.s32.totalorder %s270, %s271
      %p283 = scmp.eq.s32.totalorder %s38, 1
      %p284 = por %p282, %p283
      %p286 = scmp.ne.s32.totalorder %s271, %s285
      %p287 = scmp.eq.s32.totalorder %s38, 0
      %p288 = por %p286, %p287
      %s290 = sadd.s32 %s289, 1
      %p293 = scmp.eq.s32.totalorder %s32, 1
      %p294 = scmp.ne.s32.totalorder %s289, %s291
      %p295 = scmp.eq.s32.totalorder %s32, 0
      %p296 = por %p294, %p295
      %p297 = scmp.ne.s32.totalorder %s289, %s291
      %p298 = scmp.eq.s32.totalorder %s37, 1
      %p299 = por %p297, %p298
      %p300 = scmp.ne.s32.totalorder %s291, %s292
      %p301 = scmp.eq.s32.totalorder %s37, 0
      %p302 = por %p300, %p301
      %p303 = scmp.ne.s32.totalorder %s291, %s292
      %p304 = scmp.eq.s32.totalorder %s38, 1
      %p305 = por %p303, %p304
      %p307 = scmp.ne.s32.totalorder %s292, %s306
      %p308 = scmp.eq.s32.totalorder %s38, 0
      %p309 = por %p307, %p308
      %s311 = sadd.s32 %s310, 1
      %p314 = scmp.eq.s32.totalorder %s32, 1
      %p315 = scmp.ne.s32.totalorder %s310, %s312
      %p316 = scmp.eq.s32.totalorder %s32, 0
      %p317 = por %p315, %p316
      %p318 = scmp.ne.s32.totalorder %s310, %s312
      %p319 = scmp.eq.s32.totalorder %s37, 1
      %p320 = por %p318, %p319
      %p321 = scmp.ne.s32.totalorder %s312, %s313
      %p322 = scmp.eq.s32.totalorder %s37, 0
      %p323 = por %p321, %p322
      %p324 = scmp.ne.s32.totalorder %s312, %s313
      %p325 = scmp.eq.s32.totalorder %s38, 1
      %p326 = por %p324, %p325
      %p328 = scmp.ne.s32.totalorder %s313, %s327
      %p329 = scmp.eq.s32.totalorder %s38, 0
      %p330 = por %p328, %p329
      %s332 = sadd.s32 %s331, 1
      %p335 = scmp.eq.s32.totalorder %s32, 1
      %p336 = scmp.ne.s32.totalorder %s331, %s333
      %p337 = scmp.eq.s32.totalorder %s32, 0
      %p338 = por %p336, %p337
      %p339 = scmp.ne.s32.totalorder %s331, %s333
      %p340 = scmp.eq.s32.totalorder %s37, 1
      %p341 = por %p339, %p340
      %p342 = scmp.ne.s32.totalorder %s333, %s334
      %p343 = scmp.eq.s32.totalorder %s37, 0
      %p344 = por %p342, %p343
      %p345 = scmp.ne.s32.totalorder %s333, %s334
      %p346 = scmp.eq.s32.totalorder %s38, 1
      %p347 = por %p345, %p346
      %p349 = scmp.ne.s32.totalorder %s334, %s348
      %p350 = scmp.eq.s32.totalorder %s38, 0
      %p351 = por %p349, %p350
      %s353 = sadd.s32 %s352, 1
      %p356 = scmp.eq.s32.totalorder %s32, 1
      %p357 = scmp.ne.s32.totalorder %s352, %s354
      %p358 = scmp.eq.s32.totalorder %s32, 0
      %p359 = por %p357, %p358
      %p360 = scmp.ne.s32.totalorder %s352, %s354
      %p361 = scmp.eq.s32.totalorder %s37, 1
      %p362 = por %p360, %p361
      %p363 = scmp.ne.s32.totalorder %s354, %s355
      %p364 = scmp.eq.s32.totalorder %s37, 0
      %p365 = por %p363, %p364
      %p366 = scmp.ne.s32.totalorder %s354, %s355
      %p367 = scmp.eq.s32.totalorder %s38, 1
      %p368 = por %p366, %p367
      %p370 = scmp.ne.s32.totalorder %s355, %s369
      %p371 = scmp.eq.s32.totalorder %s38, 0
      %p372 = por %p370, %p371
      %s374 = sadd.s32 %s373, 1
      %p377 = scmp.eq.s32.totalorder %s32, 1
      %p378 = scmp.ne.s32.totalorder %s373, %s375
      %p379 = scmp.eq.s32.totalorder %s32, 0
      %p380 = por %p378, %p379
      %p381 = scmp.ne.s32.totalorder %s373, %s375
      %p382 = scmp.eq.s32.totalorder %s37, 1
      %p383 = por %p381, %p382
      %p384 = scmp.ne.s32.totalorder %s375, %s376
      %p385 = scmp.eq.s32.totalorder %s37, 0
      %p386 = por %p384, %p385
      %p387 = scmp.ne.s32.totalorder %s375, %s376
      %p388 = scmp.eq.s32.totalorder %s38, 1
      %p389 = por %p387, %p388
      %p391 = scmp.ne.s32.totalorder %s376, %s390
      %p392 = scmp.eq.s32.totalorder %s38, 0
      %p393 = por %p391, %p392
      %s395 = sadd.s32 %s394, 1
      %p398 = scmp.eq.s32.totalorder %s32, 1
      %p399 = scmp.ne.s32.totalorder %s394, %s396
      %p400 = scmp.eq.s32.totalorder %s32, 0
      %p401 = por %p399, %p400
      %p402 = scmp.ne.s32.totalorder %s394, %s396
      %p403 = scmp.eq.s32.totalorder %s37, 1
      %p404 = por %p402, %p403
      %p405 = scmp.ne.s32.totalorder %s396, %s397
      %p406 = scmp.eq.s32.totalorder %s37, 0
      %p407 = por %p405, %p406
      %p408 = scmp.ne.s32.totalorder %s396, %s397
      %p409 = scmp.eq.s32.totalorder %s38, 1
      %p410 = por %p408, %p409
      %p412 = scmp.ne.s32.totalorder %s397, %s411
      %p413 = scmp.eq.s32.totalorder %s38, 0
      %p414 = por %p412, %p413
      %s416 = sadd.s32 %s415, 1
      %p419 = scmp.eq.s32.totalorder %s32, 1
      %p420 = scmp.ne.s32.totalorder %s415, %s417
      %p421 = scmp.eq.s32.totalorder %s32, 0
      %p422 = por %p420, %p421
      %p423 = scmp.ne.s32.totalorder %s415, %s417
      %p424 = scmp.eq.s32.totalorder %s37, 1
      %p425 = por %p423, %p424
      %p426 = scmp.ne.s32.totalorder %s417, %s418
      %p427 = scmp.eq.s32.totalorder %s37, 0
      %p428 = por %p426, %p427
      %p429 = scmp.ne.s32.totalorder %s417, %s418
      %p430 = scmp.eq.s32.totalorder %s38, 1
      %p431 = por %p429, %p430
      %p433 = scmp.ne.s32.totalorder %s418, %s432
      %p434 = scmp.eq.s32.totalorder %s38, 0
      %p435 = por %p433, %p434
      %s437 = sadd.s32 %s436, 1
      %p440 = scmp.eq.s32.totalorder %s32, 1
      %p441 = scmp.ne.s32.totalorder %s436, %s438
      %p442 = scmp.eq.s32.totalorder %s32, 0
      %p443 = por %p441, %p442
      %p444 = scmp.ne.s32.totalorder %s436, %s438
      %p445 = scmp.eq.s32.totalorder %s37, 1
      %p446 = por %p444, %p445
      %p447 = scmp.ne.s32.totalorder %s438, %s439
      %p448 = scmp.eq.s32.totalorder %s37, 0
      %p449 = por %p447, %p448
      %p450 = scmp.ne.s32.totalorder %s438, %s439
      %p451 = scmp.eq.s32.totalorder %s38, 1
      %p452 = por %p450, %p451
      %p454 = scmp.ne.s32.totalorder %s439, %s453
      %p455 = scmp.eq.s32.totalorder %s38, 0
      %p456 = por %p454, %p455
      %s458 = sadd.s32 %s457, 1
      %p461 = scmp.eq.s32.totalorder %s32, 1
      %p462 = scmp.ne.s32.totalorder %s457, %s459
      %p463 = scmp.eq.s32.totalorder %s32, 0
      %p464 = por %p462, %p463
      %p465 = scmp.ne.s32.totalorder %s457, %s459
      %p466 = scmp.eq.s32.totalorder %s37, 1
      %p467 = por %p465, %p466
      %p468 = scmp.ne.s32.totalorder %s459, %s460
      %p469 = scmp.eq.s32.totalorder %s37, 0
      %p470 = por %p468, %p469
      %p471 = scmp.ne.s32.totalorder %s459, %s460
      %p472 = scmp.eq.s32.totalorder %s38, 1
      %p473 = por %p471, %p472
      %p475 = scmp.ne.s32.totalorder %s460, %s474
      %p476 = scmp.eq.s32.totalorder %s38, 0
      %p477 = por %p475, %p476
      %s478 = ssub.s32 %s39, %s51
      %s479 = ssub.s32 %s40, %s47
      %s480 = sor.u32 %s478, %s479
      %p481 = scmp.eq.s32.totalorder %s480, 0
      %s483 = sadd.s32 %s482, 1
      %s484 = scalar_select %p481, %s482, %s483
      %p487 = pneg %p481
      %p488 = scmp.eq.s32.totalorder %s32, 1
      %p489 = por %p487, %p488
      %p490 = scmp.ne.s32.totalorder %s482, %s485
      %p491 = scmp.eq.s32.totalorder %s32, 0
      %p492 = por %p490, %p491
      %p493 = scmp.ne.s32.totalorder %s482, %s485
      %p494 = scmp.eq.s32.totalorder %s37, 1
      %p495 = por %p493, %p494
      %p496 = scmp.ne.s32.totalorder %s485, %s486
      %p497 = scmp.eq.s32.totalorder %s37, 0
      %p498 = por %p496, %p497
      %p499 = scmp.ne.s32.totalorder %s485, %s486
      %p500 = scmp.eq.s32.totalorder %s38, 1
      %p501 = por %p499, %p500
      %p503 = scmp.ne.s32.totalorder %s486, %s502
      %p504 = scmp.eq.s32.totalorder %s38, 0
      %p505 = por %p503, %p504
      %p506 = scmp.le.s32.totalorder 1, %s32
      %p507 = scmp.lt.s32.totalorder %s32, 3
      %p508 = pnand %p506, %p507
      %p509 = pneg %p508
      // Predicated region
      $region9: #{decoder_forward.7} parent=5 // pred_check
        _
      $region10: #{decoder_forward.7} parent=5 // pred_check_branch
        %511 = sbr.rel (%p508) target = $region12
      $region11: #{decoder_forward.7} parent=5 // pred_region
        %s512 = ssub.s32 %s32, 1
        // Predicated region
        $region13: #{decoder_forward.7} parent=11 // pred_check
          %p513 = pneg %p197
        $region14: #{decoder_forward.7} parent=11 // pred_check_branch
          %515 = sbr.rel (%p513) target = $region16
        $region15: #{decoder_forward.7} parent=11 // pred_region
          _
        $region16: #{decoder_forward.7} parent=11 // pred_fallthru
          _
        // Predicated region
        $region17: #{decoder_forward.7} parent=11 // pred_check
          %p516 = pneg %p218
        $region18: #{decoder_forward.7} parent=11 // pred_check_branch
          %518 = sbr.rel (%p516) target = $region20
        $region19: #{decoder_forward.7} parent=11 // pred_region
          _
        $region20: #{decoder_forward.7} parent=11 // pred_fallthru
          _
        // Predicated region
        $region21: #{decoder_forward.7} parent=11 // pred_check
          %p519 = pneg %p239
        $region22: #{decoder_forward.7} parent=11 // pred_check_branch
          %521 = sbr.rel (%p519) target = $region24
        $region23: #{decoder_forward.7} parent=11 // pred_region
          %523 = vsyncadd [#allocation5], 0
          %s524 = sshll.u32 %s7, 4
          %s525 = int_to_ptr.hbm [resolvable:$true] %s524
          %s526 = sshll.u32 [#allocation4], 4
          %s527 = int_to_ptr.vmem [resolvable:$true] %s526
          %532 = dma.hbm_to_vmem [thread:$0]  %s525, 256, %s527, [#allocation5], 64, 64, 4
        $region24: #{decoder_forward.7} parent=11 // pred_fallthru
          _
        // Predicated region
        $region25: #{decoder_forward.7} parent=11 // pred_check
          %p533 = pneg %p260
        $region26: #{decoder_forward.7} parent=11 // pred_check_branch
          %535 = sbr.rel (%p533) target = $region28
        $region27: #{decoder_forward.7} parent=11 // pred_region
          _
        $region28: #{decoder_forward.7} parent=11 // pred_fallthru
          _
        // Predicated region
        $region29: #{decoder_forward.7} parent=11 // pred_check
          %p536 = pneg %p281
        $region30: #{decoder_forward.7} parent=11 // pred_check_branch
          %538 = sbr.rel (%p536) target = $region32
        $region31: #{decoder_forward.7} parent=11 // pred_region
          %540 = vsyncadd [#allocation5], 0
          %s541 = sshll.u32 %s9, 4
          %s542 = int_to_ptr.hbm [resolvable:$true] %s541
          %s543 = sshll.u32 [#allocation6], 4
          %s544 = int_to_ptr.vmem [resolvable:$true] %s543
          %549 = dma.hbm_to_vmem [thread:$0]  %s542, 256, %s544, [#allocation5], 64, 64, 4
        $region32: #{decoder_forward.7} parent=11 // pred_fallthru
          _
        // Predicated region
        $region33: #{decoder_forward.7} parent=11 // pred_check
          %p550 = pneg %p302
        $region34: #{decoder_forward.7} parent=11 // pred_check_branch
          %552 = sbr.rel (%p550) target = $region36
        $region35: #{decoder_forward.7} parent=11 // pred_region
          _
        $region36: #{decoder_forward.7} parent=11 // pred_fallthru
          _
        // Predicated region
        $region37: #{decoder_forward.7} parent=11 // pred_check
          %p553 = pneg %p323
        $region38: #{decoder_forward.7} parent=11 // pred_check_branch
          %555 = sbr.rel (%p553) target = $region40
        $region39: #{decoder_forward.7} parent=11 // pred_region
          %557 = vsyncadd [#allocation8], 0
          %s558 = sshll.u32 %s11, 4
          %s559 = int_to_ptr.hbm [resolvable:$true] %s558
          %s560 = sshll.u32 [#allocation7], 4
          %s561 = int_to_ptr.vmem [resolvable:$true] %s560
          %566 = dma.hbm_to_vmem [thread:$0]  %s559, 256, %s561, [#allocation8], 64, 64, 4
        $region40: #{decoder_forward.7} parent=11 // pred_fallthru
          _
        // Predicated region
        $region41: #{decoder_forward.7} parent=11 // pred_check
          %p567 = pneg %p344
        $region42: #{decoder_forward.7} parent=11 // pred_check_branch
          %569 = sbr.rel (%p567) target = $region44
        $region43: #{decoder_forward.7} parent=11 // pred_region
          _
        $region44: #{decoder_forward.7} parent=11 // pred_fallthru
          _
        // Predicated region
        $region45: #{decoder_forward.7} parent=11 // pred_check
          %p570 = pneg %p365
        $region46: #{decoder_forward.7} parent=11 // pred_check_branch
          %572 = sbr.rel (%p570) target = $region48
        $region47: #{decoder_forward.7} parent=11 // pred_region
          %574 = vsyncadd [#allocation8], 0
          %s575 = sshll.u32 %s13, 4
          %s576 = int_to_ptr.hbm [resolvable:$true] %s575
          %s577 = sshll.u32 [#allocation9], 4
          %s578 = int_to_ptr.vmem [resolvable:$true] %s577
          %583 = dma.hbm_to_vmem [thread:$0]  %s576, 256, %s578, [#allocation8], 64, 64, 4
        $region48: #{decoder_forward.7} parent=11 // pred_fallthru
          _
        // Predicated region
        $region49: #{decoder_forward.7} parent=11 // pred_check
          %p584 = pneg %p386
        $region50: #{decoder_forward.7} parent=11 // pred_check_branch
          %586 = sbr.rel (%p584) target = $region52
        $region51: #{decoder_forward.7} parent=11 // pred_region
          _
        $region52: #{decoder_forward.7} parent=11 // pred_fallthru
          _
        // Predicated region
        $region53: #{decoder_forward.7} parent=11 // pred_check
          %p587 = pneg %p407
        $region54: #{decoder_forward.7} parent=11 // pred_check_branch
          %589 = sbr.rel (%p587) target = $region56
        $region55: #{decoder_forward.7} parent=11 // pred_region
          %591 = vsyncadd [#allocation11], 0
          %s592 = sshll.u32 %s15, 4
          %s593 = int_to_ptr.hbm [resolvable:$true] %s592
          %s594 = sshll.u32 [#allocation10], 4
          %s595 = int_to_ptr.vmem [resolvable:$true] %s594
          %600 = dma.hbm_to_vmem [thread:$0]  %s593, 256, %s595, [#allocation11], 64, 64, 4
        $region56: #{decoder_forward.7} parent=11 // pred_fallthru
          _
        // Predicated region
        $region57: #{decoder_forward.7} parent=11 // pred_check
          %p601 = pneg %p428
        $region58: #{decoder_forward.7} parent=11 // pred_check_branch
          %603 = sbr.rel (%p601) target = $region60
        $region59: #{decoder_forward.7} parent=11 // pred_region
          _
        $region60: #{decoder_forward.7} parent=11 // pred_fallthru
          _
        // Predicated region
        $region61: #{decoder_forward.7} parent=11 // pred_check
          %p604 = pneg %p449
        $region62: #{decoder_forward.7} parent=11 // pred_check_branch
          %606 = sbr.rel (%p604) target = $region64
        $region63: #{decoder_forward.7} parent=11 // pred_region
          %608 = vsyncadd [#allocation11], 0
          %s609 = sshll.u32 %s17, 4
          %s610 = int_to_ptr.hbm [resolvable:$true] %s609
          %s611 = sshll.u32 [#allocation12], 4
          %s612 = int_to_ptr.vmem [resolvable:$true] %s611
          %617 = dma.hbm_to_vmem [thread:$0]  %s610, 256, %s612, [#allocation11], 64, 64, 4
        $region64: #{decoder_forward.7} parent=11 // pred_fallthru
          _
        // Predicated region
        $region65: #{decoder_forward.7} parent=11 // pred_check
          %p618 = pneg %p470
        $region66: #{decoder_forward.7} parent=11 // pred_check_branch
          %620 = sbr.rel (%p618) target = $region68
        $region67: #{decoder_forward.7} parent=11 // pred_region
          %622 = vsyncadd [#allocation14], 0
          %s624 = sshll.u32 %s18, 4
          %s625 = int_to_ptr.hbm [resolvable:$true] %s624
          %s626 = sshll.u32 [#allocation13], 4
          %s627 = int_to_ptr.vmem [resolvable:$true] %s626
          %629 = dma.hbm_to_vmem [thread:$0]  %s625, 16, %s627, [#allocation14]
        $region68: #{decoder_forward.7} parent=11 // pred_fallthru
          _
      $region12: #{decoder_forward.7} parent=5 // pred_fallthru
        _
      %p630 = scmp.lt.s32.totalorder %s32, 2
      // Predicated region
      $region69: #{decoder_forward.7} parent=5 // pred_check
        %p631 = pneg %p630
      $region70: #{decoder_forward.7} parent=5 // pred_check_branch
        %633 = sbr.rel (%p631) target = $region72
      $region71: #{decoder_forward.7} parent=5 // pred_region
        // Predicated region
        $region73: #{decoder_forward.7} parent=71 // pred_check
          %p634 = pneg %p66
        $region74: #{decoder_forward.7} parent=71 // pred_check_branch
          %636 = sbr.rel (%p634) target = $region76
        $region75: #{decoder_forward.7} parent=71 // pred_region
          %p637 = scmp.lt.s32.totalorder %s39, 1
          %s638 = scalar_select %p637, %s39, 1
          %p639 = scmp.lt.s32.totalorder %s40, 0
          %s640 = scalar_select %p639, %s40, 0
          %s641 = sadd.s32 %s640, %s638
          %s642 = smul.addr %s641, 8
          %s643 = scalar_lea.vmem %s0, %s642
        $region76: #{decoder_forward.7} parent=71 // pred_fallthru
          _
        // Predicated region
        $region77: #{decoder_forward.7} parent=71 // pred_check
          %p644 = pneg %p92
        $region78: #{decoder_forward.7} parent=71 // pred_check_branch
          %646 = sbr.rel (%p644) target = $region80
        $region79: #{decoder_forward.7} parent=71 // pred_region
          %p647 = scmp.lt.s32.totalorder %s39, 1
          %s648 = scalar_select %p647, %s39, 1
          %s649 = smul.addr %s648, 2
          %s650 = smul.addr %s649, 8
          %s651 = scalar_lea.vmem %s1, %s650
        $region80: #{decoder_forward.7} parent=71 // pred_fallthru
          _
        // Predicated region
        $region81: #{decoder_forward.7} parent=71 // pred_check
          %p652 = pneg %p118
        $region82: #{decoder_forward.7} parent=71 // pred_check_branch
          %654 = sbr.rel (%p652) target = $region84
        $region83: #{decoder_forward.7} parent=71 // pred_region
          %s655 = sand.u32 %s108, 1
          %s656 = scalar_lea.sflag [#allocation3], %s655
          %s657 = sand.u32 %s108, 1
          %s658 = smul.addr %s657, 8
          %s659 = scalar_lea.vmem [#allocation2], %s658
          %661 = vsyncadd %s656, 0
          %s662 = smul.addr %s39, 8
          %s663 = scalar_lea.hbm %s2, %s662
          %s665 = sshll.u32 %s663, 4
          %s666 = int_to_ptr.hbm [resolvable:$true] %s665
          %s667 = sshll.u32 %s659, 4
          %s668 = int_to_ptr.vmem [resolvable:$true] %s667
          %670 = dma.hbm_to_vmem [thread:$0]  %s666, 128, %s668, %s656
        $region84: #{decoder_forward.7} parent=71 // pred_fallthru
          _
        // Predicated region
        $region85: #{decoder_forward.7} parent=71 // pred_check
          %p671 = pneg %p144
        $region86: #{decoder_forward.7} parent=71 // pred_check_branch
          %673 = sbr.rel (%p671) target = $region88
        $region87: #{decoder_forward.7} parent=71 // pred_region
          %p674 = scmp.lt.s32.totalorder %s39, 1
          %s675 = scalar_select %p674, %s39, 1
          %s676 = scalar_lea.vmem %s3, %s675
        $region88: #{decoder_forward.7} parent=71 // pred_fallthru
          _
        // Predicated region
        $region89: #{decoder_forward.7} parent=71 // pred_check
          %p677 = pneg %p170
        $region90: #{decoder_forward.7} parent=71 // pred_check_branch
          %679 = sbr.rel (%p677) target = $region92
        $region91: #{decoder_forward.7} parent=71 // pred_region
          %p680 = scmp.lt.s32.totalorder %s39, 1
          %s681 = scalar_select %p680, %s39, 1
          %s682 = scalar_lea.vmem %s4, %s681
        $region92: #{decoder_forward.7} parent=71 // pred_fallthru
          _
      $region72: #{decoder_forward.7} parent=5 // pred_fallthru
        _
      %p683 = scmp.le.s32.totalorder 1, %s32
      %p684 = scmp.lt.s32.totalorder %s32, 3
      %p685 = pnand %p683, %p684
      %p686 = pneg %p685
      // Predicated region
      $region93: #{decoder_forward.7} parent=5 // pred_check
        _
      $region94: #{decoder_forward.7} parent=5 // pred_check_branch
        %688 = sbr.rel (%p685) target = $region96
      $region95: #{decoder_forward.7} parent=5 // pred_region
        %s689 = ssub.s32 %s32, 1
        %s690 = sand.u32 %s111, 1
        %s691 = scalar_lea.sflag [#allocation3], %s690
        %s692 = sand.u32 %s111, 1
        %s693 = smul.addr %s692, 8
        %s694 = scalar_lea.vmem [#allocation2], %s693
        // Predicated region
        $region97: #{decoder_forward.7} parent=95 // pred_check
          %p695 = pneg %p124
        $region98: #{decoder_forward.7} parent=95 // pred_check_branch
          %697 = sbr.rel (%p695) target = $region100
        $region99: #{decoder_forward.7} parent=95 // pred_region
          %699 = dma.done %s691, 128
        $region100: #{decoder_forward.7} parent=95 // pred_fallthru
          _
        // Predicated region
        $region101: #{decoder_forward.7} parent=95 // pred_check
          %p700 = pneg %p239
        $region102: #{decoder_forward.7} parent=95 // pred_check_branch
          %702 = sbr.rel (%p700) target = $region104
        $region103: #{decoder_forward.7} parent=95 // pred_region
          %704 = dma.done [#allocation5], 256
        $region104: #{decoder_forward.7} parent=95 // pred_fallthru
          _
        // Predicated region
        $region105: #{decoder_forward.7} parent=95 // pred_check
          %p705 = pneg %p281
        $region106: #{decoder_forward.7} parent=95 // pred_check_branch
          %707 = sbr.rel (%p705) target = $region108
        $region107: #{decoder_forward.7} parent=95 // pred_region
          %709 = dma.done [#allocation5], 256
        $region108: #{decoder_forward.7} parent=95 // pred_fallthru
          _
        // Predicated region
        $region109: #{decoder_forward.7} parent=95 // pred_check
          %p710 = pneg %p323
        $region110: #{decoder_forward.7} parent=95 // pred_check_branch
          %712 = sbr.rel (%p710) target = $region112
        $region111: #{decoder_forward.7} parent=95 // pred_region
          %714 = dma.done [#allocation8], 256
        $region112: #{decoder_forward.7} parent=95 // pred_fallthru
          _
        // Predicated region
        $region113: #{decoder_forward.7} parent=95 // pred_check
          %p715 = pneg %p365
        $region114: #{decoder_forward.7} parent=95 // pred_check_branch
          %717 = sbr.rel (%p715) target = $region116
        $region115: #{decoder_forward.7} parent=95 // pred_region
          %719 = dma.done [#allocation8], 256
        $region116: #{decoder_forward.7} parent=95 // pred_fallthru
          _
        // Predicated region
        $region117: #{decoder_forward.7} parent=95 // pred_check
          %p720 = pneg %p407
        $region118: #{decoder_forward.7} parent=95 // pred_check_branch
          %722 = sbr.rel (%p720) target = $region120
        $region119: #{decoder_forward.7} parent=95 // pred_region
          %724 = dma.done [#allocation11], 256
        $region120: #{decoder_forward.7} parent=95 // pred_fallthru
          _
        // Predicated region
        $region121: #{decoder_forward.7} parent=95 // pred_check
          %p725 = pneg %p449
        $region122: #{decoder_forward.7} parent=95 // pred_check_branch
          %727 = sbr.rel (%p725) target = $region124
        $region123: #{decoder_forward.7} parent=95 // pred_region
          %729 = dma.done [#allocation11], 256
        $region124: #{decoder_forward.7} parent=95 // pred_fallthru
          _
        // Predicated region
        $region125: #{decoder_forward.7} parent=95 // pred_check
          %p730 = pneg %p470
        $region126: #{decoder_forward.7} parent=95 // pred_check_branch
          %732 = sbr.rel (%p730) target = $region128
        $region127: #{decoder_forward.7} parent=95 // pred_region
          %734 = dma.done [#allocation14], 16
        $region128: #{decoder_forward.7} parent=95 // pred_fallthru
          _
        %p735 = scmp.lt.s32.totalorder %s41, 1
        %s736 = scalar_select %p735, %s41, 1
        %p737 = scmp.lt.s32.totalorder %s42, 0
        %s738 = scalar_select %p737, %s42, 0
        %s739 = sadd.s32 %s738, %s736
        %s740 = smul.addr %s739, 8
        %s741 = scalar_lea.vmem %s0, %s740
        %p742 = pneg %p72
        %p743 = pneg %p69
        %p744 = scmp.lt.s32.totalorder %s41, 1
        %s745 = scalar_select %p744, %s41, 1
        %s746 = smul.addr %s745, 2
        %s747 = smul.addr %s746, 8
        %s748 = scalar_lea.vmem %s1, %s747
        %p749 = pneg %p98
        %p750 = pneg %p95
        %s751 = sand.u32 %s111, 1
        %s752 = scalar_lea.sflag [#allocation3], %s751
        %s753 = sand.u32 %s111, 1
        %s754 = smul.addr %s753, 8
        %s755 = scalar_lea.vmem [#allocation2], %s754
        %p756 = pneg %p124
        %p757 = pneg %p121
        %p758 = scmp.lt.s32.totalorder %s41, 1
        %s759 = scalar_select %p758, %s41, 1
        %s760 = scalar_lea.vmem %s3, %s759
        %p761 = pneg %p150
        %p762 = pneg %p147
        %p763 = scmp.lt.s32.totalorder %s41, 1
        %s764 = scalar_select %p763, %s41, 1
        %s765 = scalar_lea.vmem %s4, %s764
        %p766 = pneg %p176
        %p767 = pneg %p173
        %p768 = pneg %p197
        %p769 = pneg %p194
        %p770 = pneg %p218
        %p771 = pneg %p215
        %p772 = pneg %p239
        %p773 = pneg %p236
        %p774 = pneg %p260
        %p775 = pneg %p257
        %p776 = pneg %p281
        %p777 = pneg %p278
        %p778 = pneg %p302
        %p779 = pneg %p299
        %p780 = pneg %p323
        %p781 = pneg %p320
        %p782 = pneg %p344
        %p783 = pneg %p341
        %p784 = pneg %p365
        %p785 = pneg %p362
        %p786 = pneg %p386
        %p787 = pneg %p383
        %p788 = pneg %p407
        %p789 = pneg %p404
        %p790 = pneg %p428
        %p791 = pneg %p425
        %p792 = pneg %p449
        %p793 = pneg %p446
        %p794 = pneg %p470
        %p795 = pneg %p467
        %p796 = pneg %p498
        %p797 = pneg %p495
        %p798 = scmp.lt.s32.totalorder %s41, 1
        %s799 = scalar_select %p798, %s41, 1
        %p800 = scmp.lt.s32.totalorder %s42, 0
        %s801 = scalar_select %p800, %s42, 0
        %s802 = sadd.s32 %s801, %s799
        %s803 = smul.addr %s802, 8
        %s804 = scalar_lea.vmem %s19, %s803
        %p805 = scmp.lt.s32.totalorder %s41, 1
        %s806 = scalar_select %p805, %s41, 1
        %p807 = scmp.lt.s32.totalorder %s42, 0
        %s808 = scalar_select %p807, %s42, 0
        %s809 = sadd.s32 %s808, %s806
        %s810 = smul.addr %s809, 8
        %s811 = scalar_lea.vmem %s0, %s810
        %p812 = scmp.lt.s32.totalorder %s41, 1
        %s813 = scalar_select %p812, %s41, 1
        %s814 = smul.addr %s813, 2
        %s815 = smul.addr %s814, 8
        %s816 = scalar_lea.vmem %s1, %s815
        %p817 = scmp.lt.s32.totalorder %s41, 1
        %s818 = scalar_select %p817, %s41, 1
        %s819 = scalar_lea.vmem %s3, %s818
        %p820 = scmp.lt.s32.totalorder %s41, 1
        %s821 = scalar_select %p820, %s41, 1
        %s822 = scalar_lea.vmem %s4, %s821
        %p823 = scmp.lt.s32.totalorder %s41, 1
        %s824 = scalar_select %p823, %s41, 1
        %p825 = scmp.lt.s32.totalorder %s42, 0
        %s826 = scalar_select %p825, %s42, 0
        %s827 = sadd.s32 %s826, %s824
        %s828 = smul.addr %s827, 8
        %s829 = scalar_lea.vmem %s19, %s828
        %v831 = vld [vmem:[%s811] sm:$0xff]
        %vm832 = vcmask 261120
        %v833 = vsel %vm832, %v831, 0.0
        %834 = vadd.xlane.f32.xlu0 %v833
        %v835 = vpop.xlane.xlu0 %834
        %v836 = vrcp.pop 32.0
        %v837 = vmul.f32 32.0, %v836
        %v838 = vsub.f32 1.0, %v837
        %v839 = vmul.f32 %v836, %v838
        %v840 = vadd.f32 %v836, %v839
        %vm841 = vweird.f32 %v836
        %v842 = vsel %vm841, %v836, %v840
        %v843 = vmul.f32 %v835, %v842
        %v844 = vsub.f32 %v831, %v843
        %v845 = vmul.f32 %v844, %v844
        %v846 = vsel %vm832, %v845, 0.0
        %847 = vadd.xlane.f32.xlu0 %v846
        %v848 = vpop.xlane.xlu0 %847
        %v849 = vmul.f32 %v848, %v842
        %v850 = vadd.f32 %v849, 1e-06
        %v851 = vrsqrt.pop %v850
        %v852 = vmul.f32 %v851, %v850
        %v853 = vmul.f32 %v852, %v851
        %v854 = vmul.f32 0.5, %v853
        %v855 = vsub.f32 1.5, %v854
        %v856 = vmul.f32 %v851, %v855
        %vm857 = vweird.f32 %v850
        %vm858 = vweird.f32 %v851
        %vm859 = vmor %vm857, %vm858
        %v860 = vsel %vm859, %v851, %v856
        %v861 = vmul.f32 %v844, %v860
        %v862 = vld [vmem:[%s5] sm:$0x1]
        %v864 = vperm.slane %v862, 0
        %v866 = vmul.f32 %v861, %v864
        %v867 = vld [vmem:[%s6] sm:$0x1]
        %v869 = vperm.slane %v867, 0
        %v871 = vadd.f32 %v866, %v869
        %v872 = vpack.c.bf16 %v871, %v871
        %v873 = vld [vmem:[%s816] sm:$0xff]
        %v874 = vld [vmem:[%s816 + $0x8] sm:$0xff]
        %v875 = vld [vmem:[%s819] sm:$0x1]
        %v876 = vpack.c.bf16 %v874, %v873
        %v877 = vld [vmem:[#allocation4] sm:$0xf]
        %v878 = vld [vmem:[#allocation4 + $0x4] sm:$0xf]
        %v879 = vld [vmem:[#allocation4 + $0x8] sm:$0xf]
        %v880 = vld [vmem:[#allocation4 + $0xc] sm:$0xf]
        %v881 = vld [vmem:[%s8] sm:$0x1]
        %v883 = vperm.slane %v881, 0
        %v889 = vunpack.c.l.b16 %v877
        %v890 = vunpack.c.l.b16 %v878
        %v891 = vunpack.c.l.b16 %v879
        %v892 = vunpack.c.l.b16 %v880
        %v893 = vpack.c.b16 %v890, %v889
        %v894 = vpack.c.b16 %v892, %v891
        %v898 = vsel %vm832, %v872, 0
        %900 = vmatpush.bf16.msra.mxu0 0
        %901 = vmatpush.bf16.msra.mxu0 0
        %902 = vmatpush.bf16.msra.mxu0 0
        %903 = vmatpush.bf16.msra.mxu0 0
        %904 = vmatpush.bf16.msra.mxu0 0
        %905 = vmatpush.bf16.msra.mxu0 0
        %906 = vmatpush.bf16.msra.mxu0 %v894
        %907 = vmatpush.bf16.msra.mxu0 %v893
        %908 = vmatmul.bf16.gmra.mxu0 %v898
        %v909 = vpop.f32.mrf.mxu0
        %v910 = vadd.f32 %v883, %v909
        %v911 = vpop.f32.mrf.mxu0
        %912 = vdwg.mxu0
        %v913 = vld [vmem:[#allocation6] sm:$0xf]
        %v914 = vld [vmem:[#allocation6 + $0x4] sm:$0xf]
        %v915 = vld [vmem:[#allocation6 + $0x8] sm:$0xf]
        %v916 = vld [vmem:[#allocation6 + $0xc] sm:$0xf]
        %v917 = vld [vmem:[%s10] sm:$0x1]
        %v919 = vperm.slane %v917, 0
        %v925 = vunpack.c.l.b16 %v913
        %v926 = vunpack.c.l.b16 %v914
        %v927 = vunpack.c.l.b16 %v915
        %v928 = vunpack.c.l.b16 %v916
        %v929 = vpack.c.b16 %v926, %v925
        %v930 = vpack.c.b16 %v928, %v927
        %v934 = vsel %vm832, %v876, 0
        %936 = vmatpush.bf16.msra.mxu0 0
        %937 = vmatpush.bf16.msra.mxu0 0
        %938 = vmatpush.bf16.msra.mxu0 0
        %939 = vmatpush.bf16.msra.mxu0 0
        %940 = vmatpush.bf16.msra.mxu0 0
        %941 = vmatpush.bf16.msra.mxu0 0
        %942 = vmatpush.bf16.msra.mxu0 %v930
        %943 = vmatpush.bf16.msra.mxu0 %v929
        %944 = vmatmul.bf16.gmra.mxu0 %v934
        %v945 = vpop.f32.mrf.mxu0
        %v946 = vadd.f32 %v919, %v945
        %v947 = vpop.f32.mrf.mxu0
        %v948 = vadd.f32 %v919, %v947
        %949 = vdwg.mxu0
        %v950 = vpack.c.bf16 %v910, %v910
        %v951 = vpack.c.bf16 %v948, %v946
        %vm952 = vcmask 64512
        %v954 = vsel %vm952, %v950, 0
        %v957 = vsel %vm952, %v951, 0
        %959 = vmatpush.bf16.xpose.msra.mxu0 0
        %960 = vmatpush.bf16.xpose.msra.mxu0 0
        %961 = vmatpush.bf16.xpose.msra.mxu0 0
        %962 = vmatpush.bf16.xpose.msra.mxu0 0
        %963 = vmatpush.bf16.xpose.msra.mxu0 0
        %964 = vmatpush.bf16.xpose.msra.mxu0 0
        %965 = vmatpush.bf16.xpose.msra.mxu0 0
        %966 = vmatpush.bf16.xpose.msra.mxu0 %v957
        %967 = vmatmul.bf16.gmra.mxu0 %v954
        %v968 = vpop.f32.mrf.mxu0
        %v969 = vadd.f32 0.0, %v968
        %v970 = vpop.f32.mrf.mxu0
        %971 = vdwg.mxu0
        %v972 = vmul.f32 %v969, 0.35355338
        %v974 = vperm.slane %v875, 0
        %v976 = vadd.f32 %v972, %v974
        %vm977 = vcmask 130048
        %v978 = vsel %vm977, %v976, -inf
        %979 = vmax.xlane.f32.xlu0 %v978
        %v980 = vpop.xlane.xlu0 %979
        %v981 = vsub.f32 %v976, %v980
        %v982 = vmul.f32 %v981, 1.442695
        %v983 = vpow.pop %v982
        %v984 = vsel %vm977, %v983, 0.0
        %985 = vadd.xlane.f32.xlu0 %v984
        %v986 = vpop.xlane.xlu0 %985
        %v987 = vrcp.pop %v986
        %v988 = vmul.f32 %v983, %v987
        %v989 = vpack.c.bf16 %v988, %v988
        %991 = vrot.lane.b32.xlu0 %v951, 96
        %v992 = vpop.permute.xlu0 %991
        %v995 = vsel %vm977, %v989, 0
        %997 = vmatpush.bf16.msra.mxu0 0
        %998 = vmatpush.bf16.msra.mxu0 0
        %999 = vmatpush.bf16.msra.mxu0 0
        %1000 = vmatpush.bf16.msra.mxu0 0
        %1001 = vmatpush.bf16.msra.mxu0 0
        %1002 = vmatpush.bf16.msra.mxu0 0
        %1003 = vmatpush.bf16.msra.mxu0 0
        %1004 = vmatpush.bf16.msra.mxu0 %v992
        %1005 = vmatmul.bf16.gmra.mxu0 %v995
        %v1006 = vpop.f32.mrf.mxu0
        %v1007 = vadd.f32 0.0, %v1006
        %v1008 = vpop.f32.mrf.mxu0
        %1009 = vdwg.mxu0
        %v1010 = vpack.c.bf16 %v1007, %v1007
        %1012 = vrot.lane.b32.xlu0 %v950, 120
        %v1013 = vpop.permute.xlu0 %1012
        %1014 = vrot.lane.b32.xlu0 %v951, 120
        %v1015 = vpop.permute.xlu0 %1014
        %v1017 = vsel %vm952, %v1013, 0
        %v1020 = vsel %vm952, %v1015, 0
        %1022 = vmatpush.bf16.xpose.msra.mxu0 0
        %1023 = vmatpush.bf16.xpose.msra.mxu0 0
        %1024 = vmatpush.bf16.xpose.msra.mxu0 0
        %1025 = vmatpush.bf16.xpose.msra.mxu0 0
        %1026 = vmatpush.bf16.xpose.msra.mxu0 0
        %1027 = vmatpush.bf16.xpose.msra.mxu0 0
        %1028 = vmatpush.bf16.xpose.msra.mxu0 0
        %1029 = vmatpush.bf16.xpose.msra.mxu0 %v1020
        %1030 = vmatmul.bf16.gmra.mxu0 %v1017
        %v1031 = vpop.f32.mrf.mxu0
        %v1032 = vadd.f32 0.0, %v1031
        %v1033 = vpop.f32.mrf.mxu0
        %1034 = vdwg.mxu0
        %v1035 = vmul.f32 %v1032, 0.35355338
        %v1036 = vadd.f32 %v1035, %v974
        %v1037 = vsel %vm977, %v1036, -inf
        %1038 = vmax.xlane.f32.xlu0 %v1037
        %v1039 = vpop.xlane.xlu0 %1038
        %v1040 = vsub.f32 %v1036, %v1039
        %v1041 = vmul.f32 %v1040, 1.442695
        %v1042 = vpow.pop %v1041
        %v1043 = vsel %vm977, %v1042, 0.0
        %1044 = vadd.xlane.f32.xlu0 %v1043
        %v1045 = vpop.xlane.xlu0 %1044
        %v1046 = vrcp.pop %v1045
        %v1047 = vmul.f32 %v1042, %v1046
        %v1048 = vpack.c.bf16 %v1047, %v1047
        %1049 = vrot.lane.b32.xlu0 %v951, 88
        %v1050 = vpop.permute.xlu0 %1049
        %v1053 = vsel %vm977, %v1048, 0
        %1055 = vmatpush.bf16.msra.mxu0 0
        %1056 = vmatpush.bf16.msra.mxu0 0
        %1057 = vmatpush.bf16.msra.mxu0 0
        %1058 = vmatpush.bf16.msra.mxu0 0
        %1059 = vmatpush.bf16.msra.mxu0 0
        %1060 = vmatpush.bf16.msra.mxu0 0
        %1061 = vmatpush.bf16.msra.mxu0 0
        %1062 = vmatpush.bf16.msra.mxu0 %v1050
        %1063 = vmatmul.bf16.gmra.mxu0 %v1053
        %v1064 = vpop.f32.mrf.mxu0
        %v1065 = vadd.f32 0.0, %v1064
        %v1066 = vpop.f32.mrf.mxu0
        %1067 = vdwg.mxu0
        %v1068 = vpack.c.bf16 %v1065, %v1065
        %1069 = vrot.lane.b32.xlu0 %v950, 112
        %v1070 = vpop.permute.xlu0 %1069
        %1071 = vrot.lane.b32.xlu0 %v951, 112
        %v1072 = vpop.permute.xlu0 %1071
        %v1074 = vsel %vm952, %v1070, 0
        %v1077 = vsel %vm952, %v1072, 0
        %1079 = vmatpush.bf16.xpose.msra.mxu0 0
        %1080 = vmatpush.bf16.xpose.msra.mxu0 0
        %1081 = vmatpush.bf16.xpose.msra.mxu0 0
        %1082 = vmatpush.bf16.xpose.msra.mxu0 0
        %1083 = vmatpush.bf16.xpose.msra.mxu0 0
        %1084 = vmatpush.bf16.xpose.msra.mxu0 0
        %1085 = vmatpush.bf16.xpose.msra.mxu0 0
        %1086 = vmatpush.bf16.xpose.msra.mxu0 %v1077
        %1087 = vmatmul.bf16.gmra.mxu0 %v1074
        %v1088 = vpop.f32.mrf.mxu0
        %v1089 = vadd.f32 0.0, %v1088
        %v1090 = vpop.f32.mrf.mxu0
        %1091 = vdwg.mxu0
        %v1092 = vmul.f32 %v1089, 0.35355338
        %v1093 = vadd.f32 %v1092, %v974
        %v1094 = vsel %vm977, %v1093, -inf
        %1095 = vmax.xlane.f32.xlu0 %v1094
        %v1096 = vpop.xlane.xlu0 %1095
        %v1097 = vsub.f32 %v1093, %v1096
        %v1098 = vmul.f32 %v1097, 1.442695
        %v1099 = vpow.pop %v1098
        %v1100 = vsel %vm977, %v1099, 0.0
        %1101 = vadd.xlane.f32.xlu0 %v1100
        %v1102 = vpop.xlane.xlu0 %1101
        %v1103 = vrcp.pop %v1102
        %v1104 = vmul.f32 %v1099, %v1103
        %v1105 = vpack.c.bf16 %v1104, %v1104
        %1106 = vrot.lane.b32.xlu0 %v951, 80
        %v1107 = vpop.permute.xlu0 %1106
        %v1110 = vsel %vm977, %v1105, 0
        %1112 = vmatpush.bf16.msra.mxu0 0
        %1113 = vmatpush.bf16.msra.mxu0 0
        %1114 = vmatpush.bf16.msra.mxu0 0
        %1115 = vmatpush.bf16.msra.mxu0 0
        %1116 = vmatpush.bf16.msra.mxu0 0
        %1117 = vmatpush.bf16.msra.mxu0 0
        %1118 = vmatpush.bf16.msra.mxu0 0
        %1119 = vmatpush.bf16.msra.mxu0 %v1107
        %1120 = vmatmul.bf16.gmra.mxu0 %v1110
        %v1121 = vpop.f32.mrf.mxu0
        %v1122 = vadd.f32 0.0, %v1121
        %v1123 = vpop.f32.mrf.mxu0
        %1124 = vdwg.mxu0
        %v1125 = vpack.c.bf16 %v1122, %v1122
        %1126 = vrot.lane.b32.xlu0 %v950, 104
        %v1127 = vpop.permute.xlu0 %1126
        %1128 = vrot.lane.b32.xlu0 %v951, 104
        %v1129 = vpop.permute.xlu0 %1128
        %v1131 = vsel %vm952, %v1127, 0
        %v1134 = vsel %vm952, %v1129, 0
        %1136 = vmatpush.bf16.xpose.msra.mxu0 0
        %1137 = vmatpush.bf16.xpose.msra.mxu0 0
        %1138 = vmatpush.bf16.xpose.msra.mxu0 0
        %1139 = vmatpush.bf16.xpose.msra.mxu0 0
        %1140 = vmatpush.bf16.xpose.msra.mxu0 0
        %1141 = vmatpush.bf16.xpose.msra.mxu0 0
        %1142 = vmatpush.bf16.xpose.msra.mxu0 0
        %1143 = vmatpush.bf16.xpose.msra.mxu0 %v1134
        %1144 = vmatmul.bf16.gmra.mxu0 %v1131
        %v1145 = vpop.f32.mrf.mxu0
        %v1146 = vadd.f32 0.0, %v1145
        %v1147 = vpop.f32.mrf.mxu0
        %1148 = vdwg.mxu0
        %v1149 = vmul.f32 %v1146, 0.35355338
        %v1150 = vadd.f32 %v1149, %v974
        %v1151 = vsel %vm977, %v1150, -inf
        %1152 = vmax.xlane.f32.xlu0 %v1151
        %v1153 = vpop.xlane.xlu0 %1152
        %v1154 = vsub.f32 %v1150, %v1153
        %v1155 = vmul.f32 %v1154, 1.442695
        %v1156 = vpow.pop %v1155
        %v1157 = vsel %vm977, %v1156, 0.0
        %1158 = vadd.xlane.f32.xlu0 %v1157
        %v1159 = vpop.xlane.xlu0 %1158
        %v1160 = vrcp.pop %v1159
        %v1161 = vmul.f32 %v1156, %v1160
        %v1162 = vpack.c.bf16 %v1161, %v1161
        %1163 = vrot.lane.b32.xlu0 %v951, 72
        %v1164 = vpop.permute.xlu0 %1163
        %v1167 = vsel %vm977, %v1162, 0
        %1169 = vmatpush.bf16.msra.mxu0 0
        %1170 = vmatpush.bf16.msra.mxu0 0
        %1171 = vmatpush.bf16.msra.mxu0 0
        %1172 = vmatpush.bf16.msra.mxu0 0
        %1173 = vmatpush.bf16.msra.mxu0 0
        %1174 = vmatpush.bf16.msra.mxu0 0
        %1175 = vmatpush.bf16.msra.mxu0 0
        %1176 = vmatpush.bf16.msra.mxu0 %v1164
        %1177 = vmatmul.bf16.gmra.mxu0 %v1167
        %v1178 = vpop.f32.mrf.mxu0
        %v1179 = vadd.f32 0.0, %v1178
        %v1180 = vpop.f32.mrf.mxu0
        %1181 = vdwg.mxu0
        %v1182 = vpack.c.bf16 %v1179, %v1179
        %v1184 = vunpack.c.l.b16 %v1068
        %v1185 = vpack.c.b16 %v1184, %v1184
        %1186 = vrot.lane.b32.xlu0 %v1185, 8
        %v1187 = vpop.permute.xlu0 %1186
        %v1189 = vunpack.c.l.b16 %v1125
        %v1190 = vpack.c.b16 %v1189, %v1189
        %1191 = vrot.lane.b32.xlu0 %v1190, 16
        %v1192 = vpop.permute.xlu0 %1191
        %v1194 = vunpack.c.l.b16 %v1182
        %v1195 = vpack.c.b16 %v1194, %v1194
        %1196 = vrot.lane.b32.xlu0 %v1195, 24
        %v1197 = vpop.permute.xlu0 %1196
        %v1200 = vsel %vm952, %v1010, %v1187
        %v1202 = vsel %vm977, %v1200, %v1192
        %vm1203 = vcmask 195584
        %v1205 = vsel %vm1203, %v1202, %v1197
        %v1206 = vld [vmem:[#allocation7] sm:$0xf]
        %v1207 = vld [vmem:[#allocation7 + $0x4] sm:$0xf]
        %v1208 = vld [vmem:[#allocation7 + $0x8] sm:$0xf]
        %v1209 = vld [vmem:[#allocation7 + $0xc] sm:$0xf]
        %v1210 = vld [vmem:[%s12] sm:$0x1]
        %v1212 = vperm.slane %v1210, 0
        %v1218 = vunpack.c.l.b16 %v1206
        %v1219 = vunpack.c.l.b16 %v1207
        %v1220 = vunpack.c.l.b16 %v1208
        %v1221 = vunpack.c.l.b16 %v1209
        %v1222 = vpack.c.b16 %v1219, %v1218
        %v1223 = vpack.c.b16 %v1221, %v1220
        %v1226 = vsel %vm832, %v1205, 0
        %1228 = vmatpush.bf16.msra.mxu0 0
        %1229 = vmatpush.bf16.msra.mxu0 0
        %1230 = vmatpush.bf16.msra.mxu0 0
        %1231 = vmatpush.bf16.msra.mxu0 0
        %1232 = vmatpush.bf16.msra.mxu0 0
        %1233 = vmatpush.bf16.msra.mxu0 0
        %1234 = vmatpush.bf16.msra.mxu0 %v1223
        %1235 = vmatpush.bf16.msra.mxu0 %v1222
        %1236 = vmatmul.bf16.gmra.mxu0 %v1226
        %v1237 = vpop.f32.mrf.mxu0
        %v1238 = vadd.f32 %v1212, %v1237
        %v1239 = vpop.f32.mrf.mxu0
        %1240 = vdwg.mxu0
        %v1241 = vadd.f32 %v831, %v1238
        %v1242 = vld [vmem:[%s694] sm:$0xff]
        %v1243 = vld [vmem:[%s822] sm:$0x1]
        %v1244 = vpack.c.bf16 %v1242, %v1242
        %v1245 = vld [vmem:[#allocation9] sm:$0xf]
        %v1246 = vld [vmem:[#allocation9 + $0x4] sm:$0xf]
        %v1247 = vld [vmem:[#allocation9 + $0x8] sm:$0xf]
        %v1248 = vld [vmem:[#allocation9 + $0xc] sm:$0xf]
        %v1249 = vld [vmem:[%s14] sm:$0x1]
        %v1251 = vperm.slane %v1249, 0
        %v1257 = vunpack.c.l.b16 %v1245
        %v1258 = vunpack.c.l.b16 %v1246
        %v1259 = vunpack.c.l.b16 %v1247
        %v1260 = vunpack.c.l.b16 %v1248
        %v1261 = vpack.c.b16 %v1258, %v1257
        %v1262 = vpack.c.b16 %v1260, %v1259
        %1265 = vmatpush.bf16.msra.mxu0 0
        %1266 = vmatpush.bf16.msra.mxu0 0
        %1267 = vmatpush.bf16.msra.mxu0 0
        %1268 = vmatpush.bf16.msra.mxu0 0
        %1269 = vmatpush.bf16.msra.mxu0 0
        %1270 = vmatpush.bf16.msra.mxu0 0
        %1271 = vmatpush.bf16.msra.mxu0 %v1262
        %1272 = vmatpush.bf16.msra.mxu0 %v1261
        %1273 = vmatmul.bf16.gmra.mxu0 %v898
        %v1274 = vpop.f32.mrf.mxu0
        %v1275 = vadd.f32 %v1251, %v1274
        %v1276 = vpop.f32.mrf.mxu0
        %1277 = vdwg.mxu0
        %v1278 = vld [vmem:[#allocation10] sm:$0xf]
        %v1279 = vld [vmem:[#allocation10 + $0x4] sm:$0xf]
        %v1280 = vld [vmem:[#allocation10 + $0x8] sm:$0xf]
        %v1281 = vld [vmem:[#allocation10 + $0xc] sm:$0xf]
        %v1282 = vld [vmem:[%s16] sm:$0x1]
        %v1284 = vperm.slane %v1282, 0
        %v1290 = vunpack.c.l.b16 %v1278
        %v1291 = vunpack.c.l.b16 %v1279
        %v1292 = vunpack.c.l.b16 %v1280
        %v1293 = vunpack.c.l.b16 %v1281
        %v1294 = vpack.c.b16 %v1291, %v1290
        %v1295 = vpack.c.b16 %v1293, %v1292
        %v1299 = vsel %vm832, %v1244, 0
        %1301 = vmatpush.bf16.msra.mxu0 0
        %1302 = vmatpush.bf16.msra.mxu0 0
        %1303 = vmatpush.bf16.msra.mxu0 0
        %1304 = vmatpush.bf16.msra.mxu0 0
        %1305 = vmatpush.bf16.msra.mxu0 0
        %1306 = vmatpush.bf16.msra.mxu0 0
        %1307 = vmatpush.bf16.msra.mxu0 %v1295
        %1308 = vmatpush.bf16.msra.mxu0 %v1294
        %1309 = vmatmul.bf16.gmra.mxu0 %v1299
        %v1310 = vpop.f32.mrf.mxu0
        %v1311 = vadd.f32 %v1284, %v1310
        %v1312 = vpop.f32.mrf.mxu0
        %1313 = vdwg.mxu0
        %v1314 = vpack.c.bf16 %v1275, %v1275
        %v1315 = vpack.c.bf16 %v1311, %v1311
        %v1317 = vsel %vm952, %v1314, 0
        %v1320 = vsel %vm952, %v1315, 0
        %1322 = vmatpush.bf16.xpose.msra.mxu0 0
        %1323 = vmatpush.bf16.xpose.msra.mxu0 0
        %1324 = vmatpush.bf16.xpose.msra.mxu0 0
        %1325 = vmatpush.bf16.xpose.msra.mxu0 0
        %1326 = vmatpush.bf16.xpose.msra.mxu0 0
        %1327 = vmatpush.bf16.xpose.msra.mxu0 0
        %1328 = vmatpush.bf16.xpose.msra.mxu0 0
        %1329 = vmatpush.bf16.xpose.msra.mxu0 %v1320
        %1330 = vmatmul.bf16.gmra.mxu0 %v1317
        %v1331 = vpop.f32.mrf.mxu0
        %v1332 = vadd.f32 0.0, %v1331
        %v1333 = vpop.f32.mrf.mxu0
        %1334 = vdwg.mxu0
        %v1335 = vmul.f32 %v1332, 0.35355338
        %v1337 = vperm.slane %v1243, 0
        %v1339 = vadd.f32 %v1335, %v1337
        %v1340 = vsel %vm952, %v1339, -inf
        %1341 = vmax.xlane.f32.xlu0 %v1340
        %v1342 = vpop.xlane.xlu0 %1341
        %v1343 = vsub.f32 %v1339, %v1342
        %v1344 = vmul.f32 %v1343, 1.442695
        %v1345 = vpow.pop %v1344
        %v1346 = vsel %vm952, %v1345, 0.0
        %1347 = vadd.xlane.f32.xlu0 %v1346
        %v1348 = vpop.xlane.xlu0 %1347
        %v1349 = vrcp.pop %v1348
        %v1350 = vmul.f32 %v1345, %v1349
        %v1351 = vpack.c.bf16 %v1350, %v1350
        %1353 = vrot.lane.b32.xlu0 %v1315, 96
        %v1354 = vpop.permute.xlu0 %1353
        %v1356 = vsel %vm952, %v1351, 0
        %vm1358 = vcmask 1043456
        %v1360 = vsel %vm1358, %v1354, 0
        %1362 = vmatpush.bf16.msra.mxu0 0
        %1363 = vmatpush.bf16.msra.mxu0 0
        %1364 = vmatpush.bf16.msra.mxu0 0
        %1365 = vmatpush.bf16.msra.mxu0 0
        %1366 = vmatpush.bf16.msra.mxu0 0
        %1367 = vmatpush.bf16.msra.mxu0 0
        %1368 = vmatpush.bf16.msra.mxu0 0
        %1369 = vmatpush.bf16.msra.mxu0 %v1360
        %1370 = vmatmul.bf16.gmra.mxu0 %v1356
        %v1371 = vpop.f32.mrf.mxu0
        %v1372 = vadd.f32 0.0, %v1371
        %v1373 = vpop.f32.mrf.mxu0
        %1374 = vdwg.mxu0
        %v1375 = vpack.c.bf16 %v1372, %v1372
        %1377 = vrot.lane.b32.xlu0 %v1314, 120
        %v1378 = vpop.permute.xlu0 %1377
        %1379 = vrot.lane.b32.xlu0 %v1315, 120
        %v1380 = vpop.permute.xlu0 %1379
        %v1382 = vsel %vm952, %v1378, 0
        %v1385 = vsel %vm952, %v1380, 0
        %1387 = vmatpush.bf16.xpose.msra.mxu0 0
        %1388 = vmatpush.bf16.xpose.msra.mxu0 0
        %1389 = vmatpush.bf16.xpose.msra.mxu0 0
        %1390 = vmatpush.bf16.xpose.msra.mxu0 0
        %1391 = vmatpush.bf16.xpose.msra.mxu0 0
        %1392 = vmatpush.bf16.xpose.msra.mxu0 0
        %1393 = vmatpush.bf16.xpose.msra.mxu0 0
        %1394 = vmatpush.bf16.xpose.msra.mxu0 %v1385
        %1395 = vmatmul.bf16.gmra.mxu0 %v1382
        %v1396 = vpop.f32.mrf.mxu0
        %v1397 = vadd.f32 0.0, %v1396
        %v1398 = vpop.f32.mrf.mxu0
        %1399 = vdwg.mxu0
        %v1400 = vmul.f32 %v1397, 0.35355338
        %v1401 = vadd.f32 %v1400, %v1337
        %v1402 = vsel %vm952, %v1401, -inf
        %1403 = vmax.xlane.f32.xlu0 %v1402
        %v1404 = vpop.xlane.xlu0 %1403
        %v1405 = vsub.f32 %v1401, %v1404
        %v1406 = vmul.f32 %v1405, 1.442695
        %v1407 = vpow.pop %v1406
        %v1408 = vsel %vm952, %v1407, 0.0
        %1409 = vadd.xlane.f32.xlu0 %v1408
        %v1410 = vpop.xlane.xlu0 %1409
        %v1411 = vrcp.pop %v1410
        %v1412 = vmul.f32 %v1407, %v1411
        %v1413 = vpack.c.bf16 %v1412, %v1412
        %1414 = vrot.lane.b32.xlu0 %v1315, 88
        %v1415 = vpop.permute.xlu0 %1414
        %v1417 = vsel %vm952, %v1413, 0
        %v1420 = vsel %vm1358, %v1415, 0
        %1422 = vmatpush.bf16.msra.mxu0 0
        %1423 = vmatpush.bf16.msra.mxu0 0
        %1424 = vmatpush.bf16.msra.mxu0 0
        %1425 = vmatpush.bf16.msra.mxu0 0
        %1426 = vmatpush.bf16.msra.mxu0 0
        %1427 = vmatpush.bf16.msra.mxu0 0
        %1428 = vmatpush.bf16.msra.mxu0 0
        %1429 = vmatpush.bf16.msra.mxu0 %v1420
        %1430 = vmatmul.bf16.gmra.mxu0 %v1417
        %v1431 = vpop.f32.mrf.mxu0
        %v1432 = vadd.f32 0.0, %v1431
        %v1433 = vpop.f32.mrf.mxu0
        %1434 = vdwg.mxu0
        %v1435 = vpack.c.bf16 %v1432, %v1432
        %1436 = vrot.lane.b32.xlu0 %v1314, 112
        %v1437 = vpop.permute.xlu0 %1436
        %1438 = vrot.lane.b32.xlu0 %v1315, 112
        %v1439 = vpop.permute.xlu0 %1438
        %v1441 = vsel %vm952, %v1437, 0
        %v1444 = vsel %vm952, %v1439, 0
        %1446 = vmatpush.bf16.xpose.msra.mxu0 0
        %1447 = vmatpush.bf16.xpose.msra.mxu0 0
        %1448 = vmatpush.bf16.xpose.msra.mxu0 0
        %1449 = vmatpush.bf16.xpose.msra.mxu0 0
        %1450 = vmatpush.bf16.xpose.msra.mxu0 0
        %1451 = vmatpush.bf16.xpose.msra.mxu0 0
        %1452 = vmatpush.bf16.xpose.msra.mxu0 0
        %1453 = vmatpush.bf16.xpose.msra.mxu0 %v1444
        %1454 = vmatmul.bf16.gmra.mxu0 %v1441
        %v1455 = vpop.f32.mrf.mxu0
        %v1456 = vadd.f32 0.0, %v1455
        %v1457 = vpop.f32.mrf.mxu0
        %1458 = vdwg.mxu0
        %v1459 = vmul.f32 %v1456, 0.35355338
        %v1460 = vadd.f32 %v1459, %v1337
        %v1461 = vsel %vm952, %v1460, -inf
        %1462 = vmax.xlane.f32.xlu0 %v1461
        %v1463 = vpop.xlane.xlu0 %1462
        %v1464 = vsub.f32 %v1460, %v1463
        %v1465 = vmul.f32 %v1464, 1.442695
        %v1466 = vpow.pop %v1465
        %v1467 = vsel %vm952, %v1466, 0.0
        %1468 = vadd.xlane.f32.xlu0 %v1467
        %v1469 = vpop.xlane.xlu0 %1468
        %v1470 = vrcp.pop %v1469
        %v1471 = vmul.f32 %v1466, %v1470
        %v1472 = vpack.c.bf16 %v1471, %v1471
        %1473 = vrot.lane.b32.xlu0 %v1315, 80
        %v1474 = vpop.permute.xlu0 %1473
        %v1476 = vsel %vm952, %v1472, 0
        %v1479 = vsel %vm1358, %v1474, 0
        %1481 = vmatpush.bf16.msra.mxu0 0
        %1482 = vmatpush.bf16.msra.mxu0 0
        %1483 = vmatpush.bf16.msra.mxu0 0
        %1484 = vmatpush.bf16.msra.mxu0 0
        %1485 = vmatpush.bf16.msra.mxu0 0
        %1486 = vmatpush.bf16.msra.mxu0 0
        %1487 = vmatpush.bf16.msra.mxu0 0
        %1488 = vmatpush.bf16.msra.mxu0 %v1479
        %1489 = vmatmul.bf16.gmra.mxu0 %v1476
        %v1490 = vpop.f32.mrf.mxu0
        %v1491 = vadd.f32 0.0, %v1490
        %v1492 = vpop.f32.mrf.mxu0
        %1493 = vdwg.mxu0
        %v1494 = vpack.c.bf16 %v1491, %v1491
        %1495 = vrot.lane.b32.xlu0 %v1314, 104
        %v1496 = vpop.permute.xlu0 %1495
        %1497 = vrot.lane.b32.xlu0 %v1315, 104
        %v1498 = vpop.permute.xlu0 %1497
        %v1500 = vsel %vm952, %v1496, 0
        %v1503 = vsel %vm952, %v1498, 0
        %1505 = vmatpush.bf16.xpose.msra.mxu0 0
        %1506 = vmatpush.bf16.xpose.msra.mxu0 0
        %1507 = vmatpush.bf16.xpose.msra.mxu0 0
        %1508 = vmatpush.bf16.xpose.msra.mxu0 0
        %1509 = vmatpush.bf16.xpose.msra.mxu0 0
        %1510 = vmatpush.bf16.xpose.msra.mxu0 0
        %1511 = vmatpush.bf16.xpose.msra.mxu0 0
        %1512 = vmatpush.bf16.xpose.msra.mxu0 %v1503
        %1513 = vmatmul.bf16.gmra.mxu0 %v1500
        %v1514 = vpop.f32.mrf.mxu0
        %v1515 = vadd.f32 0.0, %v1514
        %v1516 = vpop.f32.mrf.mxu0
        %1517 = vdwg.mxu0
        %v1518 = vmul.f32 %v1515, 0.35355338
        %v1519 = vadd.f32 %v1518, %v1337
        %v1520 = vsel %vm952, %v1519, -inf
        %1521 = vmax.xlane.f32.xlu0 %v1520
        %v1522 = vpop.xlane.xlu0 %1521
        %v1523 = vsub.f32 %v1519, %v1522
        %v1524 = vmul.f32 %v1523, 1.442695
        %v1525 = vpow.pop %v1524
        %v1526 = vsel %vm952, %v1525, 0.0
        %1527 = vadd.xlane.f32.xlu0 %v1526
        %v1528 = vpop.xlane.xlu0 %1527
        %v1529 = vrcp.pop %v1528
        %v1530 = vmul.f32 %v1525, %v1529
        %v1531 = vpack.c.bf16 %v1530, %v1530
        %1532 = vrot.lane.b32.xlu0 %v1315, 72
        %v1533 = vpop.permute.xlu0 %1532
        %v1535 = vsel %vm952, %v1531, 0
        %v1538 = vsel %vm1358, %v1533, 0
        %1540 = vmatpush.bf16.msra.mxu0 0
        %1541 = vmatpush.bf16.msra.mxu0 0
        %1542 = vmatpush.bf16.msra.mxu0 0
        %1543 = vmatpush.bf16.msra.mxu0 0
        %1544 = vmatpush.bf16.msra.mxu0 0
        %1545 = vmatpush.bf16.msra.mxu0 0
        %1546 = vmatpush.bf16.msra.mxu0 0
        %1547 = vmatpush.bf16.msra.mxu0 %v1538
        %1548 = vmatmul.bf16.gmra.mxu0 %v1535
        %v1549 = vpop.f32.mrf.mxu0
        %v1550 = vadd.f32 0.0, %v1549
        %v1551 = vpop.f32.mrf.mxu0
        %1552 = vdwg.mxu0
        %v1553 = vpack.c.bf16 %v1550, %v1550
        %v1555 = vunpack.c.l.b16 %v1435
        %v1556 = vpack.c.b16 %v1555, %v1555
        %1557 = vrot.lane.b32.xlu0 %v1556, 8
        %v1558 = vpop.permute.xlu0 %1557
        %v1560 = vunpack.c.l.b16 %v1494
        %v1561 = vpack.c.b16 %v1560, %v1560
        %1562 = vrot.lane.b32.xlu0 %v1561, 16
        %v1563 = vpop.permute.xlu0 %1562
        %v1565 = vunpack.c.l.b16 %v1553
        %v1566 = vpack.c.b16 %v1565, %v1565
        %1567 = vrot.lane.b32.xlu0 %v1566, 24
        %v1568 = vpop.permute.xlu0 %1567
        %v1571 = vsel %vm952, %v1375, %v1558
        %v1573 = vsel %vm977, %v1571, %v1563
        %v1575 = vsel %vm1203, %v1573, %v1568
        %v1576 = vld [vmem:[#allocation12] sm:$0xf]
        %v1577 = vld [vmem:[#allocation12 + $0x4] sm:$0xf]
        %v1578 = vld [vmem:[#allocation12 + $0x8] sm:$0xf]
        %v1579 = vld [vmem:[#allocation12 + $0xc] sm:$0xf]
        %v1580 = vld [vmem:[#allocation13] sm:$0x1]
        %v1582 = vperm.slane %v1580, 0
        %v1588 = vunpack.c.l.b16 %v1576
        %v1589 = vunpack.c.l.b16 %v1577
        %v1590 = vunpack.c.l.b16 %v1578
        %v1591 = vunpack.c.l.b16 %v1579
        %v1592 = vpack.c.b16 %v1589, %v1588
        %v1593 = vpack.c.b16 %v1591, %v1590
        %v1596 = vsel %vm832, %v1575, 0
        %1598 = vmatpush.bf16.msra.mxu0 0
        %1599 = vmatpush.bf16.msra.mxu0 0
        %1600 = vmatpush.bf16.msra.mxu0 0
        %1601 = vmatpush.bf16.msra.mxu0 0
        %1602 = vmatpush.bf16.msra.mxu0 0
        %1603 = vmatpush.bf16.msra.mxu0 0
        %1604 = vmatpush.bf16.msra.mxu0 %v1593
        %1605 = vmatpush.bf16.msra.mxu0 %v1592
        %1606 = vmatmul.bf16.gmra.mxu0 %v1596
        %v1607 = vpop.f32.mrf.mxu0
        %v1608 = vadd.f32 %v1582, %v1607
        %v1609 = vpop.f32.mrf.mxu0
        %1610 = vdwg.mxu0
        %v1611 = vadd.f32 %v1241, %v1608
        %1612 = vst.msk [vmem:[%s829] sm:$0xff] %vm832, %v1611
        %p1613 = scmp.lt.s32.totalorder %s41, 1
        %s1614 = scalar_select %p1613, %s41, 1
        %p1615 = scmp.lt.s32.totalorder %s42, 0
        %s1616 = scalar_select %p1615, %s42, 0
        %s1617 = sadd.s32 %s1616, %s1614
        %s1618 = smul.addr %s1617, 8
        %s1619 = scalar_lea.vmem %s19, %s1618
        // Predicated region
        $region129: #{decoder_forward.7} parent=95 // pred_check
          %p1620 = pneg %p495
        $region130: #{decoder_forward.7} parent=95 // pred_check_branch
          %1622 = sbr.rel (%p1620) target = $region132
        $region131: #{decoder_forward.7} parent=95 // pred_region
          _
        $region132: #{decoder_forward.7} parent=95 // pred_fallthru
          _
      $region96: #{decoder_forward.7} parent=5 // pred_fallthru
        _
      %p1623 = scmp.le.s32.totalorder 2, %s32
      // Predicated region
      $region133: #{decoder_forward.7} parent=5 // pred_check
        %p1624 = pneg %p1623
      $region134: #{decoder_forward.7} parent=5 // pred_check_branch
        %1626 = sbr.rel (%p1624) target = $region136
      $region135: #{decoder_forward.7} parent=5 // pred_region
        %s1627 = ssub.s32 %s32, 2
        // Predicated region
        $region137: #{decoder_forward.7} parent=135 // pred_check
          %p1628 = pneg %p501
        $region138: #{decoder_forward.7} parent=135 // pred_check_branch
          %1630 = sbr.rel (%p1628) target = $region140
        $region139: #{decoder_forward.7} parent=135 // pred_region
          %p1631 = scmp.lt.s32.totalorder %s43, 1
          %s1632 = scalar_select %p1631, %s43, 1
          %p1633 = scmp.lt.s32.totalorder %s44, 0
          %s1634 = scalar_select %p1633, %s44, 0
          %s1635 = sadd.s32 %s1634, %s1632
          %s1636 = smul.addr %s1635, 8
          %s1637 = scalar_lea.vmem %s19, %s1636
        $region140: #{decoder_forward.7} parent=135 // pred_fallthru
          _
      $region136: #{decoder_forward.7} parent=5 // pred_fallthru
        _
    $region6: #{decoder_forward.7} parent=1 // loop_footer
      %s36 = sadd.s32 1, %s32
    $region7: #{decoder_forward.7} parent=1 // loop_footer_branch
      %31 = sbr.rel target = $region3
    $region8: #{decoder_forward.7} parent=1 // loop_exit
      _
    %1638 = vsyncpa [#allocation3], 1
    %s1639 = scalar_lea.sflag [#allocation3], 1
    %1640 = vsyncpa %s1639, 1
    %1641 = vsyncpa [#allocation5], 1
    %1642 = vsyncpa [#allocation8], 1
    %1643 = vsyncpa [#allocation11], 1
    %1644 = vsyncpa [#allocation14], 1

// kernel: decoder_forward.11
$region0: #{decoder_forward.11}
  #allocation0 [shape = 'u32[]', space=smem, size = 0x4, offset = 0x4, fixed_abs, tag = 'smem constant byte address 0x4 - core index']
  #allocation1 [shape = 'u32[72,128]{1,0:T(1,128)}', space=vmem, size = 0x9000, scoped, tag = 'internal scratch']
  %s0 = inlined_call_operand.vmem [shape: f32[2,8,32], index: 0, kind: input, shape index: {}]
  %s1 = inlined_call_operand.vmem [shape: f32[1,32], index: 1, kind: input, shape index: {}]
  %s2 = inlined_call_operand.vmem [shape: f32[1,32], index: 2, kind: input, shape index: {}]
  %s3 = inlined_call_operand.vmem [shape: bf16[32,64], index: 3, kind: input, shape index: {}]
  %s4 = inlined_call_operand.vmem [shape: f32[1,64], index: 4, kind: input, shape index: {}]
  %s5 = inlined_call_operand.vmem [shape: bf16[64,32], index: 5, kind: input, shape index: {}]
  %s6 = inlined_call_operand.vmem [shape: f32[1,32], index: 6, kind: input, shape index: {}]
  %s7 = inlined_call_operand.vmem [shape: f32[1,32], index: 7, kind: input, shape index: {}]
  %s8 = inlined_call_operand.vmem [shape: f32[1,32], index: 8, kind: input, shape index: {}]
  %s9 = inlined_call_operand.hbm [shape: f32[2,8,32], index: 9, kind: output, shape index: {}]
  %s10 = sld [smem:[#allocation0]]
  $region69: #{decoder_forward.11} parent=0
    _
  %s12 = ssub.s32 1, %s10
  %s13 = scalar_select 0, %s12, %s10
  $region1: #{decoder_forward.11} parent=0
    #allocation2 [shape = 'u8[8192]{0}', space=vmem, size = 0x2000, scoped, tag = 'output window, operand 0']
    #allocation3 [shape = 's32[2]{0}', space=sflag, size = 0x8, scoped, tag = 'scoped memory for decoder_forward.11']
    %14 = vsyncpa [#allocation3], 0
    %s15 = scalar_lea.sflag [#allocation3], 1
    %16 = vsyncpa %s15, 0
    loop: start=0, step=1, limit=4
    $region2: #{decoder_forward.11} parent=1 // loop_pre_header
      _
    $region3: #{decoder_forward.11} parent=1 // loop_header
      %s18 = sphi 0, %s22
      %p19 = scmp.ge.s32.totalorder %s18, 4
      %s25 = sphi 0, %s37
      %s26 = sphi 0, %s33
      %s27 = sphi 0, %s25
      %s28 = sphi 0, %s26
      %s29 = sphi 0, %s27
      %s30 = sphi 0, %s28
      %s42 = sphi 0, %s44
      %s45 = sphi 0, %s42
      %s46 = sphi 0, %s45
      %s62 = sphi 0, %s46
      %s66 = sphi 0, %s66
      %s68 = sphi 0, %s66
      %s69 = sphi 0, %s68
      %s83 = sphi 0, %s69
      %s87 = sphi 0, %s87
      %s89 = sphi 0, %s87
      %s90 = sphi 0, %s89
      %s104 = sphi 0, %s90
      %s108 = sphi 0, %s108
      %s110 = sphi 0, %s108
      %s111 = sphi 0, %s110
      %s125 = sphi 0, %s111
      %s129 = sphi 0, %s129
      %s131 = sphi 0, %s129
      %s132 = sphi 0, %s131
      %s146 = sphi 0, %s132
      %s150 = sphi 0, %s150
      %s152 = sphi 0, %s150
      %s153 = sphi 0, %s152
      %s167 = sphi 0, %s153
      %s171 = sphi 0, %s171
      %s173 = sphi 0, %s171
      %s174 = sphi 0, %s173
      %s188 = sphi 0, %s174
      %s192 = sphi 0, %s192
      %s194 = sphi 0, %s192
      %s195 = sphi 0, %s194
      %s209 = sphi 0, %s195
      %s213 = sphi 0, %s213
      %s215 = sphi 0, %s213
      %s216 = sphi 0, %s215
      %s230 = sphi 0, %s216
      %s238 = sphi 0, %s240
      %s241 = sphi 0, %s238
      %s242 = sphi 0, %s241
      %s258 = sphi 0, %s242
    $region4: #{decoder_forward.11} parent=1 // loop_header_branch
      %21 = sbr.rel (%p19) target = $region8
    $region5: #{decoder_forward.11} parent=1 // loop_body
      %s23 = ssub.s32 %s18, 1
      %s24 = ssub.s32 %s18, 2
      %s31 = sadd.s32 1, %s26
      %p32 = scmp.ge.s32.totalorder %s31, 1
      %s33 = scalar_select %p32, 0, %s31
      %s34 = sadd.s32 1, %s25
      %s35 = scalar_select %p32, %s34, %s25
      %p36 = scmp.ge.s32.totalorder %s35, 2
      %s37 = scalar_select %p36, 0, %s35
      %s38 = ssub.s32 %s25, %s37
      %s39 = ssub.s32 %s26, %s33
      %s40 = sor.u32 %s38, %s39
      %p41 = scmp.eq.s32.totalorder %s40, 0
      %s43 = sadd.s32 %s42, 1
      %s44 = scalar_select %p41, %s42, %s43
      %p47 = pneg %p41
      %p48 = scmp.eq.s32.totalorder %s18, 1
      %p49 = por %p47, %p48
      %p50 = scmp.ne.s32.totalorder %s42, %s45
      %p51 = scmp.eq.s32.totalorder %s18, 0
      %p52 = por %p50, %p51
      %p53 = scmp.ne.s32.totalorder %s42, %s45
      %p54 = scmp.eq.s32.totalorder %s23, 1
      %p55 = por %p53, %p54
      %p56 = scmp.ne.s32.totalorder %s45, %s46
      %p57 = scmp.eq.s32.totalorder %s23, 0
      %p58 = por %p56, %p57
      %p59 = scmp.ne.s32.totalorder %s45, %s46
      %p60 = scmp.eq.s32.totalorder %s24, 1
      %p61 = por %p59, %p60
      %p63 = scmp.ne.s32.totalorder %s46, %s62
      %p64 = scmp.eq.s32.totalorder %s24, 0
      %p65 = por %p63, %p64
      %s67 = sadd.s32 %s66, 1
      %p70 = scmp.eq.s32.totalorder %s18, 1
      %p71 = scmp.ne.s32.totalorder %s66, %s68
      %p72 = scmp.eq.s32.totalorder %s18, 0
      %p73 = por %p71, %p72
      %p74 = scmp.ne.s32.totalorder %s66, %s68
      %p75 = scmp.eq.s32.totalorder %s23, 1
      %p76 = por %p74, %p75
      %p77 = scmp.ne.s32.totalorder %s68, %s69
      %p78 = scmp.eq.s32.totalorder %s23, 0
      %p79 = por %p77, %p78
      %p80 = scmp.ne.s32.totalorder %s68, %s69
      %p81 = scmp.eq.s32.totalorder %s24, 1
      %p82 = por %p80, %p81
      %p84 = scmp.ne.s32.totalorder %s69, %s83
      %p85 = scmp.eq.s32.totalorder %s24, 0
      %p86 = por %p84, %p85
      %s88 = sadd.s32 %s87, 1
      %p91 = scmp.eq.s32.totalorder %s18, 1
      %p92 = scmp.ne.s32.totalorder %s87, %s89
      %p93 = scmp.eq.s32.totalorder %s18, 0
      %p94 = por %p92, %p93
      %p95 = scmp.ne.s32.totalorder %s87, %s89
      %p96 = scmp.eq.s32.totalorder %s23, 1
      %p97 = por %p95, %p96
      %p98 = scmp.ne.s32.totalorder %s89, %s90
      %p99 = scmp.eq.s32.totalorder %s23, 0
      %p100 = por %p98, %p99
      %p101 = scmp.ne.s32.totalorder %s89, %s90
      %p102 = scmp.eq.s32.totalorder %s24, 1
      %p103 = por %p101, %p102
      %p105 = scmp.ne.s32.totalorder %s90, %s104
      %p106 = scmp.eq.s32.totalorder %s24, 0
      %p107 = por %p105, %p106
      %s109 = sadd.s32 %s108, 1
      %p112 = scmp.eq.s32.totalorder %s18, 1
      %p113 = scmp.ne.s32.totalorder %s108, %s110
      %p114 = scmp.eq.s32.totalorder %s18, 0
      %p115 = por %p113, %p114
      %p116 = scmp.ne.s32.totalorder %s108, %s110
      %p117 = scmp.eq.s32.totalorder %s23, 1
      %p118 = por %p116, %p117
      %p119 = scmp.ne.s32.totalorder %s110, %s111
      %p120 = scmp.eq.s32.totalorder %s23, 0
      %p121 = por %p119, %p120
      %p122 = scmp.ne.s32.totalorder %s110, %s111
      %p123 = scmp.eq.s32.totalorder %s24, 1
      %p124 = por %p122, %p123
      %p126 = scmp.ne.s32.totalorder %s111, %s125
      %p127 = scmp.eq.s32.totalorder %s24, 0
      %p128 = por %p126, %p127
      %s130 = sadd.s32 %s129, 1
      %p133 = scmp.eq.s32.totalorder %s18, 1
      %p134 = scmp.ne.s32.totalorder %s129, %s131
      %p135 = scmp.eq.s32.totalorder %s18, 0
      %p136 = por %p134, %p135
      %p137 = scmp.ne.s32.totalorder %s129, %s131
      %p138 = scmp.eq.s32.totalorder %s23, 1
      %p139 = por %p137, %p138
      %p140 = scmp.ne.s32.totalorder %s131, %s132
      %p141 = scmp.eq.s32.totalorder %s23, 0
      %p142 = por %p140, %p141
      %p143 = scmp.ne.s32.totalorder %s131, %s132
      %p144 = scmp.eq.s32.totalorder %s24, 1
      %p145 = por %p143, %p144
      %p147 = scmp.ne.s32.totalorder %s132, %s146
      %p148 = scmp.eq.s32.totalorder %s24, 0
      %p149 = por %p147, %p148
      %s151 = sadd.s32 %s150, 1
      %p154 = scmp.eq.s32.totalorder %s18, 1
      %p155 = scmp.ne.s32.totalorder %s150, %s152
      %p156 = scmp.eq.s32.totalorder %s18, 0
      %p157 = por %p155, %p156
      %p158 = scmp.ne.s32.totalorder %s150, %s152
      %p159 = scmp.eq.s32.totalorder %s23, 1
      %p160 = por %p158, %p159
      %p161 = scmp.ne.s32.totalorder %s152, %s153
      %p162 = scmp.eq.s32.totalorder %s23, 0
      %p163 = por %p161, %p162
      %p164 = scmp.ne.s32.totalorder %s152, %s153
      %p165 = scmp.eq.s32.totalorder %s24, 1
      %p166 = por %p164, %p165
      %p168 = scmp.ne.s32.totalorder %s153, %s167
      %p169 = scmp.eq.s32.totalorder %s24, 0
      %p170 = por %p168, %p169
      %s172 = sadd.s32 %s171, 1
      %p175 = scmp.eq.s32.totalorder %s18, 1
      %p176 = scmp.ne.s32.totalorder %s171, %s173
      %p177 = scmp.eq.s32.totalorder %s18, 0
      %p178 = por %p176, %p177
      %p179 = scmp.ne.s32.totalorder %s171, %s173
      %p180 = scmp.eq.s32.totalorder %s23, 1
      %p181 = por %p179, %p180
      %p182 = scmp.ne.s32.totalorder %s173, %s174
      %p183 = scmp.eq.s32.totalorder %s23, 0
      %p184 = por %p182, %p183
      %p185 = scmp.ne.s32.totalorder %s173, %s174
      %p186 = scmp.eq.s32.totalorder %s24, 1
      %p187 = por %p185, %p186
      %p189 = scmp.ne.s32.totalorder %s174, %s188
      %p190 = scmp.eq.s32.totalorder %s24, 0
      %p191 = por %p189, %p190
      %s193 = sadd.s32 %s192, 1
      %p196 = scmp.eq.s32.totalorder %s18, 1
      %p197 = scmp.ne.s32.totalorder %s192, %s194
      %p198 = scmp.eq.s32.totalorder %s18, 0
      %p199 = por %p197, %p198
      %p200 = scmp.ne.s32.totalorder %s192, %s194
      %p201 = scmp.eq.s32.totalorder %s23, 1
      %p202 = por %p200, %p201
      %p203 = scmp.ne.s32.totalorder %s194, %s195
      %p204 = scmp.eq.s32.totalorder %s23, 0
      %p205 = por %p203, %p204
      %p206 = scmp.ne.s32.totalorder %s194, %s195
      %p207 = scmp.eq.s32.totalorder %s24, 1
      %p208 = por %p206, %p207
      %p210 = scmp.ne.s32.totalorder %s195, %s209
      %p211 = scmp.eq.s32.totalorder %s24, 0
      %p212 = por %p210, %p211
      %s214 = sadd.s32 %s213, 1
      %p217 = scmp.eq.s32.totalorder %s18, 1
      %p218 = scmp.ne.s32.totalorder %s213, %s215
      %p219 = scmp.eq.s32.totalorder %s18, 0
      %p220 = por %p218, %p219
      %p221 = scmp.ne.s32.totalorder %s213, %s215
      %p222 = scmp.eq.s32.totalorder %s23, 1
      %p223 = por %p221, %p222
      %p224 = scmp.ne.s32.totalorder %s215, %s216
      %p225 = scmp.eq.s32.totalorder %s23, 0
      %p226 = por %p224, %p225
      %p227 = scmp.ne.s32.totalorder %s215, %s216
      %p228 = scmp.eq.s32.totalorder %s24, 1
      %p229 = por %p227, %p228
      %p231 = scmp.ne.s32.totalorder %s216, %s230
      %p232 = scmp.eq.s32.totalorder %s24, 0
      %p233 = por %p231, %p232
      %s234 = ssub.s32 %s25, %s37
      %s235 = ssub.s32 %s26, %s33
      %s236 = sor.u32 %s234, %s235
      %p237 = scmp.eq.s32.totalorder %s236, 0
      %s239 = sadd.s32 %s238, 1
      %s240 = scalar_select %p237, %s238, %s239
      %p243 = pneg %p237
      %p244 = scmp.eq.s32.totalorder %s18, 1
      %p245 = por %p243, %p244
      %p246 = scmp.ne.s32.totalorder %s238, %s241
      %p247 = scmp.eq.s32.totalorder %s18, 0
      %p248 = por %p246, %p247
      %p249 = scmp.ne.s32.totalorder %s238, %s241
      %p250 = scmp.eq.s32.totalorder %s23, 1
      %p251 = por %p249, %p250
      %p252 = scmp.ne.s32.totalorder %s241, %s242
      %p253 = scmp.eq.s32.totalorder %s23, 0
      %p254 = por %p252, %p253
      %p255 = scmp.ne.s32.totalorder %s241, %s242
      %p256 = scmp.eq.s32.totalorder %s24, 1
      %p257 = por %p255, %p256
      %p259 = scmp.ne.s32.totalorder %s242, %s258
      %p260 = scmp.eq.s32.totalorder %s24, 0
      %p261 = por %p259, %p260
      %p262 = scmp.le.s32.totalorder 1, %s18
      %p263 = scmp.lt.s32.totalorder %s18, 3
      %p264 = pnand %p262, %p263
      %p265 = pneg %p264
      // Predicated region
      $region9: #{decoder_forward.11} parent=5 // pred_check
        _
      $region10: #{decoder_forward.11} parent=5 // pred_check_branch
        %267 = sbr.rel (%p264) target = $region12
      $region11: #{decoder_forward.11} parent=5 // pred_region
        %s268 = ssub.s32 %s18, 1
        // Predicated region
        $region13: #{decoder_forward.11} parent=11 // pred_check
          %p269 = pneg %p79
        $region14: #{decoder_forward.11} parent=11 // pred_check_branch
          %271 = sbr.rel (%p269) target = $region16
        $region15: #{decoder_forward.11} parent=11 // pred_region
          _
        $region16: #{decoder_forward.11} parent=11 // pred_fallthru
          _
        // Predicated region
        $region17: #{decoder_forward.11} parent=11 // pred_check
          %p272 = pneg %p100
        $region18: #{decoder_forward.11} parent=11 // pred_check_branch
          %274 = sbr.rel (%p272) target = $region20
        $region19: #{decoder_forward.11} parent=11 // pred_region
          _
        $region20: #{decoder_forward.11} parent=11 // pred_fallthru
          _
        // Predicated region
        $region21: #{decoder_forward.11} parent=11 // pred_check
          %p275 = pneg %p121
        $region22: #{decoder_forward.11} parent=11 // pred_check_branch
          %277 = sbr.rel (%p275) target = $region24
        $region23: #{decoder_forward.11} parent=11 // pred_region
          _
        $region24: #{decoder_forward.11} parent=11 // pred_fallthru
          _
        // Predicated region
        $region25: #{decoder_forward.11} parent=11 // pred_check
          %p278 = pneg %p142
        $region26: #{decoder_forward.11} parent=11 // pred_check_branch
          %280 = sbr.rel (%p278) target = $region28
        $region27: #{decoder_forward.11} parent=11 // pred_region
          _
        $region28: #{decoder_forward.11} parent=11 // pred_fallthru
          _
        // Predicated region
        $region29: #{decoder_forward.11} parent=11 // pred_check
          %p281 = pneg %p163
        $region30: #{decoder_forward.11} parent=11 // pred_check_branch
          %283 = sbr.rel (%p281) target = $region32
        $region31: #{decoder_forward.11} parent=11 // pred_region
          _
        $region32: #{decoder_forward.11} parent=11 // pred_fallthru
          _
        // Predicated region
        $region33: #{decoder_forward.11} parent=11 // pred_check
          %p284 = pneg %p184
        $region34: #{decoder_forward.11} parent=11 // pred_check_branch
          %286 = sbr.rel (%p284) target = $region36
        $region35: #{decoder_forward.11} parent=11 // pred_region
          _
        $region36: #{decoder_forward.11} parent=11 // pred_fallthru
          _
        // Predicated region
        $region37: #{decoder_forward.11} parent=11 // pred_check
          %p287 = pneg %p205
        $region38: #{decoder_forward.11} parent=11 // pred_check_branch
          %289 = sbr.rel (%p287) target = $region40
        $region39: #{decoder_forward.11} parent=11 // pred_region
          _
        $region40: #{decoder_forward.11} parent=11 // pred_fallthru
          _
        // Predicated region
        $region41: #{decoder_forward.11} parent=11 // pred_check
          %p290 = pneg %p226
        $region42: #{decoder_forward.11} parent=11 // pred_check_branch
          %292 = sbr.rel (%p290) target = $region44
        $region43: #{decoder_forward.11} parent=11 // pred_region
          _
        $region44: #{decoder_forward.11} parent=11 // pred_fallthru
          _
      $region12: #{decoder_forward.11} parent=5 // pred_fallthru
        _
      %p293 = scmp.lt.s32.totalorder %s18, 2
      // Predicated region
      $region45: #{decoder_forward.11} parent=5 // pred_check
        %p294 = pneg %p293
      $region46: #{decoder_forward.11} parent=5 // pred_check_branch
        %296 = sbr.rel (%p294) target = $region48
      $region47: #{decoder_forward.11} parent=5 // pred_region
        // Predicated region
        $region49: #{decoder_forward.11} parent=47 // pred_check
          %p297 = pneg %p52
        $region50: #{decoder_forward.11} parent=47 // pred_check_branch
          %299 = sbr.rel (%p297) target = $region52
        $region51: #{decoder_forward.11} parent=47 // pred_region
          %p300 = scmp.lt.s32.totalorder %s25, 1
          %s301 = scalar_select %p300, %s25, 1
          %p302 = scmp.lt.s32.totalorder %s26, 0
          %s303 = scalar_select %p302, %s26, 0
          %s304 = sadd.s32 %s303, %s301
          %s305 = smul.addr %s304, 8
          %s306 = scalar_lea.vmem %s0, %s305
        $region52: #{decoder_forward.11} parent=47 // pred_fallthru
          _
      $region48: #{decoder_forward.11} parent=5 // pred_fallthru
        _
      %p307 = scmp.le.s32.totalorder 1, %s18
      %p308 = scmp.lt.s32.totalorder %s18, 3
      %p309 = pnand %p307, %p308
      %p310 = pneg %p309
      // Predicated region
      $region53: #{decoder_forward.11} parent=5 // pred_check
        _
      $region54: #{decoder_forward.11} parent=5 // pred_check_branch
        %312 = sbr.rel (%p309) target = $region56
      $region55: #{decoder_forward.11} parent=5 // pred_region
        %s313 = ssub.s32 %s18, 1
        %p314 = scmp.lt.s32.totalorder %s27, 1
        %s315 = scalar_select %p314, %s27, 1
        %p316 = scmp.lt.s32.totalorder %s28, 0
        %s317 = scalar_select %p316, %s28, 0
        %s318 = sadd.s32 %s317, %s315
        %s319 = smul.addr %s318, 8
        %s320 = scalar_lea.vmem %s0, %s319
        %p321 = pneg %p58
        %p322 = pneg %p55
        %p323 = pneg %p79
        %p324 = pneg %p76
        %p325 = pneg %p100
        %p326 = pneg %p97
        %p327 = pneg %p121
        %p328 = pneg %p118
        %p329 = pneg %p142
        %p330 = pneg %p139
        %p331 = pneg %p163
        %p332 = pneg %p160
        %p333 = pneg %p184
        %p334 = pneg %p181
        %p335 = pneg %p205
        %p336 = pneg %p202
        %p337 = pneg %p226
        %p338 = pneg %p223
        %p339 = pneg %p254
        %p340 = pneg %p251
        %s341 = sand.u32 %s241, 1
        %s342 = scalar_lea.sflag [#allocation3], %s341
        %s343 = sand.u32 %s241, 1
        %s344 = smul.addr %s343, 8
        %s345 = scalar_lea.vmem [#allocation2], %s344
        %p346 = scmp.lt.s32.totalorder %s27, 1
        %s347 = scalar_select %p346, %s27, 1
        %p348 = scmp.lt.s32.totalorder %s28, 0
        %s349 = scalar_select %p348, %s28, 0
        %s350 = sadd.s32 %s349, %s347
        %s351 = smul.addr %s350, 8
        %s352 = scalar_lea.vmem %s0, %s351
        %v354 = vld [vmem:[%s352] sm:$0xff]
        %vm355 = vcmask 261120
        %v356 = vsel %vm355, %v354, 0.0
        %357 = vadd.xlane.f32.xlu0 %v356
        %v358 = vpop.xlane.xlu0 %357
        %v359 = vrcp.pop 32.0
        %v360 = vmul.f32 32.0, %v359
        %v361 = vsub.f32 1.0, %v360
        %v362 = vmul.f32 %v359, %v361
        %v363 = vadd.f32 %v359, %v362
        %vm364 = vweird.f32 %v359
        %v365 = vsel %vm364, %v359, %v363
        %v366 = vmul.f32 %v358, %v365
        %v367 = vsub.f32 %v354, %v366
        %v368 = vmul.f32 %v367, %v367
        %v369 = vsel %vm355, %v368, 0.0
        %370 = vadd.xlane.f32.xlu0 %v369
        %v371 = vpop.xlane.xlu0 %370
        %v372 = vmul.f32 %v371, %v365
        %v373 = vadd.f32 %v372, 1e-06
        %v374 = vrsqrt.pop %v373
        %v375 = vmul.f32 %v374, %v373
        %v376 = vmul.f32 %v375, %v374
        %v377 = vmul.f32 0.5, %v376
        %v378 = vsub.f32 1.5, %v377
        %v379 = vmul.f32 %v374, %v378
        %vm380 = vweird.f32 %v373
        %vm381 = vweird.f32 %v374
        %vm382 = vmor %vm380, %vm381
        %v383 = vsel %vm382, %v374, %v379
        %v384 = vmul.f32 %v367, %v383
        %v385 = vld [vmem:[%s1] sm:$0x1]
        %v387 = vperm.slane %v385, 0
        %v389 = vmul.f32 %v384, %v387
        %v390 = vld [vmem:[%s2] sm:$0x1]
        %v392 = vperm.slane %v390, 0
        %v394 = vadd.f32 %v389, %v392
        %v395 = vpack.c.bf16 %v394, %v394
        %v396 = vld [vmem:[%s3] sm:$0xf]
        %v397 = vld [vmem:[%s3 + $0x4] sm:$0xf]
        %v398 = vld [vmem:[%s3 + $0x8] sm:$0xf]
        %v399 = vld [vmem:[%s3 + $0xc] sm:$0xf]
        %v400 = vld [vmem:[%s4] sm:$0x1]
        %v402 = vperm.slane %v400, 0
        %v408 = vunpack.c.l.b16 %v396
        %v409 = vunpack.c.l.b16 %v397
        %v410 = vunpack.c.l.b16 %v398
        %v411 = vunpack.c.l.b16 %v399
        %v412 = vpack.c.b16 %v409, %v408
        %v413 = vpack.c.b16 %v411, %v410
        %v417 = vsel %vm355, %v395, 0
        %419 = vmatpush.bf16.msra.mxu0 0
        %420 = vmatpush.bf16.msra.mxu0 0
        %421 = vmatpush.bf16.msra.mxu0 0
        %422 = vmatpush.bf16.msra.mxu0 0
        %423 = vmatpush.bf16.msra.mxu0 0
        %424 = vmatpush.bf16.msra.mxu0 0
        %425 = vmatpush.bf16.msra.mxu0 %v413
        %426 = vmatpush.bf16.msra.mxu0 %v412
        %427 = vmatmul.bf16.gmra.mxu0 %v417
        %v428 = vpop.f32.mrf.mxu0
        %v429 = vadd.f32 %v402, %v428
        %v430 = vpop.f32.mrf.mxu0
        %431 = vdwg.mxu0
        %v432 = vmax.f32 %v429, 0.0
        %v433 = vpack.c.bf16 %v432, %v432
        %v434 = vld [vmem:[%s5] sm:$0xf]
        %v435 = vld [vmem:[%s5 + $0x4] sm:$0xf]
        %v436 = vld [vmem:[%s5 + $0x8] sm:$0xf]
        %v437 = vld [vmem:[%s5 + $0xc] sm:$0xf]
        %v438 = vld [vmem:[%s5 + $0x10] sm:$0xf]
        %v439 = vld [vmem:[%s5 + $0x14] sm:$0xf]
        %v440 = vld [vmem:[%s5 + $0x18] sm:$0xf]
        %v441 = vld [vmem:[%s5 + $0x1c] sm:$0xf]
        %v442 = vld [vmem:[%s6] sm:$0x1]
        %v444 = vperm.slane %v442, 0
        %v454 = vunpack.c.l.b16 %v434
        %v455 = vunpack.c.l.b16 %v435
        %v456 = vunpack.c.l.b16 %v436
        %v457 = vunpack.c.l.b16 %v437
        %v458 = vunpack.c.l.b16 %v438
        %v459 = vunpack.c.l.b16 %v439
        %v460 = vunpack.c.l.b16 %v440
        %v461 = vunpack.c.l.b16 %v441
        %v462 = vpack.c.b16 %v455, %v454
        %v463 = vpack.c.b16 %v457, %v456
        %v464 = vpack.c.b16 %v459, %v458
        %v465 = vpack.c.b16 %v461, %v460
        %vm470 = vcmask 523264
        %v472 = vsel %vm470, %v433, 0
        %474 = vmatpush.bf16.msra.mxu0 0
        %475 = vmatpush.bf16.msra.mxu0 0
        %476 = vmatpush.bf16.msra.mxu0 0
        %477 = vmatpush.bf16.msra.mxu0 0
        %478 = vmatpush.bf16.msra.mxu0 %v465
        %479 = vmatpush.bf16.msra.mxu0 %v464
        %480 = vmatpush.bf16.msra.mxu0 %v463
        %481 = vmatpush.bf16.msra.mxu0 %v462
        %482 = vmatmul.bf16.gmra.mxu0 %v472
        %v483 = vpop.f32.mrf.mxu0
        %v484 = vadd.f32 %v444, %v483
        %v485 = vpop.f32.mrf.mxu0
        %486 = vdwg.mxu0
        %v487 = vadd.f32 %v484, %v354
        %v488 = vsel %vm355, %v487, 0.0
        %489 = vadd.xlane.f32.xlu0 %v488
        %v490 = vpop.xlane.xlu0 %489
        %v491 = vmul.f32 %v490, %v365
        %v492 = vsub.f32 %v487, %v491
        %v493 = vmul.f32 %v492, %v492
        %v494 = vsel %vm355, %v493, 0.0
        %495 = vadd.xlane.f32.xlu0 %v494
        %v496 = vpop.xlane.xlu0 %495
        %v497 = vmul.f32 %v496, %v365
        %v498 = vadd.f32 %v497, 1e-06
        %v499 = vrsqrt.pop %v498
        %v500 = vmul.f32 %v499, %v498
        %v501 = vmul.f32 %v500, %v499
        %v502 = vmul.f32 0.5, %v501
        %v503 = vsub.f32 1.5, %v502
        %v504 = vmul.f32 %v499, %v503
        %vm505 = vweird.f32 %v498
        %vm506 = vweird.f32 %v499
        %vm507 = vmor %vm505, %vm506
        %v508 = vsel %vm507, %v499, %v504
        %v509 = vmul.f32 %v492, %v508
        %v510 = vld [vmem:[%s7] sm:$0x1]
        %v512 = vperm.slane %v510, 0
        %v514 = vmul.f32 %v509, %v512
        %v515 = vld [vmem:[%s8] sm:$0x1]
        %v517 = vperm.slane %v515, 0
        %v519 = vadd.f32 %v514, %v517
        %520 = vst.msk [vmem:[%s345] sm:$0xff] %vm355, %v519
        %s521 = sand.u32 %s241, 1
        %s522 = scalar_lea.sflag [#allocation3], %s521
        %s523 = sand.u32 %s241, 1
        %s524 = smul.addr %s523, 8
        %s525 = scalar_lea.vmem [#allocation2], %s524
        // Predicated region
        $region57: #{decoder_forward.11} parent=55 // pred_check
          %p526 = pneg %p251
        $region58: #{decoder_forward.11} parent=55 // pred_check_branch
          %528 = sbr.rel (%p526) target = $region60
        $region59: #{decoder_forward.11} parent=55 // pred_region
          %530 = vsyncadd %s522, 0
          %s531 = sadd.s32 %s28, %s27
          %s532 = smul.addr %s531, 8
          %s533 = scalar_lea.hbm %s9, %s532
          %s535 = sshll.u32 %s525, 4
          %s536 = int_to_ptr.vmem [resolvable:$true] %s535
          %s537 = sshll.u32 %s533, 4
          %s538 = int_to_ptr.hbm [resolvable:$true] %s537
          %540 = dma.vmem_to_hbm [thread:$0]  %s536, 128, %s538, %s522
        $region60: #{decoder_forward.11} parent=55 // pred_fallthru
          _
      $region56: #{decoder_forward.11} parent=5 // pred_fallthru
        _
      %p541 = scmp.le.s32.totalorder 2, %s18
      // Predicated region
      $region61: #{decoder_forward.11} parent=5 // pred_check
        %p542 = pneg %p541
      $region62: #{decoder_forward.11} parent=5 // pred_check_branch
        %544 = sbr.rel (%p542) target = $region64
      $region63: #{decoder_forward.11} parent=5 // pred_region
        %s545 = ssub.s32 %s18, 2
        // Predicated region
        $region65: #{decoder_forward.11} parent=63 // pred_check
          %p546 = pneg %p257
        $region66: #{decoder_forward.11} parent=63 // pred_check_branch
          %548 = sbr.rel (%p546) target = $region68
        $region67: #{decoder_forward.11} parent=63 // pred_region
          %s549 = sand.u32 %s242, 1
          %s550 = scalar_lea.sflag [#allocation3], %s549
          %s551 = sand.u32 %s242, 1
          %s552 = smul.addr %s551, 8
          %s553 = scalar_lea.vmem [#allocation2], %s552
          %555 = dma.done %s550, 128
        $region68: #{decoder_forward.11} parent=63 // pred_fallthru
          _
      $region64: #{decoder_forward.11} parent=5 // pred_fallthru
        _
    $region6: #{decoder_forward.11} parent=1 // loop_footer
      %s22 = sadd.s32 1, %s18
    $region7: #{decoder_forward.11} parent=1 // loop_footer_branch
      %17 = sbr.rel target = $region3
    $region8: #{decoder_forward.11} parent=1 // loop_exit
      _
    %556 = vsyncpa [#allocation3], 1
    %s557 = scalar_lea.sflag [#allocation3], 1
    %558 = vsyncpa %s557, 1

// kernel: decoder_forward.10
$region0: #{decoder_forward.10}
  #allocation0 [shape = 'u32[]', space=smem, size = 0x4, offset = 0x4, fixed_abs, tag = 'smem constant byte address 0x4 - core index']
  #allocation1 [shape = 'u32[72,128]{1,0:T(1,128)}', space=vmem, size = 0x9000, scoped, tag = 'internal scratch']
  %s0 = inlined_call_operand.vmem [shape: f32[2,8,32], index: 0, kind: input, shape index: {}]
  %s1 = inlined_call_operand.vmem [shape: f32[2,16,32], index: 1, kind: input, shape index: {}]
  %s2 = inlined_call_operand.hbm [shape: f32[2,8,32], index: 2, kind: input, shape index: {}]
  %s3 = inlined_call_operand.vmem [shape: f32[2,1,16], index: 3, kind: input, shape index: {}]
  %s4 = inlined_call_operand.vmem [shape: f32[2,1,8], index: 4, kind: input, shape index: {}]
  %s5 = inlined_call_operand.hbm [shape: f32[1,32], index: 5, kind: input, shape index: {}]
  %s6 = inlined_call_operand.hbm [shape: f32[1,32], index: 6, kind: input, shape index: {}]
  %s7 = inlined_call_operand.hbm [shape: bf16[32,32], index: 7, kind: input, shape index: {}]
  %s8 = inlined_call_operand.hbm [shape: f32[1,32], index: 8, kind: input, shape index: {}]
  %s9 = inlined_call_operand.hbm [shape: bf16[32,64], index: 9, kind: input, shape index: {}]
  %s10 = inlined_call_operand.hbm [shape: f32[1,64], index: 10, kind: input, shape index: {}]
  %s11 = inlined_call_operand.hbm [shape: bf16[32,32], index: 11, kind: input, shape index: {}]
  %s12 = inlined_call_operand.hbm [shape: f32[1,32], index: 12, kind: input, shape index: {}]
  %s13 = inlined_call_operand.hbm [shape: bf16[32,32], index: 13, kind: input, shape index: {}]
  %s14 = inlined_call_operand.hbm [shape: f32[1,32], index: 14, kind: input, shape index: {}]
  %s15 = inlined_call_operand.hbm [shape: bf16[32,64], index: 15, kind: input, shape index: {}]
  %s16 = inlined_call_operand.hbm [shape: f32[1,64], index: 16, kind: input, shape index: {}]
  %s17 = inlined_call_operand.hbm [shape: bf16[32,32], index: 17, kind: input, shape index: {}]
  %s18 = inlined_call_operand.hbm [shape: f32[1,32], index: 18, kind: input, shape index: {}]
  %s19 = inlined_call_operand.vmem [shape: f32[2,8,32], index: 19, kind: output, shape index: {0}]
  %s20 = inlined_call_operand.hbm [shape: f32[2,8,16], index: 20, kind: output, shape index: {1}]
  %21 = xla_tuple %s19, %s20
  %s22 = sld [smem:[#allocation0]]
  $region177: #{decoder_forward.10} parent=0
    _
  %s24 = ssub.s32 1, %s22
  %s25 = scalar_select 0, %s24, %s22
  $region1: #{decoder_forward.10} parent=0
    #allocation2 [shape = 'u8[8192]{0}', space=vmem, size = 0x2000, scoped, tag = 'input window, operand 2']
    #allocation3 [shape = 's32[2]{0}', space=sflag, size = 0x8, scoped, tag = 'scoped memory for decoder_forward.10']
    #allocation4 [shape = 's32[2]{0}', space=sflag, size = 0x8, scoped, tag = 'scoped memory for decoder_forward.10']
    #allocation5 [shape = 'u8[512]{0}', space=vmem, size = 0x400, scoped, tag = 'input window, operand 5, single buffered']
    #allocation6 [shape = 's32[1]{0}', space=sflag, size = 0x4, scoped, tag = 'scoped memory for decoder_forward.10']
    #allocation7 [shape = 'u8[512]{0}', space=vmem, size = 0x400, scoped, tag = 'input window, operand 6, single buffered']
    #allocation8 [shape = 'u8[8192]{0}', space=vmem, size = 0x2000, scoped, tag = 'input window, operand 7, single buffered']
    #allocation9 [shape = 's32[1]{0}', space=sflag, size = 0x4, scoped, tag = 'scoped memory for decoder_forward.10']
    #allocation10 [shape = 'u8[512]{0}', space=vmem, size = 0x400, scoped, tag = 'input window, operand 8, single buffered']
    #allocation11 [shape = 'u8[8192]{0}', space=vmem, size = 0x2000, scoped, tag = 'input window, operand 9, single buffered']
    #allocation12 [shape = 's32[1]{0}', space=sflag, size = 0x4, scoped, tag = 'scoped memory for decoder_forward.10']
    #allocation13 [shape = 'u8[512]{0}', space=vmem, size = 0x400, scoped, tag = 'input window, operand 10, single buffered']
    #allocation14 [shape = 'u8[8192]{0}', space=vmem, size = 0x2000, scoped, tag = 'input window, operand 11, single buffered']
    #allocation15 [shape = 's32[1]{0}', space=sflag, size = 0x4, scoped, tag = 'scoped memory for decoder_forward.10']
    #allocation16 [shape = 'u8[512]{0}', space=vmem, size = 0x400, scoped, tag = 'input window, operand 12, single buffered']
    #allocation17 [shape = 'u8[8192]{0}', space=vmem, size = 0x2000, scoped, tag = 'input window, operand 13, single buffered']
    #allocation18 [shape = 's32[1]{0}', space=sflag, size = 0x4, scoped, tag = 'scoped memory for decoder_forward.10']
    #allocation19 [shape = 'u8[512]{0}', space=vmem, size = 0x400, scoped, tag = 'input window, operand 14, single buffered']
    #allocation20 [shape = 'u8[8192]{0}', space=vmem, size = 0x2000, scoped, tag = 'input window, operand 15, single buffered']
    #allocation21 [shape = 's32[1]{0}', space=sflag, size = 0x4, scoped, tag = 'scoped memory for decoder_forward.10']
    #allocation22 [shape = 'u8[512]{0}', space=vmem, size = 0x400, scoped, tag = 'input window, operand 16, single buffered']
    #allocation23 [shape = 'u8[8192]{0}', space=vmem, size = 0x2000, scoped, tag = 'input window, operand 17, single buffered']
    #allocation24 [shape = 's32[1]{0}', space=sflag, size = 0x4, scoped, tag = 'scoped memory for decoder_forward.10']
    #allocation25 [shape = 'u8[512]{0}', space=vmem, size = 0x400, scoped, tag = 'input window, operand 18, single buffered']
    #allocation26 [shape = 'u8[8192]{0}', space=vmem, size = 0x2000, scoped, tag = 'output window, operand 1']
    %26 = vsyncpa [#allocation3], 0
    %s27 = scalar_lea.sflag [#allocation3], 1
    %28 = vsyncpa %s27, 0
    %29 = vsyncpa [#allocation6], 0
    %30 = vsyncpa [#allocation9], 0
    %31 = vsyncpa [#allocation12], 0
    %32 = vsyncpa [#allocation15], 0
    %33 = vsyncpa [#allocation18], 0
    %34 = vsyncpa [#allocation21], 0
    %35 = vsyncpa [#allocation24], 0
    %36 = vsyncpa [#allocation4], 0
    %s37 = scalar_lea.sflag [#allocation4], 1
    %38 = vsyncpa %s37, 0
    loop: start=0, step=1, limit=4
    $region2: #{decoder_forward.10} parent=1 // loop_pre_header
      _
    $region3: #{decoder_forward.10} parent=1 // loop_header
      %s40 = sphi 0, %s44
      %p41 = scmp.ge.s32.totalorder %s40, 4
      %s47 = sphi 0, %s59
      %s48 = sphi 0, %s55
      %s49 = sphi 0, %s47
      %s50 = sphi 0, %s48
      %s51 = sphi 0, %s49
      %s52 = sphi 0, %s50
      %s64 = sphi 0, %s66
      %s67 = sphi 0, %s64
      %s68 = sphi 0, %s67
      %s84 = sphi 0, %s68
      %s90 = sphi 0, %s92
      %s93 = sphi 0, %s90
      %s94 = sphi 0, %s93
      %s110 = sphi 0, %s94
      %s116 = sphi 0, %s118
      %s119 = sphi 0, %s116
      %s120 = sphi 0, %s119
      %s136 = sphi 0, %s120
      %s142 = sphi 0, %s144
      %s145 = sphi 0, %s142
      %s146 = sphi 0, %s145
      %s162 = sphi 0, %s146
      %s168 = sphi 0, %s170
      %s171 = sphi 0, %s168
      %s172 = sphi 0, %s171
      %s188 = sphi 0, %s172
      %s192 = sphi 0, %s192
      %s194 = sphi 0, %s192
      %s195 = sphi 0, %s194
      %s209 = sphi 0, %s195
      %s213 = sphi 0, %s213
      %s215 = sphi 0, %s213
      %s216 = sphi 0, %s215
      %s230 = sphi 0, %s216
      %s234 = sphi 0, %s234
      %s236 = sphi 0, %s234
      %s237 = sphi 0, %s236
      %s251 = sphi 0, %s237
      %s255 = sphi 0, %s255
      %s257 = sphi 0, %s255
      %s258 = sphi 0, %s257
      %s272 = sphi 0, %s258
      %s276 = sphi 0, %s276
      %s278 = sphi 0, %s276
      %s279 = sphi 0, %s278
      %s293 = sphi 0, %s279
      %s297 = sphi 0, %s297
      %s299 = sphi 0, %s297
      %s300 = sphi 0, %s299
      %s314 = sphi 0, %s300
      %s318 = sphi 0, %s318
      %s320 = sphi 0, %s318
      %s321 = sphi 0, %s320
      %s335 = sphi 0, %s321
      %s339 = sphi 0, %s339
      %s341 = sphi 0, %s339
      %s342 = sphi 0, %s341
      %s356 = sphi 0, %s342
      %s360 = sphi 0, %s360
      %s362 = sphi 0, %s360
      %s363 = sphi 0, %s362
      %s377 = sphi 0, %s363
      %s381 = sphi 0, %s381
      %s383 = sphi 0, %s381
      %s384 = sphi 0, %s383
      %s398 = sphi 0, %s384
      %s402 = sphi 0, %s402
      %s404 = sphi 0, %s402
      %s405 = sphi 0, %s404
      %s419 = sphi 0, %s405
      %s423 = sphi 0, %s423
      %s425 = sphi 0, %s423
      %s426 = sphi 0, %s425
      %s440 = sphi 0, %s426
      %s444 = sphi 0, %s444
      %s446 = sphi 0, %s444
      %s447 = sphi 0, %s446
      %s461 = sphi 0, %s447
      %s465 = sphi 0, %s465
      %s467 = sphi 0, %s465
      %s468 = sphi 0, %s467
      %s482 = sphi 0, %s468
      %s490 = sphi 0, %s492
      %s493 = sphi 0, %s490
      %s494 = sphi 0, %s493
      %s510 = sphi 0, %s494
      %s518 = sphi 0, %s520
      %s521 = sphi 0, %s518
      %s522 = sphi 0, %s521
      %s538 = sphi 0, %s522
    $region4: #{decoder_forward.10} parent=1 // loop_header_branch
      %43 = sbr.rel (%p41) target = $region8
    $region5: #{decoder_forward.10} parent=1 // loop_body
      %s45 = ssub.s32 %s40, 1
      %s46 = ssub.s32 %s40, 2
      %s53 = sadd.s32 1, %s48
      %p54 = scmp.ge.s32.totalorder %s53, 1
      %s55 = scalar_select %p54, 0, %s53
      %s56 = sadd.s32 1, %s47
      %s57 = scalar_select %p54, %s56, %s47
      %p58 = scmp.ge.s32.totalorder %s57, 2
      %s59 = scalar_select %p58, 0, %s57
      %s60 = ssub.s32 %s47, %s59
      %s61 = ssub.s32 %s48, %s55
      %s62 = sor.u32 %s60, %s61
      %p63 = scmp.eq.s32.totalorder %s62, 0
      %s65 = sadd.s32 %s64, 1
      %s66 = scalar_select %p63, %s64, %s65
      %p69 = pneg %p63
      %p70 = scmp.eq.s32.totalorder %s40, 1
      %p71 = por %p69, %p70
      %p72 = scmp.ne.s32.totalorder %s64, %s67
      %p73 = scmp.eq.s32.totalorder %s40, 0
      %p74 = por %p72, %p73
      %p75 = scmp.ne.s32.totalorder %s64, %s67
      %p76 = scmp.eq.s32.totalorder %s45, 1
      %p77 = por %p75, %p76
      %p78 = scmp.ne.s32.totalorder %s67, %s68
      %p79 = scmp.eq.s32.totalorder %s45, 0
      %p80 = por %p78, %p79
      %p81 = scmp.ne.s32.totalorder %s67, %s68
      %p82 = scmp.eq.s32.totalorder %s46, 1
      %p83 = por %p81, %p82
      %p85 = scmp.ne.s32.totalorder %s68, %s84
      %p86 = scmp.eq.s32.totalorder %s46, 0
      %p87 = por %p85, %p86
      %s88 = ssub.s32 %s47, %s59
      %p89 = scmp.eq.s32.totalorder %s88, 0
      %s91 = sadd.s32 %s90, 1
      %s92 = scalar_select %p89, %s90, %s91
      %p95 = pneg %p89
      %p96 = scmp.eq.s32.totalorder %s40, 1
      %p97 = por %p95, %p96
      %p98 = scmp.ne.s32.totalorder %s90, %s93
      %p99 = scmp.eq.s32.totalorder %s40, 0
      %p100 = por %p98, %p99
      %p101 = scmp.ne.s32.totalorder %s90, %s93
      %p102 = scmp.eq.s32.totalorder %s45, 1
      %p103 = por %p101, %p102
      %p104 = scmp.ne.s32.totalorder %s93, %s94
      %p105 = scmp.eq.s32.totalorder %s45, 0
      %p106 = por %p104, %p105
      %p107 = scmp.ne.s32.totalorder %s93, %s94
      %p108 = scmp.eq.s32.totalorder %s46, 1
      %p109 = por %p107, %p108
      %p111 = scmp.ne.s32.totalorder %s94, %s110
      %p112 = scmp.eq.s32.totalorder %s46, 0
      %p113 = por %p111, %p112
      %s114 = ssub.s32 %s47, %s59
      %p115 = scmp.eq.s32.totalorder %s114, 0
      %s117 = sadd.s32 %s116, 1
      %s118 = scalar_select %p115, %s116, %s117
      %p121 = pneg %p115
      %p122 = scmp.eq.s32.totalorder %s40, 1
      %p123 = por %p121, %p122
      %p124 = scmp.ne.s32.totalorder %s116, %s119
      %p125 = scmp.eq.s32.totalorder %s40, 0
      %p126 = por %p124, %p125
      %p127 = scmp.ne.s32.totalorder %s116, %s119
      %p128 = scmp.eq.s32.totalorder %s45, 1
      %p129 = por %p127, %p128
      %p130 = scmp.ne.s32.totalorder %s119, %s120
      %p131 = scmp.eq.s32.totalorder %s45, 0
      %p132 = por %p130, %p131
      %p133 = scmp.ne.s32.totalorder %s119, %s120
      %p134 = scmp.eq.s32.totalorder %s46, 1
      %p135 = por %p133, %p134
      %p137 = scmp.ne.s32.totalorder %s120, %s136
      %p138 = scmp.eq.s32.totalorder %s46, 0
      %p139 = por %p137, %p138
      %s140 = ssub.s32 %s47, %s59
      %p141 = scmp.eq.s32.totalorder %s140, 0
      %s143 = sadd.s32 %s142, 1
      %s144 = scalar_select %p141, %s142, %s143
      %p147 = pneg %p141
      %p148 = scmp.eq.s32.totalorder %s40, 1
      %p149 = por %p147, %p148
      %p150 = scmp.ne.s32.totalorder %s142, %s145
      %p151 = scmp.eq.s32.totalorder %s40, 0
      %p152 = por %p150, %p151
      %p153 = scmp.ne.s32.totalorder %s142, %s145
      %p154 = scmp.eq.s32.totalorder %s45, 1
      %p155 = por %p153, %p154
      %p156 = scmp.ne.s32.totalorder %s145, %s146
      %p157 = scmp.eq.s32.totalorder %s45, 0
      %p158 = por %p156, %p157
      %p159 = scmp.ne.s32.totalorder %s145, %s146
      %p160 = scmp.eq.s32.totalorder %s46, 1
      %p161 = por %p159, %p160
      %p163 = scmp.ne.s32.totalorder %s146, %s162
      %p164 = scmp.eq.s32.totalorder %s46, 0
      %p165 = por %p163, %p164
      %s166 = ssub.s32 %s47, %s59
      %p167 = scmp.eq.s32.totalorder %s166, 0
      %s169 = sadd.s32 %s168, 1
      %s170 = scalar_select %p167, %s168, %s169
      %p173 = pneg %p167
      %p174 = scmp.eq.s32.totalorder %s40, 1
      %p175 = por %p173, %p174
      %p176 = scmp.ne.s32.totalorder %s168, %s171
      %p177 = scmp.eq.s32.totalorder %s40, 0
      %p178 = por %p176, %p177
      %p179 = scmp.ne.s32.totalorder %s168, %s171
      %p180 = scmp.eq.s32.totalorder %s45, 1
      %p181 = por %p179, %p180
      %p182 = scmp.ne.s32.totalorder %s171, %s172
      %p183 = scmp.eq.s32.totalorder %s45, 0
      %p184 = por %p182, %p183
      %p185 = scmp.ne.s32.totalorder %s171, %s172
      %p186 = scmp.eq.s32.totalorder %s46, 1
      %p187 = por %p185, %p186
      %p189 = scmp.ne.s32.totalorder %s172, %s188
      %p190 = scmp.eq.s32.totalorder %s46, 0
      %p191 = por %p189, %p190
      %s193 = sadd.s32 %s192, 1
      %p196 = scmp.eq.s32.totalorder %s40, 1
      %p197 = scmp.ne.s32.totalorder %s192, %s194
      %p198 = scmp.eq.s32.totalorder %s40, 0
      %p199 = por %p197, %p198
      %p200 = scmp.ne.s32.totalorder %s192, %s194
      %p201 = scmp.eq.s32.totalorder %s45, 1
      %p202 = por %p200, %p201
      %p203 = scmp.ne.s32.totalorder %s194, %s195
      %p204 = scmp.eq.s32.totalorder %s45, 0
      %p205 = por %p203, %p204
      %p206 = scmp.ne.s32.totalorder %s194, %s195
      %p207 = scmp.eq.s32.totalorder %s46, 1
      %p208 = por %p206, %p207
      %p210 = scmp.ne.s32.totalorder %s195, %s209
      %p211 = scmp.eq.s32.totalorder %s46, 0
      %p212 = por %p210, %p211
      %s214 = sadd.s32 %s213, 1
      %p217 = scmp.eq.s32.totalorder %s40, 1
      %p218 = scmp.ne.s32.totalorder %s213, %s215
      %p219 = scmp.eq.s32.totalorder %s40, 0
      %p220 = por %p218, %p219
      %p221 = scmp.ne.s32.totalorder %s213, %s215
      %p222 = scmp.eq.s32.totalorder %s45, 1
      %p223 = por %p221, %p222
      %p224 = scmp.ne.s32.totalorder %s215, %s216
      %p225 = scmp.eq.s32.totalorder %s45, 0
      %p226 = por %p224, %p225
      %p227 = scmp.ne.s32.totalorder %s215, %s216
      %p228 = scmp.eq.s32.totalorder %s46, 1
      %p229 = por %p227, %p228
      %p231 = scmp.ne.s32.totalorder %s216, %s230
      %p232 = scmp.eq.s32.totalorder %s46, 0
      %p233 = por %p231, %p232
      %s235 = sadd.s32 %s234, 1
      %p238 = scmp.eq.s32.totalorder %s40, 1
      %p239 = scmp.ne.s32.totalorder %s234, %s236
      %p240 = scmp.eq.s32.totalorder %s40, 0
      %p241 = por %p239, %p240
      %p242 = scmp.ne.s32.totalorder %s234, %s236
      %p243 = scmp.eq.s32.totalorder %s45, 1
      %p244 = por %p242, %p243
      %p245 = scmp.ne.s32.totalorder %s236, %s237
      %p246 = scmp.eq.s32.totalorder %s45, 0
      %p247 = por %p245, %p246
      %p248 = scmp.ne.s32.totalorder %s236, %s237
      %p249 = scmp.eq.s32.totalorder %s46, 1
      %p250 = por %p248, %p249
      %p252 = scmp.ne.s32.totalorder %s237, %s251
      %p253 = scmp.eq.s32.totalorder %s46, 0
      %p254 = por %p252, %p253
      %s256 = sadd.s32 %s255, 1
      %p259 = scmp.eq.s32.totalorder %s40, 1
      %p260 = scmp.ne.s32.totalorder %s255, %s257
      %p261 = scmp.eq.s32.totalorder %s40, 0
      %p262 = por %p260, %p261
      %p263 = scmp.ne.s32.totalorder %s255, %s257
      %p264 = scmp.eq.s32.totalorder %s45, 1
      %p265 = por %p263, %p264
      %p266 = scmp.ne.s32.totalorder %s257, %s258
      %p267 = scmp.eq.s32.totalorder %s45, 0
      %p268 = por %p266, %p267
      %p269 = scmp.ne.s32.totalorder %s257, %s258
      %p270 = scmp.eq.s32.totalorder %s46, 1
      %p271 = por %p269, %p270
      %p273 = scmp.ne.s32.totalorder %s258, %s272
      %p274 = scmp.eq.s32.totalorder %s46, 0
      %p275 = por %p273, %p274
      %s277 = sadd.s32 %s276, 1
      %p280 = scmp.eq.s32.totalorder %s40, 1
      %p281 = scmp.ne.s32.totalorder %s276, %s278
      %p282 = scmp.eq.s32.totalorder %s40, 0
      %p283 = por %p281, %p282
      %p284 = scmp.ne.s32.totalorder %s276, %s278
      %p285 = scmp.eq.s32.totalorder %s45, 1
      %p286 = por %p284, %p285
      %p287 = scmp.ne.s32.totalorder %s278, %s279
      %p288 = scmp.eq.s32.totalorder %s45, 0
      %p289 = por %p287, %p288
      %p290 = scmp.ne.s32.totalorder %s278, %s279
      %p291 = scmp.eq.s32.totalorder %s46, 1
      %p292 = por %p290, %p291
      %p294 = scmp.ne.s32.totalorder %s279, %s293
      %p295 = scmp.eq.s32.totalorder %s46, 0
      %p296 = por %p294, %p295
      %s298 = sadd.s32 %s297, 1
      %p301 = scmp.eq.s32.totalorder %s40, 1
      %p302 = scmp.ne.s32.totalorder %s297, %s299
      %p303 = scmp.eq.s32.totalorder %s40, 0
      %p304 = por %p302, %p303
      %p305 = scmp.ne.s32.totalorder %s297, %s299
      %p306 = scmp.eq.s32.totalorder %s45, 1
      %p307 = por %p305, %p306
      %p308 = scmp.ne.s32.totalorder %s299, %s300
      %p309 = scmp.eq.s32.totalorder %s45, 0
      %p310 = por %p308, %p309
      %p311 = scmp.ne.s32.totalorder %s299, %s300
      %p312 = scmp.eq.s32.totalorder %s46, 1
      %p313 = por %p311, %p312
      %p315 = scmp.ne.s32.totalorder %s300, %s314
      %p316 = scmp.eq.s32.totalorder %s46, 0
      %p317 = por %p315, %p316
      %s319 = sadd.s32 %s318, 1
      %p322 = scmp.eq.s32.totalorder %s40, 1
      %p323 = scmp.ne.s32.totalorder %s318, %s320
      %p324 = scmp.eq.s32.totalorder %s40, 0
      %p325 = por %p323, %p324
      %p326 = scmp.ne.s32.totalorder %s318, %s320
      %p327 = scmp.eq.s32.totalorder %s45, 1
      %p328 = por %p326, %p327
      %p329 = scmp.ne.s32.totalorder %s320, %s321
      %p330 = scmp.eq.s32.totalorder %s45, 0
      %p331 = por %p329, %p330
      %p332 = scmp.ne.s32.totalorder %s320, %s321
      %p333 = scmp.eq.s32.totalorder %s46, 1
      %p334 = por %p332, %p333
      %p336 = scmp.ne.s32.totalorder %s321, %s335
      %p337 = scmp.eq.s32.totalorder %s46, 0
      %p338 = por %p336, %p337
      %s340 = sadd.s32 %s339, 1
      %p343 = scmp.eq.s32.totalorder %s40, 1
      %p344 = scmp.ne.s32.totalorder %s339, %s341
      %p345 = scmp.eq.s32.totalorder %s40, 0
      %p346 = por %p344, %p345
      %p347 = scmp.ne.s32.totalorder %s339, %s341
      %p348 = scmp.eq.s32.totalorder %s45, 1
      %p349 = por %p347, %p348
      %p350 = scmp.ne.s32.totalorder %s341, %s342
      %p351 = scmp.eq.s32.totalorder %s45, 0
      %p352 = por %p350, %p351
      %p353 = scmp.ne.s32.totalorder %s341, %s342
      %p354 = scmp.eq.s32.totalorder %s46, 1
      %p355 = por %p353, %p354
      %p357 = scmp.ne.s32.totalorder %s342, %s356
      %p358 = scmp.eq.s32.totalorder %s46, 0
      %p359 = por %p357, %p358
      %s361 = sadd.s32 %s360, 1
      %p364 = scmp.eq.s32.totalorder %s40, 1
      %p365 = scmp.ne.s32.totalorder %s360, %s362
      %p366 = scmp.eq.s32.totalorder %s40, 0
      %p367 = por %p365, %p366
      %p368 = scmp.ne.s32.totalorder %s360, %s362
      %p369 = scmp.eq.s32.totalorder %s45, 1
      %p370 = por %p368, %p369
      %p371 = scmp.ne.s32.totalorder %s362, %s363
      %p372 = scmp.eq.s32.totalorder %s45, 0
      %p373 = por %p371, %p372
      %p374 = scmp.ne.s32.totalorder %s362, %s363
      %p375 = scmp.eq.s32.totalorder %s46, 1
      %p376 = por %p374, %p375
      %p378 = scmp.ne.s32.totalorder %s363, %s377
      %p379 = scmp.eq.s32.totalorder %s46, 0
      %p380 = por %p378, %p379
      %s382 = sadd.s32 %s381, 1
      %p385 = scmp.eq.s32.totalorder %s40, 1
      %p386 = scmp.ne.s32.totalorder %s381, %s383
      %p387 = scmp.eq.s32.totalorder %s40, 0
      %p388 = por %p386, %p387
      %p389 = scmp.ne.s32.totalorder %s381, %s383
      %p390 = scmp.eq.s32.totalorder %s45, 1
      %p391 = por %p389, %p390
      %p392 = scmp.ne.s32.totalorder %s383, %s384
      %p393 = scmp.eq.s32.totalorder %s45, 0
      %p394 = por %p392, %p393
      %p395 = scmp.ne.s32.totalorder %s383, %s384
      %p396 = scmp.eq.s32.totalorder %s46, 1
      %p397 = por %p395, %p396
      %p399 = scmp.ne.s32.totalorder %s384, %s398
      %p400 = scmp.eq.s32.totalorder %s46, 0
      %p401 = por %p399, %p400
      %s403 = sadd.s32 %s402, 1
      %p406 = scmp.eq.s32.totalorder %s40, 1
      %p407 = scmp.ne.s32.totalorder %s402, %s404
      %p408 = scmp.eq.s32.totalorder %s40, 0
      %p409 = por %p407, %p408
      %p410 = scmp.ne.s32.totalorder %s402, %s404
      %p411 = scmp.eq.s32.totalorder %s45, 1
      %p412 = por %p410, %p411
      %p413 = scmp.ne.s32.totalorder %s404, %s405
      %p414 = scmp.eq.s32.totalorder %s45, 0
      %p415 = por %p413, %p414
      %p416 = scmp.ne.s32.totalorder %s404, %s405
      %p417 = scmp.eq.s32.totalorder %s46, 1
      %p418 = por %p416, %p417
      %p420 = scmp.ne.s32.totalorder %s405, %s419
      %p421 = scmp.eq.s32.totalorder %s46, 0
      %p422 = por %p420, %p421
      %s424 = sadd.s32 %s423, 1
      %p427 = scmp.eq.s32.totalorder %s40, 1
      %p428 = scmp.ne.s32.totalorder %s423, %s425
      %p429 = scmp.eq.s32.totalorder %s40, 0
      %p430 = por %p428, %p429
      %p431 = scmp.ne.s32.totalorder %s423, %s425
      %p432 = scmp.eq.s32.totalorder %s45, 1
      %p433 = por %p431, %p432
      %p434 = scmp.ne.s32.totalorder %s425, %s426
      %p435 = scmp.eq.s32.totalorder %s45, 0
      %p436 = por %p434, %p435
      %p437 = scmp.ne.s32.totalorder %s425, %s426
      %p438 = scmp.eq.s32.totalorder %s46, 1
      %p439 = por %p437, %p438
      %p441 = scmp.ne.s32.totalorder %s426, %s440
      %p442 = scmp.eq.s32.totalorder %s46, 0
      %p443 = por %p441, %p442
      %s445 = sadd.s32 %s444, 1
      %p448 = scmp.eq.s32.totalorder %s40, 1
      %p449 = scmp.ne.s32.totalorder %s444, %s446
      %p450 = scmp.eq.s32.totalorder %s40, 0
      %p451 = por %p449, %p450
      %p452 = scmp.ne.s32.totalorder %s444, %s446
      %p453 = scmp.eq.s32.totalorder %s45, 1
      %p454 = por %p452, %p453
      %p455 = scmp.ne.s32.totalorder %s446, %s447
      %p456 = scmp.eq.s32.totalorder %s45, 0
      %p457 = por %p455, %p456
      %p458 = scmp.ne.s32.totalorder %s446, %s447
      %p459 = scmp.eq.s32.totalorder %s46, 1
      %p460 = por %p458, %p459
      %p462 = scmp.ne.s32.totalorder %s447, %s461
      %p463 = scmp.eq.s32.totalorder %s46, 0
      %p464 = por %p462, %p463
      %s466 = sadd.s32 %s465, 1
      %p469 = scmp.eq.s32.totalorder %s40, 1
      %p470 = scmp.ne.s32.totalorder %s465, %s467
      %p471 = scmp.eq.s32.totalorder %s40, 0
      %p472 = por %p470, %p471
      %p473 = scmp.ne.s32.totalorder %s465, %s467
      %p474 = scmp.eq.s32.totalorder %s45, 1
      %p475 = por %p473, %p474
      %p476 = scmp.ne.s32.totalorder %s467, %s468
      %p477 = scmp.eq.s32.totalorder %s45, 0
      %p478 = por %p476, %p477
      %p479 = scmp.ne.s32.totalorder %s467, %s468
      %p480 = scmp.eq.s32.totalorder %s46, 1
      %p481 = por %p479, %p480
      %p483 = scmp.ne.s32.totalorder %s468, %s482
      %p484 = scmp.eq.s32.totalorder %s46, 0
      %p485 = por %p483, %p484
      %s486 = ssub.s32 %s47, %s59
      %s487 = ssub.s32 %s48, %s55
      %s488 = sor.u32 %s486, %s487
      %p489 = scmp.eq.s32.totalorder %s488, 0
      %s491 = sadd.s32 %s490, 1
      %s492 = scalar_select %p489, %s490, %s491
      %p495 = pneg %p489
      %p496 = scmp.eq.s32.totalorder %s40, 1
      %p497 = por %p495, %p496
      %p498 = scmp.ne.s32.totalorder %s490, %s493
      %p499 = scmp.eq.s32.totalorder %s40, 0
      %p500 = por %p498, %p499
      %p501 = scmp.ne.s32.totalorder %s490, %s493
      %p502 = scmp.eq.s32.totalorder %s45, 1
      %p503 = por %p501, %p502
      %p504 = scmp.ne.s32.totalorder %s493, %s494
      %p505 = scmp.eq.s32.totalorder %s45, 0
      %p506 = por %p504, %p505
      %p507 = scmp.ne.s32.totalorder %s493, %s494
      %p508 = scmp.eq.s32.totalorder %s46, 1
      %p509 = por %p507, %p508
      %p511 = scmp.ne.s32.totalorder %s494, %s510
      %p512 = scmp.eq.s32.totalorder %s46, 0
      %p513 = por %p511, %p512
      %s514 = ssub.s32 %s47, %s59
      %s515 = ssub.s32 %s48, %s55
      %s516 = sor.u32 %s514, %s515
      %p517 = scmp.eq.s32.totalorder %s516, 0
      %s519 = sadd.s32 %s518, 1
      %s520 = scalar_select %p517, %s518, %s519
      %p523 = pneg %p517
      %p524 = scmp.eq.s32.totalorder %s40, 1
      %p525 = por %p523, %p524
      %p526 = scmp.ne.s32.totalorder %s518, %s521
      %p527 = scmp.eq.s32.totalorder %s40, 0
      %p528 = por %p526, %p527
      %p529 = scmp.ne.s32.totalorder %s518, %s521
      %p530 = scmp.eq.s32.totalorder %s45, 1
      %p531 = por %p529, %p530
      %p532 = scmp.ne.s32.totalorder %s521, %s522
      %p533 = scmp.eq.s32.totalorder %s45, 0
      %p534 = por %p532, %p533
      %p535 = scmp.ne.s32.totalorder %s521, %s522
      %p536 = scmp.eq.s32.totalorder %s46, 1
      %p537 = por %p535, %p536
      %p539 = scmp.ne.s32.totalorder %s522, %s538
      %p540 = scmp.eq.s32.totalorder %s46, 0
      %p541 = por %p539, %p540
      %p542 = scmp.le.s32.totalorder 1, %s40
      %p543 = scmp.lt.s32.totalorder %s40, 3
      %p544 = pnand %p542, %p543
      %p545 = pneg %p544
      // Predicated region
      $region9: #{decoder_forward.10} parent=5 // pred_check
        _
      $region10: #{decoder_forward.10} parent=5 // pred_check_branch
        %547 = sbr.rel (%p544) target = $region12
      $region11: #{decoder_forward.10} parent=5 // pred_region
        %s548 = ssub.s32 %s40, 1
        // Predicated region
        $region13: #{decoder_forward.10} parent=11 // pred_check
          %p549 = pneg %p205
        $region14: #{decoder_forward.10} parent=11 // pred_check_branch
          %551 = sbr.rel (%p549) target = $region16
        $region15: #{decoder_forward.10} parent=11 // pred_region
          %553 = vsyncadd [#allocation6], 0
          %s555 = sshll.u32 %s5, 4
          %s556 = int_to_ptr.hbm [resolvable:$true] %s555
          %s557 = sshll.u32 [#allocation5], 4
          %s558 = int_to_ptr.vmem [resolvable:$true] %s557
          %560 = dma.hbm_to_vmem [thread:$0]  %s556, 16, %s558, [#allocation6]
        $region16: #{decoder_forward.10} parent=11 // pred_fallthru
          _
        // Predicated region
        $region17: #{decoder_forward.10} parent=11 // pred_check
          %p561 = pneg %p226
        $region18: #{decoder_forward.10} parent=11 // pred_check_branch
          %563 = sbr.rel (%p561) target = $region20
        $region19: #{decoder_forward.10} parent=11 // pred_region
          %565 = vsyncadd [#allocation6], 0
          %s567 = sshll.u32 %s6, 4
          %s568 = int_to_ptr.hbm [resolvable:$true] %s567
          %s569 = sshll.u32 [#allocation7], 4
          %s570 = int_to_ptr.vmem [resolvable:$true] %s569
          %572 = dma.hbm_to_vmem [thread:$0]  %s568, 16, %s570, [#allocation6]
        $region20: #{decoder_forward.10} parent=11 // pred_fallthru
          _
        // Predicated region
        $region21: #{decoder_forward.10} parent=11 // pred_check
          %p573 = pneg %p247
        $region22: #{decoder_forward.10} parent=11 // pred_check_branch
          %575 = sbr.rel (%p573) target = $region24
        $region23: #{decoder_forward.10} parent=11 // pred_region
          %577 = vsyncadd [#allocation9], 0
          %s578 = sshll.u32 %s7, 4
          %s579 = int_to_ptr.hbm [resolvable:$true] %s578
          %s580 = sshll.u32 [#allocation8], 4
          %s581 = int_to_ptr.vmem [resolvable:$true] %s580
          %586 = dma.hbm_to_vmem [thread:$0]  %s579, 256, %s581, [#allocation9], 64, 64, 4
        $region24: #{decoder_forward.10} parent=11 // pred_fallthru
          _
        // Predicated region
        $region25: #{decoder_forward.10} parent=11 // pred_check
          %p587 = pneg %p268
        $region26: #{decoder_forward.10} parent=11 // pred_check_branch
          %589 = sbr.rel (%p587) target = $region28
        $region27: #{decoder_forward.10} parent=11 // pred_region
          %591 = vsyncadd [#allocation9], 0
          %s593 = sshll.u32 %s8, 4
          %s594 = int_to_ptr.hbm [resolvable:$true] %s593
          %s595 = sshll.u32 [#allocation10], 4
          %s596 = int_to_ptr.vmem [resolvable:$true] %s595
          %598 = dma.hbm_to_vmem [thread:$0]  %s594, 16, %s596, [#allocation9]
        $region28: #{decoder_forward.10} parent=11 // pred_fallthru
          _
        // Predicated region
        $region29: #{decoder_forward.10} parent=11 // pred_check
          %p599 = pneg %p289
        $region30: #{decoder_forward.10} parent=11 // pred_check_branch
          %601 = sbr.rel (%p599) target = $region32
        $region31: #{decoder_forward.10} parent=11 // pred_region
          %603 = vsyncadd [#allocation12], 0
          %s604 = sshll.u32 %s9, 4
          %s605 = int_to_ptr.hbm [resolvable:$true] %s604
          %s606 = sshll.u32 [#allocation11], 4
          %s607 = int_to_ptr.vmem [resolvable:$true] %s606
          %612 = dma.hbm_to_vmem [thread:$0]  %s605, 256, %s607, [#allocation12], 64, 64, 4
        $region32: #{decoder_forward.10} parent=11 // pred_fallthru
          _
        // Predicated region
        $region33: #{decoder_forward.10} parent=11 // pred_check
          %p613 = pneg %p310
        $region34: #{decoder_forward.10} parent=11 // pred_check_branch
          %615 = sbr.rel (%p613) target = $region36
        $region35: #{decoder_forward.10} parent=11 // pred_region
          %617 = vsyncadd [#allocation12], 0
          %s619 = sshll.u32 %s10, 4
          %s620 = int_to_ptr.hbm [resolvable:$true] %s619
          %s621 = sshll.u32 [#allocation13], 4
          %s622 = int_to_ptr.vmem [resolvable:$true] %s621
          %624 = dma.hbm_to_vmem [thread:$0]  %s620, 16, %s622, [#allocation12]
        $region36: #{decoder_forward.10} parent=11 // pred_fallthru
          _
        // Predicated region
        $region37: #{decoder_forward.10} parent=11 // pred_check
          %p625 = pneg %p331
        $region38: #{decoder_forward.10} parent=11 // pred_check_branch
          %627 = sbr.rel (%p625) target = $region40
        $region39: #{decoder_forward.10} parent=11 // pred_region
          %629 = vsyncadd [#allocation15], 0
          %s630 = sshll.u32 %s11, 4
          %s631 = int_to_ptr.hbm [resolvable:$true] %s630
          %s632 = sshll.u32 [#allocation14], 4
          %s633 = int_to_ptr.vmem [resolvable:$true] %s632
          %638 = dma.hbm_to_vmem [thread:$0]  %s631, 256, %s633, [#allocation15], 64, 64, 4
        $region40: #{decoder_forward.10} parent=11 // pred_fallthru
          _
        // Predicated region
        $region41: #{decoder_forward.10} parent=11 // pred_check
          %p639 = pneg %p352
        $region42: #{decoder_forward.10} parent=11 // pred_check_branch
          %641 = sbr.rel (%p639) target = $region44
        $region43: #{decoder_forward.10} parent=11 // pred_region
          %643 = vsyncadd [#allocation15], 0
          %s645 = sshll.u32 %s12, 4
          %s646 = int_to_ptr.hbm [resolvable:$true] %s645
          %s647 = sshll.u32 [#allocation16], 4
          %s648 = int_to_ptr.vmem [resolvable:$true] %s647
          %650 = dma.hbm_to_vmem [thread:$0]  %s646, 16, %s648, [#allocation15]
        $region44: #{decoder_forward.10} parent=11 // pred_fallthru
          _
        // Predicated region
        $region45: #{decoder_forward.10} parent=11 // pred_check
          %p651 = pneg %p373
        $region46: #{decoder_forward.10} parent=11 // pred_check_branch
          %653 = sbr.rel (%p651) target = $region48
        $region47: #{decoder_forward.10} parent=11 // pred_region
          %655 = vsyncadd [#allocation18], 0
          %s656 = sshll.u32 %s13, 4
          %s657 = int_to_ptr.hbm [resolvable:$true] %s656
          %s658 = sshll.u32 [#allocation17], 4
          %s659 = int_to_ptr.vmem [resolvable:$true] %s658
          %664 = dma.hbm_to_vmem [thread:$0]  %s657, 256, %s659, [#allocation18], 64, 64, 4
        $region48: #{decoder_forward.10} parent=11 // pred_fallthru
          _
        // Predicated region
        $region49: #{decoder_forward.10} parent=11 // pred_check
          %p665 = pneg %p394
        $region50: #{decoder_forward.10} parent=11 // pred_check_branch
          %667 = sbr.rel (%p665) target = $region52
        $region51: #{decoder_forward.10} parent=11 // pred_region
          %669 = vsyncadd [#allocation18], 0
          %s671 = sshll.u32 %s14, 4
          %s672 = int_to_ptr.hbm [resolvable:$true] %s671
          %s673 = sshll.u32 [#allocation19], 4
          %s674 = int_to_ptr.vmem [resolvable:$true] %s673
          %676 = dma.hbm_to_vmem [thread:$0]  %s672, 16, %s674, [#allocation18]
        $region52: #{decoder_forward.10} parent=11 // pred_fallthru
          _
        // Predicated region
        $region53: #{decoder_forward.10} parent=11 // pred_check
          %p677 = pneg %p415
        $region54: #{decoder_forward.10} parent=11 // pred_check_branch
          %679 = sbr.rel (%p677) target = $region56
        $region55: #{decoder_forward.10} parent=11 // pred_region
          %681 = vsyncadd [#allocation21], 0
          %s682 = sshll.u32 %s15, 4
          %s683 = int_to_ptr.hbm [resolvable:$true] %s682
          %s684 = sshll.u32 [#allocation20], 4
          %s685 = int_to_ptr.vmem [resolvable:$true] %s684
          %690 = dma.hbm_to_vmem [thread:$0]  %s683, 256, %s685, [#allocation21], 64, 64, 4
        $region56: #{decoder_forward.10} parent=11 // pred_fallthru
          _
        // Predicated region
        $region57: #{decoder_forward.10} parent=11 // pred_check
          %p691 = pneg %p436
        $region58: #{decoder_forward.10} parent=11 // pred_check_branch
          %693 = sbr.rel (%p691) target = $region60
        $region59: #{decoder_forward.10} parent=11 // pred_region
          %695 = vsyncadd [#allocation21], 0
          %s697 = sshll.u32 %s16, 4
          %s698 = int_to_ptr.hbm [resolvable:$true] %s697
          %s699 = sshll.u32 [#allocation22], 4
          %s700 = int_to_ptr.vmem [resolvable:$true] %s699
          %702 = dma.hbm_to_vmem [thread:$0]  %s698, 16, %s700, [#allocation21]
        $region60: #{decoder_forward.10} parent=11 // pred_fallthru
          _
        // Predicated region
        $region61: #{decoder_forward.10} parent=11 // pred_check
          %p703 = pneg %p457
        $region62: #{decoder_forward.10} parent=11 // pred_check_branch
          %705 = sbr.rel (%p703) target = $region64
        $region63: #{decoder_forward.10} parent=11 // pred_region
          %707 = vsyncadd [#allocation24], 0
          %s708 = sshll.u32 %s17, 4
          %s709 = int_to_ptr.hbm [resolvable:$true] %s708
          %s710 = sshll.u32 [#allocation23], 4
          %s711 = int_to_ptr.vmem [resolvable:$true] %s710
          %716 = dma.hbm_to_vmem [thread:$0]  %s709, 256, %s711, [#allocation24], 64, 64, 4
        $region64: #{decoder_forward.10} parent=11 // pred_fallthru
          _
        // Predicated region
        $region65: #{decoder_forward.10} parent=11 // pred_check
          %p717 = pneg %p478
        $region66: #{decoder_forward.10} parent=11 // pred_check_branch
          %719 = sbr.rel (%p717) target = $region68
        $region67: #{decoder_forward.10} parent=11 // pred_region
          %721 = vsyncadd [#allocation24], 0
          %s723 = sshll.u32 %s18, 4
          %s724 = int_to_ptr.hbm [resolvable:$true] %s723
          %s725 = sshll.u32 [#allocation25], 4
          %s726 = int_to_ptr.vmem [resolvable:$true] %s725
          %728 = dma.hbm_to_vmem [thread:$0]  %s724, 16, %s726, [#allocation24]
        $region68: #{decoder_forward.10} parent=11 // pred_fallthru
          _
      $region12: #{decoder_forward.10} parent=5 // pred_fallthru
        _
      %p729 = scmp.lt.s32.totalorder %s40, 2
      // Predicated region
      $region69: #{decoder_forward.10} parent=5 // pred_check
        %p730 = pneg %p729
      $region70: #{decoder_forward.10} parent=5 // pred_check_branch
        %732 = sbr.rel (%p730) target = $region72
      $region71: #{decoder_forward.10} parent=5 // pred_region
        // Predicated region
        $region73: #{decoder_forward.10} parent=71 // pred_check
          %p733 = pneg %p74
        $region74: #{decoder_forward.10} parent=71 // pred_check_branch
          %735 = sbr.rel (%p733) target = $region76
        $region75: #{decoder_forward.10} parent=71 // pred_region
          %p736 = scmp.lt.s32.totalorder %s47, 1
          %s737 = scalar_select %p736, %s47, 1
          %p738 = scmp.lt.s32.totalorder %s48, 0
          %s739 = scalar_select %p738, %s48, 0
          %s740 = sadd.s32 %s739, %s737
          %s741 = smul.addr %s740, 8
          %s742 = scalar_lea.vmem %s0, %s741
        $region76: #{decoder_forward.10} parent=71 // pred_fallthru
          _
        // Predicated region
        $region77: #{decoder_forward.10} parent=71 // pred_check
          %p743 = pneg %p100
        $region78: #{decoder_forward.10} parent=71 // pred_check_branch
          %745 = sbr.rel (%p743) target = $region80
        $region79: #{decoder_forward.10} parent=71 // pred_region
          %p746 = scmp.lt.s32.totalorder %s47, 1
          %s747 = scalar_select %p746, %s47, 1
          %s748 = smul.addr %s747, 2
          %s749 = smul.addr %s748, 8
          %s750 = scalar_lea.vmem %s1, %s749
        $region80: #{decoder_forward.10} parent=71 // pred_fallthru
          _
        // Predicated region
        $region81: #{decoder_forward.10} parent=71 // pred_check
          %p751 = pneg %p126
        $region82: #{decoder_forward.10} parent=71 // pred_check_branch
          %753 = sbr.rel (%p751) target = $region84
        $region83: #{decoder_forward.10} parent=71 // pred_region
          %s754 = sand.u32 %s116, 1
          %s755 = scalar_lea.sflag [#allocation3], %s754
          %s756 = sand.u32 %s116, 1
          %s757 = smul.addr %s756, 8
          %s758 = scalar_lea.vmem [#allocation2], %s757
          %760 = vsyncadd %s755, 0
          %s761 = smul.addr %s47, 8
          %s762 = scalar_lea.hbm %s2, %s761
          %s764 = sshll.u32 %s762, 4
          %s765 = int_to_ptr.hbm [resolvable:$true] %s764
          %s766 = sshll.u32 %s758, 4
          %s767 = int_to_ptr.vmem [resolvable:$true] %s766
          %769 = dma.hbm_to_vmem [thread:$0]  %s765, 128, %s767, %s755
        $region84: #{decoder_forward.10} parent=71 // pred_fallthru
          _
        // Predicated region
        $region85: #{decoder_forward.10} parent=71 // pred_check
          %p770 = pneg %p152
        $region86: #{decoder_forward.10} parent=71 // pred_check_branch
          %772 = sbr.rel (%p770) target = $region88
        $region87: #{decoder_forward.10} parent=71 // pred_region
          %p773 = scmp.lt.s32.totalorder %s47, 1
          %s774 = scalar_select %p773, %s47, 1
          %s775 = scalar_lea.vmem %s3, %s774
        $region88: #{decoder_forward.10} parent=71 // pred_fallthru
          _
        // Predicated region
        $region89: #{decoder_forward.10} parent=71 // pred_check
          %p776 = pneg %p178
        $region90: #{decoder_forward.10} parent=71 // pred_check_branch
          %778 = sbr.rel (%p776) target = $region92
        $region91: #{decoder_forward.10} parent=71 // pred_region
          %p779 = scmp.lt.s32.totalorder %s47, 1
          %s780 = scalar_select %p779, %s47, 1
          %s781 = scalar_lea.vmem %s4, %s780
        $region92: #{decoder_forward.10} parent=71 // pred_fallthru
          _
      $region72: #{decoder_forward.10} parent=5 // pred_fallthru
        _
      %p782 = scmp.le.s32.totalorder 1, %s40
      %p783 = scmp.lt.s32.totalorder %s40, 3
      %p784 = pnand %p782, %p783
      %p785 = pneg %p784
      // Predicated region
      $region93: #{decoder_forward.10} parent=5 // pred_check
        _
      $region94: #{decoder_forward.10} parent=5 // pred_check_branch
        %787 = sbr.rel (%p784) target = $region96
      $region95: #{decoder_forward.10} parent=5 // pred_region
        %s788 = ssub.s32 %s40, 1
        %s789 = sand.u32 %s119, 1
        %s790 = scalar_lea.sflag [#allocation3], %s789
        %s791 = sand.u32 %s119, 1
        %s792 = smul.addr %s791, 8
        %s793 = scalar_lea.vmem [#allocation2], %s792
        // Predicated region
        $region97: #{decoder_forward.10} parent=95 // pred_check
          %p794 = pneg %p132
        $region98: #{decoder_forward.10} parent=95 // pred_check_branch
          %796 = sbr.rel (%p794) target = $region100
        $region99: #{decoder_forward.10} parent=95 // pred_region
          %798 = dma.done %s790, 128
        $region100: #{decoder_forward.10} parent=95 // pred_fallthru
          _
        // Predicated region
        $region101: #{decoder_forward.10} parent=95 // pred_check
          %p799 = pneg %p205
        $region102: #{decoder_forward.10} parent=95 // pred_check_branch
          %801 = sbr.rel (%p799) target = $region104
        $region103: #{decoder_forward.10} parent=95 // pred_region
          %803 = dma.done [#allocation6], 16
        $region104: #{decoder_forward.10} parent=95 // pred_fallthru
          _
        // Predicated region
        $region105: #{decoder_forward.10} parent=95 // pred_check
          %p804 = pneg %p226
        $region106: #{decoder_forward.10} parent=95 // pred_check_branch
          %806 = sbr.rel (%p804) target = $region108
        $region107: #{decoder_forward.10} parent=95 // pred_region
          %808 = dma.done [#allocation6], 16
        $region108: #{decoder_forward.10} parent=95 // pred_fallthru
          _
        // Predicated region
        $region109: #{decoder_forward.10} parent=95 // pred_check
          %p809 = pneg %p247
        $region110: #{decoder_forward.10} parent=95 // pred_check_branch
          %811 = sbr.rel (%p809) target = $region112
        $region111: #{decoder_forward.10} parent=95 // pred_region
          %813 = dma.done [#allocation9], 256
        $region112: #{decoder_forward.10} parent=95 // pred_fallthru
          _
        // Predicated region
        $region113: #{decoder_forward.10} parent=95 // pred_check
          %p814 = pneg %p268
        $region114: #{decoder_forward.10} parent=95 // pred_check_branch
          %816 = sbr.rel (%p814) target = $region116
        $region115: #{decoder_forward.10} parent=95 // pred_region
          %818 = dma.done [#allocation9], 16
        $region116: #{decoder_forward.10} parent=95 // pred_fallthru
          _
        // Predicated region
        $region117: #{decoder_forward.10} parent=95 // pred_check
          %p819 = pneg %p289
        $region118: #{decoder_forward.10} parent=95 // pred_check_branch
          %821 = sbr.rel (%p819) target = $region120
        $region119: #{decoder_forward.10} parent=95 // pred_region
          %823 = dma.done [#allocation12], 256
        $region120: #{decoder_forward.10} parent=95 // pred_fallthru
          _
        // Predicated region
        $region121: #{decoder_forward.10} parent=95 // pred_check
          %p824 = pneg %p310
        $region122: #{decoder_forward.10} parent=95 // pred_check_branch
          %826 = sbr.rel (%p824) target = $region124
        $region123: #{decoder_forward.10} parent=95 // pred_region
          %828 = dma.done [#allocation12], 16
        $region124: #{decoder_forward.10} parent=95 // pred_fallthru
          _
        // Predicated region
        $region125: #{decoder_forward.10} parent=95 // pred_check
          %p829 = pneg %p331
        $region126: #{decoder_forward.10} parent=95 // pred_check_branch
          %831 = sbr.rel (%p829) target = $region128
        $region127: #{decoder_forward.10} parent=95 // pred_region
          %833 = dma.done [#allocation15], 256
        $region128: #{decoder_forward.10} parent=95 // pred_fallthru
          _
        // Predicated region
        $region129: #{decoder_forward.10} parent=95 // pred_check
          %p834 = pneg %p352
        $region130: #{decoder_forward.10} parent=95 // pred_check_branch
          %836 = sbr.rel (%p834) target = $region132
        $region131: #{decoder_forward.10} parent=95 // pred_region
          %838 = dma.done [#allocation15], 16
        $region132: #{decoder_forward.10} parent=95 // pred_fallthru
          _
        // Predicated region
        $region133: #{decoder_forward.10} parent=95 // pred_check
          %p839 = pneg %p373
        $region134: #{decoder_forward.10} parent=95 // pred_check_branch
          %841 = sbr.rel (%p839) target = $region136
        $region135: #{decoder_forward.10} parent=95 // pred_region
          %843 = dma.done [#allocation18], 256
        $region136: #{decoder_forward.10} parent=95 // pred_fallthru
          _
        // Predicated region
        $region137: #{decoder_forward.10} parent=95 // pred_check
          %p844 = pneg %p394
        $region138: #{decoder_forward.10} parent=95 // pred_check_branch
          %846 = sbr.rel (%p844) target = $region140
        $region139: #{decoder_forward.10} parent=95 // pred_region
          %848 = dma.done [#allocation18], 16
        $region140: #{decoder_forward.10} parent=95 // pred_fallthru
          _
        // Predicated region
        $region141: #{decoder_forward.10} parent=95 // pred_check
          %p849 = pneg %p415
        $region142: #{decoder_forward.10} parent=95 // pred_check_branch
          %851 = sbr.rel (%p849) target = $region144
        $region143: #{decoder_forward.10} parent=95 // pred_region
          %853 = dma.done [#allocation21], 256
        $region144: #{decoder_forward.10} parent=95 // pred_fallthru
          _
        // Predicated region
        $region145: #{decoder_forward.10} parent=95 // pred_check
          %p854 = pneg %p436
        $region146: #{decoder_forward.10} parent=95 // pred_check_branch
          %856 = sbr.rel (%p854) target = $region148
        $region147: #{decoder_forward.10} parent=95 // pred_region
          %858 = dma.done [#allocation21], 16
        $region148: #{decoder_forward.10} parent=95 // pred_fallthru
          _
        // Predicated region
        $region149: #{decoder_forward.10} parent=95 // pred_check
          %p859 = pneg %p457
        $region150: #{decoder_forward.10} parent=95 // pred_check_branch
          %861 = sbr.rel (%p859) target = $region152
        $region151: #{decoder_forward.10} parent=95 // pred_region
          %863 = dma.done [#allocation24], 256
        $region152: #{decoder_forward.10} parent=95 // pred_fallthru
          _
        // Predicated region
        $region153: #{decoder_forward.10} parent=95 // pred_check
          %p864 = pneg %p478
        $region154: #{decoder_forward.10} parent=95 // pred_check_branch
          %866 = sbr.rel (%p864) target = $region156
        $region155: #{decoder_forward.10} parent=95 // pred_region
          %868 = dma.done [#allocation24], 16
        $region156: #{decoder_forward.10} parent=95 // pred_fallthru
          _
        %p869 = scmp.lt.s32.totalorder %s49, 1
        %s870 = scalar_select %p869, %s49, 1
        %p871 = scmp.lt.s32.totalorder %s50, 0
        %s872 = scalar_select %p871, %s50, 0
        %s873 = sadd.s32 %s872, %s870
        %s874 = smul.addr %s873, 8
        %s875 = scalar_lea.vmem %s0, %s874
        %p876 = pneg %p80
        %p877 = pneg %p77
        %p878 = scmp.lt.s32.totalorder %s49, 1
        %s879 = scalar_select %p878, %s49, 1
        %s880 = smul.addr %s879, 2
        %s881 = smul.addr %s880, 8
        %s882 = scalar_lea.vmem %s1, %s881
        %p883 = pneg %p106
        %p884 = pneg %p103
        %s885 = sand.u32 %s119, 1
        %s886 = scalar_lea.sflag [#allocation3], %s885
        %s887 = sand.u32 %s119, 1
        %s888 = smul.addr %s887, 8
        %s889 = scalar_lea.vmem [#allocation2], %s888
        %p890 = pneg %p132
        %p891 = pneg %p129
        %p892 = scmp.lt.s32.totalorder %s49, 1
        %s893 = scalar_select %p892, %s49, 1
        %s894 = scalar_lea.vmem %s3, %s893
        %p895 = pneg %p158
        %p896 = pneg %p155
        %p897 = scmp.lt.s32.totalorder %s49, 1
        %s898 = scalar_select %p897, %s49, 1
        %s899 = scalar_lea.vmem %s4, %s898
        %p900 = pneg %p184
        %p901 = pneg %p181
        %p902 = pneg %p205
        %p903 = pneg %p202
        %p904 = pneg %p226
        %p905 = pneg %p223
        %p906 = pneg %p247
        %p907 = pneg %p244
        %p908 = pneg %p268
        %p909 = pneg %p265
        %p910 = pneg %p289
        %p911 = pneg %p286
        %p912 = pneg %p310
        %p913 = pneg %p307
        %p914 = pneg %p331
        %p915 = pneg %p328
        %p916 = pneg %p352
        %p917 = pneg %p349
        %p918 = pneg %p373
        %p919 = pneg %p370
        %p920 = pneg %p394
        %p921 = pneg %p391
        %p922 = pneg %p415
        %p923 = pneg %p412
        %p924 = pneg %p436
        %p925 = pneg %p433
        %p926 = pneg %p457
        %p927 = pneg %p454
        %p928 = pneg %p478
        %p929 = pneg %p475
        %p930 = pneg %p506
        %p931 = pneg %p503
        %p932 = scmp.lt.s32.totalorder %s49, 1
        %s933 = scalar_select %p932, %s49, 1
        %p934 = scmp.lt.s32.totalorder %s50, 0
        %s935 = scalar_select %p934, %s50, 0
        %s936 = sadd.s32 %s935, %s933
        %s937 = smul.addr %s936, 8
        %s938 = scalar_lea.vmem %s19, %s937
        %p939 = pneg %p534
        %p940 = pneg %p531
        %s941 = sand.u32 %s521, 1
        %s942 = scalar_lea.sflag [#allocation4], %s941
        %s943 = sand.u32 %s521, 1
        %s944 = smul.addr %s943, 8
        %s945 = scalar_lea.vmem [#allocation26], %s944
        %p946 = scmp.lt.s32.totalorder %s49, 1
        %s947 = scalar_select %p946, %s49, 1
        %p948 = scmp.lt.s32.totalorder %s50, 0
        %s949 = scalar_select %p948, %s50, 0
        %s950 = sadd.s32 %s949, %s947
        %s951 = smul.addr %s950, 8
        %s952 = scalar_lea.vmem %s0, %s951
        %p953 = scmp.lt.s32.totalorder %s49, 1
        %s954 = scalar_select %p953, %s49, 1
        %s955 = smul.addr %s954, 2
        %s956 = smul.addr %s955, 8
        %s957 = scalar_lea.vmem %s1, %s956
        %p958 = scmp.lt.s32.totalorder %s49, 1
        %s959 = scalar_select %p958, %s49, 1
        %s960 = scalar_lea.vmem %s3, %s959
        %p961 = scmp.lt.s32.totalorder %s49, 1
        %s962 = scalar_select %p961, %s49, 1
        %s963 = scalar_lea.vmem %s4, %s962
        %p964 = scmp.lt.s32.totalorder %s49, 1
        %s965 = scalar_select %p964, %s49, 1
        %p966 = scmp.lt.s32.totalorder %s50, 0
        %s967 = scalar_select %p966, %s50, 0
        %s968 = sadd.s32 %s967, %s965
        %s969 = smul.addr %s968, 8
        %s970 = scalar_lea.vmem %s19, %s969
        %v972 = vld [vmem:[%s952] sm:$0xff]
        %vm973 = vcmask 261120
        %v974 = vsel %vm973, %v972, 0.0
        %975 = vadd.xlane.f32.xlu0 %v974
        %v976 = vpop.xlane.xlu0 %975
        %v977 = vrcp.pop 32.0
        %v978 = vmul.f32 32.0, %v977
        %v979 = vsub.f32 1.0, %v978
        %v980 = vmul.f32 %v977, %v979
        %v981 = vadd.f32 %v977, %v980
        %vm982 = vweird.f32 %v977
        %v983 = vsel %vm982, %v977, %v981
        %v984 = vmul.f32 %v976, %v983
        %v985 = vsub.f32 %v972, %v984
        %v986 = vmul.f32 %v985, %v985
        %v987 = vsel %vm973, %v986, 0.0
        %988 = vadd.xlane.f32.xlu0 %v987
        %v989 = vpop.xlane.xlu0 %988
        %v990 = vmul.f32 %v989, %v983
        %v991 = vadd.f32 %v990, 1e-06
        %v992 = vrsqrt.pop %v991
        %v993 = vmul.f32 %v992, %v991
        %v994 = vmul.f32 %v993, %v992
        %v995 = vmul.f32 0.5, %v994
        %v996 = vsub.f32 1.5, %v995
        %v997 = vmul.f32 %v992, %v996
        %vm998 = vweird.f32 %v991
        %vm999 = vweird.f32 %v992
        %vm1000 = vmor %vm998, %vm999
        %v1001 = vsel %vm1000, %v992, %v997
        %v1002 = vmul.f32 %v985, %v1001
        %v1003 = vld [vmem:[#allocation5] sm:$0x1]
        %v1005 = vperm.slane %v1003, 0
        %v1007 = vmul.f32 %v1002, %v1005
        %v1008 = vld [vmem:[#allocation7] sm:$0x1]
        %v1010 = vperm.slane %v1008, 0
        %v1012 = vadd.f32 %v1007, %v1010
        %v1013 = vpack.c.bf16 %v1012, %v1012
        %v1014 = vld [vmem:[%s957] sm:$0xff]
        %v1015 = vld [vmem:[%s957 + $0x8] sm:$0xff]
        %v1016 = vld [vmem:[%s960] sm:$0x1]
        %v1017 = vpack.c.bf16 %v1015, %v1014
        %v1018 = vld [vmem:[#allocation8] sm:$0xf]
        %v1019 = vld [vmem:[#allocation8 + $0x4] sm:$0xf]
        %v1020 = vld [vmem:[#allocation8 + $0x8] sm:$0xf]
        %v1021 = vld [vmem:[#allocation8 + $0xc] sm:$0xf]
        %v1022 = vld [vmem:[#allocation10] sm:$0x1]
        %v1024 = vperm.slane %v1022, 0
        %v1030 = vunpack.c.l.b16 %v1018
        %v1031 = vunpack.c.l.b16 %v1019
        %v1032 = vunpack.c.l.b16 %v1020
        %v1033 = vunpack.c.l.b16 %v1021
        %v1034 = vpack.c.b16 %v1031, %v1030
        %v1035 = vpack.c.b16 %v1033, %v1032
        %v1039 = vsel %vm973, %v1013, 0
        %1041 = vmatpush.bf16.msra.mxu0 0
        %1042 = vmatpush.bf16.msra.mxu0 0
        %1043 = vmatpush.bf16.msra.mxu0 0
        %1044 = vmatpush.bf16.msra.mxu0 0
        %1045 = vmatpush.bf16.msra.mxu0 0
        %1046 = vmatpush.bf16.msra.mxu0 0
        %1047 = vmatpush.bf16.msra.mxu0 %v1035
        %1048 = vmatpush.bf16.msra.mxu0 %v1034
        %1049 = vmatmul.bf16.gmra.mxu0 %v1039
        %v1050 = vpop.f32.mrf.mxu0
        %v1051 = vadd.f32 %v1024, %v1050
        %v1052 = vpop.f32.mrf.mxu0
        %1053 = vdwg.mxu0
        %v1054 = vld [vmem:[#allocation11] sm:$0xf]
        %v1055 = vld [vmem:[#allocation11 + $0x4] sm:$0xf]
        %v1056 = vld [vmem:[#allocation11 + $0x8] sm:$0xf]
        %v1057 = vld [vmem:[#allocation11 + $0xc] sm:$0xf]
        %v1058 = vld [vmem:[#allocation13] sm:$0x1]
        %v1060 = vperm.slane %v1058, 0
        %v1066 = vunpack.c.l.b16 %v1054
        %v1067 = vunpack.c.l.b16 %v1055
        %v1068 = vunpack.c.l.b16 %v1056
        %v1069 = vunpack.c.l.b16 %v1057
        %v1070 = vpack.c.b16 %v1067, %v1066
        %v1071 = vpack.c.b16 %v1069, %v1068
        %v1075 = vsel %vm973, %v1017, 0
        %1077 = vmatpush.bf16.msra.mxu0 0
        %1078 = vmatpush.bf16.msra.mxu0 0
        %1079 = vmatpush.bf16.msra.mxu0 0
        %1080 = vmatpush.bf16.msra.mxu0 0
        %1081 = vmatpush.bf16.msra.mxu0 0
        %1082 = vmatpush.bf16.msra.mxu0 0
        %1083 = vmatpush.bf16.msra.mxu0 %v1071
        %1084 = vmatpush.bf16.msra.mxu0 %v1070
        %1085 = vmatmul.bf16.gmra.mxu0 %v1075
        %v1086 = vpop.f32.mrf.mxu0
        %v1087 = vadd.f32 %v1060, %v1086
        %v1088 = vpop.f32.mrf.mxu0
        %v1089 = vadd.f32 %v1060, %v1088
        %1090 = vdwg.mxu0
        %v1091 = vpack.c.bf16 %v1051, %v1051
        %v1092 = vpack.c.bf16 %v1089, %v1087
        %vm1093 = vcmask 64512
        %v1095 = vsel %vm1093, %v1091, 0
        %v1098 = vsel %vm1093, %v1092, 0
        %1100 = vmatpush.bf16.xpose.msra.mxu0 0
        %1101 = vmatpush.bf16.xpose.msra.mxu0 0
        %1102 = vmatpush.bf16.xpose.msra.mxu0 0
        %1103 = vmatpush.bf16.xpose.msra.mxu0 0
        %1104 = vmatpush.bf16.xpose.msra.mxu0 0
        %1105 = vmatpush.bf16.xpose.msra.mxu0 0
        %1106 = vmatpush.bf16.xpose.msra.mxu0 0
        %1107 = vmatpush.bf16.xpose.msra.mxu0 %v1098
        %1108 = vmatmul.bf16.gmra.mxu0 %v1095
        %v1109 = vpop.f32.mrf.mxu0
        %v1110 = vadd.f32 0.0, %v1109
        %v1111 = vpop.f32.mrf.mxu0
        %1112 = vdwg.mxu0
        %v1113 = vmul.f32 %v1110, 0.35355338
        %v1115 = vperm.slane %v1016, 0
        %v1117 = vadd.f32 %v1113, %v1115
        %vm1118 = vcmask 130048
        %v1119 = vsel %vm1118, %v1117, -inf
        %1120 = vmax.xlane.f32.xlu0 %v1119
        %v1121 = vpop.xlane.xlu0 %1120
        %v1122 = vsub.f32 %v1117, %v1121
        %v1123 = vmul.f32 %v1122, 1.442695
        %v1124 = vpow.pop %v1123
        %v1125 = vsel %vm1118, %v1124, 0.0
        %1126 = vadd.xlane.f32.xlu0 %v1125
        %v1127 = vpop.xlane.xlu0 %1126
        %v1128 = vrcp.pop %v1127
        %v1129 = vmul.f32 %v1127, %v1128
        %v1130 = vsub.f32 1.0, %v1129
        %v1131 = vmul.f32 %v1128, %v1130
        %v1132 = vadd.f32 %v1128, %v1131
        %vm1133 = vweird.f32 %v1127
        %vm1134 = vweird.f32 %v1128
        %vm1135 = vmor %vm1133, %vm1134
        %v1136 = vsel %vm1135, %v1128, %v1132
        %v1137 = vand.u32 2147483647, %v1127
        %vm1138 = vcmp.eq.f32.partialorder %v1137, 8.507059e+37
        %v1139 = vand.u32 %v1127, 2147483648
        %v1140 = vor.u32 1.1754944e-38, %v1139
        %v1141 = vsel %vm1138, %v1140, %v1136
        %v1142 = vmul.f32 %v1124, %v1141
        %v1143 = vpack.c.bf16 %v1142, %v1142
        %1145 = vrot.lane.b32.xlu0 %v1092, 96
        %v1146 = vpop.permute.xlu0 %1145
        %v1149 = vsel %vm1118, %v1143, 0
        %1151 = vmatpush.bf16.msra.mxu0 0
        %1152 = vmatpush.bf16.msra.mxu0 0
        %1153 = vmatpush.bf16.msra.mxu0 0
        %1154 = vmatpush.bf16.msra.mxu0 0
        %1155 = vmatpush.bf16.msra.mxu0 0
        %1156 = vmatpush.bf16.msra.mxu0 0
        %1157 = vmatpush.bf16.msra.mxu0 0
        %1158 = vmatpush.bf16.msra.mxu0 %v1146
        %1159 = vmatmul.bf16.gmra.mxu0 %v1149
        %v1160 = vpop.f32.mrf.mxu0
        %v1161 = vadd.f32 0.0, %v1160
        %v1162 = vpop.f32.mrf.mxu0
        %1163 = vdwg.mxu0
        %v1164 = vpack.c.bf16 %v1161, %v1161
        %1166 = vrot.lane.b32.xlu0 %v1091, 120
        %v1167 = vpop.permute.xlu0 %1166
        %1168 = vrot.lane.b32.xlu0 %v1092, 120
        %v1169 = vpop.permute.xlu0 %1168
        %v1171 = vsel %vm1093, %v1167, 0
        %v1174 = vsel %vm1093, %v1169, 0
        %1176 = vmatpush.bf16.xpose.msra.mxu0 0
        %1177 = vmatpush.bf16.xpose.msra.mxu0 0
        %1178 = vmatpush.bf16.xpose.msra.mxu0 0
        %1179 = vmatpush.bf16.xpose.msra.mxu0 0
        %1180 = vmatpush.bf16.xpose.msra.mxu0 0
        %1181 = vmatpush.bf16.xpose.msra.mxu0 0
        %1182 = vmatpush.bf16.xpose.msra.mxu0 0
        %1183 = vmatpush.bf16.xpose.msra.mxu0 %v1174
        %1184 = vmatmul.bf16.gmra.mxu0 %v1171
        %v1185 = vpop.f32.mrf.mxu0
        %v1186 = vadd.f32 0.0, %v1185
        %v1187 = vpop.f32.mrf.mxu0
        %1188 = vdwg.mxu0
        %v1189 = vmul.f32 %v1186, 0.35355338
        %v1190 = vadd.f32 %v1189, %v1115
        %v1191 = vsel %vm1118, %v1190, -inf
        %1192 = vmax.xlane.f32.xlu0 %v1191
        %v1193 = vpop.xlane.xlu0 %1192
        %v1194 = vsub.f32 %v1190, %v1193
        %v1195 = vmul.f32 %v1194, 1.442695
        %v1196 = vpow.pop %v1195
        %v1197 = vsel %vm1118, %v1196, 0.0
        %1198 = vadd.xlane.f32.xlu0 %v1197
        %v1199 = vpop.xlane.xlu0 %1198
        %v1200 = vrcp.pop %v1199
        %v1201 = vmul.f32 %v1199, %v1200
        %v1202 = vsub.f32 1.0, %v1201
        %v1203 = vmul.f32 %v1200, %v1202
        %v1204 = vadd.f32 %v1200, %v1203
        %vm1205 = vweird.f32 %v1199
        %vm1206 = vweird.f32 %v1200
        %vm1207 = vmor %vm1205, %vm1206
        %v1208 = vsel %vm1207, %v1200, %v1204
        %v1209 = vand.u32 2147483647, %v1199
        %vm1210 = vcmp.eq.f32.partialorder %v1209, 8.507059e+37
        %v1211 = vand.u32 %v1199, 2147483648
        %v1212 = vor.u32 1.1754944e-38, %v1211
        %v1213 = vsel %vm1210, %v1212, %v1208
        %v1214 = vmul.f32 %v1196, %v1213
        %v1215 = vadd.f32 %v1142, %v1214
        %v1216 = vpack.c.bf16 %v1214, %v1214
        %1217 = vrot.lane.b32.xlu0 %v1092, 88
        %v1218 = vpop.permute.xlu0 %1217
        %v1221 = vsel %vm1118, %v1216, 0
        %1223 = vmatpush.bf16.msra.mxu0 0
        %1224 = vmatpush.bf16.msra.mxu0 0
        %1225 = vmatpush.bf16.msra.mxu0 0
        %1226 = vmatpush.bf16.msra.mxu0 0
        %1227 = vmatpush.bf16.msra.mxu0 0
        %1228 = vmatpush.bf16.msra.mxu0 0
        %1229 = vmatpush.bf16.msra.mxu0 0
        %1230 = vmatpush.bf16.msra.mxu0 %v1218
        %1231 = vmatmul.bf16.gmra.mxu0 %v1221
        %v1232 = vpop.f32.mrf.mxu0
        %v1233 = vadd.f32 0.0, %v1232
        %v1234 = vpop.f32.mrf.mxu0
        %1235 = vdwg.mxu0
        %v1236 = vpack.c.bf16 %v1233, %v1233
        %1237 = vrot.lane.b32.xlu0 %v1091, 112
        %v1238 = vpop.permute.xlu0 %1237
        %1239 = vrot.lane.b32.xlu0 %v1092, 112
        %v1240 = vpop.permute.xlu0 %1239
        %v1242 = vsel %vm1093, %v1238, 0
        %v1245 = vsel %vm1093, %v1240, 0
        %1247 = vmatpush.bf16.xpose.msra.mxu0 0
        %1248 = vmatpush.bf16.xpose.msra.mxu0 0
        %1249 = vmatpush.bf16.xpose.msra.mxu0 0
        %1250 = vmatpush.bf16.xpose.msra.mxu0 0
        %1251 = vmatpush.bf16.xpose.msra.mxu0 0
        %1252 = vmatpush.bf16.xpose.msra.mxu0 0
        %1253 = vmatpush.bf16.xpose.msra.mxu0 0
        %1254 = vmatpush.bf16.xpose.msra.mxu0 %v1245
        %1255 = vmatmul.bf16.gmra.mxu0 %v1242
        %v1256 = vpop.f32.mrf.mxu0
        %v1257 = vadd.f32 0.0, %v1256
        %v1258 = vpop.f32.mrf.mxu0
        %1259 = vdwg.mxu0
        %v1260 = vmul.f32 %v1257, 0.35355338
        %v1261 = vadd.f32 %v1260, %v1115
        %v1262 = vsel %vm1118, %v1261, -inf
        %1263 = vmax.xlane.f32.xlu0 %v1262
        %v1264 = vpop.xlane.xlu0 %1263
        %v1265 = vsub.f32 %v1261, %v1264
        %v1266 = vmul.f32 %v1265, 1.442695
        %v1267 = vpow.pop %v1266
        %v1268 = vsel %vm1118, %v1267, 0.0
        %1269 = vadd.xlane.f32.xlu0 %v1268
        %v1270 = vpop.xlane.xlu0 %1269
        %v1271 = vrcp.pop %v1270
        %v1272 = vmul.f32 %v1270, %v1271
        %v1273 = vsub.f32 1.0, %v1272
        %v1274 = vmul.f32 %v1271, %v1273
        %v1275 = vadd.f32 %v1271, %v1274
        %vm1276 = vweird.f32 %v1270
        %vm1277 = vweird.f32 %v1271
        %vm1278 = vmor %vm1276, %vm1277
        %v1279 = vsel %vm1278, %v1271, %v1275
        %v1280 = vand.u32 2147483647, %v1270
        %vm1281 = vcmp.eq.f32.partialorder %v1280, 8.507059e+37
        %v1282 = vand.u32 %v1270, 2147483648
        %v1283 = vor.u32 1.1754944e-38, %v1282
        %v1284 = vsel %vm1281, %v1283, %v1279
        %v1285 = vmul.f32 %v1267, %v1284
        %v1286 = vadd.f32 %v1215, %v1285
        %v1287 = vpack.c.bf16 %v1285, %v1285
        %1288 = vrot.lane.b32.xlu0 %v1092, 80
        %v1289 = vpop.permute.xlu0 %1288
        %v1292 = vsel %vm1118, %v1287, 0
        %1294 = vmatpush.bf16.msra.mxu0 0
        %1295 = vmatpush.bf16.msra.mxu0 0
        %1296 = vmatpush.bf16.msra.mxu0 0
        %1297 = vmatpush.bf16.msra.mxu0 0
        %1298 = vmatpush.bf16.msra.mxu0 0
        %1299 = vmatpush.bf16.msra.mxu0 0
        %1300 = vmatpush.bf16.msra.mxu0 0
        %1301 = vmatpush.bf16.msra.mxu0 %v1289
        %1302 = vmatmul.bf16.gmra.mxu0 %v1292
        %v1303 = vpop.f32.mrf.mxu0
        %v1304 = vadd.f32 0.0, %v1303
        %v1305 = vpop.f32.mrf.mxu0
        %1306 = vdwg.mxu0
        %v1307 = vpack.c.bf16 %v1304, %v1304
        %1308 = vrot.lane.b32.xlu0 %v1091, 104
        %v1309 = vpop.permute.xlu0 %1308
        %1310 = vrot.lane.b32.xlu0 %v1092, 104
        %v1311 = vpop.permute.xlu0 %1310
        %v1313 = vsel %vm1093, %v1309, 0
        %v1316 = vsel %vm1093, %v1311, 0
        %1318 = vmatpush.bf16.xpose.msra.mxu0 0
        %1319 = vmatpush.bf16.xpose.msra.mxu0 0
        %1320 = vmatpush.bf16.xpose.msra.mxu0 0
        %1321 = vmatpush.bf16.xpose.msra.mxu0 0
        %1322 = vmatpush.bf16.xpose.msra.mxu0 0
        %1323 = vmatpush.bf16.xpose.msra.mxu0 0
        %1324 = vmatpush.bf16.xpose.msra.mxu0 0
        %1325 = vmatpush.bf16.xpose.msra.mxu0 %v1316
        %1326 = vmatmul.bf16.gmra.mxu0 %v1313
        %v1327 = vpop.f32.mrf.mxu0
        %v1328 = vadd.f32 0.0, %v1327
        %v1329 = vpop.f32.mrf.mxu0
        %1330 = vdwg.mxu0
        %v1331 = vmul.f32 %v1328, 0.35355338
        %v1332 = vadd.f32 %v1331, %v1115
        %v1333 = vsel %vm1118, %v1332, -inf
        %1334 = vmax.xlane.f32.xlu0 %v1333
        %v1335 = vpop.xlane.xlu0 %1334
        %v1336 = vsub.f32 %v1332, %v1335
        %v1337 = vmul.f32 %v1336, 1.442695
        %v1338 = vpow.pop %v1337
        %v1339 = vsel %vm1118, %v1338, 0.0
        %1340 = vadd.xlane.f32.xlu0 %v1339
        %v1341 = vpop.xlane.xlu0 %1340
        %v1342 = vrcp.pop %v1341
        %v1343 = vmul.f32 %v1341, %v1342
        %v1344 = vsub.f32 1.0, %v1343
        %v1345 = vmul.f32 %v1342, %v1344
        %v1346 = vadd.f32 %v1342, %v1345
        %vm1347 = vweird.f32 %v1341
        %vm1348 = vweird.f32 %v1342
        %vm1349 = vmor %vm1347, %vm1348
        %v1350 = vsel %vm1349, %v1342, %v1346
        %v1351 = vand.u32 2147483647, %v1341
        %vm1352 = vcmp.eq.f32.partialorder %v1351, 8.507059e+37
        %v1353 = vand.u32 %v1341, 2147483648
        %v1354 = vor.u32 1.1754944e-38, %v1353
        %v1355 = vsel %vm1352, %v1354, %v1350
        %v1356 = vmul.f32 %v1338, %v1355
        %v1357 = vadd.f32 %v1286, %v1356
        %v1358 = vpack.c.bf16 %v1356, %v1356
        %1359 = vrot.lane.b32.xlu0 %v1092, 72
        %v1360 = vpop.permute.xlu0 %1359
        %v1363 = vsel %vm1118, %v1358, 0
        %1365 = vmatpush.bf16.msra.mxu0 0
        %1366 = vmatpush.bf16.msra.mxu0 0
        %1367 = vmatpush.bf16.msra.mxu0 0
        %1368 = vmatpush.bf16.msra.mxu0 0
        %1369 = vmatpush.bf16.msra.mxu0 0
        %1370 = vmatpush.bf16.msra.mxu0 0
        %1371 = vmatpush.bf16.msra.mxu0 0
        %1372 = vmatpush.bf16.msra.mxu0 %v1360
        %1373 = vmatmul.bf16.gmra.mxu0 %v1363
        %v1374 = vpop.f32.mrf.mxu0
        %v1375 = vadd.f32 0.0, %v1374
        %v1376 = vpop.f32.mrf.mxu0
        %1377 = vdwg.mxu0
        %v1378 = vpack.c.bf16 %v1375, %v1375
        %v1380 = vunpack.c.l.b16 %v1236
        %v1381 = vpack.c.b16 %v1380, %v1380
        %1382 = vrot.lane.b32.xlu0 %v1381, 8
        %v1383 = vpop.permute.xlu0 %1382
        %v1385 = vunpack.c.l.b16 %v1307
        %v1386 = vpack.c.b16 %v1385, %v1385
        %1387 = vrot.lane.b32.xlu0 %v1386, 16
        %v1388 = vpop.permute.xlu0 %1387
        %v1390 = vunpack.c.l.b16 %v1378
        %v1391 = vpack.c.b16 %v1390, %v1390
        %1392 = vrot.lane.b32.xlu0 %v1391, 24
        %v1393 = vpop.permute.xlu0 %1392
        %v1396 = vsel %vm1093, %v1164, %v1383
        %v1398 = vsel %vm1118, %v1396, %v1388
        %vm1399 = vcmask 195584
        %v1401 = vsel %vm1399, %v1398, %v1393
        %v1402 = vld [vmem:[#allocation14] sm:$0xf]
        %v1403 = vld [vmem:[#allocation14 + $0x4] sm:$0xf]
        %v1404 = vld [vmem:[#allocation14 + $0x8] sm:$0xf]
        %v1405 = vld [vmem:[#allocation14 + $0xc] sm:$0xf]
        %v1406 = vld [vmem:[#allocation16] sm:$0x1]
        %v1408 = vperm.slane %v1406, 0
        %v1414 = vunpack.c.l.b16 %v1402
        %v1415 = vunpack.c.l.b16 %v1403
        %v1416 = vunpack.c.l.b16 %v1404
        %v1417 = vunpack.c.l.b16 %v1405
        %v1418 = vpack.c.b16 %v1415, %v1414
        %v1419 = vpack.c.b16 %v1417, %v1416
        %v1422 = vsel %vm973, %v1401, 0
        %1424 = vmatpush.bf16.msra.mxu0 0
        %1425 = vmatpush.bf16.msra.mxu0 0
        %1426 = vmatpush.bf16.msra.mxu0 0
        %1427 = vmatpush.bf16.msra.mxu0 0
        %1428 = vmatpush.bf16.msra.mxu0 0
        %1429 = vmatpush.bf16.msra.mxu0 0
        %1430 = vmatpush.bf16.msra.mxu0 %v1419
        %1431 = vmatpush.bf16.msra.mxu0 %v1418
        %1432 = vmatmul.bf16.gmra.mxu0 %v1422
        %v1433 = vpop.f32.mrf.mxu0
        %v1434 = vadd.f32 %v1408, %v1433
        %v1435 = vpop.f32.mrf.mxu0
        %1436 = vdwg.mxu0
        %v1437 = vmul.f32 %v1357, 0.25
        %v1438 = vadd.f32 %v972, %v1434
        %1439 = vst.msk [vmem:[%s945] sm:$0xff] %vm1118, %v1437
        %v1440 = vld [vmem:[%s793] sm:$0xff]
        %v1441 = vld [vmem:[%s963] sm:$0x1]
        %v1442 = vpack.c.bf16 %v1440, %v1440
        %v1443 = vld [vmem:[#allocation17] sm:$0xf]
        %v1444 = vld [vmem:[#allocation17 + $0x4] sm:$0xf]
        %v1445 = vld [vmem:[#allocation17 + $0x8] sm:$0xf]
        %v1446 = vld [vmem:[#allocation17 + $0xc] sm:$0xf]
        %v1447 = vld [vmem:[#allocation19] sm:$0x1]
        %v1449 = vperm.slane %v1447, 0
        %v1455 = vunpack.c.l.b16 %v1443
        %v1456 = vunpack.c.l.b16 %v1444
        %v1457 = vunpack.c.l.b16 %v1445
        %v1458 = vunpack.c.l.b16 %v1446
        %v1459 = vpack.c.b16 %v1456, %v1455
        %v1460 = vpack.c.b16 %v1458, %v1457
        %1463 = vmatpush.bf16.msra.mxu0 0
        %1464 = vmatpush.bf16.msra.mxu0 0
        %1465 = vmatpush.bf16.msra.mxu0 0
        %1466 = vmatpush.bf16.msra.mxu0 0
        %1467 = vmatpush.bf16.msra.mxu0 0
        %1468 = vmatpush.bf16.msra.mxu0 0
        %1469 = vmatpush.bf16.msra.mxu0 %v1460
        %1470 = vmatpush.bf16.msra.mxu0 %v1459
        %1471 = vmatmul.bf16.gmra.mxu0 %v1039
        %v1472 = vpop.f32.mrf.mxu0
        %v1473 = vadd.f32 %v1449, %v1472
        %v1474 = vpop.f32.mrf.mxu0
        %1475 = vdwg.mxu0
        %v1476 = vld [vmem:[#allocation20] sm:$0xf]
        %v1477 = vld [vmem:[#allocation20 + $0x4] sm:$0xf]
        %v1478 = vld [vmem:[#allocation20 + $0x8] sm:$0xf]
        %v1479 = vld [vmem:[#allocation20 + $0xc] sm:$0xf]
        %v1480 = vld [vmem:[#allocation22] sm:$0x1]
        %v1482 = vperm.slane %v1480, 0
        %v1488 = vunpack.c.l.b16 %v1476
        %v1489 = vunpack.c.l.b16 %v1477
        %v1490 = vunpack.c.l.b16 %v1478
        %v1491 = vunpack.c.l.b16 %v1479
        %v1492 = vpack.c.b16 %v1489, %v1488
        %v1493 = vpack.c.b16 %v1491, %v1490
        %v1497 = vsel %vm973, %v1442, 0
        %1499 = vmatpush.bf16.msra.mxu0 0
        %1500 = vmatpush.bf16.msra.mxu0 0
        %1501 = vmatpush.bf16.msra.mxu0 0
        %1502 = vmatpush.bf16.msra.mxu0 0
        %1503 = vmatpush.bf16.msra.mxu0 0
        %1504 = vmatpush.bf16.msra.mxu0 0
        %1505 = vmatpush.bf16.msra.mxu0 %v1493
        %1506 = vmatpush.bf16.msra.mxu0 %v1492
        %1507 = vmatmul.bf16.gmra.mxu0 %v1497
        %v1508 = vpop.f32.mrf.mxu0
        %v1509 = vadd.f32 %v1482, %v1508
        %v1510 = vpop.f32.mrf.mxu0
        %1511 = vdwg.mxu0
        %v1512 = vpack.c.bf16 %v1473, %v1473
        %v1513 = vpack.c.bf16 %v1509, %v1509
        %v1515 = vsel %vm1093, %v1512, 0
        %v1518 = vsel %vm1093, %v1513, 0
        %1520 = vmatpush.bf16.xpose.msra.mxu0 0
        %1521 = vmatpush.bf16.xpose.msra.mxu0 0
        %1522 = vmatpush.bf16.xpose.msra.mxu0 0
        %1523 = vmatpush.bf16.xpose.msra.mxu0 0
        %1524 = vmatpush.bf16.xpose.msra.mxu0 0
        %1525 = vmatpush.bf16.xpose.msra.mxu0 0
        %1526 = vmatpush.bf16.xpose.msra.mxu0 0
        %1527 = vmatpush.bf16.xpose.msra.mxu0 %v1518
        %1528 = vmatmul.bf16.gmra.mxu0 %v1515
        %v1529 = vpop.f32.mrf.mxu0
        %v1530 = vadd.f32 0.0, %v1529
        %v1531 = vpop.f32.mrf.mxu0
        %1532 = vdwg.mxu0
        %v1533 = vmul.f32 %v1530, 0.35355338
        %v1535 = vperm.slane %v1441, 0
        %v1537 = vadd.f32 %v1533, %v1535
        %v1538 = vsel %vm1093, %v1537, -inf
        %1539 = vmax.xlane.f32.xlu0 %v1538
        %v1540 = vpop.xlane.xlu0 %1539
        %v1541 = vsub.f32 %v1537, %v1540
        %v1542 = vmul.f32 %v1541, 1.442695
        %v1543 = vpow.pop %v1542
        %v1544 = vsel %vm1093, %v1543, 0.0
        %1545 = vadd.xlane.f32.xlu0 %v1544
        %v1546 = vpop.xlane.xlu0 %1545
        %v1547 = vrcp.pop %v1546
        %v1548 = vmul.f32 %v1543, %v1547
        %v1549 = vpack.c.bf16 %v1548, %v1548
        %1551 = vrot.lane.b32.xlu0 %v1513, 96
        %v1552 = vpop.permute.xlu0 %1551
        %v1554 = vsel %vm1093, %v1549, 0
        %vm1556 = vcmask 1043456
        %v1558 = vsel %vm1556, %v1552, 0
        %1560 = vmatpush.bf16.msra.mxu0 0
        %1561 = vmatpush.bf16.msra.mxu0 0
        %1562 = vmatpush.bf16.msra.mxu0 0
        %1563 = vmatpush.bf16.msra.mxu0 0
        %1564 = vmatpush.bf16.msra.mxu0 0
        %1565 = vmatpush.bf16.msra.mxu0 0
        %1566 = vmatpush.bf16.msra.mxu0 0
        %1567 = vmatpush.bf16.msra.mxu0 %v1558
        %1568 = vmatmul.bf16.gmra.mxu0 %v1554
        %v1569 = vpop.f32.mrf.mxu0
        %v1570 = vadd.f32 0.0, %v1569
        %v1571 = vpop.f32.mrf.mxu0
        %1572 = vdwg.mxu0
        %v1573 = vpack.c.bf16 %v1570, %v1570
        %1575 = vrot.lane.b32.xlu0 %v1512, 120
        %v1576 = vpop.permute.xlu0 %1575
        %1577 = vrot.lane.b32.xlu0 %v1513, 120
        %v1578 = vpop.permute.xlu0 %1577
        %v1580 = vsel %vm1093, %v1576, 0
        %v1583 = vsel %vm1093, %v1578, 0
        %1585 = vmatpush.bf16.xpose.msra.mxu0 0
        %1586 = vmatpush.bf16.xpose.msra.mxu0 0
        %1587 = vmatpush.bf16.xpose.msra.mxu0 0
        %1588 = vmatpush.bf16.xpose.msra.mxu0 0
        %1589 = vmatpush.bf16.xpose.msra.mxu0 0
        %1590 = vmatpush.bf16.xpose.msra.mxu0 0
        %1591 = vmatpush.bf16.xpose.msra.mxu0 0
        %1592 = vmatpush.bf16.xpose.msra.mxu0 %v1583
        %1593 = vmatmul.bf16.gmra.mxu0 %v1580
        %v1594 = vpop.f32.mrf.mxu0
        %v1595 = vadd.f32 0.0, %v1594
        %v1596 = vpop.f32.mrf.mxu0
        %1597 = vdwg.mxu0
        %v1598 = vmul.f32 %v1595, 0.35355338
        %v1599 = vadd.f32 %v1598, %v1535
        %v1600 = vsel %vm1093, %v1599, -inf
        %1601 = vmax.xlane.f32.xlu0 %v1600
        %v1602 = vpop.xlane.xlu0 %1601
        %v1603 = vsub.f32 %v1599, %v1602
        %v1604 = vmul.f32 %v1603, 1.442695
        %v1605 = vpow.pop %v1604
        %v1606 = vsel %vm1093, %v1605, 0.0
        %1607 = vadd.xlane.f32.xlu0 %v1606
        %v1608 = vpop.xlane.xlu0 %1607
        %v1609 = vrcp.pop %v1608
        %v1610 = vmul.f32 %v1605, %v1609
        %v1611 = vpack.c.bf16 %v1610, %v1610
        %1612 = vrot.lane.b32.xlu0 %v1513, 88
        %v1613 = vpop.permute.xlu0 %1612
        %v1615 = vsel %vm1093, %v1611, 0
        %v1618 = vsel %vm1556, %v1613, 0
        %1620 = vmatpush.bf16.msra.mxu0 0
        %1621 = vmatpush.bf16.msra.mxu0 0
        %1622 = vmatpush.bf16.msra.mxu0 0
        %1623 = vmatpush.bf16.msra.mxu0 0
        %1624 = vmatpush.bf16.msra.mxu0 0
        %1625 = vmatpush.bf16.msra.mxu0 0
        %1626 = vmatpush.bf16.msra.mxu0 0
        %1627 = vmatpush.bf16.msra.mxu0 %v1618
        %1628 = vmatmul.bf16.gmra.mxu0 %v1615
        %v1629 = vpop.f32.mrf.mxu0
        %v1630 = vadd.f32 0.0, %v1629
        %v1631 = vpop.f32.mrf.mxu0
        %1632 = vdwg.mxu0
        %v1633 = vpack.c.bf16 %v1630, %v1630
        %1634 = vrot.lane.b32.xlu0 %v1512, 112
        %v1635 = vpop.permute.xlu0 %1634
        %1636 = vrot.lane.b32.xlu0 %v1513, 112
        %v1637 = vpop.permute.xlu0 %1636
        %v1639 = vsel %vm1093, %v1635, 0
        %v1642 = vsel %vm1093, %v1637, 0
        %1644 = vmatpush.bf16.xpose.msra.mxu0 0
        %1645 = vmatpush.bf16.xpose.msra.mxu0 0
        %1646 = vmatpush.bf16.xpose.msra.mxu0 0
        %1647 = vmatpush.bf16.xpose.msra.mxu0 0
        %1648 = vmatpush.bf16.xpose.msra.mxu0 0
        %1649 = vmatpush.bf16.xpose.msra.mxu0 0
        %1650 = vmatpush.bf16.xpose.msra.mxu0 0
        %1651 = vmatpush.bf16.xpose.msra.mxu0 %v1642
        %1652 = vmatmul.bf16.gmra.mxu0 %v1639
        %v1653 = vpop.f32.mrf.mxu0
        %v1654 = vadd.f32 0.0, %v1653
        %v1655 = vpop.f32.mrf.mxu0
        %1656 = vdwg.mxu0
        %v1657 = vmul.f32 %v1654, 0.35355338
        %v1658 = vadd.f32 %v1657, %v1535
        %v1659 = vsel %vm1093, %v1658, -inf
        %1660 = vmax.xlane.f32.xlu0 %v1659
        %v1661 = vpop.xlane.xlu0 %1660
        %v1662 = vsub.f32 %v1658, %v1661
        %v1663 = vmul.f32 %v1662, 1.442695
        %v1664 = vpow.pop %v1663
        %v1665 = vsel %vm1093, %v1664, 0.0
        %1666 = vadd.xlane.f32.xlu0 %v1665
        %v1667 = vpop.xlane.xlu0 %1666
        %v1668 = vrcp.pop %v1667
        %v1669 = vmul.f32 %v1664, %v1668
        %v1670 = vpack.c.bf16 %v1669, %v1669
        %1671 = vrot.lane.b32.xlu0 %v1513, 80
        %v1672 = vpop.permute.xlu0 %1671
        %v1674 = vsel %vm1093, %v1670, 0
        %v1677 = vsel %vm1556, %v1672, 0
        %1679 = vmatpush.bf16.msra.mxu0 0
        %1680 = vmatpush.bf16.msra.mxu0 0
        %1681 = vmatpush.bf16.msra.mxu0 0
        %1682 = vmatpush.bf16.msra.mxu0 0
        %1683 = vmatpush.bf16.msra.mxu0 0
        %1684 = vmatpush.bf16.msra.mxu0 0
        %1685 = vmatpush.bf16.msra.mxu0 0
        %1686 = vmatpush.bf16.msra.mxu0 %v1677
        %1687 = vmatmul.bf16.gmra.mxu0 %v1674
        %v1688 = vpop.f32.mrf.mxu0
        %v1689 = vadd.f32 0.0, %v1688
        %v1690 = vpop.f32.mrf.mxu0
        %1691 = vdwg.mxu0
        %v1692 = vpack.c.bf16 %v1689, %v1689
        %1693 = vrot.lane.b32.xlu0 %v1512, 104
        %v1694 = vpop.permute.xlu0 %1693
        %1695 = vrot.lane.b32.xlu0 %v1513, 104
        %v1696 = vpop.permute.xlu0 %1695
        %v1698 = vsel %vm1093, %v1694, 0
        %v1701 = vsel %vm1093, %v1696, 0
        %1703 = vmatpush.bf16.xpose.msra.mxu0 0
        %1704 = vmatpush.bf16.xpose.msra.mxu0 0
        %1705 = vmatpush.bf16.xpose.msra.mxu0 0
        %1706 = vmatpush.bf16.xpose.msra.mxu0 0
        %1707 = vmatpush.bf16.xpose.msra.mxu0 0
        %1708 = vmatpush.bf16.xpose.msra.mxu0 0
        %1709 = vmatpush.bf16.xpose.msra.mxu0 0
        %1710 = vmatpush.bf16.xpose.msra.mxu0 %v1701
        %1711 = vmatmul.bf16.gmra.mxu0 %v1698
        %v1712 = vpop.f32.mrf.mxu0
        %v1713 = vadd.f32 0.0, %v1712
        %v1714 = vpop.f32.mrf.mxu0
        %1715 = vdwg.mxu0
        %v1716 = vmul.f32 %v1713, 0.35355338
        %v1717 = vadd.f32 %v1716, %v1535
        %v1718 = vsel %vm1093, %v1717, -inf
        %1719 = vmax.xlane.f32.xlu0 %v1718
        %v1720 = vpop.xlane.xlu0 %1719
        %v1721 = vsub.f32 %v1717, %v1720
        %v1722 = vmul.f32 %v1721, 1.442695
        %v1723 = vpow.pop %v1722
        %v1724 = vsel %vm1093, %v1723, 0.0
        %1725 = vadd.xlane.f32.xlu0 %v1724
        %v1726 = vpop.xlane.xlu0 %1725
        %v1727 = vrcp.pop %v1726
        %v1728 = vmul.f32 %v1723, %v1727
        %v1729 = vpack.c.bf16 %v1728, %v1728
        %1730 = vrot.lane.b32.xlu0 %v1513, 72
        %v1731 = vpop.permute.xlu0 %1730
        %v1733 = vsel %vm1093, %v1729, 0
        %v1736 = vsel %vm1556, %v1731, 0
        %1738 = vmatpush.bf16.msra.mxu0 0
        %1739 = vmatpush.bf16.msra.mxu0 0
        %1740 = vmatpush.bf16.msra.mxu0 0
        %1741 = vmatpush.bf16.msra.mxu0 0
        %1742 = vmatpush.bf16.msra.mxu0 0
        %1743 = vmatpush.bf16.msra.mxu0 0
        %1744 = vmatpush.bf16.msra.mxu0 0
        %1745 = vmatpush.bf16.msra.mxu0 %v1736
        %1746 = vmatmul.bf16.gmra.mxu0 %v1733
        %v1747 = vpop.f32.mrf.mxu0
        %v1748 = vadd.f32 0.0, %v1747
        %v1749 = vpop.f32.mrf.mxu0
        %1750 = vdwg.mxu0
        %v1751 = vpack.c.bf16 %v1748, %v1748
        %v1753 = vunpack.c.l.b16 %v1633
        %v1754 = vpack.c.b16 %v1753, %v1753
        %1755 = vrot.lane.b32.xlu0 %v1754, 8
        %v1756 = vpop.permute.xlu0 %1755
        %v1758 = vunpack.c.l.b16 %v1692
        %v1759 = vpack.c.b16 %v1758, %v1758
        %1760 = vrot.lane.b32.xlu0 %v1759, 16
        %v1761 = vpop.permute.xlu0 %1760
        %v1763 = vunpack.c.l.b16 %v1751
        %v1764 = vpack.c.b16 %v1763, %v1763
        %1765 = vrot.lane.b32.xlu0 %v1764, 24
        %v1766 = vpop.permute.xlu0 %1765
        %v1769 = vsel %vm1093, %v1573, %v1756
        %v1771 = vsel %vm1118, %v1769, %v1761
        %v1773 = vsel %vm1399, %v1771, %v1766
        %v1774 = vld [vmem:[#allocation23] sm:$0xf]
        %v1775 = vld [vmem:[#allocation23 + $0x4] sm:$0xf]
        %v1776 = vld [vmem:[#allocation23 + $0x8] sm:$0xf]
        %v1777 = vld [vmem:[#allocation23 + $0xc] sm:$0xf]
        %v1778 = vld [vmem:[#allocation25] sm:$0x1]
        %v1780 = vperm.slane %v1778, 0
        %v1786 = vunpack.c.l.b16 %v1774
        %v1787 = vunpack.c.l.b16 %v1775
        %v1788 = vunpack.c.l.b16 %v1776
        %v1789 = vunpack.c.l.b16 %v1777
        %v1790 = vpack.c.b16 %v1787, %v1786
        %v1791 = vpack.c.b16 %v1789, %v1788
        %v1794 = vsel %vm973, %v1773, 0
        %1796 = vmatpush.bf16.msra.mxu0 0
        %1797 = vmatpush.bf16.msra.mxu0 0
        %1798 = vmatpush.bf16.msra.mxu0 0
        %1799 = vmatpush.bf16.msra.mxu0 0
        %1800 = vmatpush.bf16.msra.mxu0 0
        %1801 = vmatpush.bf16.msra.mxu0 0
        %1802 = vmatpush.bf16.msra.mxu0 %v1791
        %1803 = vmatpush.bf16.msra.mxu0 %v1790
        %1804 = vmatmul.bf16.gmra.mxu0 %v1794
        %v1805 = vpop.f32.mrf.mxu0
        %v1806 = vadd.f32 %v1780, %v1805
        %v1807 = vpop.f32.mrf.mxu0
        %1808 = vdwg.mxu0
        %v1809 = vadd.f32 %v1438, %v1806
        %1810 = vst.msk [vmem:[%s970] sm:$0xff] %vm973, %v1809
        %p1811 = scmp.lt.s32.totalorder %s49, 1
        %s1812 = scalar_select %p1811, %s49, 1
        %p1813 = scmp.lt.s32.totalorder %s50, 0
        %s1814 = scalar_select %p1813, %s50, 0
        %s1815 = sadd.s32 %s1814, %s1812
        %s1816 = smul.addr %s1815, 8
        %s1817 = scalar_lea.vmem %s19, %s1816
        %s1818 = sand.u32 %s521, 1
        %s1819 = scalar_lea.sflag [#allocation4], %s1818
        %s1820 = sand.u32 %s521, 1
        %s1821 = smul.addr %s1820, 8
        %s1822 = scalar_lea.vmem [#allocation26], %s1821
        // Predicated region
        $region157: #{decoder_forward.10} parent=95 // pred_check
          %p1823 = pneg %p503
        $region158: #{decoder_forward.10} parent=95 // pred_check_branch
          %1825 = sbr.rel (%p1823) target = $region160
        $region159: #{decoder_forward.10} parent=95 // pred_region
          _
        $region160: #{decoder_forward.10} parent=95 // pred_fallthru
          _
        // Predicated region
        $region161: #{decoder_forward.10} parent=95 // pred_check
          %p1826 = pneg %p531
        $region162: #{decoder_forward.10} parent=95 // pred_check_branch
          %1828 = sbr.rel (%p1826) target = $region164
        $region163: #{decoder_forward.10} parent=95 // pred_region
          %1830 = vsyncadd %s1819, 0
          %s1831 = sadd.s32 %s50, %s49
          %s1832 = smul.addr %s1831, 8
          %s1833 = scalar_lea.hbm %s20, %s1832
          %s1835 = sshll.u32 %s1822, 4
          %s1836 = int_to_ptr.vmem [resolvable:$true] %s1835
          %s1837 = sshll.u32 %s1833, 4
          %s1838 = int_to_ptr.hbm [resolvable:$true] %s1837
          %1840 = dma.vmem_to_hbm [thread:$0]  %s1836, 128, %s1838, %s1819
        $region164: #{decoder_forward.10} parent=95 // pred_fallthru
          _
      $region96: #{decoder_forward.10} parent=5 // pred_fallthru
        _
      %p1841 = scmp.le.s32.totalorder 2, %s40
      // Predicated region
      $region165: #{decoder_forward.10} parent=5 // pred_check
        %p1842 = pneg %p1841
      $region166: #{decoder_forward.10} parent=5 // pred_check_branch
        %1844 = sbr.rel (%p1842) target = $region168
      $region167: #{decoder_forward.10} parent=5 // pred_region
        %s1845 = ssub.s32 %s40, 2
        // Predicated region
        $region169: #{decoder_forward.10} parent=167 // pred_check
          %p1846 = pneg %p509
        $region170: #{decoder_forward.10} parent=167 // pred_check_branch
          %1848 = sbr.rel (%p1846) target = $region172
        $region171: #{decoder_forward.10} parent=167 // pred_region
          %p1849 = scmp.lt.s32.totalorder %s51, 1
          %s1850 = scalar_select %p1849, %s51, 1
          %p1851 = scmp.lt.s32.totalorder %s52, 0
          %s1852 = scalar_select %p1851, %s52, 0
          %s1853 = sadd.s32 %s1852, %s1850
          %s1854 = smul.addr %s1853, 8
          %s1855 = scalar_lea.vmem %s19, %s1854
        $region172: #{decoder_forward.10} parent=167 // pred_fallthru
          _
        // Predicated region
        $region173: #{decoder_forward.10} parent=167 // pred_check
          %p1856 = pneg %p537
        $region174: #{decoder_forward.10} parent=167 // pred_check_branch
          %1858 = sbr.rel (%p1856) target = $region176
        $region175: #{decoder_forward.10} parent=167 // pred_region
          %s1859 = sand.u32 %s522, 1
          %s1860 = scalar_lea.sflag [#allocation4], %s1859
          %s1861 = sand.u32 %s522, 1
          %s1862 = smul.addr %s1861, 8
          %s1863 = scalar_lea.vmem [#allocation26], %s1862
          %1865 = dma.done %s1860, 128
        $region176: #{decoder_forward.10} parent=167 // pred_fallthru
          _
      $region168: #{decoder_forward.10} parent=5 // pred_fallthru
        _
    $region6: #{decoder_forward.10} parent=1 // loop_footer
      %s44 = sadd.s32 1, %s40
    $region7: #{decoder_forward.10} parent=1 // loop_footer_branch
      %39 = sbr.rel target = $region3
    $region8: #{decoder_forward.10} parent=1 // loop_exit
      _
    %1866 = vsyncpa [#allocation3], 1
    %s1867 = scalar_lea.sflag [#allocation3], 1
    %1868 = vsyncpa %s1867, 1
    %1869 = vsyncpa [#allocation6], 1
    %1870 = vsyncpa [#allocation9], 1
    %1871 = vsyncpa [#allocation12], 1
    %1872 = vsyncpa [#allocation15], 1
    %1873 = vsyncpa [#allocation18], 1
    %1874 = vsyncpa [#allocation21], 1
    %1875 = vsyncpa [#allocation24], 1
    %1876 = vsyncpa [#allocation4], 1
    %s1877 = scalar_lea.sflag [#allocation4], 1
    %1878 = vsyncpa %s1877, 1

</llo_original>
